<compile_context>
chip_gen: v6e
topology: v6e:2x2x1
jax: 0.10.0
libtpu: 0.0.40
codegen_flags: <defaults>
</compile_context>

<pallas_src>
import jax
import jax.numpy as jnp
from jax.experimental import pallas as pl
from jax.experimental.pallas import tpu as pltpu

GROUPS = 5
C = 120                     # total channels (in == out)
CG = C // GROUPS            # 24 channels per group
H = W = 28
HW = H * W                  # 784
KH = KW = 3
TAPS = KH * KW              # 9
CPAD = 128                  # lane-padded channel width per im2col tap block
KBIG = TAPS * CPAD          # 1152
EPS = 1e-5

# Flat, vertically-padded activation slab (spatial flattened on sublanes,
# channels on lanes): image pixel (i, j) lives at row BASE + i*W + j, all other
# rows / lanes are zero.  Tap (kh, kw) reads rows [BASE+d, BASE+d+HW) with
# d = (kh-1)*W + (kw-1) in {-29..29}.
BASE = 32
PAD_ROWS = 848              # >= BASE + HW + 29, multiple of 8


def bn_relu_gconv_kernel(x_ref, w_ref, gamma_ref, beta_ref, o_ref,
                         pad_ref, col_ref):
    # x_ref:     (HW, C)       activations (spatial x channels)
    # w_ref:     (KBIG, C)     im2col weight, per-tap block-diagonal blocks
    # gamma_ref: (1, C), beta_ref: (1, C)
    # o_ref:     (HW, C)
    # pad_ref:   VMEM (PAD_ROWS, CPAD)  zero-padded BN+ReLU slab
    # col_ref:   VMEM (HW, KBIG)        im2col matrix

    # ---- BatchNorm2d (training-mode batch statistics) + ReLU, all channels.
    x = x_ref[...]
    mean = jnp.mean(x, axis=0, keepdims=True)
    xc = x - mean
    var = jnp.mean(xc * xc, axis=0, keepdims=True)            # biased variance
    scale = gamma_ref[...] * jax.lax.rsqrt(var + EPS)
    y = jnp.maximum(xc * scale + beta_ref[...], 0.0)          # (HW, C)

    # ---- Zero-padded slab (single grid step -> zeroed exactly once).
    pad_ref[...] = jnp.zeros_like(pad_ref)
    pad_ref[BASE:BASE + HW, 0:C] = y

    # Horizontal-boundary masks (vertical borders are the zero rows above).
    col_idx = jax.lax.broadcasted_iota(jnp.int32, (HW, 1), 0) % W
    not_left = col_idx != 0
    not_right = col_idx != (W - 1)

    # ---- im2col: tap t occupies the 128-lane-aligned block [t*CPAD,(t+1)*CPAD).
    for kh in range(KH):
        for kw in range(KW):
            t = kh * KW + kw
            d = (kh - 1) * W + (kw - 1)
            win = pad_ref[BASE + d:BASE + d + HW, :]          # (HW, CPAD)
            if kw == 0:
                win = jnp.where(not_left, win, 0.0)
            elif kw == KW - 1:
                win = jnp.where(not_right, win, 0.0)
            col_ref[:, t * CPAD:(t + 1) * CPAD] = win

    # ---- Single fused matmul: (HW, KBIG) @ (KBIG, C) -> (HW, C).
    o_ref[...] = jnp.dot(col_ref[...], w_ref[...],
                         preferred_element_type=jnp.float32)


def _build_im2col_weight(weight):
    """weight (C, CG, KH, KW) PyTorch grouped OIHW -> (KBIG, C) im2col weight."""
    wg = weight.reshape(GROUPS, CG, CG, KH, KW)         # (g, co_g, ci_g, kh, kw)
    blocks = wg.transpose(3, 4, 0, 2, 1)                # (kh, kw, g, ci_g, co_g)
    eye = jnp.eye(GROUPS, dtype=weight.dtype)
    bd = jnp.einsum('uvgio,gh->uvgiho', blocks, eye)    # block-diagonal per tap
    bd = bd.reshape(TAPS, C, C)                         # (tap, ci_glob, co_glob)
    bd = jnp.pad(bd, ((0, 0), (0, CPAD - C), (0, 0)))   # lane-pad K to 128/tap
    return bd.reshape(KBIG, C)


@jax.jit
def bn_relu_gconv(x_nchw, gamma, beta, weight):
    n, c, h, w = x_nchw.shape
    assert n == 1 and c == C and h == H and w == W
    # One layout pass each way at the NCHW boundary (channels -> lanes).
    x2d = x_nchw.reshape(C, HW).T                       # (HW, C)
    w_big = _build_im2col_weight(weight)                # (KBIG, C)
    gamma2d = gamma.reshape(1, C)
    beta2d = beta.reshape(1, C)

    out2d = pl.pallas_call(
        bn_relu_gconv_kernel,
        out_shape=jax.ShapeDtypeStruct((HW, C), jnp.float32),
        grid=(1,),
        in_specs=[
            pl.BlockSpec((HW, C), lambda i: (0, 0)),
            pl.BlockSpec((KBIG, C), lambda i: (0, 0)),
            pl.BlockSpec((1, C), lambda i: (0, 0)),
            pl.BlockSpec((1, C), lambda i: (0, 0)),
        ],
        out_specs=pl.BlockSpec((HW, C), lambda i: (0, 0)),
        scratch_shapes=[
            pltpu.VMEM((PAD_ROWS, CPAD), jnp.float32),
            pltpu.VMEM((HW, KBIG), jnp.float32),
        ],
        compiler_params=pltpu.CompilerParams(
            dimension_semantics=("arbitrary",)),
    )(x2d, w_big, gamma2d, beta2d)

    return out2d.T.reshape(1, C, H, W)


def ref_forward(x_nchw, gamma, beta, weight):
    mean = jnp.mean(x_nchw, axis=(0, 2, 3), keepdims=True)
    var = jnp.var(x_nchw, axis=(0, 2, 3), keepdims=True)   # biased
    y = (x_nchw - mean) * jax.lax.rsqrt(var + EPS)
    y = y * gamma[None, :, None, None] + beta[None, :, None, None]
    y = jnp.maximum(y, 0.0)
    return jax.lax.conv_general_dilated(
        y, weight, window_strides=(1, 1), padding=((1, 1), (1, 1)),
        feature_group_count=GROUPS,
        dimension_numbers=("NCHW", "OIHW", "NCHW"))


if __name__ == "__main__":
    key = jax.random.PRNGKey(0)
    k1, k2, k3, k4 = jax.random.split(key, 4)
    x = jax.random.normal(k1, (1, C, H, W), jnp.float32)
    gamma = 1.0 + 0.1 * jax.random.normal(k2, (C,), jnp.float32)
    beta = 0.1 * jax.random.normal(k3, (C,), jnp.float32)
    weight = 0.05 * jax.random.normal(k4, (C, CG, KH, KW), jnp.float32)

    out = bn_relu_gconv(x, gamma, beta, weight)
    jax.block_until_ready(out)

    ref = ref_forward(x, gamma, beta, weight)
    assert out.shape == (1, C, H, W), out.shape
    assert jnp.allclose(out, ref, rtol=2e-3, atol=2e-3), float(
        jnp.max(jnp.abs(out - ref)))
    print("KERNEL_OK")
</pallas_src>

<mosaic_0001>
module attributes {stable_mosaic.version = 11 : i64} {
  func.func @bn_relu_gconv_kernel(%arg0: i32, %arg1: memref<784x120xf32, #tpu.memory_space<vmem>>, %arg2: memref<1152x120xf32, #tpu.memory_space<vmem>>, %arg3: memref<1x120xf32, #tpu.memory_space<vmem>>, %arg4: memref<1x120xf32, #tpu.memory_space<vmem>>, %arg5: memref<784x120xf32, #tpu.memory_space<vmem>>, %arg6: memref<848x128xf32, #tpu.memory_space<vmem>>, %arg7: memref<784x1152xf32, #tpu.memory_space<vmem>>) attributes {dimension_semantics = [#tpu.dimension_semantics<arbitrary>], iteration_bounds = array<i64: 1>, scalar_prefetch = 0 : i64, scratch_operands = 2 : i64, tpu.core_type = #tpu.core_type<tc>, window_params = [{pipeline_mode = #tpu.pipeline_mode<synchronous>, transform_indices = @transform_0, window_bounds = array<i64: 784, 120>}, {pipeline_mode = #tpu.pipeline_mode<synchronous>, transform_indices = @transform_1, window_bounds = array<i64: 1152, 120>}, {pipeline_mode = #tpu.pipeline_mode<synchronous>, transform_indices = @transform_2, window_bounds = array<i64: 1, 120>}, {pipeline_mode = #tpu.pipeline_mode<synchronous>, transform_indices = @transform_3, window_bounds = array<i64: 1, 120>}, {pipeline_mode = #tpu.pipeline_mode<synchronous>, transform_indices = @transform_4, window_bounds = array<i64: 784, 120>}]} {
    %c0 = arith.constant 0 : index
    %c0_0 = arith.constant 0 : index
    %0 = vector.load %arg1[%c0, %c0_0] : memref<784x120xf32, #tpu.memory_space<vmem>>, vector<784x120xf32>
    %cst = arith.constant dense<0.000000e+00> : vector<120xf32>
    %1 = vector.multi_reduction <add>, %0, %cst [0] : vector<784x120xf32> to vector<120xf32>
    %2 = vector.shape_cast %1 : vector<120xf32> to vector<1x120xf32>
    %cst_1 = arith.constant 7.840000e+02 : f32
    %3 = vector.broadcast %cst_1 : f32 to vector<1x120xf32>
    %4 = arith.divf %2, %3 : vector<1x120xf32>
    %5 = vector.broadcast %4 : vector<1x120xf32> to vector<784x120xf32>
    %6 = arith.subf %0, %5 : vector<784x120xf32>
    %7 = arith.mulf %6, %6 : vector<784x120xf32>
    %cst_2 = arith.constant dense<0.000000e+00> : vector<120xf32>
    %8 = vector.multi_reduction <add>, %7, %cst_2 [0] : vector<784x120xf32> to vector<120xf32>
    %9 = vector.shape_cast %8 : vector<120xf32> to vector<1x120xf32>
    %cst_3 = arith.constant 7.840000e+02 : f32
    %10 = vector.broadcast %cst_3 : f32 to vector<1x120xf32>
    %11 = arith.divf %9, %10 : vector<1x120xf32>
    %c0_4 = arith.constant 0 : index
    %c0_5 = arith.constant 0 : index
    %12 = vector.load %arg3[%c0_4, %c0_5] : memref<1x120xf32, #tpu.memory_space<vmem>>, vector<1x120xf32>
    %cst_6 = arith.constant 9.99999974E-6 : f32
    %13 = vector.broadcast %cst_6 : f32 to vector<1x120xf32>
    %14 = arith.addf %11, %13 : vector<1x120xf32>
    %15 = math.rsqrt %14 : vector<1x120xf32>
    %16 = arith.mulf %12, %15 : vector<1x120xf32>
    %17 = vector.broadcast %16 : vector<1x120xf32> to vector<784x120xf32>
    %18 = arith.mulf %6, %17 : vector<784x120xf32>
    %c0_7 = arith.constant 0 : index
    %c0_8 = arith.constant 0 : index
    %19 = vector.load %arg4[%c0_7, %c0_8] : memref<1x120xf32, #tpu.memory_space<vmem>>, vector<1x120xf32>
    %20 = vector.broadcast %19 : vector<1x120xf32> to vector<784x120xf32>
    %21 = arith.addf %18, %20 : vector<784x120xf32>
    %cst_9 = arith.constant 0.000000e+00 : f32
    %22 = vector.broadcast %cst_9 : f32 to vector<784x120xf32>
    %23 = arith.maximumf %21, %22 : vector<784x120xf32>
    %cst_10 = arith.constant 0.000000e+00 : f32
    %24 = vector.broadcast %cst_10 : f32 to vector<848x128xf32>
    %c0_11 = arith.constant 0 : index
    %c0_12 = arith.constant 0 : index
    %25 = vector.load %arg6[%c0_11, %c0_12] : memref<848x128xf32, #tpu.memory_space<vmem>>, vector<848x128xf32>
    tpu.vector_store %arg6[%c0_11, %c0_12], %24 {strides = array<i32>} : memref<848x128xf32, #tpu.memory_space<vmem>>, vector<848x128xf32>,
    %c32 = arith.constant 32 : index
    %c0_13 = arith.constant 0 : index
    %26 = vector.load %arg6[%c32, %c0_13] : memref<848x128xf32, #tpu.memory_space<vmem>>, vector<784x120xf32>
    tpu.vector_store %arg6[%c32, %c0_13], %23 {strides = array<i32>} : memref<848x128xf32, #tpu.memory_space<vmem>>, vector<784x120xf32>,
    %27 = tpu.iota {dimensions = array<i32: 0>} : vector<784x1xi32>
    %c28_i32 = arith.constant 28 : i32
    %c0_i32 = arith.constant 0 : i32
    %28 = arith.cmpi eq, %c28_i32, %c0_i32 : i32
    %c1_i32 = arith.constant 1 : i32
    %29 = arith.select %28, %c1_i32, %c28_i32 : i32
    %30 = vector.broadcast %29 : i32 to vector<784x1xi32>
    %31 = arith.remsi %27, %30 : vector<784x1xi32>
    %c0_i32_14 = arith.constant 0 : i32
    %32 = vector.broadcast %c0_i32_14 : i32 to vector<784x1xi32>
    %33 = arith.cmpi ne, %31, %32 : vector<784x1xi32>
    %c0_i32_15 = arith.constant 0 : i32
    %34 = vector.broadcast %c0_i32_15 : i32 to vector<784x1xi32>
    %35 = arith.cmpi slt, %31, %34 : vector<784x1xi32>
    %c0_i32_16 = arith.constant 0 : i32
    %36 = arith.cmpi slt, %29, %c0_i32_16 : i32
    %37 = vector.broadcast %36 : i1 to vector<784x1xi1>
    %38 = vector.broadcast %37 : vector<784x1xi1> to vector<784x1xi1>
    %39 = arith.xori %35, %38 : vector<784x1xi1>
    %40 = arith.andi %39, %33 : vector<784x1xi1>
    %41 = vector.broadcast %29 : i32 to vector<784x1xi32>
    %42 = arith.addi %31, %41 : vector<784x1xi32>
    %43 = arith.select %40, %42, %31 : vector<784x1xi1>, vector<784x1xi32>
    %c0_i32_17 = arith.constant 0 : i32
    %44 = vector.broadcast %c0_i32_17 : i32 to vector<784x1xi32>
    %45 = arith.cmpi ne, %43, %44 : vector<784x1xi32>
    %c27_i32 = arith.constant 27 : i32
    %46 = vector.broadcast %c27_i32 : i32 to vector<784x1xi32>
    %47 = arith.cmpi ne, %43, %46 : vector<784x1xi32>
    %c3 = arith.constant 3 : index
    %c0_18 = arith.constant 0 : index
    %48 = vector.load %arg6[%c3, %c0_18] : memref<848x128xf32, #tpu.memory_space<vmem>>, vector<784x128xf32>
    %cst_19 = arith.constant 0.000000e+00 : f32
    %49 = vector.shape_cast %45 : vector<784x1xi1> to vector<784x1xi1>
    %50 = vector.broadcast %49 : vector<784x1xi1> to vector<784x128xi1>
    %51 = vector.broadcast %cst_19 : f32 to vector<784x128xf32>
    %52 = arith.select %50, %48, %51 : vector<784x128xi1>, vector<784x128xf32>
    %c0_20 = arith.constant 0 : index
    %c0_21 = arith.constant 0 : index
    %53 = vector.load %arg7[%c0_20, %c0_21] : memref<784x1152xf32, #tpu.memory_space<vmem>>, vector<784x128xf32>
    tpu.vector_store %arg7[%c0_20, %c0_21], %52 {strides = array<i32>} : memref<784x1152xf32, #tpu.memory_space<vmem>>, vector<784x128xf32>,
    %c4 = arith.constant 4 : index
    %c0_22 = arith.constant 0 : index
    %54 = vector.load %arg6[%c4, %c0_22] : memref<848x128xf32, #tpu.memory_space<vmem>>, vector<784x128xf32>
    %c0_23 = arith.constant 0 : index
    %c128 = arith.constant 128 : index
    %55 = vector.load %arg7[%c0_23, %c128] : memref<784x1152xf32, #tpu.memory_space<vmem>>, vector<784x128xf32>
    tpu.vector_store %arg7[%c0_23, %c128], %54 {strides = array<i32>} : memref<784x1152xf32, #tpu.memory_space<vmem>>, vector<784x128xf32>,
    %c5 = arith.constant 5 : index
    %c0_24 = arith.constant 0 : index
    %56 = vector.load %arg6[%c5, %c0_24] : memref<848x128xf32, #tpu.memory_space<vmem>>, vector<784x128xf32>
    %cst_25 = arith.constant 0.000000e+00 : f32
    %57 = vector.shape_cast %47 : vector<784x1xi1> to vector<784x1xi1>
    %58 = vector.broadcast %57 : vector<784x1xi1> to vector<784x128xi1>
    %59 = vector.broadcast %cst_25 : f32 to vector<784x128xf32>
    %60 = arith.select %58, %56, %59 : vector<784x128xi1>, vector<784x128xf32>
    %c0_26 = arith.constant 0 : index
    %c256 = arith.constant 256 : index
    %61 = vector.load %arg7[%c0_26, %c256] : memref<784x1152xf32, #tpu.memory_space<vmem>>, vector<784x128xf32>
    tpu.vector_store %arg7[%c0_26, %c256], %60 {strides = array<i32>} : memref<784x1152xf32, #tpu.memory_space<vmem>>, vector<784x128xf32>,
    %c31 = arith.constant 31 : index
    %c0_27 = arith.constant 0 : index
    %62 = vector.load %arg6[%c31, %c0_27] : memref<848x128xf32, #tpu.memory_space<vmem>>, vector<784x128xf32>
    %cst_28 = arith.constant 0.000000e+00 : f32
    %63 = vector.shape_cast %45 : vector<784x1xi1> to vector<784x1xi1>
    %64 = vector.broadcast %63 : vector<784x1xi1> to vector<784x128xi1>
    %65 = vector.broadcast %cst_28 : f32 to vector<784x128xf32>
    %66 = arith.select %64, %62, %65 : vector<784x128xi1>, vector<784x128xf32>
    %c0_29 = arith.constant 0 : index
    %c384 = arith.constant 384 : index
    %67 = vector.load %arg7[%c0_29, %c384] : memref<784x1152xf32, #tpu.memory_space<vmem>>, vector<784x128xf32>
    tpu.vector_store %arg7[%c0_29, %c384], %66 {strides = array<i32>} : memref<784x1152xf32, #tpu.memory_space<vmem>>, vector<784x128xf32>,
    %c32_30 = arith.constant 32 : index
    %c0_31 = arith.constant 0 : index
    %68 = vector.load %arg6[%c32_30, %c0_31] : memref<848x128xf32, #tpu.memory_space<vmem>>, vector<784x128xf32>
    %c0_32 = arith.constant 0 : index
    %c512 = arith.constant 512 : index
    %69 = vector.load %arg7[%c0_32, %c512] : memref<784x1152xf32, #tpu.memory_space<vmem>>, vector<784x128xf32>
    tpu.vector_store %arg7[%c0_32, %c512], %68 {strides = array<i32>} : memref<784x1152xf32, #tpu.memory_space<vmem>>, vector<784x128xf32>,
    %c33 = arith.constant 33 : index
    %c0_33 = arith.constant 0 : index
    %70 = vector.load %arg6[%c33, %c0_33] : memref<848x128xf32, #tpu.memory_space<vmem>>, vector<784x128xf32>
    %cst_34 = arith.constant 0.000000e+00 : f32
    %71 = vector.shape_cast %47 : vector<784x1xi1> to vector<784x1xi1>
    %72 = vector.broadcast %71 : vector<784x1xi1> to vector<784x128xi1>
    %73 = vector.broadcast %cst_34 : f32 to vector<784x128xf32>
    %74 = arith.select %72, %70, %73 : vector<784x128xi1>, vector<784x128xf32>
    %c0_35 = arith.constant 0 : index
    %c640 = arith.constant 640 : index
    %75 = vector.load %arg7[%c0_35, %c640] : memref<784x1152xf32, #tpu.memory_space<vmem>>, vector<784x128xf32>
    tpu.vector_store %arg7[%c0_35, %c640], %74 {strides = array<i32>} : memref<784x1152xf32, #tpu.memory_space<vmem>>, vector<784x128xf32>,
    %c59 = arith.constant 59 : index
    %c0_36 = arith.constant 0 : index
    %76 = vector.load %arg6[%c59, %c0_36] : memref<848x128xf32, #tpu.memory_space<vmem>>, vector<784x128xf32>
    %cst_37 = arith.constant 0.000000e+00 : f32
    %77 = vector.shape_cast %45 : vector<784x1xi1> to vector<784x1xi1>
    %78 = vector.broadcast %77 : vector<784x1xi1> to vector<784x128xi1>
    %79 = vector.broadcast %cst_37 : f32 to vector<784x128xf32>
    %80 = arith.select %78, %76, %79 : vector<784x128xi1>, vector<784x128xf32>
    %c0_38 = arith.constant 0 : index
    %c768 = arith.constant 768 : index
    %81 = vector.load %arg7[%c0_38, %c768] : memref<784x1152xf32, #tpu.memory_space<vmem>>, vector<784x128xf32>
    tpu.vector_store %arg7[%c0_38, %c768], %80 {strides = array<i32>} : memref<784x1152xf32, #tpu.memory_space<vmem>>, vector<784x128xf32>,
    %c60 = arith.constant 60 : index
    %c0_39 = arith.constant 0 : index
    %82 = vector.load %arg6[%c60, %c0_39] : memref<848x128xf32, #tpu.memory_space<vmem>>, vector<784x128xf32>
    %c0_40 = arith.constant 0 : index
    %c896 = arith.constant 896 : index
    %83 = vector.load %arg7[%c0_40, %c896] : memref<784x1152xf32, #tpu.memory_space<vmem>>, vector<784x128xf32>
    tpu.vector_store %arg7[%c0_40, %c896], %82 {strides = array<i32>} : memref<784x1152xf32, #tpu.memory_space<vmem>>, vector<784x128xf32>,
    %c61 = arith.constant 61 : index
    %c0_41 = arith.constant 0 : index
    %84 = vector.load %arg6[%c61, %c0_41] : memref<848x128xf32, #tpu.memory_space<vmem>>, vector<784x128xf32>
    %cst_42 = arith.constant 0.000000e+00 : f32
    %85 = vector.shape_cast %47 : vector<784x1xi1> to vector<784x1xi1>
    %86 = vector.broadcast %85 : vector<784x1xi1> to vector<784x128xi1>
    %87 = vector.broadcast %cst_42 : f32 to vector<784x128xf32>
    %88 = arith.select %86, %84, %87 : vector<784x128xi1>, vector<784x128xf32>
    %c0_43 = arith.constant 0 : index
    %c1024 = arith.constant 1024 : index
    %89 = vector.load %arg7[%c0_43, %c1024] : memref<784x1152xf32, #tpu.memory_space<vmem>>, vector<784x128xf32>
    tpu.vector_store %arg7[%c0_43, %c1024], %88 {strides = array<i32>} : memref<784x1152xf32, #tpu.memory_space<vmem>>, vector<784x128xf32>,
    %c0_44 = arith.constant 0 : index
    %c0_45 = arith.constant 0 : index
    %90 = vector.load %arg7[%c0_44, %c0_45] : memref<784x1152xf32, #tpu.memory_space<vmem>>, vector<784x1152xf32>
    %c0_46 = arith.constant 0 : index
    %c0_47 = arith.constant 0 : index
    %91 = vector.load %arg2[%c0_46, %c0_47] : memref<1152x120xf32, #tpu.memory_space<vmem>>, vector<1152x120xf32>
    %cst_48 = arith.constant dense<0.000000e+00> : vector<784x120xf32>
    %92 = tpu.matmul %90, %91, %cst_48 {dimension_numbers = #tpu.dot_dimension_numbers<[1], [0], [0], [1], [0, 0, 1, 1], [], []>} : vector<784x1152xf32>, vector<1152x120xf32>, vector<784x120xf32> -> vector<784x120xf32>
    %c0_49 = arith.constant 0 : index
    %c0_50 = arith.constant 0 : index
    %93 = vector.load %arg5[%c0_49, %c0_50] : memref<784x120xf32, #tpu.memory_space<vmem>>, vector<784x120xf32>
    tpu.vector_store %arg5[%c0_49, %c0_50], %92 {strides = array<i32>} : memref<784x120xf32, #tpu.memory_space<vmem>>, vector<784x120xf32>,
    return
  }
  func.func @transform_0(%arg0: i32) -> (i32, i32) {
    %c0_i32 = arith.constant 0 : i32
    %c0_i32_0 = arith.constant 0 : i32
    %c0_i32_1 = arith.constant 0 : i32
    return %c0_i32, %c0_i32_0 : i32, i32
  }
  func.func @transform_1(%arg0: i32) -> (i32, i32) {
    %c0_i32 = arith.constant 0 : i32
    %c0_i32_0 = arith.constant 0 : i32
    %c0_i32_1 = arith.constant 0 : i32
    return %c0_i32, %c0_i32_0 : i32, i32
  }
  func.func @transform_2(%arg0: i32) -> (i32, i32) {
    %c0_i32 = arith.constant 0 : i32
    %c0_i32_0 = arith.constant 0 : i32
    %c0_i32_1 = arith.constant 0 : i32
    return %c0_i32, %c0_i32_0 : i32, i32
  }
  func.func @transform_3(%arg0: i32) -> (i32, i32) {
    %c0_i32 = arith.constant 0 : i32
    %c0_i32_0 = arith.constant 0 : i32
    %c0_i32_1 = arith.constant 0 : i32
    return %c0_i32, %c0_i32_0 : i32, i32
  }
  func.func @transform_4(%arg0: i32) -> (i32, i32) {
    %c0_i32 = arith.constant 0 : i32
    %c0_i32_0 = arith.constant 0 : i32
    %c0_i32_1 = arith.constant 0 : i32
    return %c0_i32, %c0_i32_0 : i32, i32
  }
}

</mosaic_0001>

<llo_original>
// kernel: bn_relu_gconv.1
$region0: #{bn_relu_gconv.1}
  #allocation0 [shape = 'u32[]', space=smem, size = 0x4, offset = 0x4, fixed_abs, tag = 'smem constant byte address 0x4 - core index']
  #allocation1 [shape = 'u32[144,128]{1,0:T(1,128)}', space=vmem, size = 0x12000, scoped, tag = 'internal scratch']
  #allocation2 [shape = 'f32[848,128]{1,0:T(8,128)}', space=vmem, size = 0x6a000, scoped, tag = 'scratch operand']
  #allocation3 [shape = 'f32[784,1152]{1,0:T(8,128)}', space=vmem, size = 0x372000, scoped, tag = 'scratch operand']
  %s0 = inlined_call_operand.vmem [shape: f32[784,120], index: 0, kind: input, shape index: {}]
  %s1 = inlined_call_operand.vmem [shape: f32[1152,120], index: 1, kind: input, shape index: {}]
  %s2 = inlined_call_operand.vmem [shape: f32[1,120], index: 2, kind: input, shape index: {}]
  %s3 = inlined_call_operand.vmem [shape: f32[1,120], index: 3, kind: input, shape index: {}]
  %s4 = inlined_call_operand.hbm [shape: f32[784,120], index: 4, kind: output, shape index: {}]
  %s5 = sld [smem:[#allocation0]]
  $region26: #{bn_relu_gconv.1} parent=0
    _
  %s7 = ssub.s32 1, %s5
  %s8 = scalar_select 0, %s7, %s5
  $region1: #{bn_relu_gconv.1} parent=0
    #allocation4 [shape = 'u8[401408]{0}', space=vmem, size = 0x62000, scoped, tag = 'output window, operand 0, single buffered']
    #allocation5 [shape = 's32[1]{0}', space=sflag, size = 0x4, scoped, tag = 'scoped memory for bn_relu_gconv.1']
    %9 = vsyncpa [#allocation5], 0
    // Predicated region
    $region2: #{bn_relu_gconv.1} parent=1 // pred_check
      _
    $region3: #{bn_relu_gconv.1} parent=1 // pred_check_branch
      %11 = sbr.rel (0) target = $region5
    $region4: #{bn_relu_gconv.1} parent=1 // pred_region
      _
    $region5: #{bn_relu_gconv.1} parent=1 // pred_fallthru
      _
    // Predicated region
    $region6: #{bn_relu_gconv.1} parent=1 // pred_check
      _
    $region7: #{bn_relu_gconv.1} parent=1 // pred_check_branch
      %13 = sbr.rel (0) target = $region9
    $region8: #{bn_relu_gconv.1} parent=1 // pred_region
      _
    $region9: #{bn_relu_gconv.1} parent=1 // pred_fallthru
      _
    // Predicated region
    $region10: #{bn_relu_gconv.1} parent=1 // pred_check
      _
    $region11: #{bn_relu_gconv.1} parent=1 // pred_check_branch
      %15 = sbr.rel (0) target = $region13
    $region12: #{bn_relu_gconv.1} parent=1 // pred_region
      _
    $region13: #{bn_relu_gconv.1} parent=1 // pred_fallthru
      _
    // Predicated region
    $region14: #{bn_relu_gconv.1} parent=1 // pred_check
      _
    $region15: #{bn_relu_gconv.1} parent=1 // pred_check_branch
      %17 = sbr.rel (0) target = $region17
    $region16: #{bn_relu_gconv.1} parent=1 // pred_region
      _
    $region17: #{bn_relu_gconv.1} parent=1 // pred_fallthru
      _
    %v18 = vld [vmem:[%s0] sm:$0xff]
    %v19 = vld [vmem:[%s0 + $0x8] sm:$0xff]
    %v20 = vld [vmem:[%s0 + $0x10] sm:$0xff]
    %v21 = vld [vmem:[%s0 + $0x18] sm:$0xff]
    %v22 = vld [vmem:[%s0 + $0x20] sm:$0xff]
    %v23 = vld [vmem:[%s0 + $0x28] sm:$0xff]
    %v24 = vld [vmem:[%s0 + $0x30] sm:$0xff]
    %v25 = vld [vmem:[%s0 + $0x38] sm:$0xff]
    %v26 = vld [vmem:[%s0 + $0x40] sm:$0xff]
    %v27 = vld [vmem:[%s0 + $0x48] sm:$0xff]
    %v28 = vld [vmem:[%s0 + $0x50] sm:$0xff]
    %v29 = vld [vmem:[%s0 + $0x58] sm:$0xff]
    %v30 = vld [vmem:[%s0 + $0x60] sm:$0xff]
    %v31 = vld [vmem:[%s0 + $0x68] sm:$0xff]
    %v32 = vld [vmem:[%s0 + $0x70] sm:$0xff]
    %v33 = vld [vmem:[%s0 + $0x78] sm:$0xff]
    %v34 = vld [vmem:[%s0 + $0x80] sm:$0xff]
    %v35 = vld [vmem:[%s0 + $0x88] sm:$0xff]
    %v36 = vld [vmem:[%s0 + $0x90] sm:$0xff]
    %v37 = vld [vmem:[%s0 + $0x98] sm:$0xff]
    %v38 = vld [vmem:[%s0 + $0xa0] sm:$0xff]
    %v39 = vld [vmem:[%s0 + $0xa8] sm:$0xff]
    %v40 = vld [vmem:[%s0 + $0xb0] sm:$0xff]
    %v41 = vld [vmem:[%s0 + $0xb8] sm:$0xff]
    %v42 = vld [vmem:[%s0 + $0xc0] sm:$0xff]
    %v43 = vld [vmem:[%s0 + $0xc8] sm:$0xff]
    %v44 = vld [vmem:[%s0 + $0xd0] sm:$0xff]
    %v45 = vld [vmem:[%s0 + $0xd8] sm:$0xff]
    %v46 = vld [vmem:[%s0 + $0xe0] sm:$0xff]
    %v47 = vld [vmem:[%s0 + $0xe8] sm:$0xff]
    %v48 = vld [vmem:[%s0 + $0xf0] sm:$0xff]
    %v49 = vld [vmem:[%s0 + $0xf8] sm:$0xff]
    %v50 = vld [vmem:[%s0 + $0x100] sm:$0xff]
    %v51 = vld [vmem:[%s0 + $0x108] sm:$0xff]
    %v52 = vld [vmem:[%s0 + $0x110] sm:$0xff]
    %v53 = vld [vmem:[%s0 + $0x118] sm:$0xff]
    %v54 = vld [vmem:[%s0 + $0x120] sm:$0xff]
    %v55 = vld [vmem:[%s0 + $0x128] sm:$0xff]
    %v56 = vld [vmem:[%s0 + $0x130] sm:$0xff]
    %v57 = vld [vmem:[%s0 + $0x138] sm:$0xff]
    %v58 = vld [vmem:[%s0 + $0x140] sm:$0xff]
    %v59 = vld [vmem:[%s0 + $0x148] sm:$0xff]
    %v60 = vld [vmem:[%s0 + $0x150] sm:$0xff]
    %v61 = vld [vmem:[%s0 + $0x158] sm:$0xff]
    %v62 = vld [vmem:[%s0 + $0x160] sm:$0xff]
    %v63 = vld [vmem:[%s0 + $0x168] sm:$0xff]
    %v64 = vld [vmem:[%s0 + $0x170] sm:$0xff]
    %v65 = vld [vmem:[%s0 + $0x178] sm:$0xff]
    %v66 = vld [vmem:[%s0 + $0x180] sm:$0xff]
    %v67 = vld [vmem:[%s0 + $0x188] sm:$0xff]
    %v68 = vld [vmem:[%s0 + $0x190] sm:$0xff]
    %v69 = vld [vmem:[%s0 + $0x198] sm:$0xff]
    %v70 = vld [vmem:[%s0 + $0x1a0] sm:$0xff]
    %v71 = vld [vmem:[%s0 + $0x1a8] sm:$0xff]
    %v72 = vld [vmem:[%s0 + $0x1b0] sm:$0xff]
    %v73 = vld [vmem:[%s0 + $0x1b8] sm:$0xff]
    %v74 = vld [vmem:[%s0 + $0x1c0] sm:$0xff]
    %v75 = vld [vmem:[%s0 + $0x1c8] sm:$0xff]
    %v76 = vld [vmem:[%s0 + $0x1d0] sm:$0xff]
    %v77 = vld [vmem:[%s0 + $0x1d8] sm:$0xff]
    %v78 = vld [vmem:[%s0 + $0x1e0] sm:$0xff]
    %v79 = vld [vmem:[%s0 + $0x1e8] sm:$0xff]
    %v80 = vld [vmem:[%s0 + $0x1f0] sm:$0xff]
    %v81 = vld [vmem:[%s0 + $0x1f8] sm:$0xff]
    %v82 = vld [vmem:[%s0 + $0x200] sm:$0xff]
    %v83 = vld [vmem:[%s0 + $0x208] sm:$0xff]
    %v84 = vld [vmem:[%s0 + $0x210] sm:$0xff]
    %v85 = vld [vmem:[%s0 + $0x218] sm:$0xff]
    %v86 = vld [vmem:[%s0 + $0x220] sm:$0xff]
    %v87 = vld [vmem:[%s0 + $0x228] sm:$0xff]
    %v88 = vld [vmem:[%s0 + $0x230] sm:$0xff]
    %v89 = vld [vmem:[%s0 + $0x238] sm:$0xff]
    %v90 = vld [vmem:[%s0 + $0x240] sm:$0xff]
    %v91 = vld [vmem:[%s0 + $0x248] sm:$0xff]
    %v92 = vld [vmem:[%s0 + $0x250] sm:$0xff]
    %v93 = vld [vmem:[%s0 + $0x258] sm:$0xff]
    %v94 = vld [vmem:[%s0 + $0x260] sm:$0xff]
    %v95 = vld [vmem:[%s0 + $0x268] sm:$0xff]
    %v96 = vld [vmem:[%s0 + $0x270] sm:$0xff]
    %v97 = vld [vmem:[%s0 + $0x278] sm:$0xff]
    %v98 = vld [vmem:[%s0 + $0x280] sm:$0xff]
    %v99 = vld [vmem:[%s0 + $0x288] sm:$0xff]
    %v100 = vld [vmem:[%s0 + $0x290] sm:$0xff]
    %v101 = vld [vmem:[%s0 + $0x298] sm:$0xff]
    %v102 = vld [vmem:[%s0 + $0x2a0] sm:$0xff]
    %v103 = vld [vmem:[%s0 + $0x2a8] sm:$0xff]
    %v104 = vld [vmem:[%s0 + $0x2b0] sm:$0xff]
    %v105 = vld [vmem:[%s0 + $0x2b8] sm:$0xff]
    %v106 = vld [vmem:[%s0 + $0x2c0] sm:$0xff]
    %v107 = vld [vmem:[%s0 + $0x2c8] sm:$0xff]
    %v108 = vld [vmem:[%s0 + $0x2d0] sm:$0xff]
    %v109 = vld [vmem:[%s0 + $0x2d8] sm:$0xff]
    %v110 = vld [vmem:[%s0 + $0x2e0] sm:$0xff]
    %v111 = vld [vmem:[%s0 + $0x2e8] sm:$0xff]
    %v112 = vld [vmem:[%s0 + $0x2f0] sm:$0xff]
    %v113 = vld [vmem:[%s0 + $0x2f8] sm:$0xff]
    %v114 = vld [vmem:[%s0 + $0x300] sm:$0xff]
    %v115 = vld [vmem:[%s0 + $0x308] sm:$0xff]
    %vm116 = vcmask 982016
    %v117 = vsel %vm116, %v18, 0.0
    %v118 = vsel %vm116, %v19, 0.0
    %v119 = vadd.f32 %v117, %v118
    %v120 = vsel %vm116, %v20, 0.0
    %v121 = vadd.f32 %v119, %v120
    %v122 = vsel %vm116, %v21, 0.0
    %v123 = vadd.f32 %v121, %v122
    %v124 = vsel %vm116, %v22, 0.0
    %v125 = vadd.f32 %v123, %v124
    %v126 = vsel %vm116, %v23, 0.0
    %v127 = vadd.f32 %v125, %v126
    %v128 = vsel %vm116, %v24, 0.0
    %v129 = vadd.f32 %v127, %v128
    %v130 = vsel %vm116, %v25, 0.0
    %v131 = vadd.f32 %v129, %v130
    %v132 = vsel %vm116, %v26, 0.0
    %v133 = vadd.f32 %v131, %v132
    %v134 = vsel %vm116, %v27, 0.0
    %v135 = vadd.f32 %v133, %v134
    %v136 = vsel %vm116, %v28, 0.0
    %v137 = vadd.f32 %v135, %v136
    %v138 = vsel %vm116, %v29, 0.0
    %v139 = vadd.f32 %v137, %v138
    %v140 = vsel %vm116, %v30, 0.0
    %v141 = vadd.f32 %v139, %v140
    %v142 = vsel %vm116, %v31, 0.0
    %v143 = vadd.f32 %v141, %v142
    %v144 = vsel %vm116, %v32, 0.0
    %v145 = vadd.f32 %v143, %v144
    %v146 = vsel %vm116, %v33, 0.0
    %v147 = vadd.f32 %v145, %v146
    %v148 = vsel %vm116, %v34, 0.0
    %v149 = vadd.f32 %v147, %v148
    %v150 = vsel %vm116, %v35, 0.0
    %v151 = vadd.f32 %v149, %v150
    %v152 = vsel %vm116, %v36, 0.0
    %v153 = vadd.f32 %v151, %v152
    %v154 = vsel %vm116, %v37, 0.0
    %v155 = vadd.f32 %v153, %v154
    %v156 = vsel %vm116, %v38, 0.0
    %v157 = vadd.f32 %v155, %v156
    %v158 = vsel %vm116, %v39, 0.0
    %v159 = vadd.f32 %v157, %v158
    %v160 = vsel %vm116, %v40, 0.0
    %v161 = vadd.f32 %v159, %v160
    %v162 = vsel %vm116, %v41, 0.0
    %v163 = vadd.f32 %v161, %v162
    %v164 = vsel %vm116, %v42, 0.0
    %v165 = vadd.f32 %v163, %v164
    %v166 = vsel %vm116, %v43, 0.0
    %v167 = vadd.f32 %v165, %v166
    %v168 = vsel %vm116, %v44, 0.0
    %v169 = vadd.f32 %v167, %v168
    %v170 = vsel %vm116, %v45, 0.0
    %v171 = vadd.f32 %v169, %v170
    %v172 = vsel %vm116, %v46, 0.0
    %v173 = vadd.f32 %v171, %v172
    %v174 = vsel %vm116, %v47, 0.0
    %v175 = vadd.f32 %v173, %v174
    %v176 = vsel %vm116, %v48, 0.0
    %v177 = vadd.f32 %v175, %v176
    %v178 = vsel %vm116, %v49, 0.0
    %v179 = vadd.f32 %v177, %v178
    %v180 = vsel %vm116, %v50, 0.0
    %v181 = vadd.f32 %v179, %v180
    %v182 = vsel %vm116, %v51, 0.0
    %v183 = vadd.f32 %v181, %v182
    %v184 = vsel %vm116, %v52, 0.0
    %v185 = vadd.f32 %v183, %v184
    %v186 = vsel %vm116, %v53, 0.0
    %v187 = vadd.f32 %v185, %v186
    %v188 = vsel %vm116, %v54, 0.0
    %v189 = vadd.f32 %v187, %v188
    %v190 = vsel %vm116, %v55, 0.0
    %v191 = vadd.f32 %v189, %v190
    %v192 = vsel %vm116, %v56, 0.0
    %v193 = vadd.f32 %v191, %v192
    %v194 = vsel %vm116, %v57, 0.0
    %v195 = vadd.f32 %v193, %v194
    %v196 = vsel %vm116, %v58, 0.0
    %v197 = vadd.f32 %v195, %v196
    %v198 = vsel %vm116, %v59, 0.0
    %v199 = vadd.f32 %v197, %v198
    %v200 = vsel %vm116, %v60, 0.0
    %v201 = vadd.f32 %v199, %v200
    %v202 = vsel %vm116, %v61, 0.0
    %v203 = vadd.f32 %v201, %v202
    %v204 = vsel %vm116, %v62, 0.0
    %v205 = vadd.f32 %v203, %v204
    %v206 = vsel %vm116, %v63, 0.0
    %v207 = vadd.f32 %v205, %v206
    %v208 = vsel %vm116, %v64, 0.0
    %v209 = vadd.f32 %v207, %v208
    %v210 = vsel %vm116, %v65, 0.0
    %v211 = vadd.f32 %v209, %v210
    %v212 = vsel %vm116, %v66, 0.0
    %v213 = vadd.f32 %v211, %v212
    %v214 = vsel %vm116, %v67, 0.0
    %v215 = vadd.f32 %v213, %v214
    %v216 = vsel %vm116, %v68, 0.0
    %v217 = vadd.f32 %v215, %v216
    %v218 = vsel %vm116, %v69, 0.0
    %v219 = vadd.f32 %v217, %v218
    %v220 = vsel %vm116, %v70, 0.0
    %v221 = vadd.f32 %v219, %v220
    %v222 = vsel %vm116, %v71, 0.0
    %v223 = vadd.f32 %v221, %v222
    %v224 = vsel %vm116, %v72, 0.0
    %v225 = vadd.f32 %v223, %v224
    %v226 = vsel %vm116, %v73, 0.0
    %v227 = vadd.f32 %v225, %v226
    %v228 = vsel %vm116, %v74, 0.0
    %v229 = vadd.f32 %v227, %v228
    %v230 = vsel %vm116, %v75, 0.0
    %v231 = vadd.f32 %v229, %v230
    %v232 = vsel %vm116, %v76, 0.0
    %v233 = vadd.f32 %v231, %v232
    %v234 = vsel %vm116, %v77, 0.0
    %v235 = vadd.f32 %v233, %v234
    %v236 = vsel %vm116, %v78, 0.0
    %v237 = vadd.f32 %v235, %v236
    %v238 = vsel %vm116, %v79, 0.0
    %v239 = vadd.f32 %v237, %v238
    %v240 = vsel %vm116, %v80, 0.0
    %v241 = vadd.f32 %v239, %v240
    %v242 = vsel %vm116, %v81, 0.0
    %v243 = vadd.f32 %v241, %v242
    %v244 = vsel %vm116, %v82, 0.0
    %v245 = vadd.f32 %v243, %v244
    %v246 = vsel %vm116, %v83, 0.0
    %v247 = vadd.f32 %v245, %v246
    %v248 = vsel %vm116, %v84, 0.0
    %v249 = vadd.f32 %v247, %v248
    %v250 = vsel %vm116, %v85, 0.0
    %v251 = vadd.f32 %v249, %v250
    %v252 = vsel %vm116, %v86, 0.0
    %v253 = vadd.f32 %v251, %v252
    %v254 = vsel %vm116, %v87, 0.0
    %v255 = vadd.f32 %v253, %v254
    %v256 = vsel %vm116, %v88, 0.0
    %v257 = vadd.f32 %v255, %v256
    %v258 = vsel %vm116, %v89, 0.0
    %v259 = vadd.f32 %v257, %v258
    %v260 = vsel %vm116, %v90, 0.0
    %v261 = vadd.f32 %v259, %v260
    %v262 = vsel %vm116, %v91, 0.0
    %v263 = vadd.f32 %v261, %v262
    %v264 = vsel %vm116, %v92, 0.0
    %v265 = vadd.f32 %v263, %v264
    %v266 = vsel %vm116, %v93, 0.0
    %v267 = vadd.f32 %v265, %v266
    %v268 = vsel %vm116, %v94, 0.0
    %v269 = vadd.f32 %v267, %v268
    %v270 = vsel %vm116, %v95, 0.0
    %v271 = vadd.f32 %v269, %v270
    %v272 = vsel %vm116, %v96, 0.0
    %v273 = vadd.f32 %v271, %v272
    %v274 = vsel %vm116, %v97, 0.0
    %v275 = vadd.f32 %v273, %v274
    %v276 = vsel %vm116, %v98, 0.0
    %v277 = vadd.f32 %v275, %v276
    %v278 = vsel %vm116, %v99, 0.0
    %v279 = vadd.f32 %v277, %v278
    %v280 = vsel %vm116, %v100, 0.0
    %v281 = vadd.f32 %v279, %v280
    %v282 = vsel %vm116, %v101, 0.0
    %v283 = vadd.f32 %v281, %v282
    %v284 = vsel %vm116, %v102, 0.0
    %v285 = vadd.f32 %v283, %v284
    %v286 = vsel %vm116, %v103, 0.0
    %v287 = vadd.f32 %v285, %v286
    %v288 = vsel %vm116, %v104, 0.0
    %v289 = vadd.f32 %v287, %v288
    %v290 = vsel %vm116, %v105, 0.0
    %v291 = vadd.f32 %v289, %v290
    %v292 = vsel %vm116, %v106, 0.0
    %v293 = vadd.f32 %v291, %v292
    %v294 = vsel %vm116, %v107, 0.0
    %v295 = vadd.f32 %v293, %v294
    %v296 = vsel %vm116, %v108, 0.0
    %v297 = vadd.f32 %v295, %v296
    %v298 = vsel %vm116, %v109, 0.0
    %v299 = vadd.f32 %v297, %v298
    %v300 = vsel %vm116, %v110, 0.0
    %v301 = vadd.f32 %v299, %v300
    %v302 = vsel %vm116, %v111, 0.0
    %v303 = vadd.f32 %v301, %v302
    %v304 = vsel %vm116, %v112, 0.0
    %v305 = vadd.f32 %v303, %v304
    %v306 = vsel %vm116, %v113, 0.0
    %v307 = vadd.f32 %v305, %v306
    %v308 = vsel %vm116, %v114, 0.0
    %v309 = vadd.f32 %v307, %v308
    %v310 = vsel %vm116, %v115, 0.0
    %v311 = vadd.f32 %v309, %v310
    %v312 = vrot.slane %v311, 4
    %v313 = vadd.f32 %v311, %v312
    %v314 = vrot.slane %v313, 2
    %v315 = vadd.f32 %v313, %v314
    %v316 = vrot.slane %v315, 1
    %v317 = vadd.f32 %v315, %v316
    %v318 = vrcp.pop 784.0
    %v319 = vmul.f32 %v317, %v318
    %v320 = vsub.f32 %v18, %v319
    %v321 = vsub.f32 %v19, %v319
    %v322 = vsub.f32 %v20, %v319
    %v323 = vsub.f32 %v21, %v319
    %v324 = vsub.f32 %v22, %v319
    %v325 = vsub.f32 %v23, %v319
    %v326 = vsub.f32 %v24, %v319
    %v327 = vsub.f32 %v25, %v319
    %v328 = vsub.f32 %v26, %v319
    %v329 = vsub.f32 %v27, %v319
    %v330 = vsub.f32 %v28, %v319
    %v331 = vsub.f32 %v29, %v319
    %v332 = vsub.f32 %v30, %v319
    %v333 = vsub.f32 %v31, %v319
    %v334 = vsub.f32 %v32, %v319
    %v335 = vsub.f32 %v33, %v319
    %v336 = vsub.f32 %v34, %v319
    %v337 = vsub.f32 %v35, %v319
    %v338 = vsub.f32 %v36, %v319
    %v339 = vsub.f32 %v37, %v319
    %v340 = vsub.f32 %v38, %v319
    %v341 = vsub.f32 %v39, %v319
    %v342 = vsub.f32 %v40, %v319
    %v343 = vsub.f32 %v41, %v319
    %v344 = vsub.f32 %v42, %v319
    %v345 = vsub.f32 %v43, %v319
    %v346 = vsub.f32 %v44, %v319
    %v347 = vsub.f32 %v45, %v319
    %v348 = vsub.f32 %v46, %v319
    %v349 = vsub.f32 %v47, %v319
    %v350 = vsub.f32 %v48, %v319
    %v351 = vsub.f32 %v49, %v319
    %v352 = vsub.f32 %v50, %v319
    %v353 = vsub.f32 %v51, %v319
    %v354 = vsub.f32 %v52, %v319
    %v355 = vsub.f32 %v53, %v319
    %v356 = vsub.f32 %v54, %v319
    %v357 = vsub.f32 %v55, %v319
    %v358 = vsub.f32 %v56, %v319
    %v359 = vsub.f32 %v57, %v319
    %v360 = vsub.f32 %v58, %v319
    %v361 = vsub.f32 %v59, %v319
    %v362 = vsub.f32 %v60, %v319
    %v363 = vsub.f32 %v61, %v319
    %v364 = vsub.f32 %v62, %v319
    %v365 = vsub.f32 %v63, %v319
    %v366 = vsub.f32 %v64, %v319
    %v367 = vsub.f32 %v65, %v319
    %v368 = vsub.f32 %v66, %v319
    %v369 = vsub.f32 %v67, %v319
    %v370 = vsub.f32 %v68, %v319
    %v371 = vsub.f32 %v69, %v319
    %v372 = vsub.f32 %v70, %v319
    %v373 = vsub.f32 %v71, %v319
    %v374 = vsub.f32 %v72, %v319
    %v375 = vsub.f32 %v73, %v319
    %v376 = vsub.f32 %v74, %v319
    %v377 = vsub.f32 %v75, %v319
    %v378 = vsub.f32 %v76, %v319
    %v379 = vsub.f32 %v77, %v319
    %v380 = vsub.f32 %v78, %v319
    %v381 = vsub.f32 %v79, %v319
    %v382 = vsub.f32 %v80, %v319
    %v383 = vsub.f32 %v81, %v319
    %v384 = vsub.f32 %v82, %v319
    %v385 = vsub.f32 %v83, %v319
    %v386 = vsub.f32 %v84, %v319
    %v387 = vsub.f32 %v85, %v319
    %v388 = vsub.f32 %v86, %v319
    %v389 = vsub.f32 %v87, %v319
    %v390 = vsub.f32 %v88, %v319
    %v391 = vsub.f32 %v89, %v319
    %v392 = vsub.f32 %v90, %v319
    %v393 = vsub.f32 %v91, %v319
    %v394 = vsub.f32 %v92, %v319
    %v395 = vsub.f32 %v93, %v319
    %v396 = vsub.f32 %v94, %v319
    %v397 = vsub.f32 %v95, %v319
    %v398 = vsub.f32 %v96, %v319
    %v399 = vsub.f32 %v97, %v319
    %v400 = vsub.f32 %v98, %v319
    %v401 = vsub.f32 %v99, %v319
    %v402 = vsub.f32 %v100, %v319
    %v403 = vsub.f32 %v101, %v319
    %v404 = vsub.f32 %v102, %v319
    %v405 = vsub.f32 %v103, %v319
    %v406 = vsub.f32 %v104, %v319
    %v407 = vsub.f32 %v105, %v319
    %v408 = vsub.f32 %v106, %v319
    %v409 = vsub.f32 %v107, %v319
    %v410 = vsub.f32 %v108, %v319
    %v411 = vsub.f32 %v109, %v319
    %v412 = vsub.f32 %v110, %v319
    %v413 = vsub.f32 %v111, %v319
    %v414 = vsub.f32 %v112, %v319
    %v415 = vsub.f32 %v113, %v319
    %v416 = vsub.f32 %v114, %v319
    %v417 = vsub.f32 %v115, %v319
    %v418 = vmul.f32 %v320, %v320
    %v419 = vmul.f32 %v321, %v321
    %v420 = vmul.f32 %v322, %v322
    %v421 = vmul.f32 %v323, %v323
    %v422 = vmul.f32 %v324, %v324
    %v423 = vmul.f32 %v325, %v325
    %v424 = vmul.f32 %v326, %v326
    %v425 = vmul.f32 %v327, %v327
    %v426 = vmul.f32 %v328, %v328
    %v427 = vmul.f32 %v329, %v329
    %v428 = vmul.f32 %v330, %v330
    %v429 = vmul.f32 %v331, %v331
    %v430 = vmul.f32 %v332, %v332
    %v431 = vmul.f32 %v333, %v333
    %v432 = vmul.f32 %v334, %v334
    %v433 = vmul.f32 %v335, %v335
    %v434 = vmul.f32 %v336, %v336
    %v435 = vmul.f32 %v337, %v337
    %v436 = vmul.f32 %v338, %v338
    %v437 = vmul.f32 %v339, %v339
    %v438 = vmul.f32 %v340, %v340
    %v439 = vmul.f32 %v341, %v341
    %v440 = vmul.f32 %v342, %v342
    %v441 = vmul.f32 %v343, %v343
    %v442 = vmul.f32 %v344, %v344
    %v443 = vmul.f32 %v345, %v345
    %v444 = vmul.f32 %v346, %v346
    %v445 = vmul.f32 %v347, %v347
    %v446 = vmul.f32 %v348, %v348
    %v447 = vmul.f32 %v349, %v349
    %v448 = vmul.f32 %v350, %v350
    %v449 = vmul.f32 %v351, %v351
    %v450 = vmul.f32 %v352, %v352
    %v451 = vmul.f32 %v353, %v353
    %v452 = vmul.f32 %v354, %v354
    %v453 = vmul.f32 %v355, %v355
    %v454 = vmul.f32 %v356, %v356
    %v455 = vmul.f32 %v357, %v357
    %v456 = vmul.f32 %v358, %v358
    %v457 = vmul.f32 %v359, %v359
    %v458 = vmul.f32 %v360, %v360
    %v459 = vmul.f32 %v361, %v361
    %v460 = vmul.f32 %v362, %v362
    %v461 = vmul.f32 %v363, %v363
    %v462 = vmul.f32 %v364, %v364
    %v463 = vmul.f32 %v365, %v365
    %v464 = vmul.f32 %v366, %v366
    %v465 = vmul.f32 %v367, %v367
    %v466 = vmul.f32 %v368, %v368
    %v467 = vmul.f32 %v369, %v369
    %v468 = vmul.f32 %v370, %v370
    %v469 = vmul.f32 %v371, %v371
    %v470 = vmul.f32 %v372, %v372
    %v471 = vmul.f32 %v373, %v373
    %v472 = vmul.f32 %v374, %v374
    %v473 = vmul.f32 %v375, %v375
    %v474 = vmul.f32 %v376, %v376
    %v475 = vmul.f32 %v377, %v377
    %v476 = vmul.f32 %v378, %v378
    %v477 = vmul.f32 %v379, %v379
    %v478 = vmul.f32 %v380, %v380
    %v479 = vmul.f32 %v381, %v381
    %v480 = vmul.f32 %v382, %v382
    %v481 = vmul.f32 %v383, %v383
    %v482 = vmul.f32 %v384, %v384
    %v483 = vmul.f32 %v385, %v385
    %v484 = vmul.f32 %v386, %v386
    %v485 = vmul.f32 %v387, %v387
    %v486 = vmul.f32 %v388, %v388
    %v487 = vmul.f32 %v389, %v389
    %v488 = vmul.f32 %v390, %v390
    %v489 = vmul.f32 %v391, %v391
    %v490 = vmul.f32 %v392, %v392
    %v491 = vmul.f32 %v393, %v393
    %v492 = vmul.f32 %v394, %v394
    %v493 = vmul.f32 %v395, %v395
    %v494 = vmul.f32 %v396, %v396
    %v495 = vmul.f32 %v397, %v397
    %v496 = vmul.f32 %v398, %v398
    %v497 = vmul.f32 %v399, %v399
    %v498 = vmul.f32 %v400, %v400
    %v499 = vmul.f32 %v401, %v401
    %v500 = vmul.f32 %v402, %v402
    %v501 = vmul.f32 %v403, %v403
    %v502 = vmul.f32 %v404, %v404
    %v503 = vmul.f32 %v405, %v405
    %v504 = vmul.f32 %v406, %v406
    %v505 = vmul.f32 %v407, %v407
    %v506 = vmul.f32 %v408, %v408
    %v507 = vmul.f32 %v409, %v409
    %v508 = vmul.f32 %v410, %v410
    %v509 = vmul.f32 %v411, %v411
    %v510 = vmul.f32 %v412, %v412
    %v511 = vmul.f32 %v413, %v413
    %v512 = vmul.f32 %v414, %v414
    %v513 = vmul.f32 %v415, %v415
    %v514 = vmul.f32 %v416, %v416
    %v515 = vmul.f32 %v417, %v417
    %v516 = vsel %vm116, %v418, 0.0
    %v517 = vsel %vm116, %v419, 0.0
    %v518 = vadd.f32 %v516, %v517
    %v519 = vsel %vm116, %v420, 0.0
    %v520 = vadd.f32 %v518, %v519
    %v521 = vsel %vm116, %v421, 0.0
    %v522 = vadd.f32 %v520, %v521
    %v523 = vsel %vm116, %v422, 0.0
    %v524 = vadd.f32 %v522, %v523
    %v525 = vsel %vm116, %v423, 0.0
    %v526 = vadd.f32 %v524, %v525
    %v527 = vsel %vm116, %v424, 0.0
    %v528 = vadd.f32 %v526, %v527
    %v529 = vsel %vm116, %v425, 0.0
    %v530 = vadd.f32 %v528, %v529
    %v531 = vsel %vm116, %v426, 0.0
    %v532 = vadd.f32 %v530, %v531
    %v533 = vsel %vm116, %v427, 0.0
    %v534 = vadd.f32 %v532, %v533
    %v535 = vsel %vm116, %v428, 0.0
    %v536 = vadd.f32 %v534, %v535
    %v537 = vsel %vm116, %v429, 0.0
    %v538 = vadd.f32 %v536, %v537
    %v539 = vsel %vm116, %v430, 0.0
    %v540 = vadd.f32 %v538, %v539
    %v541 = vsel %vm116, %v431, 0.0
    %v542 = vadd.f32 %v540, %v541
    %v543 = vsel %vm116, %v432, 0.0
    %v544 = vadd.f32 %v542, %v543
    %v545 = vsel %vm116, %v433, 0.0
    %v546 = vadd.f32 %v544, %v545
    %v547 = vsel %vm116, %v434, 0.0
    %v548 = vadd.f32 %v546, %v547
    %v549 = vsel %vm116, %v435, 0.0
    %v550 = vadd.f32 %v548, %v549
    %v551 = vsel %vm116, %v436, 0.0
    %v552 = vadd.f32 %v550, %v551
    %v553 = vsel %vm116, %v437, 0.0
    %v554 = vadd.f32 %v552, %v553
    %v555 = vsel %vm116, %v438, 0.0
    %v556 = vadd.f32 %v554, %v555
    %v557 = vsel %vm116, %v439, 0.0
    %v558 = vadd.f32 %v556, %v557
    %v559 = vsel %vm116, %v440, 0.0
    %v560 = vadd.f32 %v558, %v559
    %v561 = vsel %vm116, %v441, 0.0
    %v562 = vadd.f32 %v560, %v561
    %v563 = vsel %vm116, %v442, 0.0
    %v564 = vadd.f32 %v562, %v563
    %v565 = vsel %vm116, %v443, 0.0
    %v566 = vadd.f32 %v564, %v565
    %v567 = vsel %vm116, %v444, 0.0
    %v568 = vadd.f32 %v566, %v567
    %v569 = vsel %vm116, %v445, 0.0
    %v570 = vadd.f32 %v568, %v569
    %v571 = vsel %vm116, %v446, 0.0
    %v572 = vadd.f32 %v570, %v571
    %v573 = vsel %vm116, %v447, 0.0
    %v574 = vadd.f32 %v572, %v573
    %v575 = vsel %vm116, %v448, 0.0
    %v576 = vadd.f32 %v574, %v575
    %v577 = vsel %vm116, %v449, 0.0
    %v578 = vadd.f32 %v576, %v577
    %v579 = vsel %vm116, %v450, 0.0
    %v580 = vadd.f32 %v578, %v579
    %v581 = vsel %vm116, %v451, 0.0
    %v582 = vadd.f32 %v580, %v581
    %v583 = vsel %vm116, %v452, 0.0
    %v584 = vadd.f32 %v582, %v583
    %v585 = vsel %vm116, %v453, 0.0
    %v586 = vadd.f32 %v584, %v585
    %v587 = vsel %vm116, %v454, 0.0
    %v588 = vadd.f32 %v586, %v587
    %v589 = vsel %vm116, %v455, 0.0
    %v590 = vadd.f32 %v588, %v589
    %v591 = vsel %vm116, %v456, 0.0
    %v592 = vadd.f32 %v590, %v591
    %v593 = vsel %vm116, %v457, 0.0
    %v594 = vadd.f32 %v592, %v593
    %v595 = vsel %vm116, %v458, 0.0
    %v596 = vadd.f32 %v594, %v595
    %v597 = vsel %vm116, %v459, 0.0
    %v598 = vadd.f32 %v596, %v597
    %v599 = vsel %vm116, %v460, 0.0
    %v600 = vadd.f32 %v598, %v599
    %v601 = vsel %vm116, %v461, 0.0
    %v602 = vadd.f32 %v600, %v601
    %v603 = vsel %vm116, %v462, 0.0
    %v604 = vadd.f32 %v602, %v603
    %v605 = vsel %vm116, %v463, 0.0
    %v606 = vadd.f32 %v604, %v605
    %v607 = vsel %vm116, %v464, 0.0
    %v608 = vadd.f32 %v606, %v607
    %v609 = vsel %vm116, %v465, 0.0
    %v610 = vadd.f32 %v608, %v609
    %v611 = vsel %vm116, %v466, 0.0
    %v612 = vadd.f32 %v610, %v611
    %v613 = vsel %vm116, %v467, 0.0
    %v614 = vadd.f32 %v612, %v613
    %v615 = vsel %vm116, %v468, 0.0
    %v616 = vadd.f32 %v614, %v615
    %v617 = vsel %vm116, %v469, 0.0
    %v618 = vadd.f32 %v616, %v617
    %v619 = vsel %vm116, %v470, 0.0
    %v620 = vadd.f32 %v618, %v619
    %v621 = vsel %vm116, %v471, 0.0
    %v622 = vadd.f32 %v620, %v621
    %v623 = vsel %vm116, %v472, 0.0
    %v624 = vadd.f32 %v622, %v623
    %v625 = vsel %vm116, %v473, 0.0
    %v626 = vadd.f32 %v624, %v625
    %v627 = vsel %vm116, %v474, 0.0
    %v628 = vadd.f32 %v626, %v627
    %v629 = vsel %vm116, %v475, 0.0
    %v630 = vadd.f32 %v628, %v629
    %v631 = vsel %vm116, %v476, 0.0
    %v632 = vadd.f32 %v630, %v631
    %v633 = vsel %vm116, %v477, 0.0
    %v634 = vadd.f32 %v632, %v633
    %v635 = vsel %vm116, %v478, 0.0
    %v636 = vadd.f32 %v634, %v635
    %v637 = vsel %vm116, %v479, 0.0
    %v638 = vadd.f32 %v636, %v637
    %v639 = vsel %vm116, %v480, 0.0
    %v640 = vadd.f32 %v638, %v639
    %v641 = vsel %vm116, %v481, 0.0
    %v642 = vadd.f32 %v640, %v641
    %v643 = vsel %vm116, %v482, 0.0
    %v644 = vadd.f32 %v642, %v643
    %v645 = vsel %vm116, %v483, 0.0
    %v646 = vadd.f32 %v644, %v645
    %v647 = vsel %vm116, %v484, 0.0
    %v648 = vadd.f32 %v646, %v647
    %v649 = vsel %vm116, %v485, 0.0
    %v650 = vadd.f32 %v648, %v649
    %v651 = vsel %vm116, %v486, 0.0
    %v652 = vadd.f32 %v650, %v651
    %v653 = vsel %vm116, %v487, 0.0
    %v654 = vadd.f32 %v652, %v653
    %v655 = vsel %vm116, %v488, 0.0
    %v656 = vadd.f32 %v654, %v655
    %v657 = vsel %vm116, %v489, 0.0
    %v658 = vadd.f32 %v656, %v657
    %v659 = vsel %vm116, %v490, 0.0
    %v660 = vadd.f32 %v658, %v659
    %v661 = vsel %vm116, %v491, 0.0
    %v662 = vadd.f32 %v660, %v661
    %v663 = vsel %vm116, %v492, 0.0
    %v664 = vadd.f32 %v662, %v663
    %v665 = vsel %vm116, %v493, 0.0
    %v666 = vadd.f32 %v664, %v665
    %v667 = vsel %vm116, %v494, 0.0
    %v668 = vadd.f32 %v666, %v667
    %v669 = vsel %vm116, %v495, 0.0
    %v670 = vadd.f32 %v668, %v669
    %v671 = vsel %vm116, %v496, 0.0
    %v672 = vadd.f32 %v670, %v671
    %v673 = vsel %vm116, %v497, 0.0
    %v674 = vadd.f32 %v672, %v673
    %v675 = vsel %vm116, %v498, 0.0
    %v676 = vadd.f32 %v674, %v675
    %v677 = vsel %vm116, %v499, 0.0
    %v678 = vadd.f32 %v676, %v677
    %v679 = vsel %vm116, %v500, 0.0
    %v680 = vadd.f32 %v678, %v679
    %v681 = vsel %vm116, %v501, 0.0
    %v682 = vadd.f32 %v680, %v681
    %v683 = vsel %vm116, %v502, 0.0
    %v684 = vadd.f32 %v682, %v683
    %v685 = vsel %vm116, %v503, 0.0
    %v686 = vadd.f32 %v684, %v685
    %v687 = vsel %vm116, %v504, 0.0
    %v688 = vadd.f32 %v686, %v687
    %v689 = vsel %vm116, %v505, 0.0
    %v690 = vadd.f32 %v688, %v689
    %v691 = vsel %vm116, %v506, 0.0
    %v692 = vadd.f32 %v690, %v691
    %v693 = vsel %vm116, %v507, 0.0
    %v694 = vadd.f32 %v692, %v693
    %v695 = vsel %vm116, %v508, 0.0
    %v696 = vadd.f32 %v694, %v695
    %v697 = vsel %vm116, %v509, 0.0
    %v698 = vadd.f32 %v696, %v697
    %v699 = vsel %vm116, %v510, 0.0
    %v700 = vadd.f32 %v698, %v699
    %v701 = vsel %vm116, %v511, 0.0
    %v702 = vadd.f32 %v700, %v701
    %v703 = vsel %vm116, %v512, 0.0
    %v704 = vadd.f32 %v702, %v703
    %v705 = vsel %vm116, %v513, 0.0
    %v706 = vadd.f32 %v704, %v705
    %v707 = vsel %vm116, %v514, 0.0
    %v708 = vadd.f32 %v706, %v707
    %v709 = vsel %vm116, %v515, 0.0
    %v710 = vadd.f32 %v708, %v709
    %v711 = vrot.slane %v710, 4
    %v712 = vadd.f32 %v710, %v711
    %v713 = vrot.slane %v712, 2
    %v714 = vadd.f32 %v712, %v713
    %v715 = vrot.slane %v714, 1
    %v716 = vadd.f32 %v714, %v715
    %v717 = vmul.f32 %v716, %v318
    %v718 = vld [vmem:[%s2] sm:$0x1]
    %v719 = vadd.f32 %v717, 1e-05
    %v720 = vrsqrt.pop %v719
    %v721 = vmul.f32 %v718, %v720
    %v723 = vlaneseq
    %v724 = vshrl.u32 %v723, 7
    %v725 = vsub.s32 0, %v724
    %v726 = vrot.slane %v721, %v725
    %v728 = vmul.f32 %v320, %v726
    %v729 = vmul.f32 %v321, %v726
    %v730 = vmul.f32 %v322, %v726
    %v731 = vmul.f32 %v323, %v726
    %v732 = vmul.f32 %v324, %v726
    %v733 = vmul.f32 %v325, %v726
    %v734 = vmul.f32 %v326, %v726
    %v735 = vmul.f32 %v327, %v726
    %v736 = vmul.f32 %v328, %v726
    %v737 = vmul.f32 %v329, %v726
    %v738 = vmul.f32 %v330, %v726
    %v739 = vmul.f32 %v331, %v726
    %v740 = vmul.f32 %v332, %v726
    %v741 = vmul.f32 %v333, %v726
    %v742 = vmul.f32 %v334, %v726
    %v743 = vmul.f32 %v335, %v726
    %v744 = vmul.f32 %v336, %v726
    %v745 = vmul.f32 %v337, %v726
    %v746 = vmul.f32 %v338, %v726
    %v747 = vmul.f32 %v339, %v726
    %v748 = vmul.f32 %v340, %v726
    %v749 = vmul.f32 %v341, %v726
    %v750 = vmul.f32 %v342, %v726
    %v751 = vmul.f32 %v343, %v726
    %v752 = vmul.f32 %v344, %v726
    %v753 = vmul.f32 %v345, %v726
    %v754 = vmul.f32 %v346, %v726
    %v755 = vmul.f32 %v347, %v726
    %v756 = vmul.f32 %v348, %v726
    %v757 = vmul.f32 %v349, %v726
    %v758 = vmul.f32 %v350, %v726
    %v759 = vmul.f32 %v351, %v726
    %v760 = vmul.f32 %v352, %v726
    %v761 = vmul.f32 %v353, %v726
    %v762 = vmul.f32 %v354, %v726
    %v763 = vmul.f32 %v355, %v726
    %v764 = vmul.f32 %v356, %v726
    %v765 = vmul.f32 %v357, %v726
    %v766 = vmul.f32 %v358, %v726
    %v767 = vmul.f32 %v359, %v726
    %v768 = vmul.f32 %v360, %v726
    %v769 = vmul.f32 %v361, %v726
    %v770 = vmul.f32 %v362, %v726
    %v771 = vmul.f32 %v363, %v726
    %v772 = vmul.f32 %v364, %v726
    %v773 = vmul.f32 %v365, %v726
    %v774 = vmul.f32 %v366, %v726
    %v775 = vmul.f32 %v367, %v726
    %v776 = vmul.f32 %v368, %v726
    %v777 = vmul.f32 %v369, %v726
    %v778 = vmul.f32 %v370, %v726
    %v779 = vmul.f32 %v371, %v726
    %v780 = vmul.f32 %v372, %v726
    %v781 = vmul.f32 %v373, %v726
    %v782 = vmul.f32 %v374, %v726
    %v783 = vmul.f32 %v375, %v726
    %v784 = vmul.f32 %v376, %v726
    %v785 = vmul.f32 %v377, %v726
    %v786 = vmul.f32 %v378, %v726
    %v787 = vmul.f32 %v379, %v726
    %v788 = vmul.f32 %v380, %v726
    %v789 = vmul.f32 %v381, %v726
    %v790 = vmul.f32 %v382, %v726
    %v791 = vmul.f32 %v383, %v726
    %v792 = vmul.f32 %v384, %v726
    %v793 = vmul.f32 %v385, %v726
    %v794 = vmul.f32 %v386, %v726
    %v795 = vmul.f32 %v387, %v726
    %v796 = vmul.f32 %v388, %v726
    %v797 = vmul.f32 %v389, %v726
    %v798 = vmul.f32 %v390, %v726
    %v799 = vmul.f32 %v391, %v726
    %v800 = vmul.f32 %v392, %v726
    %v801 = vmul.f32 %v393, %v726
    %v802 = vmul.f32 %v394, %v726
    %v803 = vmul.f32 %v395, %v726
    %v804 = vmul.f32 %v396, %v726
    %v805 = vmul.f32 %v397, %v726
    %v806 = vmul.f32 %v398, %v726
    %v807 = vmul.f32 %v399, %v726
    %v808 = vmul.f32 %v400, %v726
    %v809 = vmul.f32 %v401, %v726
    %v810 = vmul.f32 %v402, %v726
    %v811 = vmul.f32 %v403, %v726
    %v812 = vmul.f32 %v404, %v726
    %v813 = vmul.f32 %v405, %v726
    %v814 = vmul.f32 %v406, %v726
    %v815 = vmul.f32 %v407, %v726
    %v816 = vmul.f32 %v408, %v726
    %v817 = vmul.f32 %v409, %v726
    %v818 = vmul.f32 %v410, %v726
    %v819 = vmul.f32 %v411, %v726
    %v820 = vmul.f32 %v412, %v726
    %v821 = vmul.f32 %v413, %v726
    %v822 = vmul.f32 %v414, %v726
    %v823 = vmul.f32 %v415, %v726
    %v824 = vmul.f32 %v416, %v726
    %v825 = vmul.f32 %v417, %v726
    %v826 = vld [vmem:[%s3] sm:$0x1]
    %v828 = vlaneseq
    %v829 = vshrl.u32 %v828, 7
    %v830 = vsub.s32 0, %v829
    %v831 = vrot.slane %v826, %v830
    %v833 = vadd.f32 %v728, %v831
    %v834 = vadd.f32 %v729, %v831
    %v835 = vadd.f32 %v730, %v831
    %v836 = vadd.f32 %v731, %v831
    %v837 = vadd.f32 %v732, %v831
    %v838 = vadd.f32 %v733, %v831
    %v839 = vadd.f32 %v734, %v831
    %v840 = vadd.f32 %v735, %v831
    %v841 = vadd.f32 %v736, %v831
    %v842 = vadd.f32 %v737, %v831
    %v843 = vadd.f32 %v738, %v831
    %v844 = vadd.f32 %v739, %v831
    %v845 = vadd.f32 %v740, %v831
    %v846 = vadd.f32 %v741, %v831
    %v847 = vadd.f32 %v742, %v831
    %v848 = vadd.f32 %v743, %v831
    %v849 = vadd.f32 %v744, %v831
    %v850 = vadd.f32 %v745, %v831
    %v851 = vadd.f32 %v746, %v831
    %v852 = vadd.f32 %v747, %v831
    %v853 = vadd.f32 %v748, %v831
    %v854 = vadd.f32 %v749, %v831
    %v855 = vadd.f32 %v750, %v831
    %v856 = vadd.f32 %v751, %v831
    %v857 = vadd.f32 %v752, %v831
    %v858 = vadd.f32 %v753, %v831
    %v859 = vadd.f32 %v754, %v831
    %v860 = vadd.f32 %v755, %v831
    %v861 = vadd.f32 %v756, %v831
    %v862 = vadd.f32 %v757, %v831
    %v863 = vadd.f32 %v758, %v831
    %v864 = vadd.f32 %v759, %v831
    %v865 = vadd.f32 %v760, %v831
    %v866 = vadd.f32 %v761, %v831
    %v867 = vadd.f32 %v762, %v831
    %v868 = vadd.f32 %v763, %v831
    %v869 = vadd.f32 %v764, %v831
    %v870 = vadd.f32 %v765, %v831
    %v871 = vadd.f32 %v766, %v831
    %v872 = vadd.f32 %v767, %v831
    %v873 = vadd.f32 %v768, %v831
    %v874 = vadd.f32 %v769, %v831
    %v875 = vadd.f32 %v770, %v831
    %v876 = vadd.f32 %v771, %v831
    %v877 = vadd.f32 %v772, %v831
    %v878 = vadd.f32 %v773, %v831
    %v879 = vadd.f32 %v774, %v831
    %v880 = vadd.f32 %v775, %v831
    %v881 = vadd.f32 %v776, %v831
    %v882 = vadd.f32 %v777, %v831
    %v883 = vadd.f32 %v778, %v831
    %v884 = vadd.f32 %v779, %v831
    %v885 = vadd.f32 %v780, %v831
    %v886 = vadd.f32 %v781, %v831
    %v887 = vadd.f32 %v782, %v831
    %v888 = vadd.f32 %v783, %v831
    %v889 = vadd.f32 %v784, %v831
    %v890 = vadd.f32 %v785, %v831
    %v891 = vadd.f32 %v786, %v831
    %v892 = vadd.f32 %v787, %v831
    %v893 = vadd.f32 %v788, %v831
    %v894 = vadd.f32 %v789, %v831
    %v895 = vadd.f32 %v790, %v831
    %v896 = vadd.f32 %v791, %v831
    %v897 = vadd.f32 %v792, %v831
    %v898 = vadd.f32 %v793, %v831
    %v899 = vadd.f32 %v794, %v831
    %v900 = vadd.f32 %v795, %v831
    %v901 = vadd.f32 %v796, %v831
    %v902 = vadd.f32 %v797, %v831
    %v903 = vadd.f32 %v798, %v831
    %v904 = vadd.f32 %v799, %v831
    %v905 = vadd.f32 %v800, %v831
    %v906 = vadd.f32 %v801, %v831
    %v907 = vadd.f32 %v802, %v831
    %v908 = vadd.f32 %v803, %v831
    %v909 = vadd.f32 %v804, %v831
    %v910 = vadd.f32 %v805, %v831
    %v911 = vadd.f32 %v806, %v831
    %v912 = vadd.f32 %v807, %v831
    %v913 = vadd.f32 %v808, %v831
    %v914 = vadd.f32 %v809, %v831
    %v915 = vadd.f32 %v810, %v831
    %v916 = vadd.f32 %v811, %v831
    %v917 = vadd.f32 %v812, %v831
    %v918 = vadd.f32 %v813, %v831
    %v919 = vadd.f32 %v814, %v831
    %v920 = vadd.f32 %v815, %v831
    %v921 = vadd.f32 %v816, %v831
    %v922 = vadd.f32 %v817, %v831
    %v923 = vadd.f32 %v818, %v831
    %v924 = vadd.f32 %v819, %v831
    %v925 = vadd.f32 %v820, %v831
    %v926 = vadd.f32 %v821, %v831
    %v927 = vadd.f32 %v822, %v831
    %v928 = vadd.f32 %v823, %v831
    %v929 = vadd.f32 %v824, %v831
    %v930 = vadd.f32 %v825, %v831
    %v931 = vmax.f32 %v833, 0.0
    %v932 = vmax.f32 %v834, 0.0
    %v933 = vmax.f32 %v835, 0.0
    %v934 = vmax.f32 %v836, 0.0
    %v935 = vmax.f32 %v837, 0.0
    %v936 = vmax.f32 %v838, 0.0
    %v937 = vmax.f32 %v839, 0.0
    %v938 = vmax.f32 %v840, 0.0
    %v939 = vmax.f32 %v841, 0.0
    %v940 = vmax.f32 %v842, 0.0
    %v941 = vmax.f32 %v843, 0.0
    %v942 = vmax.f32 %v844, 0.0
    %v943 = vmax.f32 %v845, 0.0
    %v944 = vmax.f32 %v846, 0.0
    %v945 = vmax.f32 %v847, 0.0
    %v946 = vmax.f32 %v848, 0.0
    %v947 = vmax.f32 %v849, 0.0
    %v948 = vmax.f32 %v850, 0.0
    %v949 = vmax.f32 %v851, 0.0
    %v950 = vmax.f32 %v852, 0.0
    %v951 = vmax.f32 %v853, 0.0
    %v952 = vmax.f32 %v854, 0.0
    %v953 = vmax.f32 %v855, 0.0
    %v954 = vmax.f32 %v856, 0.0
    %v955 = vmax.f32 %v857, 0.0
    %v956 = vmax.f32 %v858, 0.0
    %v957 = vmax.f32 %v859, 0.0
    %v958 = vmax.f32 %v860, 0.0
    %v959 = vmax.f32 %v861, 0.0
    %v960 = vmax.f32 %v862, 0.0
    %v961 = vmax.f32 %v863, 0.0
    %v962 = vmax.f32 %v864, 0.0
    %v963 = vmax.f32 %v865, 0.0
    %v964 = vmax.f32 %v866, 0.0
    %v965 = vmax.f32 %v867, 0.0
    %v966 = vmax.f32 %v868, 0.0
    %v967 = vmax.f32 %v869, 0.0
    %v968 = vmax.f32 %v870, 0.0
    %v969 = vmax.f32 %v871, 0.0
    %v970 = vmax.f32 %v872, 0.0
    %v971 = vmax.f32 %v873, 0.0
    %v972 = vmax.f32 %v874, 0.0
    %v973 = vmax.f32 %v875, 0.0
    %v974 = vmax.f32 %v876, 0.0
    %v975 = vmax.f32 %v877, 0.0
    %v976 = vmax.f32 %v878, 0.0
    %v977 = vmax.f32 %v879, 0.0
    %v978 = vmax.f32 %v880, 0.0
    %v979 = vmax.f32 %v881, 0.0
    %v980 = vmax.f32 %v882, 0.0
    %v981 = vmax.f32 %v883, 0.0
    %v982 = vmax.f32 %v884, 0.0
    %v983 = vmax.f32 %v885, 0.0
    %v984 = vmax.f32 %v886, 0.0
    %v985 = vmax.f32 %v887, 0.0
    %v986 = vmax.f32 %v888, 0.0
    %v987 = vmax.f32 %v889, 0.0
    %v988 = vmax.f32 %v890, 0.0
    %v989 = vmax.f32 %v891, 0.0
    %v990 = vmax.f32 %v892, 0.0
    %v991 = vmax.f32 %v893, 0.0
    %v992 = vmax.f32 %v894, 0.0
    %v993 = vmax.f32 %v895, 0.0
    %v994 = vmax.f32 %v896, 0.0
    %v995 = vmax.f32 %v897, 0.0
    %v996 = vmax.f32 %v898, 0.0
    %v997 = vmax.f32 %v899, 0.0
    %v998 = vmax.f32 %v900, 0.0
    %v999 = vmax.f32 %v901, 0.0
    %v1000 = vmax.f32 %v902, 0.0
    %v1001 = vmax.f32 %v903, 0.0
    %v1002 = vmax.f32 %v904, 0.0
    %v1003 = vmax.f32 %v905, 0.0
    %v1004 = vmax.f32 %v906, 0.0
    %v1005 = vmax.f32 %v907, 0.0
    %v1006 = vmax.f32 %v908, 0.0
    %v1007 = vmax.f32 %v909, 0.0
    %v1008 = vmax.f32 %v910, 0.0
    %v1009 = vmax.f32 %v911, 0.0
    %v1010 = vmax.f32 %v912, 0.0
    %v1011 = vmax.f32 %v913, 0.0
    %v1012 = vmax.f32 %v914, 0.0
    %v1013 = vmax.f32 %v915, 0.0
    %v1014 = vmax.f32 %v916, 0.0
    %v1015 = vmax.f32 %v917, 0.0
    %v1016 = vmax.f32 %v918, 0.0
    %v1017 = vmax.f32 %v919, 0.0
    %v1018 = vmax.f32 %v920, 0.0
    %v1019 = vmax.f32 %v921, 0.0
    %v1020 = vmax.f32 %v922, 0.0
    %v1021 = vmax.f32 %v923, 0.0
    %v1022 = vmax.f32 %v924, 0.0
    %v1023 = vmax.f32 %v925, 0.0
    %v1024 = vmax.f32 %v926, 0.0
    %v1025 = vmax.f32 %v927, 0.0
    %v1026 = vmax.f32 %v928, 0.0
    %v1027 = vmax.f32 %v929, 0.0
    %v1028 = vmax.f32 %v930, 0.0
    %1029 = vst [vmem:[#allocation2] sm:$0xff] 0.0
    %1030 = vst [vmem:[#allocation2 + $0x8] sm:$0xff] 0.0
    %1031 = vst [vmem:[#allocation2 + $0x10] sm:$0xff] 0.0
    %1032 = vst [vmem:[#allocation2 + $0x18] sm:$0xff] 0.0
    %1033 = vst [vmem:[#allocation2 + $0x20] sm:$0xff] 0.0
    %1034 = vst [vmem:[#allocation2 + $0x28] sm:$0xff] 0.0
    %1035 = vst [vmem:[#allocation2 + $0x30] sm:$0xff] 0.0
    %1036 = vst [vmem:[#allocation2 + $0x38] sm:$0xff] 0.0
    %1037 = vst [vmem:[#allocation2 + $0x40] sm:$0xff] 0.0
    %1038 = vst [vmem:[#allocation2 + $0x48] sm:$0xff] 0.0
    %1039 = vst [vmem:[#allocation2 + $0x50] sm:$0xff] 0.0
    %1040 = vst [vmem:[#allocation2 + $0x58] sm:$0xff] 0.0
    %1041 = vst [vmem:[#allocation2 + $0x60] sm:$0xff] 0.0
    %1042 = vst [vmem:[#allocation2 + $0x68] sm:$0xff] 0.0
    %1043 = vst [vmem:[#allocation2 + $0x70] sm:$0xff] 0.0
    %1044 = vst [vmem:[#allocation2 + $0x78] sm:$0xff] 0.0
    %1045 = vst [vmem:[#allocation2 + $0x80] sm:$0xff] 0.0
    %1046 = vst [vmem:[#allocation2 + $0x88] sm:$0xff] 0.0
    %1047 = vst [vmem:[#allocation2 + $0x90] sm:$0xff] 0.0
    %1048 = vst [vmem:[#allocation2 + $0x98] sm:$0xff] 0.0
    %1049 = vst [vmem:[#allocation2 + $0xa0] sm:$0xff] 0.0
    %1050 = vst [vmem:[#allocation2 + $0xa8] sm:$0xff] 0.0
    %1051 = vst [vmem:[#allocation2 + $0xb0] sm:$0xff] 0.0
    %1052 = vst [vmem:[#allocation2 + $0xb8] sm:$0xff] 0.0
    %1053 = vst [vmem:[#allocation2 + $0xc0] sm:$0xff] 0.0
    %1054 = vst [vmem:[#allocation2 + $0xc8] sm:$0xff] 0.0
    %1055 = vst [vmem:[#allocation2 + $0xd0] sm:$0xff] 0.0
    %1056 = vst [vmem:[#allocation2 + $0xd8] sm:$0xff] 0.0
    %1057 = vst [vmem:[#allocation2 + $0xe0] sm:$0xff] 0.0
    %1058 = vst [vmem:[#allocation2 + $0xe8] sm:$0xff] 0.0
    %1059 = vst [vmem:[#allocation2 + $0xf0] sm:$0xff] 0.0
    %1060 = vst [vmem:[#allocation2 + $0xf8] sm:$0xff] 0.0
    %1061 = vst [vmem:[#allocation2 + $0x100] sm:$0xff] 0.0
    %1062 = vst [vmem:[#allocation2 + $0x108] sm:$0xff] 0.0
    %1063 = vst [vmem:[#allocation2 + $0x110] sm:$0xff] 0.0
    %1064 = vst [vmem:[#allocation2 + $0x118] sm:$0xff] 0.0
    %1065 = vst [vmem:[#allocation2 + $0x120] sm:$0xff] 0.0
    %1066 = vst [vmem:[#allocation2 + $0x128] sm:$0xff] 0.0
    %1067 = vst [vmem:[#allocation2 + $0x130] sm:$0xff] 0.0
    %1068 = vst [vmem:[#allocation2 + $0x138] sm:$0xff] 0.0
    %1069 = vst [vmem:[#allocation2 + $0x140] sm:$0xff] 0.0
    %1070 = vst [vmem:[#allocation2 + $0x148] sm:$0xff] 0.0
    %1071 = vst [vmem:[#allocation2 + $0x150] sm:$0xff] 0.0
    %1072 = vst [vmem:[#allocation2 + $0x158] sm:$0xff] 0.0
    %1073 = vst [vmem:[#allocation2 + $0x160] sm:$0xff] 0.0
    %1074 = vst [vmem:[#allocation2 + $0x168] sm:$0xff] 0.0
    %1075 = vst [vmem:[#allocation2 + $0x170] sm:$0xff] 0.0
    %1076 = vst [vmem:[#allocation2 + $0x178] sm:$0xff] 0.0
    %1077 = vst [vmem:[#allocation2 + $0x180] sm:$0xff] 0.0
    %1078 = vst [vmem:[#allocation2 + $0x188] sm:$0xff] 0.0
    %1079 = vst [vmem:[#allocation2 + $0x190] sm:$0xff] 0.0
    %1080 = vst [vmem:[#allocation2 + $0x198] sm:$0xff] 0.0
    %1081 = vst [vmem:[#allocation2 + $0x1a0] sm:$0xff] 0.0
    %1082 = vst [vmem:[#allocation2 + $0x1a8] sm:$0xff] 0.0
    %1083 = vst [vmem:[#allocation2 + $0x1b0] sm:$0xff] 0.0
    %1084 = vst [vmem:[#allocation2 + $0x1b8] sm:$0xff] 0.0
    %1085 = vst [vmem:[#allocation2 + $0x1c0] sm:$0xff] 0.0
    %1086 = vst [vmem:[#allocation2 + $0x1c8] sm:$0xff] 0.0
    %1087 = vst [vmem:[#allocation2 + $0x1d0] sm:$0xff] 0.0
    %1088 = vst [vmem:[#allocation2 + $0x1d8] sm:$0xff] 0.0
    %1089 = vst [vmem:[#allocation2 + $0x1e0] sm:$0xff] 0.0
    %1090 = vst [vmem:[#allocation2 + $0x1e8] sm:$0xff] 0.0
    %1091 = vst [vmem:[#allocation2 + $0x1f0] sm:$0xff] 0.0
    %1092 = vst [vmem:[#allocation2 + $0x1f8] sm:$0xff] 0.0
    %1093 = vst [vmem:[#allocation2 + $0x200] sm:$0xff] 0.0
    %1094 = vst [vmem:[#allocation2 + $0x208] sm:$0xff] 0.0
    %1095 = vst [vmem:[#allocation2 + $0x210] sm:$0xff] 0.0
    %1096 = vst [vmem:[#allocation2 + $0x218] sm:$0xff] 0.0
    %1097 = vst [vmem:[#allocation2 + $0x220] sm:$0xff] 0.0
    %1098 = vst [vmem:[#allocation2 + $0x228] sm:$0xff] 0.0
    %1099 = vst [vmem:[#allocation2 + $0x230] sm:$0xff] 0.0
    %1100 = vst [vmem:[#allocation2 + $0x238] sm:$0xff] 0.0
    %1101 = vst [vmem:[#allocation2 + $0x240] sm:$0xff] 0.0
    %1102 = vst [vmem:[#allocation2 + $0x248] sm:$0xff] 0.0
    %1103 = vst [vmem:[#allocation2 + $0x250] sm:$0xff] 0.0
    %1104 = vst [vmem:[#allocation2 + $0x258] sm:$0xff] 0.0
    %1105 = vst [vmem:[#allocation2 + $0x260] sm:$0xff] 0.0
    %1106 = vst [vmem:[#allocation2 + $0x268] sm:$0xff] 0.0
    %1107 = vst [vmem:[#allocation2 + $0x270] sm:$0xff] 0.0
    %1108 = vst [vmem:[#allocation2 + $0x278] sm:$0xff] 0.0
    %1109 = vst [vmem:[#allocation2 + $0x280] sm:$0xff] 0.0
    %1110 = vst [vmem:[#allocation2 + $0x288] sm:$0xff] 0.0
    %1111 = vst [vmem:[#allocation2 + $0x290] sm:$0xff] 0.0
    %1112 = vst [vmem:[#allocation2 + $0x298] sm:$0xff] 0.0
    %1113 = vst [vmem:[#allocation2 + $0x2a0] sm:$0xff] 0.0
    %1114 = vst [vmem:[#allocation2 + $0x2a8] sm:$0xff] 0.0
    %1115 = vst [vmem:[#allocation2 + $0x2b0] sm:$0xff] 0.0
    %1116 = vst [vmem:[#allocation2 + $0x2b8] sm:$0xff] 0.0
    %1117 = vst [vmem:[#allocation2 + $0x2c0] sm:$0xff] 0.0
    %1118 = vst [vmem:[#allocation2 + $0x2c8] sm:$0xff] 0.0
    %1119 = vst [vmem:[#allocation2 + $0x2d0] sm:$0xff] 0.0
    %1120 = vst [vmem:[#allocation2 + $0x2d8] sm:$0xff] 0.0
    %1121 = vst [vmem:[#allocation2 + $0x2e0] sm:$0xff] 0.0
    %1122 = vst [vmem:[#allocation2 + $0x2e8] sm:$0xff] 0.0
    %1123 = vst [vmem:[#allocation2 + $0x2f0] sm:$0xff] 0.0
    %1124 = vst [vmem:[#allocation2 + $0x2f8] sm:$0xff] 0.0
    %1125 = vst [vmem:[#allocation2 + $0x300] sm:$0xff] 0.0
    %1126 = vst [vmem:[#allocation2 + $0x308] sm:$0xff] 0.0
    %1127 = vst [vmem:[#allocation2 + $0x310] sm:$0xff] 0.0
    %1128 = vst [vmem:[#allocation2 + $0x318] sm:$0xff] 0.0
    %1129 = vst [vmem:[#allocation2 + $0x320] sm:$0xff] 0.0
    %1130 = vst [vmem:[#allocation2 + $0x328] sm:$0xff] 0.0
    %1131 = vst [vmem:[#allocation2 + $0x330] sm:$0xff] 0.0
    %1132 = vst [vmem:[#allocation2 + $0x338] sm:$0xff] 0.0
    %1133 = vst [vmem:[#allocation2 + $0x340] sm:$0xff] 0.0
    %1134 = vst [vmem:[#allocation2 + $0x348] sm:$0xff] 0.0
    %1135 = vst.msk [vmem:[#allocation2 + $0x20] sm:$0xff] %vm116, %v931
    %1136 = vst.msk [vmem:[#allocation2 + $0x28] sm:$0xff] %vm116, %v932
    %1137 = vst.msk [vmem:[#allocation2 + $0x30] sm:$0xff] %vm116, %v933
    %1138 = vst.msk [vmem:[#allocation2 + $0x38] sm:$0xff] %vm116, %v934
    %1139 = vst.msk [vmem:[#allocation2 + $0x40] sm:$0xff] %vm116, %v935
    %1140 = vst.msk [vmem:[#allocation2 + $0x48] sm:$0xff] %vm116, %v936
    %1141 = vst.msk [vmem:[#allocation2 + $0x50] sm:$0xff] %vm116, %v937
    %1142 = vst.msk [vmem:[#allocation2 + $0x58] sm:$0xff] %vm116, %v938
    %1143 = vst.msk [vmem:[#allocation2 + $0x60] sm:$0xff] %vm116, %v939
    %1144 = vst.msk [vmem:[#allocation2 + $0x68] sm:$0xff] %vm116, %v940
    %1145 = vst.msk [vmem:[#allocation2 + $0x70] sm:$0xff] %vm116, %v941
    %1146 = vst.msk [vmem:[#allocation2 + $0x78] sm:$0xff] %vm116, %v942
    %1147 = vst.msk [vmem:[#allocation2 + $0x80] sm:$0xff] %vm116, %v943
    %1148 = vst.msk [vmem:[#allocation2 + $0x88] sm:$0xff] %vm116, %v944
    %1149 = vst.msk [vmem:[#allocation2 + $0x90] sm:$0xff] %vm116, %v945
    %1150 = vst.msk [vmem:[#allocation2 + $0x98] sm:$0xff] %vm116, %v946
    %1151 = vst.msk [vmem:[#allocation2 + $0xa0] sm:$0xff] %vm116, %v947
    %1152 = vst.msk [vmem:[#allocation2 + $0xa8] sm:$0xff] %vm116, %v948
    %1153 = vst.msk [vmem:[#allocation2 + $0xb0] sm:$0xff] %vm116, %v949
    %1154 = vst.msk [vmem:[#allocation2 + $0xb8] sm:$0xff] %vm116, %v950
    %1155 = vst.msk [vmem:[#allocation2 + $0xc0] sm:$0xff] %vm116, %v951
    %1156 = vst.msk [vmem:[#allocation2 + $0xc8] sm:$0xff] %vm116, %v952
    %1157 = vst.msk [vmem:[#allocation2 + $0xd0] sm:$0xff] %vm116, %v953
    %1158 = vst.msk [vmem:[#allocation2 + $0xd8] sm:$0xff] %vm116, %v954
    %1159 = vst.msk [vmem:[#allocation2 + $0xe0] sm:$0xff] %vm116, %v955
    %1160 = vst.msk [vmem:[#allocation2 + $0xe8] sm:$0xff] %vm116, %v956
    %1161 = vst.msk [vmem:[#allocation2 + $0xf0] sm:$0xff] %vm116, %v957
    %1162 = vst.msk [vmem:[#allocation2 + $0xf8] sm:$0xff] %vm116, %v958
    %1163 = vst.msk [vmem:[#allocation2 + $0x100] sm:$0xff] %vm116, %v959
    %1164 = vst.msk [vmem:[#allocation2 + $0x108] sm:$0xff] %vm116, %v960
    %1165 = vst.msk [vmem:[#allocation2 + $0x110] sm:$0xff] %vm116, %v961
    %1166 = vst.msk [vmem:[#allocation2 + $0x118] sm:$0xff] %vm116, %v962
    %1167 = vst.msk [vmem:[#allocation2 + $0x120] sm:$0xff] %vm116, %v963
    %1168 = vst.msk [vmem:[#allocation2 + $0x128] sm:$0xff] %vm116, %v964
    %1169 = vst.msk [vmem:[#allocation2 + $0x130] sm:$0xff] %vm116, %v965
    %1170 = vst.msk [vmem:[#allocation2 + $0x138] sm:$0xff] %vm116, %v966
    %1171 = vst.msk [vmem:[#allocation2 + $0x140] sm:$0xff] %vm116, %v967
    %1172 = vst.msk [vmem:[#allocation2 + $0x148] sm:$0xff] %vm116, %v968
    %1173 = vst.msk [vmem:[#allocation2 + $0x150] sm:$0xff] %vm116, %v969
    %1174 = vst.msk [vmem:[#allocation2 + $0x158] sm:$0xff] %vm116, %v970
    %1175 = vst.msk [vmem:[#allocation2 + $0x160] sm:$0xff] %vm116, %v971
    %1176 = vst.msk [vmem:[#allocation2 + $0x168] sm:$0xff] %vm116, %v972
    %1177 = vst.msk [vmem:[#allocation2 + $0x170] sm:$0xff] %vm116, %v973
    %1178 = vst.msk [vmem:[#allocation2 + $0x178] sm:$0xff] %vm116, %v974
    %1179 = vst.msk [vmem:[#allocation2 + $0x180] sm:$0xff] %vm116, %v975
    %1180 = vst.msk [vmem:[#allocation2 + $0x188] sm:$0xff] %vm116, %v976
    %1181 = vst.msk [vmem:[#allocation2 + $0x190] sm:$0xff] %vm116, %v977
    %1182 = vst.msk [vmem:[#allocation2 + $0x198] sm:$0xff] %vm116, %v978
    %1183 = vst.msk [vmem:[#allocation2 + $0x1a0] sm:$0xff] %vm116, %v979
    %1184 = vst.msk [vmem:[#allocation2 + $0x1a8] sm:$0xff] %vm116, %v980
    %1185 = vst.msk [vmem:[#allocation2 + $0x1b0] sm:$0xff] %vm116, %v981
    %1186 = vst.msk [vmem:[#allocation2 + $0x1b8] sm:$0xff] %vm116, %v982
    %1187 = vst.msk [vmem:[#allocation2 + $0x1c0] sm:$0xff] %vm116, %v983
    %1188 = vst.msk [vmem:[#allocation2 + $0x1c8] sm:$0xff] %vm116, %v984
    %1189 = vst.msk [vmem:[#allocation2 + $0x1d0] sm:$0xff] %vm116, %v985
    %1190 = vst.msk [vmem:[#allocation2 + $0x1d8] sm:$0xff] %vm116, %v986
    %1191 = vst.msk [vmem:[#allocation2 + $0x1e0] sm:$0xff] %vm116, %v987
    %1192 = vst.msk [vmem:[#allocation2 + $0x1e8] sm:$0xff] %vm116, %v988
    %1193 = vst.msk [vmem:[#allocation2 + $0x1f0] sm:$0xff] %vm116, %v989
    %1194 = vst.msk [vmem:[#allocation2 + $0x1f8] sm:$0xff] %vm116, %v990
    %1195 = vst.msk [vmem:[#allocation2 + $0x200] sm:$0xff] %vm116, %v991
    %1196 = vst.msk [vmem:[#allocation2 + $0x208] sm:$0xff] %vm116, %v992
    %1197 = vst.msk [vmem:[#allocation2 + $0x210] sm:$0xff] %vm116, %v993
    %1198 = vst.msk [vmem:[#allocation2 + $0x218] sm:$0xff] %vm116, %v994
    %1199 = vst.msk [vmem:[#allocation2 + $0x220] sm:$0xff] %vm116, %v995
    %1200 = vst.msk [vmem:[#allocation2 + $0x228] sm:$0xff] %vm116, %v996
    %1201 = vst.msk [vmem:[#allocation2 + $0x230] sm:$0xff] %vm116, %v997
    %1202 = vst.msk [vmem:[#allocation2 + $0x238] sm:$0xff] %vm116, %v998
    %1203 = vst.msk [vmem:[#allocation2 + $0x240] sm:$0xff] %vm116, %v999
    %1204 = vst.msk [vmem:[#allocation2 + $0x248] sm:$0xff] %vm116, %v1000
    %1205 = vst.msk [vmem:[#allocation2 + $0x250] sm:$0xff] %vm116, %v1001
    %1206 = vst.msk [vmem:[#allocation2 + $0x258] sm:$0xff] %vm116, %v1002
    %1207 = vst.msk [vmem:[#allocation2 + $0x260] sm:$0xff] %vm116, %v1003
    %1208 = vst.msk [vmem:[#allocation2 + $0x268] sm:$0xff] %vm116, %v1004
    %1209 = vst.msk [vmem:[#allocation2 + $0x270] sm:$0xff] %vm116, %v1005
    %1210 = vst.msk [vmem:[#allocation2 + $0x278] sm:$0xff] %vm116, %v1006
    %1211 = vst.msk [vmem:[#allocation2 + $0x280] sm:$0xff] %vm116, %v1007
    %1212 = vst.msk [vmem:[#allocation2 + $0x288] sm:$0xff] %vm116, %v1008
    %1213 = vst.msk [vmem:[#allocation2 + $0x290] sm:$0xff] %vm116, %v1009
    %1214 = vst.msk [vmem:[#allocation2 + $0x298] sm:$0xff] %vm116, %v1010
    %1215 = vst.msk [vmem:[#allocation2 + $0x2a0] sm:$0xff] %vm116, %v1011
    %1216 = vst.msk [vmem:[#allocation2 + $0x2a8] sm:$0xff] %vm116, %v1012
    %1217 = vst.msk [vmem:[#allocation2 + $0x2b0] sm:$0xff] %vm116, %v1013
    %1218 = vst.msk [vmem:[#allocation2 + $0x2b8] sm:$0xff] %vm116, %v1014
    %1219 = vst.msk [vmem:[#allocation2 + $0x2c0] sm:$0xff] %vm116, %v1015
    %1220 = vst.msk [vmem:[#allocation2 + $0x2c8] sm:$0xff] %vm116, %v1016
    %1221 = vst.msk [vmem:[#allocation2 + $0x2d0] sm:$0xff] %vm116, %v1017
    %1222 = vst.msk [vmem:[#allocation2 + $0x2d8] sm:$0xff] %vm116, %v1018
    %1223 = vst.msk [vmem:[#allocation2 + $0x2e0] sm:$0xff] %vm116, %v1019
    %1224 = vst.msk [vmem:[#allocation2 + $0x2e8] sm:$0xff] %vm116, %v1020
    %1225 = vst.msk [vmem:[#allocation2 + $0x2f0] sm:$0xff] %vm116, %v1021
    %1226 = vst.msk [vmem:[#allocation2 + $0x2f8] sm:$0xff] %vm116, %v1022
    %1227 = vst.msk [vmem:[#allocation2 + $0x300] sm:$0xff] %vm116, %v1023
    %1228 = vst.msk [vmem:[#allocation2 + $0x308] sm:$0xff] %vm116, %v1024
    %1229 = vst.msk [vmem:[#allocation2 + $0x310] sm:$0xff] %vm116, %v1025
    %1230 = vst.msk [vmem:[#allocation2 + $0x318] sm:$0xff] %vm116, %v1026
    %1231 = vst.msk [vmem:[#allocation2 + $0x320] sm:$0xff] %vm116, %v1027
    %1232 = vst.msk [vmem:[#allocation2 + $0x328] sm:$0xff] %vm116, %v1028
    %v1233 = vlaneseq
    %v1234 = vshrl.u32 %v1233, 7
    %v1235 = vadd.s32 %v1234, 8
    %v1236 = vadd.s32 %v1234, 16
    %v1237 = vadd.s32 %v1234, 24
    %v1238 = vadd.s32 %v1234, 32
    %v1239 = vadd.s32 %v1234, 40
    %v1240 = vadd.s32 %v1234, 48
    %v1241 = vadd.s32 %v1234, 56
    %v1242 = vadd.s32 %v1234, 64
    %v1243 = vadd.s32 %v1234, 72
    %v1244 = vadd.s32 %v1234, 80
    %v1245 = vadd.s32 %v1234, 88
    %v1246 = vadd.s32 %v1234, 96
    %v1247 = vadd.s32 %v1234, 104
    %v1248 = vadd.s32 %v1234, 112
    %v1249 = vadd.s32 %v1234, 120
    %v1250 = vadd.s32 %v1234, 128
    %v1251 = vadd.s32 %v1234, 136
    %v1252 = vadd.s32 %v1234, 144
    %v1253 = vadd.s32 %v1234, 152
    %v1254 = vadd.s32 %v1234, 160
    %v1255 = vadd.s32 %v1234, 168
    %v1256 = vadd.s32 %v1234, 176
    %v1257 = vadd.s32 %v1234, 184
    %v1258 = vadd.s32 %v1234, 192
    %v1259 = vadd.s32 %v1234, 200
    %v1260 = vadd.s32 %v1234, 208
    %v1261 = vadd.s32 %v1234, 216
    %v1262 = vadd.s32 %v1234, 224
    %v1263 = vadd.s32 %v1234, 232
    %v1264 = vadd.s32 %v1234, 240
    %v1265 = vadd.s32 %v1234, 248
    %v1266 = vadd.s32 %v1234, 256
    %v1267 = vadd.s32 %v1234, 264
    %v1268 = vadd.s32 %v1234, 272
    %v1269 = vadd.s32 %v1234, 280
    %v1270 = vadd.s32 %v1234, 288
    %v1271 = vadd.s32 %v1234, 296
    %v1272 = vadd.s32 %v1234, 304
    %v1273 = vadd.s32 %v1234, 312
    %v1274 = vadd.s32 %v1234, 320
    %v1275 = vadd.s32 %v1234, 328
    %v1276 = vadd.s32 %v1234, 336
    %v1277 = vadd.s32 %v1234, 344
    %v1278 = vadd.s32 %v1234, 352
    %v1279 = vadd.s32 %v1234, 360
    %v1280 = vadd.s32 %v1234, 368
    %v1281 = vadd.s32 %v1234, 376
    %v1282 = vadd.s32 %v1234, 384
    %v1283 = vadd.s32 %v1234, 392
    %v1284 = vadd.s32 %v1234, 400
    %v1285 = vadd.s32 %v1234, 408
    %v1286 = vadd.s32 %v1234, 416
    %v1287 = vadd.s32 %v1234, 424
    %v1288 = vadd.s32 %v1234, 432
    %v1289 = vadd.s32 %v1234, 440
    %v1290 = vadd.s32 %v1234, 448
    %v1291 = vadd.s32 %v1234, 456
    %v1292 = vadd.s32 %v1234, 464
    %v1293 = vadd.s32 %v1234, 472
    %v1294 = vadd.s32 %v1234, 480
    %v1295 = vadd.s32 %v1234, 488
    %v1296 = vadd.s32 %v1234, 496
    %v1297 = vadd.s32 %v1234, 504
    %v1298 = vadd.s32 %v1234, 512
    %v1299 = vadd.s32 %v1234, 520
    %v1300 = vadd.s32 %v1234, 528
    %v1301 = vadd.s32 %v1234, 536
    %v1302 = vadd.s32 %v1234, 544
    %v1303 = vadd.s32 %v1234, 552
    %v1304 = vadd.s32 %v1234, 560
    %v1305 = vadd.s32 %v1234, 568
    %v1306 = vadd.s32 %v1234, 576
    %v1307 = vadd.s32 %v1234, 584
    %v1308 = vadd.s32 %v1234, 592
    %v1309 = vadd.s32 %v1234, 600
    %v1310 = vadd.s32 %v1234, 608
    %v1311 = vadd.s32 %v1234, 616
    %v1312 = vadd.s32 %v1234, 624
    %v1313 = vadd.s32 %v1234, 632
    %v1314 = vadd.s32 %v1234, 640
    %v1315 = vadd.s32 %v1234, 648
    %v1316 = vadd.s32 %v1234, 656
    %v1317 = vadd.s32 %v1234, 664
    %v1318 = vadd.s32 %v1234, 672
    %v1319 = vadd.s32 %v1234, 680
    %v1320 = vadd.s32 %v1234, 688
    %v1321 = vadd.s32 %v1234, 696
    %v1322 = vadd.s32 %v1234, 704
    %v1323 = vadd.s32 %v1234, 712
    %v1324 = vadd.s32 %v1234, 720
    %v1325 = vadd.s32 %v1234, 728
    %v1326 = vadd.s32 %v1234, 736
    %v1327 = vadd.s32 %v1234, 744
    %v1328 = vadd.s32 %v1234, 752
    %v1329 = vadd.s32 %v1234, 760
    %v1330 = vadd.s32 %v1234, 768
    %v1331 = vadd.s32 %v1234, 776
    %vm1332 = vcmp.lt.s32.totalorder %v1234, 0
    %v1333 = vsub.s32 0, %v1234
    %v1334 = vsel %vm1332, %v1333, %v1234
    %v1335 = vmul.u32.u64.compose %v1334, 2454267026
    %v1336 = vextract.low.u32 %v1335
    %v1337 = vextract.high.u32 %v1335
    %vm1338 = vc.u32 %v1336, 2454267026
    %v1339 = vsel %vm1338, 1, 0
    %v1340 = vadd.s32 %v1337, %v1339
    %v1341 = vshrl.u32 %v1340, 4
    %v1342 = vmul.u32 %v1341, 28
    %v1343 = vsub.s32 %v1334, %v1342
    %v1344 = vsub.s32 0, %v1343
    %v1345 = vsel %vm1332, %v1344, %v1343
    %vm1346 = vcmp.lt.s32.totalorder %v1235, 0
    %v1347 = vsub.s32 0, %v1235
    %v1348 = vsel %vm1346, %v1347, %v1235
    %v1349 = vmul.u32.u64.compose %v1348, 2454267026
    %v1350 = vextract.low.u32 %v1349
    %v1351 = vextract.high.u32 %v1349
    %vm1352 = vc.u32 %v1350, 2454267026
    %v1353 = vsel %vm1352, 1, 0
    %v1354 = vadd.s32 %v1351, %v1353
    %v1355 = vshrl.u32 %v1354, 4
    %v1356 = vmul.u32 %v1355, 28
    %v1357 = vsub.s32 %v1348, %v1356
    %v1358 = vsub.s32 0, %v1357
    %v1359 = vsel %vm1346, %v1358, %v1357
    %vm1360 = vcmp.lt.s32.totalorder %v1236, 0
    %v1361 = vsub.s32 0, %v1236
    %v1362 = vsel %vm1360, %v1361, %v1236
    %v1363 = vmul.u32.u64.compose %v1362, 2454267026
    %v1364 = vextract.low.u32 %v1363
    %v1365 = vextract.high.u32 %v1363
    %vm1366 = vc.u32 %v1364, 2454267026
    %v1367 = vsel %vm1366, 1, 0
    %v1368 = vadd.s32 %v1365, %v1367
    %v1369 = vshrl.u32 %v1368, 4
    %v1370 = vmul.u32 %v1369, 28
    %v1371 = vsub.s32 %v1362, %v1370
    %v1372 = vsub.s32 0, %v1371
    %v1373 = vsel %vm1360, %v1372, %v1371
    %vm1374 = vcmp.lt.s32.totalorder %v1237, 0
    %v1375 = vsub.s32 0, %v1237
    %v1376 = vsel %vm1374, %v1375, %v1237
    %v1377 = vmul.u32.u64.compose %v1376, 2454267026
    %v1378 = vextract.low.u32 %v1377
    %v1379 = vextract.high.u32 %v1377
    %vm1380 = vc.u32 %v1378, 2454267026
    %v1381 = vsel %vm1380, 1, 0
    %v1382 = vadd.s32 %v1379, %v1381
    %v1383 = vshrl.u32 %v1382, 4
    %v1384 = vmul.u32 %v1383, 28
    %v1385 = vsub.s32 %v1376, %v1384
    %v1386 = vsub.s32 0, %v1385
    %v1387 = vsel %vm1374, %v1386, %v1385
    %vm1388 = vcmp.lt.s32.totalorder %v1238, 0
    %v1389 = vsub.s32 0, %v1238
    %v1390 = vsel %vm1388, %v1389, %v1238
    %v1391 = vmul.u32.u64.compose %v1390, 2454267026
    %v1392 = vextract.low.u32 %v1391
    %v1393 = vextract.high.u32 %v1391
    %vm1394 = vc.u32 %v1392, 2454267026
    %v1395 = vsel %vm1394, 1, 0
    %v1396 = vadd.s32 %v1393, %v1395
    %v1397 = vshrl.u32 %v1396, 4
    %v1398 = vmul.u32 %v1397, 28
    %v1399 = vsub.s32 %v1390, %v1398
    %v1400 = vsub.s32 0, %v1399
    %v1401 = vsel %vm1388, %v1400, %v1399
    %vm1402 = vcmp.lt.s32.totalorder %v1239, 0
    %v1403 = vsub.s32 0, %v1239
    %v1404 = vsel %vm1402, %v1403, %v1239
    %v1405 = vmul.u32.u64.compose %v1404, 2454267026
    %v1406 = vextract.low.u32 %v1405
    %v1407 = vextract.high.u32 %v1405
    %vm1408 = vc.u32 %v1406, 2454267026
    %v1409 = vsel %vm1408, 1, 0
    %v1410 = vadd.s32 %v1407, %v1409
    %v1411 = vshrl.u32 %v1410, 4
    %v1412 = vmul.u32 %v1411, 28
    %v1413 = vsub.s32 %v1404, %v1412
    %v1414 = vsub.s32 0, %v1413
    %v1415 = vsel %vm1402, %v1414, %v1413
    %vm1416 = vcmp.lt.s32.totalorder %v1240, 0
    %v1417 = vsub.s32 0, %v1240
    %v1418 = vsel %vm1416, %v1417, %v1240
    %v1419 = vmul.u32.u64.compose %v1418, 2454267026
    %v1420 = vextract.low.u32 %v1419
    %v1421 = vextract.high.u32 %v1419
    %vm1422 = vc.u32 %v1420, 2454267026
    %v1423 = vsel %vm1422, 1, 0
    %v1424 = vadd.s32 %v1421, %v1423
    %v1425 = vshrl.u32 %v1424, 4
    %v1426 = vmul.u32 %v1425, 28
    %v1427 = vsub.s32 %v1418, %v1426
    %v1428 = vsub.s32 0, %v1427
    %v1429 = vsel %vm1416, %v1428, %v1427
    %vm1430 = vcmp.lt.s32.totalorder %v1241, 0
    %v1431 = vsub.s32 0, %v1241
    %v1432 = vsel %vm1430, %v1431, %v1241
    %v1433 = vmul.u32.u64.compose %v1432, 2454267026
    %v1434 = vextract.low.u32 %v1433
    %v1435 = vextract.high.u32 %v1433
    %vm1436 = vc.u32 %v1434, 2454267026
    %v1437 = vsel %vm1436, 1, 0
    %v1438 = vadd.s32 %v1435, %v1437
    %v1439 = vshrl.u32 %v1438, 4
    %v1440 = vmul.u32 %v1439, 28
    %v1441 = vsub.s32 %v1432, %v1440
    %v1442 = vsub.s32 0, %v1441
    %v1443 = vsel %vm1430, %v1442, %v1441
    %vm1444 = vcmp.lt.s32.totalorder %v1242, 0
    %v1445 = vsub.s32 0, %v1242
    %v1446 = vsel %vm1444, %v1445, %v1242
    %v1447 = vmul.u32.u64.compose %v1446, 2454267026
    %v1448 = vextract.low.u32 %v1447
    %v1449 = vextract.high.u32 %v1447
    %vm1450 = vc.u32 %v1448, 2454267026
    %v1451 = vsel %vm1450, 1, 0
    %v1452 = vadd.s32 %v1449, %v1451
    %v1453 = vshrl.u32 %v1452, 4
    %v1454 = vmul.u32 %v1453, 28
    %v1455 = vsub.s32 %v1446, %v1454
    %v1456 = vsub.s32 0, %v1455
    %v1457 = vsel %vm1444, %v1456, %v1455
    %vm1458 = vcmp.lt.s32.totalorder %v1243, 0
    %v1459 = vsub.s32 0, %v1243
    %v1460 = vsel %vm1458, %v1459, %v1243
    %v1461 = vmul.u32.u64.compose %v1460, 2454267026
    %v1462 = vextract.low.u32 %v1461
    %v1463 = vextract.high.u32 %v1461
    %vm1464 = vc.u32 %v1462, 2454267026
    %v1465 = vsel %vm1464, 1, 0
    %v1466 = vadd.s32 %v1463, %v1465
    %v1467 = vshrl.u32 %v1466, 4
    %v1468 = vmul.u32 %v1467, 28
    %v1469 = vsub.s32 %v1460, %v1468
    %v1470 = vsub.s32 0, %v1469
    %v1471 = vsel %vm1458, %v1470, %v1469
    %vm1472 = vcmp.lt.s32.totalorder %v1244, 0
    %v1473 = vsub.s32 0, %v1244
    %v1474 = vsel %vm1472, %v1473, %v1244
    %v1475 = vmul.u32.u64.compose %v1474, 2454267026
    %v1476 = vextract.low.u32 %v1475
    %v1477 = vextract.high.u32 %v1475
    %vm1478 = vc.u32 %v1476, 2454267026
    %v1479 = vsel %vm1478, 1, 0
    %v1480 = vadd.s32 %v1477, %v1479
    %v1481 = vshrl.u32 %v1480, 4
    %v1482 = vmul.u32 %v1481, 28
    %v1483 = vsub.s32 %v1474, %v1482
    %v1484 = vsub.s32 0, %v1483
    %v1485 = vsel %vm1472, %v1484, %v1483
    %vm1486 = vcmp.lt.s32.totalorder %v1245, 0
    %v1487 = vsub.s32 0, %v1245
    %v1488 = vsel %vm1486, %v1487, %v1245
    %v1489 = vmul.u32.u64.compose %v1488, 2454267026
    %v1490 = vextract.low.u32 %v1489
    %v1491 = vextract.high.u32 %v1489
    %vm1492 = vc.u32 %v1490, 2454267026
    %v1493 = vsel %vm1492, 1, 0
    %v1494 = vadd.s32 %v1491, %v1493
    %v1495 = vshrl.u32 %v1494, 4
    %v1496 = vmul.u32 %v1495, 28
    %v1497 = vsub.s32 %v1488, %v1496
    %v1498 = vsub.s32 0, %v1497
    %v1499 = vsel %vm1486, %v1498, %v1497
    %vm1500 = vcmp.lt.s32.totalorder %v1246, 0
    %v1501 = vsub.s32 0, %v1246
    %v1502 = vsel %vm1500, %v1501, %v1246
    %v1503 = vmul.u32.u64.compose %v1502, 2454267026
    %v1504 = vextract.low.u32 %v1503
    %v1505 = vextract.high.u32 %v1503
    %vm1506 = vc.u32 %v1504, 2454267026
    %v1507 = vsel %vm1506, 1, 0
    %v1508 = vadd.s32 %v1505, %v1507
    %v1509 = vshrl.u32 %v1508, 4
    %v1510 = vmul.u32 %v1509, 28
    %v1511 = vsub.s32 %v1502, %v1510
    %v1512 = vsub.s32 0, %v1511
    %v1513 = vsel %vm1500, %v1512, %v1511
    %vm1514 = vcmp.lt.s32.totalorder %v1247, 0
    %v1515 = vsub.s32 0, %v1247
    %v1516 = vsel %vm1514, %v1515, %v1247
    %v1517 = vmul.u32.u64.compose %v1516, 2454267026
    %v1518 = vextract.low.u32 %v1517
    %v1519 = vextract.high.u32 %v1517
    %vm1520 = vc.u32 %v1518, 2454267026
    %v1521 = vsel %vm1520, 1, 0
    %v1522 = vadd.s32 %v1519, %v1521
    %v1523 = vshrl.u32 %v1522, 4
    %v1524 = vmul.u32 %v1523, 28
    %v1525 = vsub.s32 %v1516, %v1524
    %v1526 = vsub.s32 0, %v1525
    %v1527 = vsel %vm1514, %v1526, %v1525
    %vm1528 = vcmp.lt.s32.totalorder %v1248, 0
    %v1529 = vsub.s32 0, %v1248
    %v1530 = vsel %vm1528, %v1529, %v1248
    %v1531 = vmul.u32.u64.compose %v1530, 2454267026
    %v1532 = vextract.low.u32 %v1531
    %v1533 = vextract.high.u32 %v1531
    %vm1534 = vc.u32 %v1532, 2454267026
    %v1535 = vsel %vm1534, 1, 0
    %v1536 = vadd.s32 %v1533, %v1535
    %v1537 = vshrl.u32 %v1536, 4
    %v1538 = vmul.u32 %v1537, 28
    %v1539 = vsub.s32 %v1530, %v1538
    %v1540 = vsub.s32 0, %v1539
    %v1541 = vsel %vm1528, %v1540, %v1539
    %vm1542 = vcmp.lt.s32.totalorder %v1249, 0
    %v1543 = vsub.s32 0, %v1249
    %v1544 = vsel %vm1542, %v1543, %v1249
    %v1545 = vmul.u32.u64.compose %v1544, 2454267026
    %v1546 = vextract.low.u32 %v1545
    %v1547 = vextract.high.u32 %v1545
    %vm1548 = vc.u32 %v1546, 2454267026
    %v1549 = vsel %vm1548, 1, 0
    %v1550 = vadd.s32 %v1547, %v1549
    %v1551 = vshrl.u32 %v1550, 4
    %v1552 = vmul.u32 %v1551, 28
    %v1553 = vsub.s32 %v1544, %v1552
    %v1554 = vsub.s32 0, %v1553
    %v1555 = vsel %vm1542, %v1554, %v1553
    %vm1556 = vcmp.lt.s32.totalorder %v1250, 0
    %v1557 = vsub.s32 0, %v1250
    %v1558 = vsel %vm1556, %v1557, %v1250
    %v1559 = vmul.u32.u64.compose %v1558, 2454267026
    %v1560 = vextract.low.u32 %v1559
    %v1561 = vextract.high.u32 %v1559
    %vm1562 = vc.u32 %v1560, 2454267026
    %v1563 = vsel %vm1562, 1, 0
    %v1564 = vadd.s32 %v1561, %v1563
    %v1565 = vshrl.u32 %v1564, 4
    %v1566 = vmul.u32 %v1565, 28
    %v1567 = vsub.s32 %v1558, %v1566
    %v1568 = vsub.s32 0, %v1567
    %v1569 = vsel %vm1556, %v1568, %v1567
    %vm1570 = vcmp.lt.s32.totalorder %v1251, 0
    %v1571 = vsub.s32 0, %v1251
    %v1572 = vsel %vm1570, %v1571, %v1251
    %v1573 = vmul.u32.u64.compose %v1572, 2454267026
    %v1574 = vextract.low.u32 %v1573
    %v1575 = vextract.high.u32 %v1573
    %vm1576 = vc.u32 %v1574, 2454267026
    %v1577 = vsel %vm1576, 1, 0
    %v1578 = vadd.s32 %v1575, %v1577
    %v1579 = vshrl.u32 %v1578, 4
    %v1580 = vmul.u32 %v1579, 28
    %v1581 = vsub.s32 %v1572, %v1580
    %v1582 = vsub.s32 0, %v1581
    %v1583 = vsel %vm1570, %v1582, %v1581
    %vm1584 = vcmp.lt.s32.totalorder %v1252, 0
    %v1585 = vsub.s32 0, %v1252
    %v1586 = vsel %vm1584, %v1585, %v1252
    %v1587 = vmul.u32.u64.compose %v1586, 2454267026
    %v1588 = vextract.low.u32 %v1587
    %v1589 = vextract.high.u32 %v1587
    %vm1590 = vc.u32 %v1588, 2454267026
    %v1591 = vsel %vm1590, 1, 0
    %v1592 = vadd.s32 %v1589, %v1591
    %v1593 = vshrl.u32 %v1592, 4
    %v1594 = vmul.u32 %v1593, 28
    %v1595 = vsub.s32 %v1586, %v1594
    %v1596 = vsub.s32 0, %v1595
    %v1597 = vsel %vm1584, %v1596, %v1595
    %vm1598 = vcmp.lt.s32.totalorder %v1253, 0
    %v1599 = vsub.s32 0, %v1253
    %v1600 = vsel %vm1598, %v1599, %v1253
    %v1601 = vmul.u32.u64.compose %v1600, 2454267026
    %v1602 = vextract.low.u32 %v1601
    %v1603 = vextract.high.u32 %v1601
    %vm1604 = vc.u32 %v1602, 2454267026
    %v1605 = vsel %vm1604, 1, 0
    %v1606 = vadd.s32 %v1603, %v1605
    %v1607 = vshrl.u32 %v1606, 4
    %v1608 = vmul.u32 %v1607, 28
    %v1609 = vsub.s32 %v1600, %v1608
    %v1610 = vsub.s32 0, %v1609
    %v1611 = vsel %vm1598, %v1610, %v1609
    %vm1612 = vcmp.lt.s32.totalorder %v1254, 0
    %v1613 = vsub.s32 0, %v1254
    %v1614 = vsel %vm1612, %v1613, %v1254
    %v1615 = vmul.u32.u64.compose %v1614, 2454267026
    %v1616 = vextract.low.u32 %v1615
    %v1617 = vextract.high.u32 %v1615
    %vm1618 = vc.u32 %v1616, 2454267026
    %v1619 = vsel %vm1618, 1, 0
    %v1620 = vadd.s32 %v1617, %v1619
    %v1621 = vshrl.u32 %v1620, 4
    %v1622 = vmul.u32 %v1621, 28
    %v1623 = vsub.s32 %v1614, %v1622
    %v1624 = vsub.s32 0, %v1623
    %v1625 = vsel %vm1612, %v1624, %v1623
    %vm1626 = vcmp.lt.s32.totalorder %v1255, 0
    %v1627 = vsub.s32 0, %v1255
    %v1628 = vsel %vm1626, %v1627, %v1255
    %v1629 = vmul.u32.u64.compose %v1628, 2454267026
    %v1630 = vextract.low.u32 %v1629
    %v1631 = vextract.high.u32 %v1629
    %vm1632 = vc.u32 %v1630, 2454267026
    %v1633 = vsel %vm1632, 1, 0
    %v1634 = vadd.s32 %v1631, %v1633
    %v1635 = vshrl.u32 %v1634, 4
    %v1636 = vmul.u32 %v1635, 28
    %v1637 = vsub.s32 %v1628, %v1636
    %v1638 = vsub.s32 0, %v1637
    %v1639 = vsel %vm1626, %v1638, %v1637
    %vm1640 = vcmp.lt.s32.totalorder %v1256, 0
    %v1641 = vsub.s32 0, %v1256
    %v1642 = vsel %vm1640, %v1641, %v1256
    %v1643 = vmul.u32.u64.compose %v1642, 2454267026
    %v1644 = vextract.low.u32 %v1643
    %v1645 = vextract.high.u32 %v1643
    %vm1646 = vc.u32 %v1644, 2454267026
    %v1647 = vsel %vm1646, 1, 0
    %v1648 = vadd.s32 %v1645, %v1647
    %v1649 = vshrl.u32 %v1648, 4
    %v1650 = vmul.u32 %v1649, 28
    %v1651 = vsub.s32 %v1642, %v1650
    %v1652 = vsub.s32 0, %v1651
    %v1653 = vsel %vm1640, %v1652, %v1651
    %vm1654 = vcmp.lt.s32.totalorder %v1257, 0
    %v1655 = vsub.s32 0, %v1257
    %v1656 = vsel %vm1654, %v1655, %v1257
    %v1657 = vmul.u32.u64.compose %v1656, 2454267026
    %v1658 = vextract.low.u32 %v1657
    %v1659 = vextract.high.u32 %v1657
    %vm1660 = vc.u32 %v1658, 2454267026
    %v1661 = vsel %vm1660, 1, 0
    %v1662 = vadd.s32 %v1659, %v1661
    %v1663 = vshrl.u32 %v1662, 4
    %v1664 = vmul.u32 %v1663, 28
    %v1665 = vsub.s32 %v1656, %v1664
    %v1666 = vsub.s32 0, %v1665
    %v1667 = vsel %vm1654, %v1666, %v1665
    %vm1668 = vcmp.lt.s32.totalorder %v1258, 0
    %v1669 = vsub.s32 0, %v1258
    %v1670 = vsel %vm1668, %v1669, %v1258
    %v1671 = vmul.u32.u64.compose %v1670, 2454267026
    %v1672 = vextract.low.u32 %v1671
    %v1673 = vextract.high.u32 %v1671
    %vm1674 = vc.u32 %v1672, 2454267026
    %v1675 = vsel %vm1674, 1, 0
    %v1676 = vadd.s32 %v1673, %v1675
    %v1677 = vshrl.u32 %v1676, 4
    %v1678 = vmul.u32 %v1677, 28
    %v1679 = vsub.s32 %v1670, %v1678
    %v1680 = vsub.s32 0, %v1679
    %v1681 = vsel %vm1668, %v1680, %v1679
    %vm1682 = vcmp.lt.s32.totalorder %v1259, 0
    %v1683 = vsub.s32 0, %v1259
    %v1684 = vsel %vm1682, %v1683, %v1259
    %v1685 = vmul.u32.u64.compose %v1684, 2454267026
    %v1686 = vextract.low.u32 %v1685
    %v1687 = vextract.high.u32 %v1685
    %vm1688 = vc.u32 %v1686, 2454267026
    %v1689 = vsel %vm1688, 1, 0
    %v1690 = vadd.s32 %v1687, %v1689
    %v1691 = vshrl.u32 %v1690, 4
    %v1692 = vmul.u32 %v1691, 28
    %v1693 = vsub.s32 %v1684, %v1692
    %v1694 = vsub.s32 0, %v1693
    %v1695 = vsel %vm1682, %v1694, %v1693
    %vm1696 = vcmp.lt.s32.totalorder %v1260, 0
    %v1697 = vsub.s32 0, %v1260
    %v1698 = vsel %vm1696, %v1697, %v1260
    %v1699 = vmul.u32.u64.compose %v1698, 2454267026
    %v1700 = vextract.low.u32 %v1699
    %v1701 = vextract.high.u32 %v1699
    %vm1702 = vc.u32 %v1700, 2454267026
    %v1703 = vsel %vm1702, 1, 0
    %v1704 = vadd.s32 %v1701, %v1703
    %v1705 = vshrl.u32 %v1704, 4
    %v1706 = vmul.u32 %v1705, 28
    %v1707 = vsub.s32 %v1698, %v1706
    %v1708 = vsub.s32 0, %v1707
    %v1709 = vsel %vm1696, %v1708, %v1707
    %vm1710 = vcmp.lt.s32.totalorder %v1261, 0
    %v1711 = vsub.s32 0, %v1261
    %v1712 = vsel %vm1710, %v1711, %v1261
    %v1713 = vmul.u32.u64.compose %v1712, 2454267026
    %v1714 = vextract.low.u32 %v1713
    %v1715 = vextract.high.u32 %v1713
    %vm1716 = vc.u32 %v1714, 2454267026
    %v1717 = vsel %vm1716, 1, 0
    %v1718 = vadd.s32 %v1715, %v1717
    %v1719 = vshrl.u32 %v1718, 4
    %v1720 = vmul.u32 %v1719, 28
    %v1721 = vsub.s32 %v1712, %v1720
    %v1722 = vsub.s32 0, %v1721
    %v1723 = vsel %vm1710, %v1722, %v1721
    %vm1724 = vcmp.lt.s32.totalorder %v1262, 0
    %v1725 = vsub.s32 0, %v1262
    %v1726 = vsel %vm1724, %v1725, %v1262
    %v1727 = vmul.u32.u64.compose %v1726, 2454267026
    %v1728 = vextract.low.u32 %v1727
    %v1729 = vextract.high.u32 %v1727
    %vm1730 = vc.u32 %v1728, 2454267026
    %v1731 = vsel %vm1730, 1, 0
    %v1732 = vadd.s32 %v1729, %v1731
    %v1733 = vshrl.u32 %v1732, 4
    %v1734 = vmul.u32 %v1733, 28
    %v1735 = vsub.s32 %v1726, %v1734
    %v1736 = vsub.s32 0, %v1735
    %v1737 = vsel %vm1724, %v1736, %v1735
    %vm1738 = vcmp.lt.s32.totalorder %v1263, 0
    %v1739 = vsub.s32 0, %v1263
    %v1740 = vsel %vm1738, %v1739, %v1263
    %v1741 = vmul.u32.u64.compose %v1740, 2454267026
    %v1742 = vextract.low.u32 %v1741
    %v1743 = vextract.high.u32 %v1741
    %vm1744 = vc.u32 %v1742, 2454267026
    %v1745 = vsel %vm1744, 1, 0
    %v1746 = vadd.s32 %v1743, %v1745
    %v1747 = vshrl.u32 %v1746, 4
    %v1748 = vmul.u32 %v1747, 28
    %v1749 = vsub.s32 %v1740, %v1748
    %v1750 = vsub.s32 0, %v1749
    %v1751 = vsel %vm1738, %v1750, %v1749
    %vm1752 = vcmp.lt.s32.totalorder %v1264, 0
    %v1753 = vsub.s32 0, %v1264
    %v1754 = vsel %vm1752, %v1753, %v1264
    %v1755 = vmul.u32.u64.compose %v1754, 2454267026
    %v1756 = vextract.low.u32 %v1755
    %v1757 = vextract.high.u32 %v1755
    %vm1758 = vc.u32 %v1756, 2454267026
    %v1759 = vsel %vm1758, 1, 0
    %v1760 = vadd.s32 %v1757, %v1759
    %v1761 = vshrl.u32 %v1760, 4
    %v1762 = vmul.u32 %v1761, 28
    %v1763 = vsub.s32 %v1754, %v1762
    %v1764 = vsub.s32 0, %v1763
    %v1765 = vsel %vm1752, %v1764, %v1763
    %vm1766 = vcmp.lt.s32.totalorder %v1265, 0
    %v1767 = vsub.s32 0, %v1265
    %v1768 = vsel %vm1766, %v1767, %v1265
    %v1769 = vmul.u32.u64.compose %v1768, 2454267026
    %v1770 = vextract.low.u32 %v1769
    %v1771 = vextract.high.u32 %v1769
    %vm1772 = vc.u32 %v1770, 2454267026
    %v1773 = vsel %vm1772, 1, 0
    %v1774 = vadd.s32 %v1771, %v1773
    %v1775 = vshrl.u32 %v1774, 4
    %v1776 = vmul.u32 %v1775, 28
    %v1777 = vsub.s32 %v1768, %v1776
    %v1778 = vsub.s32 0, %v1777
    %v1779 = vsel %vm1766, %v1778, %v1777
    %vm1780 = vcmp.lt.s32.totalorder %v1266, 0
    %v1781 = vsub.s32 0, %v1266
    %v1782 = vsel %vm1780, %v1781, %v1266
    %v1783 = vmul.u32.u64.compose %v1782, 2454267026
    %v1784 = vextract.low.u32 %v1783
    %v1785 = vextract.high.u32 %v1783
    %vm1786 = vc.u32 %v1784, 2454267026
    %v1787 = vsel %vm1786, 1, 0
    %v1788 = vadd.s32 %v1785, %v1787
    %v1789 = vshrl.u32 %v1788, 4
    %v1790 = vmul.u32 %v1789, 28
    %v1791 = vsub.s32 %v1782, %v1790
    %v1792 = vsub.s32 0, %v1791
    %v1793 = vsel %vm1780, %v1792, %v1791
    %vm1794 = vcmp.lt.s32.totalorder %v1267, 0
    %v1795 = vsub.s32 0, %v1267
    %v1796 = vsel %vm1794, %v1795, %v1267
    %v1797 = vmul.u32.u64.compose %v1796, 2454267026
    %v1798 = vextract.low.u32 %v1797
    %v1799 = vextract.high.u32 %v1797
    %vm1800 = vc.u32 %v1798, 2454267026
    %v1801 = vsel %vm1800, 1, 0
    %v1802 = vadd.s32 %v1799, %v1801
    %v1803 = vshrl.u32 %v1802, 4
    %v1804 = vmul.u32 %v1803, 28
    %v1805 = vsub.s32 %v1796, %v1804
    %v1806 = vsub.s32 0, %v1805
    %v1807 = vsel %vm1794, %v1806, %v1805
    %vm1808 = vcmp.lt.s32.totalorder %v1268, 0
    %v1809 = vsub.s32 0, %v1268
    %v1810 = vsel %vm1808, %v1809, %v1268
    %v1811 = vmul.u32.u64.compose %v1810, 2454267026
    %v1812 = vextract.low.u32 %v1811
    %v1813 = vextract.high.u32 %v1811
    %vm1814 = vc.u32 %v1812, 2454267026
    %v1815 = vsel %vm1814, 1, 0
    %v1816 = vadd.s32 %v1813, %v1815
    %v1817 = vshrl.u32 %v1816, 4
    %v1818 = vmul.u32 %v1817, 28
    %v1819 = vsub.s32 %v1810, %v1818
    %v1820 = vsub.s32 0, %v1819
    %v1821 = vsel %vm1808, %v1820, %v1819
    %vm1822 = vcmp.lt.s32.totalorder %v1269, 0
    %v1823 = vsub.s32 0, %v1269
    %v1824 = vsel %vm1822, %v1823, %v1269
    %v1825 = vmul.u32.u64.compose %v1824, 2454267026
    %v1826 = vextract.low.u32 %v1825
    %v1827 = vextract.high.u32 %v1825
    %vm1828 = vc.u32 %v1826, 2454267026
    %v1829 = vsel %vm1828, 1, 0
    %v1830 = vadd.s32 %v1827, %v1829
    %v1831 = vshrl.u32 %v1830, 4
    %v1832 = vmul.u32 %v1831, 28
    %v1833 = vsub.s32 %v1824, %v1832
    %v1834 = vsub.s32 0, %v1833
    %v1835 = vsel %vm1822, %v1834, %v1833
    %vm1836 = vcmp.lt.s32.totalorder %v1270, 0
    %v1837 = vsub.s32 0, %v1270
    %v1838 = vsel %vm1836, %v1837, %v1270
    %v1839 = vmul.u32.u64.compose %v1838, 2454267026
    %v1840 = vextract.low.u32 %v1839
    %v1841 = vextract.high.u32 %v1839
    %vm1842 = vc.u32 %v1840, 2454267026
    %v1843 = vsel %vm1842, 1, 0
    %v1844 = vadd.s32 %v1841, %v1843
    %v1845 = vshrl.u32 %v1844, 4
    %v1846 = vmul.u32 %v1845, 28
    %v1847 = vsub.s32 %v1838, %v1846
    %v1848 = vsub.s32 0, %v1847
    %v1849 = vsel %vm1836, %v1848, %v1847
    %vm1850 = vcmp.lt.s32.totalorder %v1271, 0
    %v1851 = vsub.s32 0, %v1271
    %v1852 = vsel %vm1850, %v1851, %v1271
    %v1853 = vmul.u32.u64.compose %v1852, 2454267026
    %v1854 = vextract.low.u32 %v1853
    %v1855 = vextract.high.u32 %v1853
    %vm1856 = vc.u32 %v1854, 2454267026
    %v1857 = vsel %vm1856, 1, 0
    %v1858 = vadd.s32 %v1855, %v1857
    %v1859 = vshrl.u32 %v1858, 4
    %v1860 = vmul.u32 %v1859, 28
    %v1861 = vsub.s32 %v1852, %v1860
    %v1862 = vsub.s32 0, %v1861
    %v1863 = vsel %vm1850, %v1862, %v1861
    %vm1864 = vcmp.lt.s32.totalorder %v1272, 0
    %v1865 = vsub.s32 0, %v1272
    %v1866 = vsel %vm1864, %v1865, %v1272
    %v1867 = vmul.u32.u64.compose %v1866, 2454267026
    %v1868 = vextract.low.u32 %v1867
    %v1869 = vextract.high.u32 %v1867
    %vm1870 = vc.u32 %v1868, 2454267026
    %v1871 = vsel %vm1870, 1, 0
    %v1872 = vadd.s32 %v1869, %v1871
    %v1873 = vshrl.u32 %v1872, 4
    %v1874 = vmul.u32 %v1873, 28
    %v1875 = vsub.s32 %v1866, %v1874
    %v1876 = vsub.s32 0, %v1875
    %v1877 = vsel %vm1864, %v1876, %v1875
    %vm1878 = vcmp.lt.s32.totalorder %v1273, 0
    %v1879 = vsub.s32 0, %v1273
    %v1880 = vsel %vm1878, %v1879, %v1273
    %v1881 = vmul.u32.u64.compose %v1880, 2454267026
    %v1882 = vextract.low.u32 %v1881
    %v1883 = vextract.high.u32 %v1881
    %vm1884 = vc.u32 %v1882, 2454267026
    %v1885 = vsel %vm1884, 1, 0
    %v1886 = vadd.s32 %v1883, %v1885
    %v1887 = vshrl.u32 %v1886, 4
    %v1888 = vmul.u32 %v1887, 28
    %v1889 = vsub.s32 %v1880, %v1888
    %v1890 = vsub.s32 0, %v1889
    %v1891 = vsel %vm1878, %v1890, %v1889
    %vm1892 = vcmp.lt.s32.totalorder %v1274, 0
    %v1893 = vsub.s32 0, %v1274
    %v1894 = vsel %vm1892, %v1893, %v1274
    %v1895 = vmul.u32.u64.compose %v1894, 2454267026
    %v1896 = vextract.low.u32 %v1895
    %v1897 = vextract.high.u32 %v1895
    %vm1898 = vc.u32 %v1896, 2454267026
    %v1899 = vsel %vm1898, 1, 0
    %v1900 = vadd.s32 %v1897, %v1899
    %v1901 = vshrl.u32 %v1900, 4
    %v1902 = vmul.u32 %v1901, 28
    %v1903 = vsub.s32 %v1894, %v1902
    %v1904 = vsub.s32 0, %v1903
    %v1905 = vsel %vm1892, %v1904, %v1903
    %vm1906 = vcmp.lt.s32.totalorder %v1275, 0
    %v1907 = vsub.s32 0, %v1275
    %v1908 = vsel %vm1906, %v1907, %v1275
    %v1909 = vmul.u32.u64.compose %v1908, 2454267026
    %v1910 = vextract.low.u32 %v1909
    %v1911 = vextract.high.u32 %v1909
    %vm1912 = vc.u32 %v1910, 2454267026
    %v1913 = vsel %vm1912, 1, 0
    %v1914 = vadd.s32 %v1911, %v1913
    %v1915 = vshrl.u32 %v1914, 4
    %v1916 = vmul.u32 %v1915, 28
    %v1917 = vsub.s32 %v1908, %v1916
    %v1918 = vsub.s32 0, %v1917
    %v1919 = vsel %vm1906, %v1918, %v1917
    %vm1920 = vcmp.lt.s32.totalorder %v1276, 0
    %v1921 = vsub.s32 0, %v1276
    %v1922 = vsel %vm1920, %v1921, %v1276
    %v1923 = vmul.u32.u64.compose %v1922, 2454267026
    %v1924 = vextract.low.u32 %v1923
    %v1925 = vextract.high.u32 %v1923
    %vm1926 = vc.u32 %v1924, 2454267026
    %v1927 = vsel %vm1926, 1, 0
    %v1928 = vadd.s32 %v1925, %v1927
    %v1929 = vshrl.u32 %v1928, 4
    %v1930 = vmul.u32 %v1929, 28
    %v1931 = vsub.s32 %v1922, %v1930
    %v1932 = vsub.s32 0, %v1931
    %v1933 = vsel %vm1920, %v1932, %v1931
    %vm1934 = vcmp.lt.s32.totalorder %v1277, 0
    %v1935 = vsub.s32 0, %v1277
    %v1936 = vsel %vm1934, %v1935, %v1277
    %v1937 = vmul.u32.u64.compose %v1936, 2454267026
    %v1938 = vextract.low.u32 %v1937
    %v1939 = vextract.high.u32 %v1937
    %vm1940 = vc.u32 %v1938, 2454267026
    %v1941 = vsel %vm1940, 1, 0
    %v1942 = vadd.s32 %v1939, %v1941
    %v1943 = vshrl.u32 %v1942, 4
    %v1944 = vmul.u32 %v1943, 28
    %v1945 = vsub.s32 %v1936, %v1944
    %v1946 = vsub.s32 0, %v1945
    %v1947 = vsel %vm1934, %v1946, %v1945
    %vm1948 = vcmp.lt.s32.totalorder %v1278, 0
    %v1949 = vsub.s32 0, %v1278
    %v1950 = vsel %vm1948, %v1949, %v1278
    %v1951 = vmul.u32.u64.compose %v1950, 2454267026
    %v1952 = vextract.low.u32 %v1951
    %v1953 = vextract.high.u32 %v1951
    %vm1954 = vc.u32 %v1952, 2454267026
    %v1955 = vsel %vm1954, 1, 0
    %v1956 = vadd.s32 %v1953, %v1955
    %v1957 = vshrl.u32 %v1956, 4
    %v1958 = vmul.u32 %v1957, 28
    %v1959 = vsub.s32 %v1950, %v1958
    %v1960 = vsub.s32 0, %v1959
    %v1961 = vsel %vm1948, %v1960, %v1959
    %vm1962 = vcmp.lt.s32.totalorder %v1279, 0
    %v1963 = vsub.s32 0, %v1279
    %v1964 = vsel %vm1962, %v1963, %v1279
    %v1965 = vmul.u32.u64.compose %v1964, 2454267026
    %v1966 = vextract.low.u32 %v1965
    %v1967 = vextract.high.u32 %v1965
    %vm1968 = vc.u32 %v1966, 2454267026
    %v1969 = vsel %vm1968, 1, 0
    %v1970 = vadd.s32 %v1967, %v1969
    %v1971 = vshrl.u32 %v1970, 4
    %v1972 = vmul.u32 %v1971, 28
    %v1973 = vsub.s32 %v1964, %v1972
    %v1974 = vsub.s32 0, %v1973
    %v1975 = vsel %vm1962, %v1974, %v1973
    %vm1976 = vcmp.lt.s32.totalorder %v1280, 0
    %v1977 = vsub.s32 0, %v1280
    %v1978 = vsel %vm1976, %v1977, %v1280
    %v1979 = vmul.u32.u64.compose %v1978, 2454267026
    %v1980 = vextract.low.u32 %v1979
    %v1981 = vextract.high.u32 %v1979
    %vm1982 = vc.u32 %v1980, 2454267026
    %v1983 = vsel %vm1982, 1, 0
    %v1984 = vadd.s32 %v1981, %v1983
    %v1985 = vshrl.u32 %v1984, 4
    %v1986 = vmul.u32 %v1985, 28
    %v1987 = vsub.s32 %v1978, %v1986
    %v1988 = vsub.s32 0, %v1987
    %v1989 = vsel %vm1976, %v1988, %v1987
    %vm1990 = vcmp.lt.s32.totalorder %v1281, 0
    %v1991 = vsub.s32 0, %v1281
    %v1992 = vsel %vm1990, %v1991, %v1281
    %v1993 = vmul.u32.u64.compose %v1992, 2454267026
    %v1994 = vextract.low.u32 %v1993
    %v1995 = vextract.high.u32 %v1993
    %vm1996 = vc.u32 %v1994, 2454267026
    %v1997 = vsel %vm1996, 1, 0
    %v1998 = vadd.s32 %v1995, %v1997
    %v1999 = vshrl.u32 %v1998, 4
    %v2000 = vmul.u32 %v1999, 28
    %v2001 = vsub.s32 %v1992, %v2000
    %v2002 = vsub.s32 0, %v2001
    %v2003 = vsel %vm1990, %v2002, %v2001
    %vm2004 = vcmp.lt.s32.totalorder %v1282, 0
    %v2005 = vsub.s32 0, %v1282
    %v2006 = vsel %vm2004, %v2005, %v1282
    %v2007 = vmul.u32.u64.compose %v2006, 2454267026
    %v2008 = vextract.low.u32 %v2007
    %v2009 = vextract.high.u32 %v2007
    %vm2010 = vc.u32 %v2008, 2454267026
    %v2011 = vsel %vm2010, 1, 0
    %v2012 = vadd.s32 %v2009, %v2011
    %v2013 = vshrl.u32 %v2012, 4
    %v2014 = vmul.u32 %v2013, 28
    %v2015 = vsub.s32 %v2006, %v2014
    %v2016 = vsub.s32 0, %v2015
    %v2017 = vsel %vm2004, %v2016, %v2015
    %vm2018 = vcmp.lt.s32.totalorder %v1283, 0
    %v2019 = vsub.s32 0, %v1283
    %v2020 = vsel %vm2018, %v2019, %v1283
    %v2021 = vmul.u32.u64.compose %v2020, 2454267026
    %v2022 = vextract.low.u32 %v2021
    %v2023 = vextract.high.u32 %v2021
    %vm2024 = vc.u32 %v2022, 2454267026
    %v2025 = vsel %vm2024, 1, 0
    %v2026 = vadd.s32 %v2023, %v2025
    %v2027 = vshrl.u32 %v2026, 4
    %v2028 = vmul.u32 %v2027, 28
    %v2029 = vsub.s32 %v2020, %v2028
    %v2030 = vsub.s32 0, %v2029
    %v2031 = vsel %vm2018, %v2030, %v2029
    %vm2032 = vcmp.lt.s32.totalorder %v1284, 0
    %v2033 = vsub.s32 0, %v1284
    %v2034 = vsel %vm2032, %v2033, %v1284
    %v2035 = vmul.u32.u64.compose %v2034, 2454267026
    %v2036 = vextract.low.u32 %v2035
    %v2037 = vextract.high.u32 %v2035
    %vm2038 = vc.u32 %v2036, 2454267026
    %v2039 = vsel %vm2038, 1, 0
    %v2040 = vadd.s32 %v2037, %v2039
    %v2041 = vshrl.u32 %v2040, 4
    %v2042 = vmul.u32 %v2041, 28
    %v2043 = vsub.s32 %v2034, %v2042
    %v2044 = vsub.s32 0, %v2043
    %v2045 = vsel %vm2032, %v2044, %v2043
    %vm2046 = vcmp.lt.s32.totalorder %v1285, 0
    %v2047 = vsub.s32 0, %v1285
    %v2048 = vsel %vm2046, %v2047, %v1285
    %v2049 = vmul.u32.u64.compose %v2048, 2454267026
    %v2050 = vextract.low.u32 %v2049
    %v2051 = vextract.high.u32 %v2049
    %vm2052 = vc.u32 %v2050, 2454267026
    %v2053 = vsel %vm2052, 1, 0
    %v2054 = vadd.s32 %v2051, %v2053
    %v2055 = vshrl.u32 %v2054, 4
    %v2056 = vmul.u32 %v2055, 28
    %v2057 = vsub.s32 %v2048, %v2056
    %v2058 = vsub.s32 0, %v2057
    %v2059 = vsel %vm2046, %v2058, %v2057
    %vm2060 = vcmp.lt.s32.totalorder %v1286, 0
    %v2061 = vsub.s32 0, %v1286
    %v2062 = vsel %vm2060, %v2061, %v1286
    %v2063 = vmul.u32.u64.compose %v2062, 2454267026
    %v2064 = vextract.low.u32 %v2063
    %v2065 = vextract.high.u32 %v2063
    %vm2066 = vc.u32 %v2064, 2454267026
    %v2067 = vsel %vm2066, 1, 0
    %v2068 = vadd.s32 %v2065, %v2067
    %v2069 = vshrl.u32 %v2068, 4
    %v2070 = vmul.u32 %v2069, 28
    %v2071 = vsub.s32 %v2062, %v2070
    %v2072 = vsub.s32 0, %v2071
    %v2073 = vsel %vm2060, %v2072, %v2071
    %vm2074 = vcmp.lt.s32.totalorder %v1287, 0
    %v2075 = vsub.s32 0, %v1287
    %v2076 = vsel %vm2074, %v2075, %v1287
    %v2077 = vmul.u32.u64.compose %v2076, 2454267026
    %v2078 = vextract.low.u32 %v2077
    %v2079 = vextract.high.u32 %v2077
    %vm2080 = vc.u32 %v2078, 2454267026
    %v2081 = vsel %vm2080, 1, 0
    %v2082 = vadd.s32 %v2079, %v2081
    %v2083 = vshrl.u32 %v2082, 4
    %v2084 = vmul.u32 %v2083, 28
    %v2085 = vsub.s32 %v2076, %v2084
    %v2086 = vsub.s32 0, %v2085
    %v2087 = vsel %vm2074, %v2086, %v2085
    %vm2088 = vcmp.lt.s32.totalorder %v1288, 0
    %v2089 = vsub.s32 0, %v1288
    %v2090 = vsel %vm2088, %v2089, %v1288
    %v2091 = vmul.u32.u64.compose %v2090, 2454267026
    %v2092 = vextract.low.u32 %v2091
    %v2093 = vextract.high.u32 %v2091
    %vm2094 = vc.u32 %v2092, 2454267026
    %v2095 = vsel %vm2094, 1, 0
    %v2096 = vadd.s32 %v2093, %v2095
    %v2097 = vshrl.u32 %v2096, 4
    %v2098 = vmul.u32 %v2097, 28
    %v2099 = vsub.s32 %v2090, %v2098
    %v2100 = vsub.s32 0, %v2099
    %v2101 = vsel %vm2088, %v2100, %v2099
    %vm2102 = vcmp.lt.s32.totalorder %v1289, 0
    %v2103 = vsub.s32 0, %v1289
    %v2104 = vsel %vm2102, %v2103, %v1289
    %v2105 = vmul.u32.u64.compose %v2104, 2454267026
    %v2106 = vextract.low.u32 %v2105
    %v2107 = vextract.high.u32 %v2105
    %vm2108 = vc.u32 %v2106, 2454267026
    %v2109 = vsel %vm2108, 1, 0
    %v2110 = vadd.s32 %v2107, %v2109
    %v2111 = vshrl.u32 %v2110, 4
    %v2112 = vmul.u32 %v2111, 28
    %v2113 = vsub.s32 %v2104, %v2112
    %v2114 = vsub.s32 0, %v2113
    %v2115 = vsel %vm2102, %v2114, %v2113
    %vm2116 = vcmp.lt.s32.totalorder %v1290, 0
    %v2117 = vsub.s32 0, %v1290
    %v2118 = vsel %vm2116, %v2117, %v1290
    %v2119 = vmul.u32.u64.compose %v2118, 2454267026
    %v2120 = vextract.low.u32 %v2119
    %v2121 = vextract.high.u32 %v2119
    %vm2122 = vc.u32 %v2120, 2454267026
    %v2123 = vsel %vm2122, 1, 0
    %v2124 = vadd.s32 %v2121, %v2123
    %v2125 = vshrl.u32 %v2124, 4
    %v2126 = vmul.u32 %v2125, 28
    %v2127 = vsub.s32 %v2118, %v2126
    %v2128 = vsub.s32 0, %v2127
    %v2129 = vsel %vm2116, %v2128, %v2127
    %vm2130 = vcmp.lt.s32.totalorder %v1291, 0
    %v2131 = vsub.s32 0, %v1291
    %v2132 = vsel %vm2130, %v2131, %v1291
    %v2133 = vmul.u32.u64.compose %v2132, 2454267026
    %v2134 = vextract.low.u32 %v2133
    %v2135 = vextract.high.u32 %v2133
    %vm2136 = vc.u32 %v2134, 2454267026
    %v2137 = vsel %vm2136, 1, 0
    %v2138 = vadd.s32 %v2135, %v2137
    %v2139 = vshrl.u32 %v2138, 4
    %v2140 = vmul.u32 %v2139, 28
    %v2141 = vsub.s32 %v2132, %v2140
    %v2142 = vsub.s32 0, %v2141
    %v2143 = vsel %vm2130, %v2142, %v2141
    %vm2144 = vcmp.lt.s32.totalorder %v1292, 0
    %v2145 = vsub.s32 0, %v1292
    %v2146 = vsel %vm2144, %v2145, %v1292
    %v2147 = vmul.u32.u64.compose %v2146, 2454267026
    %v2148 = vextract.low.u32 %v2147
    %v2149 = vextract.high.u32 %v2147
    %vm2150 = vc.u32 %v2148, 2454267026
    %v2151 = vsel %vm2150, 1, 0
    %v2152 = vadd.s32 %v2149, %v2151
    %v2153 = vshrl.u32 %v2152, 4
    %v2154 = vmul.u32 %v2153, 28
    %v2155 = vsub.s32 %v2146, %v2154
    %v2156 = vsub.s32 0, %v2155
    %v2157 = vsel %vm2144, %v2156, %v2155
    %vm2158 = vcmp.lt.s32.totalorder %v1293, 0
    %v2159 = vsub.s32 0, %v1293
    %v2160 = vsel %vm2158, %v2159, %v1293
    %v2161 = vmul.u32.u64.compose %v2160, 2454267026
    %v2162 = vextract.low.u32 %v2161
    %v2163 = vextract.high.u32 %v2161
    %vm2164 = vc.u32 %v2162, 2454267026
    %v2165 = vsel %vm2164, 1, 0
    %v2166 = vadd.s32 %v2163, %v2165
    %v2167 = vshrl.u32 %v2166, 4
    %v2168 = vmul.u32 %v2167, 28
    %v2169 = vsub.s32 %v2160, %v2168
    %v2170 = vsub.s32 0, %v2169
    %v2171 = vsel %vm2158, %v2170, %v2169
    %vm2172 = vcmp.lt.s32.totalorder %v1294, 0
    %v2173 = vsub.s32 0, %v1294
    %v2174 = vsel %vm2172, %v2173, %v1294
    %v2175 = vmul.u32.u64.compose %v2174, 2454267026
    %v2176 = vextract.low.u32 %v2175
    %v2177 = vextract.high.u32 %v2175
    %vm2178 = vc.u32 %v2176, 2454267026
    %v2179 = vsel %vm2178, 1, 0
    %v2180 = vadd.s32 %v2177, %v2179
    %v2181 = vshrl.u32 %v2180, 4
    %v2182 = vmul.u32 %v2181, 28
    %v2183 = vsub.s32 %v2174, %v2182
    %v2184 = vsub.s32 0, %v2183
    %v2185 = vsel %vm2172, %v2184, %v2183
    %vm2186 = vcmp.lt.s32.totalorder %v1295, 0
    %v2187 = vsub.s32 0, %v1295
    %v2188 = vsel %vm2186, %v2187, %v1295
    %v2189 = vmul.u32.u64.compose %v2188, 2454267026
    %v2190 = vextract.low.u32 %v2189
    %v2191 = vextract.high.u32 %v2189
    %vm2192 = vc.u32 %v2190, 2454267026
    %v2193 = vsel %vm2192, 1, 0
    %v2194 = vadd.s32 %v2191, %v2193
    %v2195 = vshrl.u32 %v2194, 4
    %v2196 = vmul.u32 %v2195, 28
    %v2197 = vsub.s32 %v2188, %v2196
    %v2198 = vsub.s32 0, %v2197
    %v2199 = vsel %vm2186, %v2198, %v2197
    %vm2200 = vcmp.lt.s32.totalorder %v1296, 0
    %v2201 = vsub.s32 0, %v1296
    %v2202 = vsel %vm2200, %v2201, %v1296
    %v2203 = vmul.u32.u64.compose %v2202, 2454267026
    %v2204 = vextract.low.u32 %v2203
    %v2205 = vextract.high.u32 %v2203
    %vm2206 = vc.u32 %v2204, 2454267026
    %v2207 = vsel %vm2206, 1, 0
    %v2208 = vadd.s32 %v2205, %v2207
    %v2209 = vshrl.u32 %v2208, 4
    %v2210 = vmul.u32 %v2209, 28
    %v2211 = vsub.s32 %v2202, %v2210
    %v2212 = vsub.s32 0, %v2211
    %v2213 = vsel %vm2200, %v2212, %v2211
    %vm2214 = vcmp.lt.s32.totalorder %v1297, 0
    %v2215 = vsub.s32 0, %v1297
    %v2216 = vsel %vm2214, %v2215, %v1297
    %v2217 = vmul.u32.u64.compose %v2216, 2454267026
    %v2218 = vextract.low.u32 %v2217
    %v2219 = vextract.high.u32 %v2217
    %vm2220 = vc.u32 %v2218, 2454267026
    %v2221 = vsel %vm2220, 1, 0
    %v2222 = vadd.s32 %v2219, %v2221
    %v2223 = vshrl.u32 %v2222, 4
    %v2224 = vmul.u32 %v2223, 28
    %v2225 = vsub.s32 %v2216, %v2224
    %v2226 = vsub.s32 0, %v2225
    %v2227 = vsel %vm2214, %v2226, %v2225
    %vm2228 = vcmp.lt.s32.totalorder %v1298, 0
    %v2229 = vsub.s32 0, %v1298
    %v2230 = vsel %vm2228, %v2229, %v1298
    %v2231 = vmul.u32.u64.compose %v2230, 2454267026
    %v2232 = vextract.low.u32 %v2231
    %v2233 = vextract.high.u32 %v2231
    %vm2234 = vc.u32 %v2232, 2454267026
    %v2235 = vsel %vm2234, 1, 0
    %v2236 = vadd.s32 %v2233, %v2235
    %v2237 = vshrl.u32 %v2236, 4
    %v2238 = vmul.u32 %v2237, 28
    %v2239 = vsub.s32 %v2230, %v2238
    %v2240 = vsub.s32 0, %v2239
    %v2241 = vsel %vm2228, %v2240, %v2239
    %vm2242 = vcmp.lt.s32.totalorder %v1299, 0
    %v2243 = vsub.s32 0, %v1299
    %v2244 = vsel %vm2242, %v2243, %v1299
    %v2245 = vmul.u32.u64.compose %v2244, 2454267026
    %v2246 = vextract.low.u32 %v2245
    %v2247 = vextract.high.u32 %v2245
    %vm2248 = vc.u32 %v2246, 2454267026
    %v2249 = vsel %vm2248, 1, 0
    %v2250 = vadd.s32 %v2247, %v2249
    %v2251 = vshrl.u32 %v2250, 4
    %v2252 = vmul.u32 %v2251, 28
    %v2253 = vsub.s32 %v2244, %v2252
    %v2254 = vsub.s32 0, %v2253
    %v2255 = vsel %vm2242, %v2254, %v2253
    %vm2256 = vcmp.lt.s32.totalorder %v1300, 0
    %v2257 = vsub.s32 0, %v1300
    %v2258 = vsel %vm2256, %v2257, %v1300
    %v2259 = vmul.u32.u64.compose %v2258, 2454267026
    %v2260 = vextract.low.u32 %v2259
    %v2261 = vextract.high.u32 %v2259
    %vm2262 = vc.u32 %v2260, 2454267026
    %v2263 = vsel %vm2262, 1, 0
    %v2264 = vadd.s32 %v2261, %v2263
    %v2265 = vshrl.u32 %v2264, 4
    %v2266 = vmul.u32 %v2265, 28
    %v2267 = vsub.s32 %v2258, %v2266
    %v2268 = vsub.s32 0, %v2267
    %v2269 = vsel %vm2256, %v2268, %v2267
    %vm2270 = vcmp.lt.s32.totalorder %v1301, 0
    %v2271 = vsub.s32 0, %v1301
    %v2272 = vsel %vm2270, %v2271, %v1301
    %v2273 = vmul.u32.u64.compose %v2272, 2454267026
    %v2274 = vextract.low.u32 %v2273
    %v2275 = vextract.high.u32 %v2273
    %vm2276 = vc.u32 %v2274, 2454267026
    %v2277 = vsel %vm2276, 1, 0
    %v2278 = vadd.s32 %v2275, %v2277
    %v2279 = vshrl.u32 %v2278, 4
    %v2280 = vmul.u32 %v2279, 28
    %v2281 = vsub.s32 %v2272, %v2280
    %v2282 = vsub.s32 0, %v2281
    %v2283 = vsel %vm2270, %v2282, %v2281
    %vm2284 = vcmp.lt.s32.totalorder %v1302, 0
    %v2285 = vsub.s32 0, %v1302
    %v2286 = vsel %vm2284, %v2285, %v1302
    %v2287 = vmul.u32.u64.compose %v2286, 2454267026
    %v2288 = vextract.low.u32 %v2287
    %v2289 = vextract.high.u32 %v2287
    %vm2290 = vc.u32 %v2288, 2454267026
    %v2291 = vsel %vm2290, 1, 0
    %v2292 = vadd.s32 %v2289, %v2291
    %v2293 = vshrl.u32 %v2292, 4
    %v2294 = vmul.u32 %v2293, 28
    %v2295 = vsub.s32 %v2286, %v2294
    %v2296 = vsub.s32 0, %v2295
    %v2297 = vsel %vm2284, %v2296, %v2295
    %vm2298 = vcmp.lt.s32.totalorder %v1303, 0
    %v2299 = vsub.s32 0, %v1303
    %v2300 = vsel %vm2298, %v2299, %v1303
    %v2301 = vmul.u32.u64.compose %v2300, 2454267026
    %v2302 = vextract.low.u32 %v2301
    %v2303 = vextract.high.u32 %v2301
    %vm2304 = vc.u32 %v2302, 2454267026
    %v2305 = vsel %vm2304, 1, 0
    %v2306 = vadd.s32 %v2303, %v2305
    %v2307 = vshrl.u32 %v2306, 4
    %v2308 = vmul.u32 %v2307, 28
    %v2309 = vsub.s32 %v2300, %v2308
    %v2310 = vsub.s32 0, %v2309
    %v2311 = vsel %vm2298, %v2310, %v2309
    %vm2312 = vcmp.lt.s32.totalorder %v1304, 0
    %v2313 = vsub.s32 0, %v1304
    %v2314 = vsel %vm2312, %v2313, %v1304
    %v2315 = vmul.u32.u64.compose %v2314, 2454267026
    %v2316 = vextract.low.u32 %v2315
    %v2317 = vextract.high.u32 %v2315
    %vm2318 = vc.u32 %v2316, 2454267026
    %v2319 = vsel %vm2318, 1, 0
    %v2320 = vadd.s32 %v2317, %v2319
    %v2321 = vshrl.u32 %v2320, 4
    %v2322 = vmul.u32 %v2321, 28
    %v2323 = vsub.s32 %v2314, %v2322
    %v2324 = vsub.s32 0, %v2323
    %v2325 = vsel %vm2312, %v2324, %v2323
    %vm2326 = vcmp.lt.s32.totalorder %v1305, 0
    %v2327 = vsub.s32 0, %v1305
    %v2328 = vsel %vm2326, %v2327, %v1305
    %v2329 = vmul.u32.u64.compose %v2328, 2454267026
    %v2330 = vextract.low.u32 %v2329
    %v2331 = vextract.high.u32 %v2329
    %vm2332 = vc.u32 %v2330, 2454267026
    %v2333 = vsel %vm2332, 1, 0
    %v2334 = vadd.s32 %v2331, %v2333
    %v2335 = vshrl.u32 %v2334, 4
    %v2336 = vmul.u32 %v2335, 28
    %v2337 = vsub.s32 %v2328, %v2336
    %v2338 = vsub.s32 0, %v2337
    %v2339 = vsel %vm2326, %v2338, %v2337
    %vm2340 = vcmp.lt.s32.totalorder %v1306, 0
    %v2341 = vsub.s32 0, %v1306
    %v2342 = vsel %vm2340, %v2341, %v1306
    %v2343 = vmul.u32.u64.compose %v2342, 2454267026
    %v2344 = vextract.low.u32 %v2343
    %v2345 = vextract.high.u32 %v2343
    %vm2346 = vc.u32 %v2344, 2454267026
    %v2347 = vsel %vm2346, 1, 0
    %v2348 = vadd.s32 %v2345, %v2347
    %v2349 = vshrl.u32 %v2348, 4
    %v2350 = vmul.u32 %v2349, 28
    %v2351 = vsub.s32 %v2342, %v2350
    %v2352 = vsub.s32 0, %v2351
    %v2353 = vsel %vm2340, %v2352, %v2351
    %vm2354 = vcmp.lt.s32.totalorder %v1307, 0
    %v2355 = vsub.s32 0, %v1307
    %v2356 = vsel %vm2354, %v2355, %v1307
    %v2357 = vmul.u32.u64.compose %v2356, 2454267026
    %v2358 = vextract.low.u32 %v2357
    %v2359 = vextract.high.u32 %v2357
    %vm2360 = vc.u32 %v2358, 2454267026
    %v2361 = vsel %vm2360, 1, 0
    %v2362 = vadd.s32 %v2359, %v2361
    %v2363 = vshrl.u32 %v2362, 4
    %v2364 = vmul.u32 %v2363, 28
    %v2365 = vsub.s32 %v2356, %v2364
    %v2366 = vsub.s32 0, %v2365
    %v2367 = vsel %vm2354, %v2366, %v2365
    %vm2368 = vcmp.lt.s32.totalorder %v1308, 0
    %v2369 = vsub.s32 0, %v1308
    %v2370 = vsel %vm2368, %v2369, %v1308
    %v2371 = vmul.u32.u64.compose %v2370, 2454267026
    %v2372 = vextract.low.u32 %v2371
    %v2373 = vextract.high.u32 %v2371
    %vm2374 = vc.u32 %v2372, 2454267026
    %v2375 = vsel %vm2374, 1, 0
    %v2376 = vadd.s32 %v2373, %v2375
    %v2377 = vshrl.u32 %v2376, 4
    %v2378 = vmul.u32 %v2377, 28
    %v2379 = vsub.s32 %v2370, %v2378
    %v2380 = vsub.s32 0, %v2379
    %v2381 = vsel %vm2368, %v2380, %v2379
    %vm2382 = vcmp.lt.s32.totalorder %v1309, 0
    %v2383 = vsub.s32 0, %v1309
    %v2384 = vsel %vm2382, %v2383, %v1309
    %v2385 = vmul.u32.u64.compose %v2384, 2454267026
    %v2386 = vextract.low.u32 %v2385
    %v2387 = vextract.high.u32 %v2385
    %vm2388 = vc.u32 %v2386, 2454267026
    %v2389 = vsel %vm2388, 1, 0
    %v2390 = vadd.s32 %v2387, %v2389
    %v2391 = vshrl.u32 %v2390, 4
    %v2392 = vmul.u32 %v2391, 28
    %v2393 = vsub.s32 %v2384, %v2392
    %v2394 = vsub.s32 0, %v2393
    %v2395 = vsel %vm2382, %v2394, %v2393
    %vm2396 = vcmp.lt.s32.totalorder %v1310, 0
    %v2397 = vsub.s32 0, %v1310
    %v2398 = vsel %vm2396, %v2397, %v1310
    %v2399 = vmul.u32.u64.compose %v2398, 2454267026
    %v2400 = vextract.low.u32 %v2399
    %v2401 = vextract.high.u32 %v2399
    %vm2402 = vc.u32 %v2400, 2454267026
    %v2403 = vsel %vm2402, 1, 0
    %v2404 = vadd.s32 %v2401, %v2403
    %v2405 = vshrl.u32 %v2404, 4
    %v2406 = vmul.u32 %v2405, 28
    %v2407 = vsub.s32 %v2398, %v2406
    %v2408 = vsub.s32 0, %v2407
    %v2409 = vsel %vm2396, %v2408, %v2407
    %vm2410 = vcmp.lt.s32.totalorder %v1311, 0
    %v2411 = vsub.s32 0, %v1311
    %v2412 = vsel %vm2410, %v2411, %v1311
    %v2413 = vmul.u32.u64.compose %v2412, 2454267026
    %v2414 = vextract.low.u32 %v2413
    %v2415 = vextract.high.u32 %v2413
    %vm2416 = vc.u32 %v2414, 2454267026
    %v2417 = vsel %vm2416, 1, 0
    %v2418 = vadd.s32 %v2415, %v2417
    %v2419 = vshrl.u32 %v2418, 4
    %v2420 = vmul.u32 %v2419, 28
    %v2421 = vsub.s32 %v2412, %v2420
    %v2422 = vsub.s32 0, %v2421
    %v2423 = vsel %vm2410, %v2422, %v2421
    %vm2424 = vcmp.lt.s32.totalorder %v1312, 0
    %v2425 = vsub.s32 0, %v1312
    %v2426 = vsel %vm2424, %v2425, %v1312
    %v2427 = vmul.u32.u64.compose %v2426, 2454267026
    %v2428 = vextract.low.u32 %v2427
    %v2429 = vextract.high.u32 %v2427
    %vm2430 = vc.u32 %v2428, 2454267026
    %v2431 = vsel %vm2430, 1, 0
    %v2432 = vadd.s32 %v2429, %v2431
    %v2433 = vshrl.u32 %v2432, 4
    %v2434 = vmul.u32 %v2433, 28
    %v2435 = vsub.s32 %v2426, %v2434
    %v2436 = vsub.s32 0, %v2435
    %v2437 = vsel %vm2424, %v2436, %v2435
    %vm2438 = vcmp.lt.s32.totalorder %v1313, 0
    %v2439 = vsub.s32 0, %v1313
    %v2440 = vsel %vm2438, %v2439, %v1313
    %v2441 = vmul.u32.u64.compose %v2440, 2454267026
    %v2442 = vextract.low.u32 %v2441
    %v2443 = vextract.high.u32 %v2441
    %vm2444 = vc.u32 %v2442, 2454267026
    %v2445 = vsel %vm2444, 1, 0
    %v2446 = vadd.s32 %v2443, %v2445
    %v2447 = vshrl.u32 %v2446, 4
    %v2448 = vmul.u32 %v2447, 28
    %v2449 = vsub.s32 %v2440, %v2448
    %v2450 = vsub.s32 0, %v2449
    %v2451 = vsel %vm2438, %v2450, %v2449
    %vm2452 = vcmp.lt.s32.totalorder %v1314, 0
    %v2453 = vsub.s32 0, %v1314
    %v2454 = vsel %vm2452, %v2453, %v1314
    %v2455 = vmul.u32.u64.compose %v2454, 2454267026
    %v2456 = vextract.low.u32 %v2455
    %v2457 = vextract.high.u32 %v2455
    %vm2458 = vc.u32 %v2456, 2454267026
    %v2459 = vsel %vm2458, 1, 0
    %v2460 = vadd.s32 %v2457, %v2459
    %v2461 = vshrl.u32 %v2460, 4
    %v2462 = vmul.u32 %v2461, 28
    %v2463 = vsub.s32 %v2454, %v2462
    %v2464 = vsub.s32 0, %v2463
    %v2465 = vsel %vm2452, %v2464, %v2463
    %vm2466 = vcmp.lt.s32.totalorder %v1315, 0
    %v2467 = vsub.s32 0, %v1315
    %v2468 = vsel %vm2466, %v2467, %v1315
    %v2469 = vmul.u32.u64.compose %v2468, 2454267026
    %v2470 = vextract.low.u32 %v2469
    %v2471 = vextract.high.u32 %v2469
    %vm2472 = vc.u32 %v2470, 2454267026
    %v2473 = vsel %vm2472, 1, 0
    %v2474 = vadd.s32 %v2471, %v2473
    %v2475 = vshrl.u32 %v2474, 4
    %v2476 = vmul.u32 %v2475, 28
    %v2477 = vsub.s32 %v2468, %v2476
    %v2478 = vsub.s32 0, %v2477
    %v2479 = vsel %vm2466, %v2478, %v2477
    %vm2480 = vcmp.lt.s32.totalorder %v1316, 0
    %v2481 = vsub.s32 0, %v1316
    %v2482 = vsel %vm2480, %v2481, %v1316
    %v2483 = vmul.u32.u64.compose %v2482, 2454267026
    %v2484 = vextract.low.u32 %v2483
    %v2485 = vextract.high.u32 %v2483
    %vm2486 = vc.u32 %v2484, 2454267026
    %v2487 = vsel %vm2486, 1, 0
    %v2488 = vadd.s32 %v2485, %v2487
    %v2489 = vshrl.u32 %v2488, 4
    %v2490 = vmul.u32 %v2489, 28
    %v2491 = vsub.s32 %v2482, %v2490
    %v2492 = vsub.s32 0, %v2491
    %v2493 = vsel %vm2480, %v2492, %v2491
    %vm2494 = vcmp.lt.s32.totalorder %v1317, 0
    %v2495 = vsub.s32 0, %v1317
    %v2496 = vsel %vm2494, %v2495, %v1317
    %v2497 = vmul.u32.u64.compose %v2496, 2454267026
    %v2498 = vextract.low.u32 %v2497
    %v2499 = vextract.high.u32 %v2497
    %vm2500 = vc.u32 %v2498, 2454267026
    %v2501 = vsel %vm2500, 1, 0
    %v2502 = vadd.s32 %v2499, %v2501
    %v2503 = vshrl.u32 %v2502, 4
    %v2504 = vmul.u32 %v2503, 28
    %v2505 = vsub.s32 %v2496, %v2504
    %v2506 = vsub.s32 0, %v2505
    %v2507 = vsel %vm2494, %v2506, %v2505
    %vm2508 = vcmp.lt.s32.totalorder %v1318, 0
    %v2509 = vsub.s32 0, %v1318
    %v2510 = vsel %vm2508, %v2509, %v1318
    %v2511 = vmul.u32.u64.compose %v2510, 2454267026
    %v2512 = vextract.low.u32 %v2511
    %v2513 = vextract.high.u32 %v2511
    %vm2514 = vc.u32 %v2512, 2454267026
    %v2515 = vsel %vm2514, 1, 0
    %v2516 = vadd.s32 %v2513, %v2515
    %v2517 = vshrl.u32 %v2516, 4
    %v2518 = vmul.u32 %v2517, 28
    %v2519 = vsub.s32 %v2510, %v2518
    %v2520 = vsub.s32 0, %v2519
    %v2521 = vsel %vm2508, %v2520, %v2519
    %vm2522 = vcmp.lt.s32.totalorder %v1319, 0
    %v2523 = vsub.s32 0, %v1319
    %v2524 = vsel %vm2522, %v2523, %v1319
    %v2525 = vmul.u32.u64.compose %v2524, 2454267026
    %v2526 = vextract.low.u32 %v2525
    %v2527 = vextract.high.u32 %v2525
    %vm2528 = vc.u32 %v2526, 2454267026
    %v2529 = vsel %vm2528, 1, 0
    %v2530 = vadd.s32 %v2527, %v2529
    %v2531 = vshrl.u32 %v2530, 4
    %v2532 = vmul.u32 %v2531, 28
    %v2533 = vsub.s32 %v2524, %v2532
    %v2534 = vsub.s32 0, %v2533
    %v2535 = vsel %vm2522, %v2534, %v2533
    %vm2536 = vcmp.lt.s32.totalorder %v1320, 0
    %v2537 = vsub.s32 0, %v1320
    %v2538 = vsel %vm2536, %v2537, %v1320
    %v2539 = vmul.u32.u64.compose %v2538, 2454267026
    %v2540 = vextract.low.u32 %v2539
    %v2541 = vextract.high.u32 %v2539
    %vm2542 = vc.u32 %v2540, 2454267026
    %v2543 = vsel %vm2542, 1, 0
    %v2544 = vadd.s32 %v2541, %v2543
    %v2545 = vshrl.u32 %v2544, 4
    %v2546 = vmul.u32 %v2545, 28
    %v2547 = vsub.s32 %v2538, %v2546
    %v2548 = vsub.s32 0, %v2547
    %v2549 = vsel %vm2536, %v2548, %v2547
    %vm2550 = vcmp.lt.s32.totalorder %v1321, 0
    %v2551 = vsub.s32 0, %v1321
    %v2552 = vsel %vm2550, %v2551, %v1321
    %v2553 = vmul.u32.u64.compose %v2552, 2454267026
    %v2554 = vextract.low.u32 %v2553
    %v2555 = vextract.high.u32 %v2553
    %vm2556 = vc.u32 %v2554, 2454267026
    %v2557 = vsel %vm2556, 1, 0
    %v2558 = vadd.s32 %v2555, %v2557
    %v2559 = vshrl.u32 %v2558, 4
    %v2560 = vmul.u32 %v2559, 28
    %v2561 = vsub.s32 %v2552, %v2560
    %v2562 = vsub.s32 0, %v2561
    %v2563 = vsel %vm2550, %v2562, %v2561
    %vm2564 = vcmp.lt.s32.totalorder %v1322, 0
    %v2565 = vsub.s32 0, %v1322
    %v2566 = vsel %vm2564, %v2565, %v1322
    %v2567 = vmul.u32.u64.compose %v2566, 2454267026
    %v2568 = vextract.low.u32 %v2567
    %v2569 = vextract.high.u32 %v2567
    %vm2570 = vc.u32 %v2568, 2454267026
    %v2571 = vsel %vm2570, 1, 0
    %v2572 = vadd.s32 %v2569, %v2571
    %v2573 = vshrl.u32 %v2572, 4
    %v2574 = vmul.u32 %v2573, 28
    %v2575 = vsub.s32 %v2566, %v2574
    %v2576 = vsub.s32 0, %v2575
    %v2577 = vsel %vm2564, %v2576, %v2575
    %vm2578 = vcmp.lt.s32.totalorder %v1323, 0
    %v2579 = vsub.s32 0, %v1323
    %v2580 = vsel %vm2578, %v2579, %v1323
    %v2581 = vmul.u32.u64.compose %v2580, 2454267026
    %v2582 = vextract.low.u32 %v2581
    %v2583 = vextract.high.u32 %v2581
    %vm2584 = vc.u32 %v2582, 2454267026
    %v2585 = vsel %vm2584, 1, 0
    %v2586 = vadd.s32 %v2583, %v2585
    %v2587 = vshrl.u32 %v2586, 4
    %v2588 = vmul.u32 %v2587, 28
    %v2589 = vsub.s32 %v2580, %v2588
    %v2590 = vsub.s32 0, %v2589
    %v2591 = vsel %vm2578, %v2590, %v2589
    %vm2592 = vcmp.lt.s32.totalorder %v1324, 0
    %v2593 = vsub.s32 0, %v1324
    %v2594 = vsel %vm2592, %v2593, %v1324
    %v2595 = vmul.u32.u64.compose %v2594, 2454267026
    %v2596 = vextract.low.u32 %v2595
    %v2597 = vextract.high.u32 %v2595
    %vm2598 = vc.u32 %v2596, 2454267026
    %v2599 = vsel %vm2598, 1, 0
    %v2600 = vadd.s32 %v2597, %v2599
    %v2601 = vshrl.u32 %v2600, 4
    %v2602 = vmul.u32 %v2601, 28
    %v2603 = vsub.s32 %v2594, %v2602
    %v2604 = vsub.s32 0, %v2603
    %v2605 = vsel %vm2592, %v2604, %v2603
    %vm2606 = vcmp.lt.s32.totalorder %v1325, 0
    %v2607 = vsub.s32 0, %v1325
    %v2608 = vsel %vm2606, %v2607, %v1325
    %v2609 = vmul.u32.u64.compose %v2608, 2454267026
    %v2610 = vextract.low.u32 %v2609
    %v2611 = vextract.high.u32 %v2609
    %vm2612 = vc.u32 %v2610, 2454267026
    %v2613 = vsel %vm2612, 1, 0
    %v2614 = vadd.s32 %v2611, %v2613
    %v2615 = vshrl.u32 %v2614, 4
    %v2616 = vmul.u32 %v2615, 28
    %v2617 = vsub.s32 %v2608, %v2616
    %v2618 = vsub.s32 0, %v2617
    %v2619 = vsel %vm2606, %v2618, %v2617
    %vm2620 = vcmp.lt.s32.totalorder %v1326, 0
    %v2621 = vsub.s32 0, %v1326
    %v2622 = vsel %vm2620, %v2621, %v1326
    %v2623 = vmul.u32.u64.compose %v2622, 2454267026
    %v2624 = vextract.low.u32 %v2623
    %v2625 = vextract.high.u32 %v2623
    %vm2626 = vc.u32 %v2624, 2454267026
    %v2627 = vsel %vm2626, 1, 0
    %v2628 = vadd.s32 %v2625, %v2627
    %v2629 = vshrl.u32 %v2628, 4
    %v2630 = vmul.u32 %v2629, 28
    %v2631 = vsub.s32 %v2622, %v2630
    %v2632 = vsub.s32 0, %v2631
    %v2633 = vsel %vm2620, %v2632, %v2631
    %vm2634 = vcmp.lt.s32.totalorder %v1327, 0
    %v2635 = vsub.s32 0, %v1327
    %v2636 = vsel %vm2634, %v2635, %v1327
    %v2637 = vmul.u32.u64.compose %v2636, 2454267026
    %v2638 = vextract.low.u32 %v2637
    %v2639 = vextract.high.u32 %v2637
    %vm2640 = vc.u32 %v2638, 2454267026
    %v2641 = vsel %vm2640, 1, 0
    %v2642 = vadd.s32 %v2639, %v2641
    %v2643 = vshrl.u32 %v2642, 4
    %v2644 = vmul.u32 %v2643, 28
    %v2645 = vsub.s32 %v2636, %v2644
    %v2646 = vsub.s32 0, %v2645
    %v2647 = vsel %vm2634, %v2646, %v2645
    %vm2648 = vcmp.lt.s32.totalorder %v1328, 0
    %v2649 = vsub.s32 0, %v1328
    %v2650 = vsel %vm2648, %v2649, %v1328
    %v2651 = vmul.u32.u64.compose %v2650, 2454267026
    %v2652 = vextract.low.u32 %v2651
    %v2653 = vextract.high.u32 %v2651
    %vm2654 = vc.u32 %v2652, 2454267026
    %v2655 = vsel %vm2654, 1, 0
    %v2656 = vadd.s32 %v2653, %v2655
    %v2657 = vshrl.u32 %v2656, 4
    %v2658 = vmul.u32 %v2657, 28
    %v2659 = vsub.s32 %v2650, %v2658
    %v2660 = vsub.s32 0, %v2659
    %v2661 = vsel %vm2648, %v2660, %v2659
    %vm2662 = vcmp.lt.s32.totalorder %v1329, 0
    %v2663 = vsub.s32 0, %v1329
    %v2664 = vsel %vm2662, %v2663, %v1329
    %v2665 = vmul.u32.u64.compose %v2664, 2454267026
    %v2666 = vextract.low.u32 %v2665
    %v2667 = vextract.high.u32 %v2665
    %vm2668 = vc.u32 %v2666, 2454267026
    %v2669 = vsel %vm2668, 1, 0
    %v2670 = vadd.s32 %v2667, %v2669
    %v2671 = vshrl.u32 %v2670, 4
    %v2672 = vmul.u32 %v2671, 28
    %v2673 = vsub.s32 %v2664, %v2672
    %v2674 = vsub.s32 0, %v2673
    %v2675 = vsel %vm2662, %v2674, %v2673
    %vm2676 = vcmp.lt.s32.totalorder %v1330, 0
    %v2677 = vsub.s32 0, %v1330
    %v2678 = vsel %vm2676, %v2677, %v1330
    %v2679 = vmul.u32.u64.compose %v2678, 2454267026
    %v2680 = vextract.low.u32 %v2679
    %v2681 = vextract.high.u32 %v2679
    %vm2682 = vc.u32 %v2680, 2454267026
    %v2683 = vsel %vm2682, 1, 0
    %v2684 = vadd.s32 %v2681, %v2683
    %v2685 = vshrl.u32 %v2684, 4
    %v2686 = vmul.u32 %v2685, 28
    %v2687 = vsub.s32 %v2678, %v2686
    %v2688 = vsub.s32 0, %v2687
    %v2689 = vsel %vm2676, %v2688, %v2687
    %vm2690 = vcmp.lt.s32.totalorder %v1331, 0
    %v2691 = vsub.s32 0, %v1331
    %v2692 = vsel %vm2690, %v2691, %v1331
    %v2693 = vmul.u32.u64.compose %v2692, 2454267026
    %v2694 = vextract.low.u32 %v2693
    %v2695 = vextract.high.u32 %v2693
    %vm2696 = vc.u32 %v2694, 2454267026
    %v2697 = vsel %vm2696, 1, 0
    %v2698 = vadd.s32 %v2695, %v2697
    %v2699 = vshrl.u32 %v2698, 4
    %v2700 = vmul.u32 %v2699, 28
    %v2701 = vsub.s32 %v2692, %v2700
    %v2702 = vsub.s32 0, %v2701
    %v2703 = vsel %vm2690, %v2702, %v2701
    %vm2704 = vcmp.ne.s32.totalorder %v1345, 0
    %vm2705 = vcmp.ne.s32.totalorder %v1359, 0
    %vm2706 = vcmp.ne.s32.totalorder %v1373, 0
    %vm2707 = vcmp.ne.s32.totalorder %v1387, 0
    %vm2708 = vcmp.ne.s32.totalorder %v1401, 0
    %vm2709 = vcmp.ne.s32.totalorder %v1415, 0
    %vm2710 = vcmp.ne.s32.totalorder %v1429, 0
    %vm2711 = vcmp.ne.s32.totalorder %v1443, 0
    %vm2712 = vcmp.ne.s32.totalorder %v1457, 0
    %vm2713 = vcmp.ne.s32.totalorder %v1471, 0
    %vm2714 = vcmp.ne.s32.totalorder %v1485, 0
    %vm2715 = vcmp.ne.s32.totalorder %v1499, 0
    %vm2716 = vcmp.ne.s32.totalorder %v1513, 0
    %vm2717 = vcmp.ne.s32.totalorder %v1527, 0
    %vm2718 = vcmp.ne.s32.totalorder %v1541, 0
    %vm2719 = vcmp.ne.s32.totalorder %v1555, 0
    %vm2720 = vcmp.ne.s32.totalorder %v1569, 0
    %vm2721 = vcmp.ne.s32.totalorder %v1583, 0
    %vm2722 = vcmp.ne.s32.totalorder %v1597, 0
    %vm2723 = vcmp.ne.s32.totalorder %v1611, 0
    %vm2724 = vcmp.ne.s32.totalorder %v1625, 0
    %vm2725 = vcmp.ne.s32.totalorder %v1639, 0
    %vm2726 = vcmp.ne.s32.totalorder %v1653, 0
    %vm2727 = vcmp.ne.s32.totalorder %v1667, 0
    %vm2728 = vcmp.ne.s32.totalorder %v1681, 0
    %vm2729 = vcmp.ne.s32.totalorder %v1695, 0
    %vm2730 = vcmp.ne.s32.totalorder %v1709, 0
    %vm2731 = vcmp.ne.s32.totalorder %v1723, 0
    %vm2732 = vcmp.ne.s32.totalorder %v1737, 0
    %vm2733 = vcmp.ne.s32.totalorder %v1751, 0
    %vm2734 = vcmp.ne.s32.totalorder %v1765, 0
    %vm2735 = vcmp.ne.s32.totalorder %v1779, 0
    %vm2736 = vcmp.ne.s32.totalorder %v1793, 0
    %vm2737 = vcmp.ne.s32.totalorder %v1807, 0
    %vm2738 = vcmp.ne.s32.totalorder %v1821, 0
    %vm2739 = vcmp.ne.s32.totalorder %v1835, 0
    %vm2740 = vcmp.ne.s32.totalorder %v1849, 0
    %vm2741 = vcmp.ne.s32.totalorder %v1863, 0
    %vm2742 = vcmp.ne.s32.totalorder %v1877, 0
    %vm2743 = vcmp.ne.s32.totalorder %v1891, 0
    %vm2744 = vcmp.ne.s32.totalorder %v1905, 0
    %vm2745 = vcmp.ne.s32.totalorder %v1919, 0
    %vm2746 = vcmp.ne.s32.totalorder %v1933, 0
    %vm2747 = vcmp.ne.s32.totalorder %v1947, 0
    %vm2748 = vcmp.ne.s32.totalorder %v1961, 0
    %vm2749 = vcmp.ne.s32.totalorder %v1975, 0
    %vm2750 = vcmp.ne.s32.totalorder %v1989, 0
    %vm2751 = vcmp.ne.s32.totalorder %v2003, 0
    %vm2752 = vcmp.ne.s32.totalorder %v2017, 0
    %vm2753 = vcmp.ne.s32.totalorder %v2031, 0
    %vm2754 = vcmp.ne.s32.totalorder %v2045, 0
    %vm2755 = vcmp.ne.s32.totalorder %v2059, 0
    %vm2756 = vcmp.ne.s32.totalorder %v2073, 0
    %vm2757 = vcmp.ne.s32.totalorder %v2087, 0
    %vm2758 = vcmp.ne.s32.totalorder %v2101, 0
    %vm2759 = vcmp.ne.s32.totalorder %v2115, 0
    %vm2760 = vcmp.ne.s32.totalorder %v2129, 0
    %vm2761 = vcmp.ne.s32.totalorder %v2143, 0
    %vm2762 = vcmp.ne.s32.totalorder %v2157, 0
    %vm2763 = vcmp.ne.s32.totalorder %v2171, 0
    %vm2764 = vcmp.ne.s32.totalorder %v2185, 0
    %vm2765 = vcmp.ne.s32.totalorder %v2199, 0
    %vm2766 = vcmp.ne.s32.totalorder %v2213, 0
    %vm2767 = vcmp.ne.s32.totalorder %v2227, 0
    %vm2768 = vcmp.ne.s32.totalorder %v2241, 0
    %vm2769 = vcmp.ne.s32.totalorder %v2255, 0
    %vm2770 = vcmp.ne.s32.totalorder %v2269, 0
    %vm2771 = vcmp.ne.s32.totalorder %v2283, 0
    %vm2772 = vcmp.ne.s32.totalorder %v2297, 0
    %vm2773 = vcmp.ne.s32.totalorder %v2311, 0
    %vm2774 = vcmp.ne.s32.totalorder %v2325, 0
    %vm2775 = vcmp.ne.s32.totalorder %v2339, 0
    %vm2776 = vcmp.ne.s32.totalorder %v2353, 0
    %vm2777 = vcmp.ne.s32.totalorder %v2367, 0
    %vm2778 = vcmp.ne.s32.totalorder %v2381, 0
    %vm2779 = vcmp.ne.s32.totalorder %v2395, 0
    %vm2780 = vcmp.ne.s32.totalorder %v2409, 0
    %vm2781 = vcmp.ne.s32.totalorder %v2423, 0
    %vm2782 = vcmp.ne.s32.totalorder %v2437, 0
    %vm2783 = vcmp.ne.s32.totalorder %v2451, 0
    %vm2784 = vcmp.ne.s32.totalorder %v2465, 0
    %vm2785 = vcmp.ne.s32.totalorder %v2479, 0
    %vm2786 = vcmp.ne.s32.totalorder %v2493, 0
    %vm2787 = vcmp.ne.s32.totalorder %v2507, 0
    %vm2788 = vcmp.ne.s32.totalorder %v2521, 0
    %vm2789 = vcmp.ne.s32.totalorder %v2535, 0
    %vm2790 = vcmp.ne.s32.totalorder %v2549, 0
    %vm2791 = vcmp.ne.s32.totalorder %v2563, 0
    %vm2792 = vcmp.ne.s32.totalorder %v2577, 0
    %vm2793 = vcmp.ne.s32.totalorder %v2591, 0
    %vm2794 = vcmp.ne.s32.totalorder %v2605, 0
    %vm2795 = vcmp.ne.s32.totalorder %v2619, 0
    %vm2796 = vcmp.ne.s32.totalorder %v2633, 0
    %vm2797 = vcmp.ne.s32.totalorder %v2647, 0
    %vm2798 = vcmp.ne.s32.totalorder %v2661, 0
    %vm2799 = vcmp.ne.s32.totalorder %v2675, 0
    %vm2800 = vcmp.ne.s32.totalorder %v2689, 0
    %vm2801 = vcmp.ne.s32.totalorder %v2703, 0
    %vm2802 = vcmp.lt.s32.totalorder %v1345, 0
    %vm2803 = vcmp.lt.s32.totalorder %v1359, 0
    %vm2804 = vcmp.lt.s32.totalorder %v1373, 0
    %vm2805 = vcmp.lt.s32.totalorder %v1387, 0
    %vm2806 = vcmp.lt.s32.totalorder %v1401, 0
    %vm2807 = vcmp.lt.s32.totalorder %v1415, 0
    %vm2808 = vcmp.lt.s32.totalorder %v1429, 0
    %vm2809 = vcmp.lt.s32.totalorder %v1443, 0
    %vm2810 = vcmp.lt.s32.totalorder %v1457, 0
    %vm2811 = vcmp.lt.s32.totalorder %v1471, 0
    %vm2812 = vcmp.lt.s32.totalorder %v1485, 0
    %vm2813 = vcmp.lt.s32.totalorder %v1499, 0
    %vm2814 = vcmp.lt.s32.totalorder %v1513, 0
    %vm2815 = vcmp.lt.s32.totalorder %v1527, 0
    %vm2816 = vcmp.lt.s32.totalorder %v1541, 0
    %vm2817 = vcmp.lt.s32.totalorder %v1555, 0
    %vm2818 = vcmp.lt.s32.totalorder %v1569, 0
    %vm2819 = vcmp.lt.s32.totalorder %v1583, 0
    %vm2820 = vcmp.lt.s32.totalorder %v1597, 0
    %vm2821 = vcmp.lt.s32.totalorder %v1611, 0
    %vm2822 = vcmp.lt.s32.totalorder %v1625, 0
    %vm2823 = vcmp.lt.s32.totalorder %v1639, 0
    %vm2824 = vcmp.lt.s32.totalorder %v1653, 0
    %vm2825 = vcmp.lt.s32.totalorder %v1667, 0
    %vm2826 = vcmp.lt.s32.totalorder %v1681, 0
    %vm2827 = vcmp.lt.s32.totalorder %v1695, 0
    %vm2828 = vcmp.lt.s32.totalorder %v1709, 0
    %vm2829 = vcmp.lt.s32.totalorder %v1723, 0
    %vm2830 = vcmp.lt.s32.totalorder %v1737, 0
    %vm2831 = vcmp.lt.s32.totalorder %v1751, 0
    %vm2832 = vcmp.lt.s32.totalorder %v1765, 0
    %vm2833 = vcmp.lt.s32.totalorder %v1779, 0
    %vm2834 = vcmp.lt.s32.totalorder %v1793, 0
    %vm2835 = vcmp.lt.s32.totalorder %v1807, 0
    %vm2836 = vcmp.lt.s32.totalorder %v1821, 0
    %vm2837 = vcmp.lt.s32.totalorder %v1835, 0
    %vm2838 = vcmp.lt.s32.totalorder %v1849, 0
    %vm2839 = vcmp.lt.s32.totalorder %v1863, 0
    %vm2840 = vcmp.lt.s32.totalorder %v1877, 0
    %vm2841 = vcmp.lt.s32.totalorder %v1891, 0
    %vm2842 = vcmp.lt.s32.totalorder %v1905, 0
    %vm2843 = vcmp.lt.s32.totalorder %v1919, 0
    %vm2844 = vcmp.lt.s32.totalorder %v1933, 0
    %vm2845 = vcmp.lt.s32.totalorder %v1947, 0
    %vm2846 = vcmp.lt.s32.totalorder %v1961, 0
    %vm2847 = vcmp.lt.s32.totalorder %v1975, 0
    %vm2848 = vcmp.lt.s32.totalorder %v1989, 0
    %vm2849 = vcmp.lt.s32.totalorder %v2003, 0
    %vm2850 = vcmp.lt.s32.totalorder %v2017, 0
    %vm2851 = vcmp.lt.s32.totalorder %v2031, 0
    %vm2852 = vcmp.lt.s32.totalorder %v2045, 0
    %vm2853 = vcmp.lt.s32.totalorder %v2059, 0
    %vm2854 = vcmp.lt.s32.totalorder %v2073, 0
    %vm2855 = vcmp.lt.s32.totalorder %v2087, 0
    %vm2856 = vcmp.lt.s32.totalorder %v2101, 0
    %vm2857 = vcmp.lt.s32.totalorder %v2115, 0
    %vm2858 = vcmp.lt.s32.totalorder %v2129, 0
    %vm2859 = vcmp.lt.s32.totalorder %v2143, 0
    %vm2860 = vcmp.lt.s32.totalorder %v2157, 0
    %vm2861 = vcmp.lt.s32.totalorder %v2171, 0
    %vm2862 = vcmp.lt.s32.totalorder %v2185, 0
    %vm2863 = vcmp.lt.s32.totalorder %v2199, 0
    %vm2864 = vcmp.lt.s32.totalorder %v2213, 0
    %vm2865 = vcmp.lt.s32.totalorder %v2227, 0
    %vm2866 = vcmp.lt.s32.totalorder %v2241, 0
    %vm2867 = vcmp.lt.s32.totalorder %v2255, 0
    %vm2868 = vcmp.lt.s32.totalorder %v2269, 0
    %vm2869 = vcmp.lt.s32.totalorder %v2283, 0
    %vm2870 = vcmp.lt.s32.totalorder %v2297, 0
    %vm2871 = vcmp.lt.s32.totalorder %v2311, 0
    %vm2872 = vcmp.lt.s32.totalorder %v2325, 0
    %vm2873 = vcmp.lt.s32.totalorder %v2339, 0
    %vm2874 = vcmp.lt.s32.totalorder %v2353, 0
    %vm2875 = vcmp.lt.s32.totalorder %v2367, 0
    %vm2876 = vcmp.lt.s32.totalorder %v2381, 0
    %vm2877 = vcmp.lt.s32.totalorder %v2395, 0
    %vm2878 = vcmp.lt.s32.totalorder %v2409, 0
    %vm2879 = vcmp.lt.s32.totalorder %v2423, 0
    %vm2880 = vcmp.lt.s32.totalorder %v2437, 0
    %vm2881 = vcmp.lt.s32.totalorder %v2451, 0
    %vm2882 = vcmp.lt.s32.totalorder %v2465, 0
    %vm2883 = vcmp.lt.s32.totalorder %v2479, 0
    %vm2884 = vcmp.lt.s32.totalorder %v2493, 0
    %vm2885 = vcmp.lt.s32.totalorder %v2507, 0
    %vm2886 = vcmp.lt.s32.totalorder %v2521, 0
    %vm2887 = vcmp.lt.s32.totalorder %v2535, 0
    %vm2888 = vcmp.lt.s32.totalorder %v2549, 0
    %vm2889 = vcmp.lt.s32.totalorder %v2563, 0
    %vm2890 = vcmp.lt.s32.totalorder %v2577, 0
    %vm2891 = vcmp.lt.s32.totalorder %v2591, 0
    %vm2892 = vcmp.lt.s32.totalorder %v2605, 0
    %vm2893 = vcmp.lt.s32.totalorder %v2619, 0
    %vm2894 = vcmp.lt.s32.totalorder %v2633, 0
    %vm2895 = vcmp.lt.s32.totalorder %v2647, 0
    %vm2896 = vcmp.lt.s32.totalorder %v2661, 0
    %vm2897 = vcmp.lt.s32.totalorder %v2675, 0
    %vm2898 = vcmp.lt.s32.totalorder %v2689, 0
    %vm2899 = vcmp.lt.s32.totalorder %v2703, 0
    %vm2900 = vmand %vm2802, %vm2704
    %vm2901 = vmand %vm2803, %vm2705
    %vm2902 = vmand %vm2804, %vm2706
    %vm2903 = vmand %vm2805, %vm2707
    %vm2904 = vmand %vm2806, %vm2708
    %vm2905 = vmand %vm2807, %vm2709
    %vm2906 = vmand %vm2808, %vm2710
    %vm2907 = vmand %vm2809, %vm2711
    %vm2908 = vmand %vm2810, %vm2712
    %vm2909 = vmand %vm2811, %vm2713
    %vm2910 = vmand %vm2812, %vm2714
    %vm2911 = vmand %vm2813, %vm2715
    %vm2912 = vmand %vm2814, %vm2716
    %vm2913 = vmand %vm2815, %vm2717
    %vm2914 = vmand %vm2816, %vm2718
    %vm2915 = vmand %vm2817, %vm2719
    %vm2916 = vmand %vm2818, %vm2720
    %vm2917 = vmand %vm2819, %vm2721
    %vm2918 = vmand %vm2820, %vm2722
    %vm2919 = vmand %vm2821, %vm2723
    %vm2920 = vmand %vm2822, %vm2724
    %vm2921 = vmand %vm2823, %vm2725
    %vm2922 = vmand %vm2824, %vm2726
    %vm2923 = vmand %vm2825, %vm2727
    %vm2924 = vmand %vm2826, %vm2728
    %vm2925 = vmand %vm2827, %vm2729
    %vm2926 = vmand %vm2828, %vm2730
    %vm2927 = vmand %vm2829, %vm2731
    %vm2928 = vmand %vm2830, %vm2732
    %vm2929 = vmand %vm2831, %vm2733
    %vm2930 = vmand %vm2832, %vm2734
    %vm2931 = vmand %vm2833, %vm2735
    %vm2932 = vmand %vm2834, %vm2736
    %vm2933 = vmand %vm2835, %vm2737
    %vm2934 = vmand %vm2836, %vm2738
    %vm2935 = vmand %vm2837, %vm2739
    %vm2936 = vmand %vm2838, %vm2740
    %vm2937 = vmand %vm2839, %vm2741
    %vm2938 = vmand %vm2840, %vm2742
    %vm2939 = vmand %vm2841, %vm2743
    %vm2940 = vmand %vm2842, %vm2744
    %vm2941 = vmand %vm2843, %vm2745
    %vm2942 = vmand %vm2844, %vm2746
    %vm2943 = vmand %vm2845, %vm2747
    %vm2944 = vmand %vm2846, %vm2748
    %vm2945 = vmand %vm2847, %vm2749
    %vm2946 = vmand %vm2848, %vm2750
    %vm2947 = vmand %vm2849, %vm2751
    %vm2948 = vmand %vm2850, %vm2752
    %vm2949 = vmand %vm2851, %vm2753
    %vm2950 = vmand %vm2852, %vm2754
    %vm2951 = vmand %vm2853, %vm2755
    %vm2952 = vmand %vm2854, %vm2756
    %vm2953 = vmand %vm2855, %vm2757
    %vm2954 = vmand %vm2856, %vm2758
    %vm2955 = vmand %vm2857, %vm2759
    %vm2956 = vmand %vm2858, %vm2760
    %vm2957 = vmand %vm2859, %vm2761
    %vm2958 = vmand %vm2860, %vm2762
    %vm2959 = vmand %vm2861, %vm2763
    %vm2960 = vmand %vm2862, %vm2764
    %vm2961 = vmand %vm2863, %vm2765
    %vm2962 = vmand %vm2864, %vm2766
    %vm2963 = vmand %vm2865, %vm2767
    %vm2964 = vmand %vm2866, %vm2768
    %vm2965 = vmand %vm2867, %vm2769
    %vm2966 = vmand %vm2868, %vm2770
    %vm2967 = vmand %vm2869, %vm2771
    %vm2968 = vmand %vm2870, %vm2772
    %vm2969 = vmand %vm2871, %vm2773
    %vm2970 = vmand %vm2872, %vm2774
    %vm2971 = vmand %vm2873, %vm2775
    %vm2972 = vmand %vm2874, %vm2776
    %vm2973 = vmand %vm2875, %vm2777
    %vm2974 = vmand %vm2876, %vm2778
    %vm2975 = vmand %vm2877, %vm2779
    %vm2976 = vmand %vm2878, %vm2780
    %vm2977 = vmand %vm2879, %vm2781
    %vm2978 = vmand %vm2880, %vm2782
    %vm2979 = vmand %vm2881, %vm2783
    %vm2980 = vmand %vm2882, %vm2784
    %vm2981 = vmand %vm2883, %vm2785
    %vm2982 = vmand %vm2884, %vm2786
    %vm2983 = vmand %vm2885, %vm2787
    %vm2984 = vmand %vm2886, %vm2788
    %vm2985 = vmand %vm2887, %vm2789
    %vm2986 = vmand %vm2888, %vm2790
    %vm2987 = vmand %vm2889, %vm2791
    %vm2988 = vmand %vm2890, %vm2792
    %vm2989 = vmand %vm2891, %vm2793
    %vm2990 = vmand %vm2892, %vm2794
    %vm2991 = vmand %vm2893, %vm2795
    %vm2992 = vmand %vm2894, %vm2796
    %vm2993 = vmand %vm2895, %vm2797
    %vm2994 = vmand %vm2896, %vm2798
    %vm2995 = vmand %vm2897, %vm2799
    %vm2996 = vmand %vm2898, %vm2800
    %vm2997 = vmand %vm2899, %vm2801
    %v2998 = vadd.s32 %v1345, 28
    %v2999 = vadd.s32 %v1359, 28
    %v3000 = vadd.s32 %v1373, 28
    %v3001 = vadd.s32 %v1387, 28
    %v3002 = vadd.s32 %v1401, 28
    %v3003 = vadd.s32 %v1415, 28
    %v3004 = vadd.s32 %v1429, 28
    %v3005 = vadd.s32 %v1443, 28
    %v3006 = vadd.s32 %v1457, 28
    %v3007 = vadd.s32 %v1471, 28
    %v3008 = vadd.s32 %v1485, 28
    %v3009 = vadd.s32 %v1499, 28
    %v3010 = vadd.s32 %v1513, 28
    %v3011 = vadd.s32 %v1527, 28
    %v3012 = vadd.s32 %v1541, 28
    %v3013 = vadd.s32 %v1555, 28
    %v3014 = vadd.s32 %v1569, 28
    %v3015 = vadd.s32 %v1583, 28
    %v3016 = vadd.s32 %v1597, 28
    %v3017 = vadd.s32 %v1611, 28
    %v3018 = vadd.s32 %v1625, 28
    %v3019 = vadd.s32 %v1639, 28
    %v3020 = vadd.s32 %v1653, 28
    %v3021 = vadd.s32 %v1667, 28
    %v3022 = vadd.s32 %v1681, 28
    %v3023 = vadd.s32 %v1695, 28
    %v3024 = vadd.s32 %v1709, 28
    %v3025 = vadd.s32 %v1723, 28
    %v3026 = vadd.s32 %v1737, 28
    %v3027 = vadd.s32 %v1751, 28
    %v3028 = vadd.s32 %v1765, 28
    %v3029 = vadd.s32 %v1779, 28
    %v3030 = vadd.s32 %v1793, 28
    %v3031 = vadd.s32 %v1807, 28
    %v3032 = vadd.s32 %v1821, 28
    %v3033 = vadd.s32 %v1835, 28
    %v3034 = vadd.s32 %v1849, 28
    %v3035 = vadd.s32 %v1863, 28
    %v3036 = vadd.s32 %v1877, 28
    %v3037 = vadd.s32 %v1891, 28
    %v3038 = vadd.s32 %v1905, 28
    %v3039 = vadd.s32 %v1919, 28
    %v3040 = vadd.s32 %v1933, 28
    %v3041 = vadd.s32 %v1947, 28
    %v3042 = vadd.s32 %v1961, 28
    %v3043 = vadd.s32 %v1975, 28
    %v3044 = vadd.s32 %v1989, 28
    %v3045 = vadd.s32 %v2003, 28
    %v3046 = vadd.s32 %v2017, 28
    %v3047 = vadd.s32 %v2031, 28
    %v3048 = vadd.s32 %v2045, 28
    %v3049 = vadd.s32 %v2059, 28
    %v3050 = vadd.s32 %v2073, 28
    %v3051 = vadd.s32 %v2087, 28
    %v3052 = vadd.s32 %v2101, 28
    %v3053 = vadd.s32 %v2115, 28
    %v3054 = vadd.s32 %v2129, 28
    %v3055 = vadd.s32 %v2143, 28
    %v3056 = vadd.s32 %v2157, 28
    %v3057 = vadd.s32 %v2171, 28
    %v3058 = vadd.s32 %v2185, 28
    %v3059 = vadd.s32 %v2199, 28
    %v3060 = vadd.s32 %v2213, 28
    %v3061 = vadd.s32 %v2227, 28
    %v3062 = vadd.s32 %v2241, 28
    %v3063 = vadd.s32 %v2255, 28
    %v3064 = vadd.s32 %v2269, 28
    %v3065 = vadd.s32 %v2283, 28
    %v3066 = vadd.s32 %v2297, 28
    %v3067 = vadd.s32 %v2311, 28
    %v3068 = vadd.s32 %v2325, 28
    %v3069 = vadd.s32 %v2339, 28
    %v3070 = vadd.s32 %v2353, 28
    %v3071 = vadd.s32 %v2367, 28
    %v3072 = vadd.s32 %v2381, 28
    %v3073 = vadd.s32 %v2395, 28
    %v3074 = vadd.s32 %v2409, 28
    %v3075 = vadd.s32 %v2423, 28
    %v3076 = vadd.s32 %v2437, 28
    %v3077 = vadd.s32 %v2451, 28
    %v3078 = vadd.s32 %v2465, 28
    %v3079 = vadd.s32 %v2479, 28
    %v3080 = vadd.s32 %v2493, 28
    %v3081 = vadd.s32 %v2507, 28
    %v3082 = vadd.s32 %v2521, 28
    %v3083 = vadd.s32 %v2535, 28
    %v3084 = vadd.s32 %v2549, 28
    %v3085 = vadd.s32 %v2563, 28
    %v3086 = vadd.s32 %v2577, 28
    %v3087 = vadd.s32 %v2591, 28
    %v3088 = vadd.s32 %v2605, 28
    %v3089 = vadd.s32 %v2619, 28
    %v3090 = vadd.s32 %v2633, 28
    %v3091 = vadd.s32 %v2647, 28
    %v3092 = vadd.s32 %v2661, 28
    %v3093 = vadd.s32 %v2675, 28
    %v3094 = vadd.s32 %v2689, 28
    %v3095 = vadd.s32 %v2703, 28
    %v3096 = vsel %vm2900, %v2998, %v1345
    %v3097 = vsel %vm2901, %v2999, %v1359
    %v3098 = vsel %vm2902, %v3000, %v1373
    %v3099 = vsel %vm2903, %v3001, %v1387
    %v3100 = vsel %vm2904, %v3002, %v1401
    %v3101 = vsel %vm2905, %v3003, %v1415
    %v3102 = vsel %vm2906, %v3004, %v1429
    %v3103 = vsel %vm2907, %v3005, %v1443
    %v3104 = vsel %vm2908, %v3006, %v1457
    %v3105 = vsel %vm2909, %v3007, %v1471
    %v3106 = vsel %vm2910, %v3008, %v1485
    %v3107 = vsel %vm2911, %v3009, %v1499
    %v3108 = vsel %vm2912, %v3010, %v1513
    %v3109 = vsel %vm2913, %v3011, %v1527
    %v3110 = vsel %vm2914, %v3012, %v1541
    %v3111 = vsel %vm2915, %v3013, %v1555
    %v3112 = vsel %vm2916, %v3014, %v1569
    %v3113 = vsel %vm2917, %v3015, %v1583
    %v3114 = vsel %vm2918, %v3016, %v1597
    %v3115 = vsel %vm2919, %v3017, %v1611
    %v3116 = vsel %vm2920, %v3018, %v1625
    %v3117 = vsel %vm2921, %v3019, %v1639
    %v3118 = vsel %vm2922, %v3020, %v1653
    %v3119 = vsel %vm2923, %v3021, %v1667
    %v3120 = vsel %vm2924, %v3022, %v1681
    %v3121 = vsel %vm2925, %v3023, %v1695
    %v3122 = vsel %vm2926, %v3024, %v1709
    %v3123 = vsel %vm2927, %v3025, %v1723
    %v3124 = vsel %vm2928, %v3026, %v1737
    %v3125 = vsel %vm2929, %v3027, %v1751
    %v3126 = vsel %vm2930, %v3028, %v1765
    %v3127 = vsel %vm2931, %v3029, %v1779
    %v3128 = vsel %vm2932, %v3030, %v1793
    %v3129 = vsel %vm2933, %v3031, %v1807
    %v3130 = vsel %vm2934, %v3032, %v1821
    %v3131 = vsel %vm2935, %v3033, %v1835
    %v3132 = vsel %vm2936, %v3034, %v1849
    %v3133 = vsel %vm2937, %v3035, %v1863
    %v3134 = vsel %vm2938, %v3036, %v1877
    %v3135 = vsel %vm2939, %v3037, %v1891
    %v3136 = vsel %vm2940, %v3038, %v1905
    %v3137 = vsel %vm2941, %v3039, %v1919
    %v3138 = vsel %vm2942, %v3040, %v1933
    %v3139 = vsel %vm2943, %v3041, %v1947
    %v3140 = vsel %vm2944, %v3042, %v1961
    %v3141 = vsel %vm2945, %v3043, %v1975
    %v3142 = vsel %vm2946, %v3044, %v1989
    %v3143 = vsel %vm2947, %v3045, %v2003
    %v3144 = vsel %vm2948, %v3046, %v2017
    %v3145 = vsel %vm2949, %v3047, %v2031
    %v3146 = vsel %vm2950, %v3048, %v2045
    %v3147 = vsel %vm2951, %v3049, %v2059
    %v3148 = vsel %vm2952, %v3050, %v2073
    %v3149 = vsel %vm2953, %v3051, %v2087
    %v3150 = vsel %vm2954, %v3052, %v2101
    %v3151 = vsel %vm2955, %v3053, %v2115
    %v3152 = vsel %vm2956, %v3054, %v2129
    %v3153 = vsel %vm2957, %v3055, %v2143
    %v3154 = vsel %vm2958, %v3056, %v2157
    %v3155 = vsel %vm2959, %v3057, %v2171
    %v3156 = vsel %vm2960, %v3058, %v2185
    %v3157 = vsel %vm2961, %v3059, %v2199
    %v3158 = vsel %vm2962, %v3060, %v2213
    %v3159 = vsel %vm2963, %v3061, %v2227
    %v3160 = vsel %vm2964, %v3062, %v2241
    %v3161 = vsel %vm2965, %v3063, %v2255
    %v3162 = vsel %vm2966, %v3064, %v2269
    %v3163 = vsel %vm2967, %v3065, %v2283
    %v3164 = vsel %vm2968, %v3066, %v2297
    %v3165 = vsel %vm2969, %v3067, %v2311
    %v3166 = vsel %vm2970, %v3068, %v2325
    %v3167 = vsel %vm2971, %v3069, %v2339
    %v3168 = vsel %vm2972, %v3070, %v2353
    %v3169 = vsel %vm2973, %v3071, %v2367
    %v3170 = vsel %vm2974, %v3072, %v2381
    %v3171 = vsel %vm2975, %v3073, %v2395
    %v3172 = vsel %vm2976, %v3074, %v2409
    %v3173 = vsel %vm2977, %v3075, %v2423
    %v3174 = vsel %vm2978, %v3076, %v2437
    %v3175 = vsel %vm2979, %v3077, %v2451
    %v3176 = vsel %vm2980, %v3078, %v2465
    %v3177 = vsel %vm2981, %v3079, %v2479
    %v3178 = vsel %vm2982, %v3080, %v2493
    %v3179 = vsel %vm2983, %v3081, %v2507
    %v3180 = vsel %vm2984, %v3082, %v2521
    %v3181 = vsel %vm2985, %v3083, %v2535
    %v3182 = vsel %vm2986, %v3084, %v2549
    %v3183 = vsel %vm2987, %v3085, %v2563
    %v3184 = vsel %vm2988, %v3086, %v2577
    %v3185 = vsel %vm2989, %v3087, %v2591
    %v3186 = vsel %vm2990, %v3088, %v2605
    %v3187 = vsel %vm2991, %v3089, %v2619
    %v3188 = vsel %vm2992, %v3090, %v2633
    %v3189 = vsel %vm2993, %v3091, %v2647
    %v3190 = vsel %vm2994, %v3092, %v2661
    %v3191 = vsel %vm2995, %v3093, %v2675
    %v3192 = vsel %vm2996, %v3094, %v2689
    %v3193 = vsel %vm2997, %v3095, %v2703
    %vm3194 = vcmp.ne.s32.totalorder %v3096, 0
    %vm3195 = vcmp.ne.s32.totalorder %v3097, 0
    %vm3196 = vcmp.ne.s32.totalorder %v3098, 0
    %vm3197 = vcmp.ne.s32.totalorder %v3099, 0
    %vm3198 = vcmp.ne.s32.totalorder %v3100, 0
    %vm3199 = vcmp.ne.s32.totalorder %v3101, 0
    %vm3200 = vcmp.ne.s32.totalorder %v3102, 0
    %vm3201 = vcmp.ne.s32.totalorder %v3103, 0
    %vm3202 = vcmp.ne.s32.totalorder %v3104, 0
    %vm3203 = vcmp.ne.s32.totalorder %v3105, 0
    %vm3204 = vcmp.ne.s32.totalorder %v3106, 0
    %vm3205 = vcmp.ne.s32.totalorder %v3107, 0
    %vm3206 = vcmp.ne.s32.totalorder %v3108, 0
    %vm3207 = vcmp.ne.s32.totalorder %v3109, 0
    %vm3208 = vcmp.ne.s32.totalorder %v3110, 0
    %vm3209 = vcmp.ne.s32.totalorder %v3111, 0
    %vm3210 = vcmp.ne.s32.totalorder %v3112, 0
    %vm3211 = vcmp.ne.s32.totalorder %v3113, 0
    %vm3212 = vcmp.ne.s32.totalorder %v3114, 0
    %vm3213 = vcmp.ne.s32.totalorder %v3115, 0
    %vm3214 = vcmp.ne.s32.totalorder %v3116, 0
    %vm3215 = vcmp.ne.s32.totalorder %v3117, 0
    %vm3216 = vcmp.ne.s32.totalorder %v3118, 0
    %vm3217 = vcmp.ne.s32.totalorder %v3119, 0
    %vm3218 = vcmp.ne.s32.totalorder %v3120, 0
    %vm3219 = vcmp.ne.s32.totalorder %v3121, 0
    %vm3220 = vcmp.ne.s32.totalorder %v3122, 0
    %vm3221 = vcmp.ne.s32.totalorder %v3123, 0
    %vm3222 = vcmp.ne.s32.totalorder %v3124, 0
    %vm3223 = vcmp.ne.s32.totalorder %v3125, 0
    %vm3224 = vcmp.ne.s32.totalorder %v3126, 0
    %vm3225 = vcmp.ne.s32.totalorder %v3127, 0
    %vm3226 = vcmp.ne.s32.totalorder %v3128, 0
    %vm3227 = vcmp.ne.s32.totalorder %v3129, 0
    %vm3228 = vcmp.ne.s32.totalorder %v3130, 0
    %vm3229 = vcmp.ne.s32.totalorder %v3131, 0
    %vm3230 = vcmp.ne.s32.totalorder %v3132, 0
    %vm3231 = vcmp.ne.s32.totalorder %v3133, 0
    %vm3232 = vcmp.ne.s32.totalorder %v3134, 0
    %vm3233 = vcmp.ne.s32.totalorder %v3135, 0
    %vm3234 = vcmp.ne.s32.totalorder %v3136, 0
    %vm3235 = vcmp.ne.s32.totalorder %v3137, 0
    %vm3236 = vcmp.ne.s32.totalorder %v3138, 0
    %vm3237 = vcmp.ne.s32.totalorder %v3139, 0
    %vm3238 = vcmp.ne.s32.totalorder %v3140, 0
    %vm3239 = vcmp.ne.s32.totalorder %v3141, 0
    %vm3240 = vcmp.ne.s32.totalorder %v3142, 0
    %vm3241 = vcmp.ne.s32.totalorder %v3143, 0
    %vm3242 = vcmp.ne.s32.totalorder %v3144, 0
    %vm3243 = vcmp.ne.s32.totalorder %v3145, 0
    %vm3244 = vcmp.ne.s32.totalorder %v3146, 0
    %vm3245 = vcmp.ne.s32.totalorder %v3147, 0
    %vm3246 = vcmp.ne.s32.totalorder %v3148, 0
    %vm3247 = vcmp.ne.s32.totalorder %v3149, 0
    %vm3248 = vcmp.ne.s32.totalorder %v3150, 0
    %vm3249 = vcmp.ne.s32.totalorder %v3151, 0
    %vm3250 = vcmp.ne.s32.totalorder %v3152, 0
    %vm3251 = vcmp.ne.s32.totalorder %v3153, 0
    %vm3252 = vcmp.ne.s32.totalorder %v3154, 0
    %vm3253 = vcmp.ne.s32.totalorder %v3155, 0
    %vm3254 = vcmp.ne.s32.totalorder %v3156, 0
    %vm3255 = vcmp.ne.s32.totalorder %v3157, 0
    %vm3256 = vcmp.ne.s32.totalorder %v3158, 0
    %vm3257 = vcmp.ne.s32.totalorder %v3159, 0
    %vm3258 = vcmp.ne.s32.totalorder %v3160, 0
    %vm3259 = vcmp.ne.s32.totalorder %v3161, 0
    %vm3260 = vcmp.ne.s32.totalorder %v3162, 0
    %vm3261 = vcmp.ne.s32.totalorder %v3163, 0
    %vm3262 = vcmp.ne.s32.totalorder %v3164, 0
    %vm3263 = vcmp.ne.s32.totalorder %v3165, 0
    %vm3264 = vcmp.ne.s32.totalorder %v3166, 0
    %vm3265 = vcmp.ne.s32.totalorder %v3167, 0
    %vm3266 = vcmp.ne.s32.totalorder %v3168, 0
    %vm3267 = vcmp.ne.s32.totalorder %v3169, 0
    %vm3268 = vcmp.ne.s32.totalorder %v3170, 0
    %vm3269 = vcmp.ne.s32.totalorder %v3171, 0
    %vm3270 = vcmp.ne.s32.totalorder %v3172, 0
    %vm3271 = vcmp.ne.s32.totalorder %v3173, 0
    %vm3272 = vcmp.ne.s32.totalorder %v3174, 0
    %vm3273 = vcmp.ne.s32.totalorder %v3175, 0
    %vm3274 = vcmp.ne.s32.totalorder %v3176, 0
    %vm3275 = vcmp.ne.s32.totalorder %v3177, 0
    %vm3276 = vcmp.ne.s32.totalorder %v3178, 0
    %vm3277 = vcmp.ne.s32.totalorder %v3179, 0
    %vm3278 = vcmp.ne.s32.totalorder %v3180, 0
    %vm3279 = vcmp.ne.s32.totalorder %v3181, 0
    %vm3280 = vcmp.ne.s32.totalorder %v3182, 0
    %vm3281 = vcmp.ne.s32.totalorder %v3183, 0
    %vm3282 = vcmp.ne.s32.totalorder %v3184, 0
    %vm3283 = vcmp.ne.s32.totalorder %v3185, 0
    %vm3284 = vcmp.ne.s32.totalorder %v3186, 0
    %vm3285 = vcmp.ne.s32.totalorder %v3187, 0
    %vm3286 = vcmp.ne.s32.totalorder %v3188, 0
    %vm3287 = vcmp.ne.s32.totalorder %v3189, 0
    %vm3288 = vcmp.ne.s32.totalorder %v3190, 0
    %vm3289 = vcmp.ne.s32.totalorder %v3191, 0
    %vm3290 = vcmp.ne.s32.totalorder %v3192, 0
    %vm3291 = vcmp.ne.s32.totalorder %v3193, 0
    %vm3292 = vcmp.ne.s32.totalorder %v3096, 27
    %vm3293 = vcmp.ne.s32.totalorder %v3097, 27
    %vm3294 = vcmp.ne.s32.totalorder %v3098, 27
    %vm3295 = vcmp.ne.s32.totalorder %v3099, 27
    %vm3296 = vcmp.ne.s32.totalorder %v3100, 27
    %vm3297 = vcmp.ne.s32.totalorder %v3101, 27
    %vm3298 = vcmp.ne.s32.totalorder %v3102, 27
    %vm3299 = vcmp.ne.s32.totalorder %v3103, 27
    %vm3300 = vcmp.ne.s32.totalorder %v3104, 27
    %vm3301 = vcmp.ne.s32.totalorder %v3105, 27
    %vm3302 = vcmp.ne.s32.totalorder %v3106, 27
    %vm3303 = vcmp.ne.s32.totalorder %v3107, 27
    %vm3304 = vcmp.ne.s32.totalorder %v3108, 27
    %vm3305 = vcmp.ne.s32.totalorder %v3109, 27
    %vm3306 = vcmp.ne.s32.totalorder %v3110, 27
    %vm3307 = vcmp.ne.s32.totalorder %v3111, 27
    %vm3308 = vcmp.ne.s32.totalorder %v3112, 27
    %vm3309 = vcmp.ne.s32.totalorder %v3113, 27
    %vm3310 = vcmp.ne.s32.totalorder %v3114, 27
    %vm3311 = vcmp.ne.s32.totalorder %v3115, 27
    %vm3312 = vcmp.ne.s32.totalorder %v3116, 27
    %vm3313 = vcmp.ne.s32.totalorder %v3117, 27
    %vm3314 = vcmp.ne.s32.totalorder %v3118, 27
    %vm3315 = vcmp.ne.s32.totalorder %v3119, 27
    %vm3316 = vcmp.ne.s32.totalorder %v3120, 27
    %vm3317 = vcmp.ne.s32.totalorder %v3121, 27
    %vm3318 = vcmp.ne.s32.totalorder %v3122, 27
    %vm3319 = vcmp.ne.s32.totalorder %v3123, 27
    %vm3320 = vcmp.ne.s32.totalorder %v3124, 27
    %vm3321 = vcmp.ne.s32.totalorder %v3125, 27
    %vm3322 = vcmp.ne.s32.totalorder %v3126, 27
    %vm3323 = vcmp.ne.s32.totalorder %v3127, 27
    %vm3324 = vcmp.ne.s32.totalorder %v3128, 27
    %vm3325 = vcmp.ne.s32.totalorder %v3129, 27
    %vm3326 = vcmp.ne.s32.totalorder %v3130, 27
    %vm3327 = vcmp.ne.s32.totalorder %v3131, 27
    %vm3328 = vcmp.ne.s32.totalorder %v3132, 27
    %vm3329 = vcmp.ne.s32.totalorder %v3133, 27
    %vm3330 = vcmp.ne.s32.totalorder %v3134, 27
    %vm3331 = vcmp.ne.s32.totalorder %v3135, 27
    %vm3332 = vcmp.ne.s32.totalorder %v3136, 27
    %vm3333 = vcmp.ne.s32.totalorder %v3137, 27
    %vm3334 = vcmp.ne.s32.totalorder %v3138, 27
    %vm3335 = vcmp.ne.s32.totalorder %v3139, 27
    %vm3336 = vcmp.ne.s32.totalorder %v3140, 27
    %vm3337 = vcmp.ne.s32.totalorder %v3141, 27
    %vm3338 = vcmp.ne.s32.totalorder %v3142, 27
    %vm3339 = vcmp.ne.s32.totalorder %v3143, 27
    %vm3340 = vcmp.ne.s32.totalorder %v3144, 27
    %vm3341 = vcmp.ne.s32.totalorder %v3145, 27
    %vm3342 = vcmp.ne.s32.totalorder %v3146, 27
    %vm3343 = vcmp.ne.s32.totalorder %v3147, 27
    %vm3344 = vcmp.ne.s32.totalorder %v3148, 27
    %vm3345 = vcmp.ne.s32.totalorder %v3149, 27
    %vm3346 = vcmp.ne.s32.totalorder %v3150, 27
    %vm3347 = vcmp.ne.s32.totalorder %v3151, 27
    %vm3348 = vcmp.ne.s32.totalorder %v3152, 27
    %vm3349 = vcmp.ne.s32.totalorder %v3153, 27
    %vm3350 = vcmp.ne.s32.totalorder %v3154, 27
    %vm3351 = vcmp.ne.s32.totalorder %v3155, 27
    %vm3352 = vcmp.ne.s32.totalorder %v3156, 27
    %vm3353 = vcmp.ne.s32.totalorder %v3157, 27
    %vm3354 = vcmp.ne.s32.totalorder %v3158, 27
    %vm3355 = vcmp.ne.s32.totalorder %v3159, 27
    %vm3356 = vcmp.ne.s32.totalorder %v3160, 27
    %vm3357 = vcmp.ne.s32.totalorder %v3161, 27
    %vm3358 = vcmp.ne.s32.totalorder %v3162, 27
    %vm3359 = vcmp.ne.s32.totalorder %v3163, 27
    %vm3360 = vcmp.ne.s32.totalorder %v3164, 27
    %vm3361 = vcmp.ne.s32.totalorder %v3165, 27
    %vm3362 = vcmp.ne.s32.totalorder %v3166, 27
    %vm3363 = vcmp.ne.s32.totalorder %v3167, 27
    %vm3364 = vcmp.ne.s32.totalorder %v3168, 27
    %vm3365 = vcmp.ne.s32.totalorder %v3169, 27
    %vm3366 = vcmp.ne.s32.totalorder %v3170, 27
    %vm3367 = vcmp.ne.s32.totalorder %v3171, 27
    %vm3368 = vcmp.ne.s32.totalorder %v3172, 27
    %vm3369 = vcmp.ne.s32.totalorder %v3173, 27
    %vm3370 = vcmp.ne.s32.totalorder %v3174, 27
    %vm3371 = vcmp.ne.s32.totalorder %v3175, 27
    %vm3372 = vcmp.ne.s32.totalorder %v3176, 27
    %vm3373 = vcmp.ne.s32.totalorder %v3177, 27
    %vm3374 = vcmp.ne.s32.totalorder %v3178, 27
    %vm3375 = vcmp.ne.s32.totalorder %v3179, 27
    %vm3376 = vcmp.ne.s32.totalorder %v3180, 27
    %vm3377 = vcmp.ne.s32.totalorder %v3181, 27
    %vm3378 = vcmp.ne.s32.totalorder %v3182, 27
    %vm3379 = vcmp.ne.s32.totalorder %v3183, 27
    %vm3380 = vcmp.ne.s32.totalorder %v3184, 27
    %vm3381 = vcmp.ne.s32.totalorder %v3185, 27
    %vm3382 = vcmp.ne.s32.totalorder %v3186, 27
    %vm3383 = vcmp.ne.s32.totalorder %v3187, 27
    %vm3384 = vcmp.ne.s32.totalorder %v3188, 27
    %vm3385 = vcmp.ne.s32.totalorder %v3189, 27
    %vm3386 = vcmp.ne.s32.totalorder %v3190, 27
    %vm3387 = vcmp.ne.s32.totalorder %v3191, 27
    %vm3388 = vcmp.ne.s32.totalorder %v3192, 27
    %vm3389 = vcmp.ne.s32.totalorder %v3193, 27
    %v3390 = vld [vmem:[#allocation2 + $0x3] sm:$0xff]
    %v3391 = vld [vmem:[#allocation2 + $0xb] sm:$0xff]
    %v3392 = vld [vmem:[#allocation2 + $0x13] sm:$0xff]
    %v3393 = vld [vmem:[#allocation2 + $0x1b] sm:$0xff]
    %v3394 = vld [vmem:[#allocation2 + $0x23] sm:$0xff]
    %v3395 = vld [vmem:[#allocation2 + $0x2b] sm:$0xff]
    %v3396 = vld [vmem:[#allocation2 + $0x33] sm:$0xff]
    %v3397 = vld [vmem:[#allocation2 + $0x3b] sm:$0xff]
    %v3398 = vld [vmem:[#allocation2 + $0x43] sm:$0xff]
    %v3399 = vld [vmem:[#allocation2 + $0x4b] sm:$0xff]
    %v3400 = vld [vmem:[#allocation2 + $0x53] sm:$0xff]
    %v3401 = vld [vmem:[#allocation2 + $0x5b] sm:$0xff]
    %v3402 = vld [vmem:[#allocation2 + $0x63] sm:$0xff]
    %v3403 = vld [vmem:[#allocation2 + $0x6b] sm:$0xff]
    %v3404 = vld [vmem:[#allocation2 + $0x73] sm:$0xff]
    %v3405 = vld [vmem:[#allocation2 + $0x7b] sm:$0xff]
    %v3406 = vld [vmem:[#allocation2 + $0x83] sm:$0xff]
    %v3407 = vld [vmem:[#allocation2 + $0x8b] sm:$0xff]
    %v3408 = vld [vmem:[#allocation2 + $0x93] sm:$0xff]
    %v3409 = vld [vmem:[#allocation2 + $0x9b] sm:$0xff]
    %v3410 = vld [vmem:[#allocation2 + $0xa3] sm:$0xff]
    %v3411 = vld [vmem:[#allocation2 + $0xab] sm:$0xff]
    %v3412 = vld [vmem:[#allocation2 + $0xb3] sm:$0xff]
    %v3413 = vld [vmem:[#allocation2 + $0xbb] sm:$0xff]
    %v3414 = vld [vmem:[#allocation2 + $0xc3] sm:$0xff]
    %v3415 = vld [vmem:[#allocation2 + $0xcb] sm:$0xff]
    %v3416 = vld [vmem:[#allocation2 + $0xd3] sm:$0xff]
    %v3417 = vld [vmem:[#allocation2 + $0xdb] sm:$0xff]
    %v3418 = vld [vmem:[#allocation2 + $0xe3] sm:$0xff]
    %v3419 = vld [vmem:[#allocation2 + $0xeb] sm:$0xff]
    %v3420 = vld [vmem:[#allocation2 + $0xf3] sm:$0xff]
    %v3421 = vld [vmem:[#allocation2 + $0xfb] sm:$0xff]
    %v3422 = vld [vmem:[#allocation2 + $0x103] sm:$0xff]
    %v3423 = vld [vmem:[#allocation2 + $0x10b] sm:$0xff]
    %v3424 = vld [vmem:[#allocation2 + $0x113] sm:$0xff]
    %v3425 = vld [vmem:[#allocation2 + $0x11b] sm:$0xff]
    %v3426 = vld [vmem:[#allocation2 + $0x123] sm:$0xff]
    %v3427 = vld [vmem:[#allocation2 + $0x12b] sm:$0xff]
    %v3428 = vld [vmem:[#allocation2 + $0x133] sm:$0xff]
    %v3429 = vld [vmem:[#allocation2 + $0x13b] sm:$0xff]
    %v3430 = vld [vmem:[#allocation2 + $0x143] sm:$0xff]
    %v3431 = vld [vmem:[#allocation2 + $0x14b] sm:$0xff]
    %v3432 = vld [vmem:[#allocation2 + $0x153] sm:$0xff]
    %v3433 = vld [vmem:[#allocation2 + $0x15b] sm:$0xff]
    %v3434 = vld [vmem:[#allocation2 + $0x163] sm:$0xff]
    %v3435 = vld [vmem:[#allocation2 + $0x16b] sm:$0xff]
    %v3436 = vld [vmem:[#allocation2 + $0x173] sm:$0xff]
    %v3437 = vld [vmem:[#allocation2 + $0x17b] sm:$0xff]
    %v3438 = vld [vmem:[#allocation2 + $0x183] sm:$0xff]
    %v3439 = vld [vmem:[#allocation2 + $0x18b] sm:$0xff]
    %v3440 = vld [vmem:[#allocation2 + $0x193] sm:$0xff]
    %v3441 = vld [vmem:[#allocation2 + $0x19b] sm:$0xff]
    %v3442 = vld [vmem:[#allocation2 + $0x1a3] sm:$0xff]
    %v3443 = vld [vmem:[#allocation2 + $0x1ab] sm:$0xff]
    %v3444 = vld [vmem:[#allocation2 + $0x1b3] sm:$0xff]
    %v3445 = vld [vmem:[#allocation2 + $0x1bb] sm:$0xff]
    %v3446 = vld [vmem:[#allocation2 + $0x1c3] sm:$0xff]
    %v3447 = vld [vmem:[#allocation2 + $0x1cb] sm:$0xff]
    %v3448 = vld [vmem:[#allocation2 + $0x1d3] sm:$0xff]
    %v3449 = vld [vmem:[#allocation2 + $0x1db] sm:$0xff]
    %v3450 = vld [vmem:[#allocation2 + $0x1e3] sm:$0xff]
    %v3451 = vld [vmem:[#allocation2 + $0x1eb] sm:$0xff]
    %v3452 = vld [vmem:[#allocation2 + $0x1f3] sm:$0xff]
    %v3453 = vld [vmem:[#allocation2 + $0x1fb] sm:$0xff]
    %v3454 = vld [vmem:[#allocation2 + $0x203] sm:$0xff]
    %v3455 = vld [vmem:[#allocation2 + $0x20b] sm:$0xff]
    %v3456 = vld [vmem:[#allocation2 + $0x213] sm:$0xff]
    %v3457 = vld [vmem:[#allocation2 + $0x21b] sm:$0xff]
    %v3458 = vld [vmem:[#allocation2 + $0x223] sm:$0xff]
    %v3459 = vld [vmem:[#allocation2 + $0x22b] sm:$0xff]
    %v3460 = vld [vmem:[#allocation2 + $0x233] sm:$0xff]
    %v3461 = vld [vmem:[#allocation2 + $0x23b] sm:$0xff]
    %v3462 = vld [vmem:[#allocation2 + $0x243] sm:$0xff]
    %v3463 = vld [vmem:[#allocation2 + $0x24b] sm:$0xff]
    %v3464 = vld [vmem:[#allocation2 + $0x253] sm:$0xff]
    %v3465 = vld [vmem:[#allocation2 + $0x25b] sm:$0xff]
    %v3466 = vld [vmem:[#allocation2 + $0x263] sm:$0xff]
    %v3467 = vld [vmem:[#allocation2 + $0x26b] sm:$0xff]
    %v3468 = vld [vmem:[#allocation2 + $0x273] sm:$0xff]
    %v3469 = vld [vmem:[#allocation2 + $0x27b] sm:$0xff]
    %v3470 = vld [vmem:[#allocation2 + $0x283] sm:$0xff]
    %v3471 = vld [vmem:[#allocation2 + $0x28b] sm:$0xff]
    %v3472 = vld [vmem:[#allocation2 + $0x293] sm:$0xff]
    %v3473 = vld [vmem:[#allocation2 + $0x29b] sm:$0xff]
    %v3474 = vld [vmem:[#allocation2 + $0x2a3] sm:$0xff]
    %v3475 = vld [vmem:[#allocation2 + $0x2ab] sm:$0xff]
    %v3476 = vld [vmem:[#allocation2 + $0x2b3] sm:$0xff]
    %v3477 = vld [vmem:[#allocation2 + $0x2bb] sm:$0xff]
    %v3478 = vld [vmem:[#allocation2 + $0x2c3] sm:$0xff]
    %v3479 = vld [vmem:[#allocation2 + $0x2cb] sm:$0xff]
    %v3480 = vld [vmem:[#allocation2 + $0x2d3] sm:$0xff]
    %v3481 = vld [vmem:[#allocation2 + $0x2db] sm:$0xff]
    %v3482 = vld [vmem:[#allocation2 + $0x2e3] sm:$0xff]
    %v3483 = vld [vmem:[#allocation2 + $0x2eb] sm:$0xff]
    %v3484 = vld [vmem:[#allocation2 + $0x2f3] sm:$0xff]
    %v3485 = vld [vmem:[#allocation2 + $0x2fb] sm:$0xff]
    %v3486 = vld [vmem:[#allocation2 + $0x303] sm:$0xff]
    %v3487 = vld [vmem:[#allocation2 + $0x30b] sm:$0xff]
    %v3488 = vsel %vm3194, 1, 0
    %v3489 = vsel %vm3195, 1, 0
    %v3490 = vsel %vm3196, 1, 0
    %v3491 = vsel %vm3197, 1, 0
    %v3492 = vsel %vm3198, 1, 0
    %v3493 = vsel %vm3199, 1, 0
    %v3494 = vsel %vm3200, 1, 0
    %v3495 = vsel %vm3201, 1, 0
    %v3496 = vsel %vm3202, 1, 0
    %v3497 = vsel %vm3203, 1, 0
    %v3498 = vsel %vm3204, 1, 0
    %v3499 = vsel %vm3205, 1, 0
    %v3500 = vsel %vm3206, 1, 0
    %v3501 = vsel %vm3207, 1, 0
    %v3502 = vsel %vm3208, 1, 0
    %v3503 = vsel %vm3209, 1, 0
    %v3504 = vsel %vm3210, 1, 0
    %v3505 = vsel %vm3211, 1, 0
    %v3506 = vsel %vm3212, 1, 0
    %v3507 = vsel %vm3213, 1, 0
    %v3508 = vsel %vm3214, 1, 0
    %v3509 = vsel %vm3215, 1, 0
    %v3510 = vsel %vm3216, 1, 0
    %v3511 = vsel %vm3217, 1, 0
    %v3512 = vsel %vm3218, 1, 0
    %v3513 = vsel %vm3219, 1, 0
    %v3514 = vsel %vm3220, 1, 0
    %v3515 = vsel %vm3221, 1, 0
    %v3516 = vsel %vm3222, 1, 0
    %v3517 = vsel %vm3223, 1, 0
    %v3518 = vsel %vm3224, 1, 0
    %v3519 = vsel %vm3225, 1, 0
    %v3520 = vsel %vm3226, 1, 0
    %v3521 = vsel %vm3227, 1, 0
    %v3522 = vsel %vm3228, 1, 0
    %v3523 = vsel %vm3229, 1, 0
    %v3524 = vsel %vm3230, 1, 0
    %v3525 = vsel %vm3231, 1, 0
    %v3526 = vsel %vm3232, 1, 0
    %v3527 = vsel %vm3233, 1, 0
    %v3528 = vsel %vm3234, 1, 0
    %v3529 = vsel %vm3235, 1, 0
    %v3530 = vsel %vm3236, 1, 0
    %v3531 = vsel %vm3237, 1, 0
    %v3532 = vsel %vm3238, 1, 0
    %v3533 = vsel %vm3239, 1, 0
    %v3534 = vsel %vm3240, 1, 0
    %v3535 = vsel %vm3241, 1, 0
    %v3536 = vsel %vm3242, 1, 0
    %v3537 = vsel %vm3243, 1, 0
    %v3538 = vsel %vm3244, 1, 0
    %v3539 = vsel %vm3245, 1, 0
    %v3540 = vsel %vm3246, 1, 0
    %v3541 = vsel %vm3247, 1, 0
    %v3542 = vsel %vm3248, 1, 0
    %v3543 = vsel %vm3249, 1, 0
    %v3544 = vsel %vm3250, 1, 0
    %v3545 = vsel %vm3251, 1, 0
    %v3546 = vsel %vm3252, 1, 0
    %v3547 = vsel %vm3253, 1, 0
    %v3548 = vsel %vm3254, 1, 0
    %v3549 = vsel %vm3255, 1, 0
    %v3550 = vsel %vm3256, 1, 0
    %v3551 = vsel %vm3257, 1, 0
    %v3552 = vsel %vm3258, 1, 0
    %v3553 = vsel %vm3259, 1, 0
    %v3554 = vsel %vm3260, 1, 0
    %v3555 = vsel %vm3261, 1, 0
    %v3556 = vsel %vm3262, 1, 0
    %v3557 = vsel %vm3263, 1, 0
    %v3558 = vsel %vm3264, 1, 0
    %v3559 = vsel %vm3265, 1, 0
    %v3560 = vsel %vm3266, 1, 0
    %v3561 = vsel %vm3267, 1, 0
    %v3562 = vsel %vm3268, 1, 0
    %v3563 = vsel %vm3269, 1, 0
    %v3564 = vsel %vm3270, 1, 0
    %v3565 = vsel %vm3271, 1, 0
    %v3566 = vsel %vm3272, 1, 0
    %v3567 = vsel %vm3273, 1, 0
    %v3568 = vsel %vm3274, 1, 0
    %v3569 = vsel %vm3275, 1, 0
    %v3570 = vsel %vm3276, 1, 0
    %v3571 = vsel %vm3277, 1, 0
    %v3572 = vsel %vm3278, 1, 0
    %v3573 = vsel %vm3279, 1, 0
    %v3574 = vsel %vm3280, 1, 0
    %v3575 = vsel %vm3281, 1, 0
    %v3576 = vsel %vm3282, 1, 0
    %v3577 = vsel %vm3283, 1, 0
    %v3578 = vsel %vm3284, 1, 0
    %v3579 = vsel %vm3285, 1, 0
    %v3580 = vsel %vm3286, 1, 0
    %v3581 = vsel %vm3287, 1, 0
    %v3582 = vsel %vm3288, 1, 0
    %v3583 = vsel %vm3289, 1, 0
    %v3584 = vsel %vm3290, 1, 0
    %v3585 = vsel %vm3291, 1, 0
    %vm3586 = vcmp.eq.s32.totalorder %v3488, 1
    %vm3587 = vcmp.eq.s32.totalorder %v3489, 1
    %vm3588 = vcmp.eq.s32.totalorder %v3490, 1
    %vm3589 = vcmp.eq.s32.totalorder %v3491, 1
    %vm3590 = vcmp.eq.s32.totalorder %v3492, 1
    %vm3591 = vcmp.eq.s32.totalorder %v3493, 1
    %vm3592 = vcmp.eq.s32.totalorder %v3494, 1
    %vm3593 = vcmp.eq.s32.totalorder %v3495, 1
    %vm3594 = vcmp.eq.s32.totalorder %v3496, 1
    %vm3595 = vcmp.eq.s32.totalorder %v3497, 1
    %vm3596 = vcmp.eq.s32.totalorder %v3498, 1
    %vm3597 = vcmp.eq.s32.totalorder %v3499, 1
    %vm3598 = vcmp.eq.s32.totalorder %v3500, 1
    %vm3599 = vcmp.eq.s32.totalorder %v3501, 1
    %vm3600 = vcmp.eq.s32.totalorder %v3502, 1
    %vm3601 = vcmp.eq.s32.totalorder %v3503, 1
    %vm3602 = vcmp.eq.s32.totalorder %v3504, 1
    %vm3603 = vcmp.eq.s32.totalorder %v3505, 1
    %vm3604 = vcmp.eq.s32.totalorder %v3506, 1
    %vm3605 = vcmp.eq.s32.totalorder %v3507, 1
    %vm3606 = vcmp.eq.s32.totalorder %v3508, 1
    %vm3607 = vcmp.eq.s32.totalorder %v3509, 1
    %vm3608 = vcmp.eq.s32.totalorder %v3510, 1
    %vm3609 = vcmp.eq.s32.totalorder %v3511, 1
    %vm3610 = vcmp.eq.s32.totalorder %v3512, 1
    %vm3611 = vcmp.eq.s32.totalorder %v3513, 1
    %vm3612 = vcmp.eq.s32.totalorder %v3514, 1
    %vm3613 = vcmp.eq.s32.totalorder %v3515, 1
    %vm3614 = vcmp.eq.s32.totalorder %v3516, 1
    %vm3615 = vcmp.eq.s32.totalorder %v3517, 1
    %vm3616 = vcmp.eq.s32.totalorder %v3518, 1
    %vm3617 = vcmp.eq.s32.totalorder %v3519, 1
    %vm3618 = vcmp.eq.s32.totalorder %v3520, 1
    %vm3619 = vcmp.eq.s32.totalorder %v3521, 1
    %vm3620 = vcmp.eq.s32.totalorder %v3522, 1
    %vm3621 = vcmp.eq.s32.totalorder %v3523, 1
    %vm3622 = vcmp.eq.s32.totalorder %v3524, 1
    %vm3623 = vcmp.eq.s32.totalorder %v3525, 1
    %vm3624 = vcmp.eq.s32.totalorder %v3526, 1
    %vm3625 = vcmp.eq.s32.totalorder %v3527, 1
    %vm3626 = vcmp.eq.s32.totalorder %v3528, 1
    %vm3627 = vcmp.eq.s32.totalorder %v3529, 1
    %vm3628 = vcmp.eq.s32.totalorder %v3530, 1
    %vm3629 = vcmp.eq.s32.totalorder %v3531, 1
    %vm3630 = vcmp.eq.s32.totalorder %v3532, 1
    %vm3631 = vcmp.eq.s32.totalorder %v3533, 1
    %vm3632 = vcmp.eq.s32.totalorder %v3534, 1
    %vm3633 = vcmp.eq.s32.totalorder %v3535, 1
    %vm3634 = vcmp.eq.s32.totalorder %v3536, 1
    %vm3635 = vcmp.eq.s32.totalorder %v3537, 1
    %vm3636 = vcmp.eq.s32.totalorder %v3538, 1
    %vm3637 = vcmp.eq.s32.totalorder %v3539, 1
    %vm3638 = vcmp.eq.s32.totalorder %v3540, 1
    %vm3639 = vcmp.eq.s32.totalorder %v3541, 1
    %vm3640 = vcmp.eq.s32.totalorder %v3542, 1
    %vm3641 = vcmp.eq.s32.totalorder %v3543, 1
    %vm3642 = vcmp.eq.s32.totalorder %v3544, 1
    %vm3643 = vcmp.eq.s32.totalorder %v3545, 1
    %vm3644 = vcmp.eq.s32.totalorder %v3546, 1
    %vm3645 = vcmp.eq.s32.totalorder %v3547, 1
    %vm3646 = vcmp.eq.s32.totalorder %v3548, 1
    %vm3647 = vcmp.eq.s32.totalorder %v3549, 1
    %vm3648 = vcmp.eq.s32.totalorder %v3550, 1
    %vm3649 = vcmp.eq.s32.totalorder %v3551, 1
    %vm3650 = vcmp.eq.s32.totalorder %v3552, 1
    %vm3651 = vcmp.eq.s32.totalorder %v3553, 1
    %vm3652 = vcmp.eq.s32.totalorder %v3554, 1
    %vm3653 = vcmp.eq.s32.totalorder %v3555, 1
    %vm3654 = vcmp.eq.s32.totalorder %v3556, 1
    %vm3655 = vcmp.eq.s32.totalorder %v3557, 1
    %vm3656 = vcmp.eq.s32.totalorder %v3558, 1
    %vm3657 = vcmp.eq.s32.totalorder %v3559, 1
    %vm3658 = vcmp.eq.s32.totalorder %v3560, 1
    %vm3659 = vcmp.eq.s32.totalorder %v3561, 1
    %vm3660 = vcmp.eq.s32.totalorder %v3562, 1
    %vm3661 = vcmp.eq.s32.totalorder %v3563, 1
    %vm3662 = vcmp.eq.s32.totalorder %v3564, 1
    %vm3663 = vcmp.eq.s32.totalorder %v3565, 1
    %vm3664 = vcmp.eq.s32.totalorder %v3566, 1
    %vm3665 = vcmp.eq.s32.totalorder %v3567, 1
    %vm3666 = vcmp.eq.s32.totalorder %v3568, 1
    %vm3667 = vcmp.eq.s32.totalorder %v3569, 1
    %vm3668 = vcmp.eq.s32.totalorder %v3570, 1
    %vm3669 = vcmp.eq.s32.totalorder %v3571, 1
    %vm3670 = vcmp.eq.s32.totalorder %v3572, 1
    %vm3671 = vcmp.eq.s32.totalorder %v3573, 1
    %vm3672 = vcmp.eq.s32.totalorder %v3574, 1
    %vm3673 = vcmp.eq.s32.totalorder %v3575, 1
    %vm3674 = vcmp.eq.s32.totalorder %v3576, 1
    %vm3675 = vcmp.eq.s32.totalorder %v3577, 1
    %vm3676 = vcmp.eq.s32.totalorder %v3578, 1
    %vm3677 = vcmp.eq.s32.totalorder %v3579, 1
    %vm3678 = vcmp.eq.s32.totalorder %v3580, 1
    %vm3679 = vcmp.eq.s32.totalorder %v3581, 1
    %vm3680 = vcmp.eq.s32.totalorder %v3582, 1
    %vm3681 = vcmp.eq.s32.totalorder %v3583, 1
    %vm3682 = vcmp.eq.s32.totalorder %v3584, 1
    %vm3683 = vcmp.eq.s32.totalorder %v3585, 1
    %v3684 = vsel %vm3586, %v3390, 0.0
    %v3685 = vsel %vm3587, %v3391, 0.0
    %v3686 = vsel %vm3588, %v3392, 0.0
    %v3687 = vsel %vm3589, %v3393, 0.0
    %v3688 = vsel %vm3590, %v3394, 0.0
    %v3689 = vsel %vm3591, %v3395, 0.0
    %v3690 = vsel %vm3592, %v3396, 0.0
    %v3691 = vsel %vm3593, %v3397, 0.0
    %v3692 = vsel %vm3594, %v3398, 0.0
    %v3693 = vsel %vm3595, %v3399, 0.0
    %v3694 = vsel %vm3596, %v3400, 0.0
    %v3695 = vsel %vm3597, %v3401, 0.0
    %v3696 = vsel %vm3598, %v3402, 0.0
    %v3697 = vsel %vm3599, %v3403, 0.0
    %v3698 = vsel %vm3600, %v3404, 0.0
    %v3699 = vsel %vm3601, %v3405, 0.0
    %v3700 = vsel %vm3602, %v3406, 0.0
    %v3701 = vsel %vm3603, %v3407, 0.0
    %v3702 = vsel %vm3604, %v3408, 0.0
    %v3703 = vsel %vm3605, %v3409, 0.0
    %v3704 = vsel %vm3606, %v3410, 0.0
    %v3705 = vsel %vm3607, %v3411, 0.0
    %v3706 = vsel %vm3608, %v3412, 0.0
    %v3707 = vsel %vm3609, %v3413, 0.0
    %v3708 = vsel %vm3610, %v3414, 0.0
    %v3709 = vsel %vm3611, %v3415, 0.0
    %v3710 = vsel %vm3612, %v3416, 0.0
    %v3711 = vsel %vm3613, %v3417, 0.0
    %v3712 = vsel %vm3614, %v3418, 0.0
    %v3713 = vsel %vm3615, %v3419, 0.0
    %v3714 = vsel %vm3616, %v3420, 0.0
    %v3715 = vsel %vm3617, %v3421, 0.0
    %v3716 = vsel %vm3618, %v3422, 0.0
    %v3717 = vsel %vm3619, %v3423, 0.0
    %v3718 = vsel %vm3620, %v3424, 0.0
    %v3719 = vsel %vm3621, %v3425, 0.0
    %v3720 = vsel %vm3622, %v3426, 0.0
    %v3721 = vsel %vm3623, %v3427, 0.0
    %v3722 = vsel %vm3624, %v3428, 0.0
    %v3723 = vsel %vm3625, %v3429, 0.0
    %v3724 = vsel %vm3626, %v3430, 0.0
    %v3725 = vsel %vm3627, %v3431, 0.0
    %v3726 = vsel %vm3628, %v3432, 0.0
    %v3727 = vsel %vm3629, %v3433, 0.0
    %v3728 = vsel %vm3630, %v3434, 0.0
    %v3729 = vsel %vm3631, %v3435, 0.0
    %v3730 = vsel %vm3632, %v3436, 0.0
    %v3731 = vsel %vm3633, %v3437, 0.0
    %v3732 = vsel %vm3634, %v3438, 0.0
    %v3733 = vsel %vm3635, %v3439, 0.0
    %v3734 = vsel %vm3636, %v3440, 0.0
    %v3735 = vsel %vm3637, %v3441, 0.0
    %v3736 = vsel %vm3638, %v3442, 0.0
    %v3737 = vsel %vm3639, %v3443, 0.0
    %v3738 = vsel %vm3640, %v3444, 0.0
    %v3739 = vsel %vm3641, %v3445, 0.0
    %v3740 = vsel %vm3642, %v3446, 0.0
    %v3741 = vsel %vm3643, %v3447, 0.0
    %v3742 = vsel %vm3644, %v3448, 0.0
    %v3743 = vsel %vm3645, %v3449, 0.0
    %v3744 = vsel %vm3646, %v3450, 0.0
    %v3745 = vsel %vm3647, %v3451, 0.0
    %v3746 = vsel %vm3648, %v3452, 0.0
    %v3747 = vsel %vm3649, %v3453, 0.0
    %v3748 = vsel %vm3650, %v3454, 0.0
    %v3749 = vsel %vm3651, %v3455, 0.0
    %v3750 = vsel %vm3652, %v3456, 0.0
    %v3751 = vsel %vm3653, %v3457, 0.0
    %v3752 = vsel %vm3654, %v3458, 0.0
    %v3753 = vsel %vm3655, %v3459, 0.0
    %v3754 = vsel %vm3656, %v3460, 0.0
    %v3755 = vsel %vm3657, %v3461, 0.0
    %v3756 = vsel %vm3658, %v3462, 0.0
    %v3757 = vsel %vm3659, %v3463, 0.0
    %v3758 = vsel %vm3660, %v3464, 0.0
    %v3759 = vsel %vm3661, %v3465, 0.0
    %v3760 = vsel %vm3662, %v3466, 0.0
    %v3761 = vsel %vm3663, %v3467, 0.0
    %v3762 = vsel %vm3664, %v3468, 0.0
    %v3763 = vsel %vm3665, %v3469, 0.0
    %v3764 = vsel %vm3666, %v3470, 0.0
    %v3765 = vsel %vm3667, %v3471, 0.0
    %v3766 = vsel %vm3668, %v3472, 0.0
    %v3767 = vsel %vm3669, %v3473, 0.0
    %v3768 = vsel %vm3670, %v3474, 0.0
    %v3769 = vsel %vm3671, %v3475, 0.0
    %v3770 = vsel %vm3672, %v3476, 0.0
    %v3771 = vsel %vm3673, %v3477, 0.0
    %v3772 = vsel %vm3674, %v3478, 0.0
    %v3773 = vsel %vm3675, %v3479, 0.0
    %v3774 = vsel %vm3676, %v3480, 0.0
    %v3775 = vsel %vm3677, %v3481, 0.0
    %v3776 = vsel %vm3678, %v3482, 0.0
    %v3777 = vsel %vm3679, %v3483, 0.0
    %v3778 = vsel %vm3680, %v3484, 0.0
    %v3779 = vsel %vm3681, %v3485, 0.0
    %v3780 = vsel %vm3682, %v3486, 0.0
    %v3781 = vsel %vm3683, %v3487, 0.0
    %3782 = vst [vmem:[#allocation3] sm:$0xff] %v3684
    %3783 = vst [vmem:[#allocation3 + $0x48] sm:$0xff] %v3685
    %3784 = vst [vmem:[#allocation3 + $0x90] sm:$0xff] %v3686
    %3785 = vst [vmem:[#allocation3 + $0xd8] sm:$0xff] %v3687
    %3786 = vst [vmem:[#allocation3 + $0x120] sm:$0xff] %v3688
    %3787 = vst [vmem:[#allocation3 + $0x168] sm:$0xff] %v3689
    %3788 = vst [vmem:[#allocation3 + $0x1b0] sm:$0xff] %v3690
    %3789 = vst [vmem:[#allocation3 + $0x1f8] sm:$0xff] %v3691
    %3790 = vst [vmem:[#allocation3 + $0x240] sm:$0xff] %v3692
    %3791 = vst [vmem:[#allocation3 + $0x288] sm:$0xff] %v3693
    %3792 = vst [vmem:[#allocation3 + $0x2d0] sm:$0xff] %v3694
    %3793 = vst [vmem:[#allocation3 + $0x318] sm:$0xff] %v3695
    %3794 = vst [vmem:[#allocation3 + $0x360] sm:$0xff] %v3696
    %3795 = vst [vmem:[#allocation3 + $0x3a8] sm:$0xff] %v3697
    %3796 = vst [vmem:[#allocation3 + $0x3f0] sm:$0xff] %v3698
    %3797 = vst [vmem:[#allocation3 + $0x438] sm:$0xff] %v3699
    %3798 = vst [vmem:[#allocation3 + $0x480] sm:$0xff] %v3700
    %3799 = vst [vmem:[#allocation3 + $0x4c8] sm:$0xff] %v3701
    %3800 = vst [vmem:[#allocation3 + $0x510] sm:$0xff] %v3702
    %3801 = vst [vmem:[#allocation3 + $0x558] sm:$0xff] %v3703
    %3802 = vst [vmem:[#allocation3 + $0x5a0] sm:$0xff] %v3704
    %3803 = vst [vmem:[#allocation3 + $0x5e8] sm:$0xff] %v3705
    %3804 = vst [vmem:[#allocation3 + $0x630] sm:$0xff] %v3706
    %3805 = vst [vmem:[#allocation3 + $0x678] sm:$0xff] %v3707
    %3806 = vst [vmem:[#allocation3 + $0x6c0] sm:$0xff] %v3708
    %3807 = vst [vmem:[#allocation3 + $0x708] sm:$0xff] %v3709
    %3808 = vst [vmem:[#allocation3 + $0x750] sm:$0xff] %v3710
    %3809 = vst [vmem:[#allocation3 + $0x798] sm:$0xff] %v3711
    %3810 = vst [vmem:[#allocation3 + $0x7e0] sm:$0xff] %v3712
    %3811 = vst [vmem:[#allocation3 + $0x828] sm:$0xff] %v3713
    %3812 = vst [vmem:[#allocation3 + $0x870] sm:$0xff] %v3714
    %3813 = vst [vmem:[#allocation3 + $0x8b8] sm:$0xff] %v3715
    %3814 = vst [vmem:[#allocation3 + $0x900] sm:$0xff] %v3716
    %3815 = vst [vmem:[#allocation3 + $0x948] sm:$0xff] %v3717
    %3816 = vst [vmem:[#allocation3 + $0x990] sm:$0xff] %v3718
    %3817 = vst [vmem:[#allocation3 + $0x9d8] sm:$0xff] %v3719
    %3818 = vst [vmem:[#allocation3 + $0xa20] sm:$0xff] %v3720
    %3819 = vst [vmem:[#allocation3 + $0xa68] sm:$0xff] %v3721
    %3820 = vst [vmem:[#allocation3 + $0xab0] sm:$0xff] %v3722
    %3821 = vst [vmem:[#allocation3 + $0xaf8] sm:$0xff] %v3723
    %3822 = vst [vmem:[#allocation3 + $0xb40] sm:$0xff] %v3724
    %3823 = vst [vmem:[#allocation3 + $0xb88] sm:$0xff] %v3725
    %3824 = vst [vmem:[#allocation3 + $0xbd0] sm:$0xff] %v3726
    %3825 = vst [vmem:[#allocation3 + $0xc18] sm:$0xff] %v3727
    %3826 = vst [vmem:[#allocation3 + $0xc60] sm:$0xff] %v3728
    %3827 = vst [vmem:[#allocation3 + $0xca8] sm:$0xff] %v3729
    %3828 = vst [vmem:[#allocation3 + $0xcf0] sm:$0xff] %v3730
    %3829 = vst [vmem:[#allocation3 + $0xd38] sm:$0xff] %v3731
    %3830 = vst [vmem:[#allocation3 + $0xd80] sm:$0xff] %v3732
    %3831 = vst [vmem:[#allocation3 + $0xdc8] sm:$0xff] %v3733
    %3832 = vst [vmem:[#allocation3 + $0xe10] sm:$0xff] %v3734
    %3833 = vst [vmem:[#allocation3 + $0xe58] sm:$0xff] %v3735
    %3834 = vst [vmem:[#allocation3 + $0xea0] sm:$0xff] %v3736
    %3835 = vst [vmem:[#allocation3 + $0xee8] sm:$0xff] %v3737
    %3836 = vst [vmem:[#allocation3 + $0xf30] sm:$0xff] %v3738
    %3837 = vst [vmem:[#allocation3 + $0xf78] sm:$0xff] %v3739
    %3838 = vst [vmem:[#allocation3 + $0xfc0] sm:$0xff] %v3740
    %3839 = vst [vmem:[#allocation3 + $0x1008] sm:$0xff] %v3741
    %3840 = vst [vmem:[#allocation3 + $0x1050] sm:$0xff] %v3742
    %3841 = vst [vmem:[#allocation3 + $0x1098] sm:$0xff] %v3743
    %3842 = vst [vmem:[#allocation3 + $0x10e0] sm:$0xff] %v3744
    %3843 = vst [vmem:[#allocation3 + $0x1128] sm:$0xff] %v3745
    %3844 = vst [vmem:[#allocation3 + $0x1170] sm:$0xff] %v3746
    %3845 = vst [vmem:[#allocation3 + $0x11b8] sm:$0xff] %v3747
    %3846 = vst [vmem:[#allocation3 + $0x1200] sm:$0xff] %v3748
    %3847 = vst [vmem:[#allocation3 + $0x1248] sm:$0xff] %v3749
    %3848 = vst [vmem:[#allocation3 + $0x1290] sm:$0xff] %v3750
    %3849 = vst [vmem:[#allocation3 + $0x12d8] sm:$0xff] %v3751
    %3850 = vst [vmem:[#allocation3 + $0x1320] sm:$0xff] %v3752
    %3851 = vst [vmem:[#allocation3 + $0x1368] sm:$0xff] %v3753
    %3852 = vst [vmem:[#allocation3 + $0x13b0] sm:$0xff] %v3754
    %3853 = vst [vmem:[#allocation3 + $0x13f8] sm:$0xff] %v3755
    %3854 = vst [vmem:[#allocation3 + $0x1440] sm:$0xff] %v3756
    %3855 = vst [vmem:[#allocation3 + $0x1488] sm:$0xff] %v3757
    %3856 = vst [vmem:[#allocation3 + $0x14d0] sm:$0xff] %v3758
    %3857 = vst [vmem:[#allocation3 + $0x1518] sm:$0xff] %v3759
    %3858 = vst [vmem:[#allocation3 + $0x1560] sm:$0xff] %v3760
    %3859 = vst [vmem:[#allocation3 + $0x15a8] sm:$0xff] %v3761
    %3860 = vst [vmem:[#allocation3 + $0x15f0] sm:$0xff] %v3762
    %3861 = vst [vmem:[#allocation3 + $0x1638] sm:$0xff] %v3763
    %3862 = vst [vmem:[#allocation3 + $0x1680] sm:$0xff] %v3764
    %3863 = vst [vmem:[#allocation3 + $0x16c8] sm:$0xff] %v3765
    %3864 = vst [vmem:[#allocation3 + $0x1710] sm:$0xff] %v3766
    %3865 = vst [vmem:[#allocation3 + $0x1758] sm:$0xff] %v3767
    %3866 = vst [vmem:[#allocation3 + $0x17a0] sm:$0xff] %v3768
    %3867 = vst [vmem:[#allocation3 + $0x17e8] sm:$0xff] %v3769
    %3868 = vst [vmem:[#allocation3 + $0x1830] sm:$0xff] %v3770
    %3869 = vst [vmem:[#allocation3 + $0x1878] sm:$0xff] %v3771
    %3870 = vst [vmem:[#allocation3 + $0x18c0] sm:$0xff] %v3772
    %3871 = vst [vmem:[#allocation3 + $0x1908] sm:$0xff] %v3773
    %3872 = vst [vmem:[#allocation3 + $0x1950] sm:$0xff] %v3774
    %3873 = vst [vmem:[#allocation3 + $0x1998] sm:$0xff] %v3775
    %3874 = vst [vmem:[#allocation3 + $0x19e0] sm:$0xff] %v3776
    %3875 = vst [vmem:[#allocation3 + $0x1a28] sm:$0xff] %v3777
    %3876 = vst [vmem:[#allocation3 + $0x1a70] sm:$0xff] %v3778
    %3877 = vst [vmem:[#allocation3 + $0x1ab8] sm:$0xff] %v3779
    %3878 = vst [vmem:[#allocation3 + $0x1b00] sm:$0xff] %v3780
    %3879 = vst [vmem:[#allocation3 + $0x1b48] sm:$0xff] %v3781
    %v3880 = vld [vmem:[#allocation2 + $0x4] sm:$0xff]
    %v3881 = vld [vmem:[#allocation2 + $0xc] sm:$0xff]
    %v3882 = vld [vmem:[#allocation2 + $0x14] sm:$0xff]
    %v3883 = vld [vmem:[#allocation2 + $0x1c] sm:$0xff]
    %v3884 = vld [vmem:[#allocation2 + $0x24] sm:$0xff]
    %v3885 = vld [vmem:[#allocation2 + $0x2c] sm:$0xff]
    %v3886 = vld [vmem:[#allocation2 + $0x34] sm:$0xff]
    %v3887 = vld [vmem:[#allocation2 + $0x3c] sm:$0xff]
    %v3888 = vld [vmem:[#allocation2 + $0x44] sm:$0xff]
    %v3889 = vld [vmem:[#allocation2 + $0x4c] sm:$0xff]
    %v3890 = vld [vmem:[#allocation2 + $0x54] sm:$0xff]
    %v3891 = vld [vmem:[#allocation2 + $0x5c] sm:$0xff]
    %v3892 = vld [vmem:[#allocation2 + $0x64] sm:$0xff]
    %v3893 = vld [vmem:[#allocation2 + $0x6c] sm:$0xff]
    %v3894 = vld [vmem:[#allocation2 + $0x74] sm:$0xff]
    %v3895 = vld [vmem:[#allocation2 + $0x7c] sm:$0xff]
    %v3896 = vld [vmem:[#allocation2 + $0x84] sm:$0xff]
    %v3897 = vld [vmem:[#allocation2 + $0x8c] sm:$0xff]
    %v3898 = vld [vmem:[#allocation2 + $0x94] sm:$0xff]
    %v3899 = vld [vmem:[#allocation2 + $0x9c] sm:$0xff]
    %v3900 = vld [vmem:[#allocation2 + $0xa4] sm:$0xff]
    %v3901 = vld [vmem:[#allocation2 + $0xac] sm:$0xff]
    %v3902 = vld [vmem:[#allocation2 + $0xb4] sm:$0xff]
    %v3903 = vld [vmem:[#allocation2 + $0xbc] sm:$0xff]
    %v3904 = vld [vmem:[#allocation2 + $0xc4] sm:$0xff]
    %v3905 = vld [vmem:[#allocation2 + $0xcc] sm:$0xff]
    %v3906 = vld [vmem:[#allocation2 + $0xd4] sm:$0xff]
    %v3907 = vld [vmem:[#allocation2 + $0xdc] sm:$0xff]
    %v3908 = vld [vmem:[#allocation2 + $0xe4] sm:$0xff]
    %v3909 = vld [vmem:[#allocation2 + $0xec] sm:$0xff]
    %v3910 = vld [vmem:[#allocation2 + $0xf4] sm:$0xff]
    %v3911 = vld [vmem:[#allocation2 + $0xfc] sm:$0xff]
    %v3912 = vld [vmem:[#allocation2 + $0x104] sm:$0xff]
    %v3913 = vld [vmem:[#allocation2 + $0x10c] sm:$0xff]
    %v3914 = vld [vmem:[#allocation2 + $0x114] sm:$0xff]
    %v3915 = vld [vmem:[#allocation2 + $0x11c] sm:$0xff]
    %v3916 = vld [vmem:[#allocation2 + $0x124] sm:$0xff]
    %v3917 = vld [vmem:[#allocation2 + $0x12c] sm:$0xff]
    %v3918 = vld [vmem:[#allocation2 + $0x134] sm:$0xff]
    %v3919 = vld [vmem:[#allocation2 + $0x13c] sm:$0xff]
    %v3920 = vld [vmem:[#allocation2 + $0x144] sm:$0xff]
    %v3921 = vld [vmem:[#allocation2 + $0x14c] sm:$0xff]
    %v3922 = vld [vmem:[#allocation2 + $0x154] sm:$0xff]
    %v3923 = vld [vmem:[#allocation2 + $0x15c] sm:$0xff]
    %v3924 = vld [vmem:[#allocation2 + $0x164] sm:$0xff]
    %v3925 = vld [vmem:[#allocation2 + $0x16c] sm:$0xff]
    %v3926 = vld [vmem:[#allocation2 + $0x174] sm:$0xff]
    %v3927 = vld [vmem:[#allocation2 + $0x17c] sm:$0xff]
    %v3928 = vld [vmem:[#allocation2 + $0x184] sm:$0xff]
    %v3929 = vld [vmem:[#allocation2 + $0x18c] sm:$0xff]
    %v3930 = vld [vmem:[#allocation2 + $0x194] sm:$0xff]
    %v3931 = vld [vmem:[#allocation2 + $0x19c] sm:$0xff]
    %v3932 = vld [vmem:[#allocation2 + $0x1a4] sm:$0xff]
    %v3933 = vld [vmem:[#allocation2 + $0x1ac] sm:$0xff]
    %v3934 = vld [vmem:[#allocation2 + $0x1b4] sm:$0xff]
    %v3935 = vld [vmem:[#allocation2 + $0x1bc] sm:$0xff]
    %v3936 = vld [vmem:[#allocation2 + $0x1c4] sm:$0xff]
    %v3937 = vld [vmem:[#allocation2 + $0x1cc] sm:$0xff]
    %v3938 = vld [vmem:[#allocation2 + $0x1d4] sm:$0xff]
    %v3939 = vld [vmem:[#allocation2 + $0x1dc] sm:$0xff]
    %v3940 = vld [vmem:[#allocation2 + $0x1e4] sm:$0xff]
    %v3941 = vld [vmem:[#allocation2 + $0x1ec] sm:$0xff]
    %v3942 = vld [vmem:[#allocation2 + $0x1f4] sm:$0xff]
    %v3943 = vld [vmem:[#allocation2 + $0x1fc] sm:$0xff]
    %v3944 = vld [vmem:[#allocation2 + $0x204] sm:$0xff]
    %v3945 = vld [vmem:[#allocation2 + $0x20c] sm:$0xff]
    %v3946 = vld [vmem:[#allocation2 + $0x214] sm:$0xff]
    %v3947 = vld [vmem:[#allocation2 + $0x21c] sm:$0xff]
    %v3948 = vld [vmem:[#allocation2 + $0x224] sm:$0xff]
    %v3949 = vld [vmem:[#allocation2 + $0x22c] sm:$0xff]
    %v3950 = vld [vmem:[#allocation2 + $0x234] sm:$0xff]
    %v3951 = vld [vmem:[#allocation2 + $0x23c] sm:$0xff]
    %v3952 = vld [vmem:[#allocation2 + $0x244] sm:$0xff]
    %v3953 = vld [vmem:[#allocation2 + $0x24c] sm:$0xff]
    %v3954 = vld [vmem:[#allocation2 + $0x254] sm:$0xff]
    %v3955 = vld [vmem:[#allocation2 + $0x25c] sm:$0xff]
    %v3956 = vld [vmem:[#allocation2 + $0x264] sm:$0xff]
    %v3957 = vld [vmem:[#allocation2 + $0x26c] sm:$0xff]
    %v3958 = vld [vmem:[#allocation2 + $0x274] sm:$0xff]
    %v3959 = vld [vmem:[#allocation2 + $0x27c] sm:$0xff]
    %v3960 = vld [vmem:[#allocation2 + $0x284] sm:$0xff]
    %v3961 = vld [vmem:[#allocation2 + $0x28c] sm:$0xff]
    %v3962 = vld [vmem:[#allocation2 + $0x294] sm:$0xff]
    %v3963 = vld [vmem:[#allocation2 + $0x29c] sm:$0xff]
    %v3964 = vld [vmem:[#allocation2 + $0x2a4] sm:$0xff]
    %v3965 = vld [vmem:[#allocation2 + $0x2ac] sm:$0xff]
    %v3966 = vld [vmem:[#allocation2 + $0x2b4] sm:$0xff]
    %v3967 = vld [vmem:[#allocation2 + $0x2bc] sm:$0xff]
    %v3968 = vld [vmem:[#allocation2 + $0x2c4] sm:$0xff]
    %v3969 = vld [vmem:[#allocation2 + $0x2cc] sm:$0xff]
    %v3970 = vld [vmem:[#allocation2 + $0x2d4] sm:$0xff]
    %v3971 = vld [vmem:[#allocation2 + $0x2dc] sm:$0xff]
    %v3972 = vld [vmem:[#allocation2 + $0x2e4] sm:$0xff]
    %v3973 = vld [vmem:[#allocation2 + $0x2ec] sm:$0xff]
    %v3974 = vld [vmem:[#allocation2 + $0x2f4] sm:$0xff]
    %v3975 = vld [vmem:[#allocation2 + $0x2fc] sm:$0xff]
    %v3976 = vld [vmem:[#allocation2 + $0x304] sm:$0xff]
    %v3977 = vld [vmem:[#allocation2 + $0x30c] sm:$0xff]
    %3978 = vst [vmem:[#allocation3 + $0x8] sm:$0xff] %v3880
    %3979 = vst [vmem:[#allocation3 + $0x50] sm:$0xff] %v3881
    %3980 = vst [vmem:[#allocation3 + $0x98] sm:$0xff] %v3882
    %3981 = vst [vmem:[#allocation3 + $0xe0] sm:$0xff] %v3883
    %3982 = vst [vmem:[#allocation3 + $0x128] sm:$0xff] %v3884
    %3983 = vst [vmem:[#allocation3 + $0x170] sm:$0xff] %v3885
    %3984 = vst [vmem:[#allocation3 + $0x1b8] sm:$0xff] %v3886
    %3985 = vst [vmem:[#allocation3 + $0x200] sm:$0xff] %v3887
    %3986 = vst [vmem:[#allocation3 + $0x248] sm:$0xff] %v3888
    %3987 = vst [vmem:[#allocation3 + $0x290] sm:$0xff] %v3889
    %3988 = vst [vmem:[#allocation3 + $0x2d8] sm:$0xff] %v3890
    %3989 = vst [vmem:[#allocation3 + $0x320] sm:$0xff] %v3891
    %3990 = vst [vmem:[#allocation3 + $0x368] sm:$0xff] %v3892
    %3991 = vst [vmem:[#allocation3 + $0x3b0] sm:$0xff] %v3893
    %3992 = vst [vmem:[#allocation3 + $0x3f8] sm:$0xff] %v3894
    %3993 = vst [vmem:[#allocation3 + $0x440] sm:$0xff] %v3895
    %3994 = vst [vmem:[#allocation3 + $0x488] sm:$0xff] %v3896
    %3995 = vst [vmem:[#allocation3 + $0x4d0] sm:$0xff] %v3897
    %3996 = vst [vmem:[#allocation3 + $0x518] sm:$0xff] %v3898
    %3997 = vst [vmem:[#allocation3 + $0x560] sm:$0xff] %v3899
    %3998 = vst [vmem:[#allocation3 + $0x5a8] sm:$0xff] %v3900
    %3999 = vst [vmem:[#allocation3 + $0x5f0] sm:$0xff] %v3901
    %4000 = vst [vmem:[#allocation3 + $0x638] sm:$0xff] %v3902
    %4001 = vst [vmem:[#allocation3 + $0x680] sm:$0xff] %v3903
    %4002 = vst [vmem:[#allocation3 + $0x6c8] sm:$0xff] %v3904
    %4003 = vst [vmem:[#allocation3 + $0x710] sm:$0xff] %v3905
    %4004 = vst [vmem:[#allocation3 + $0x758] sm:$0xff] %v3906
    %4005 = vst [vmem:[#allocation3 + $0x7a0] sm:$0xff] %v3907
    %4006 = vst [vmem:[#allocation3 + $0x7e8] sm:$0xff] %v3908
    %4007 = vst [vmem:[#allocation3 + $0x830] sm:$0xff] %v3909
    %4008 = vst [vmem:[#allocation3 + $0x878] sm:$0xff] %v3910
    %4009 = vst [vmem:[#allocation3 + $0x8c0] sm:$0xff] %v3911
    %4010 = vst [vmem:[#allocation3 + $0x908] sm:$0xff] %v3912
    %4011 = vst [vmem:[#allocation3 + $0x950] sm:$0xff] %v3913
    %4012 = vst [vmem:[#allocation3 + $0x998] sm:$0xff] %v3914
    %4013 = vst [vmem:[#allocation3 + $0x9e0] sm:$0xff] %v3915
    %4014 = vst [vmem:[#allocation3 + $0xa28] sm:$0xff] %v3916
    %4015 = vst [vmem:[#allocation3 + $0xa70] sm:$0xff] %v3917
    %4016 = vst [vmem:[#allocation3 + $0xab8] sm:$0xff] %v3918
    %4017 = vst [vmem:[#allocation3 + $0xb00] sm:$0xff] %v3919
    %4018 = vst [vmem:[#allocation3 + $0xb48] sm:$0xff] %v3920
    %4019 = vst [vmem:[#allocation3 + $0xb90] sm:$0xff] %v3921
    %4020 = vst [vmem:[#allocation3 + $0xbd8] sm:$0xff] %v3922
    %4021 = vst [vmem:[#allocation3 + $0xc20] sm:$0xff] %v3923
    %4022 = vst [vmem:[#allocation3 + $0xc68] sm:$0xff] %v3924
    %4023 = vst [vmem:[#allocation3 + $0xcb0] sm:$0xff] %v3925
    %4024 = vst [vmem:[#allocation3 + $0xcf8] sm:$0xff] %v3926
    %4025 = vst [vmem:[#allocation3 + $0xd40] sm:$0xff] %v3927
    %4026 = vst [vmem:[#allocation3 + $0xd88] sm:$0xff] %v3928
    %4027 = vst [vmem:[#allocation3 + $0xdd0] sm:$0xff] %v3929
    %4028 = vst [vmem:[#allocation3 + $0xe18] sm:$0xff] %v3930
    %4029 = vst [vmem:[#allocation3 + $0xe60] sm:$0xff] %v3931
    %4030 = vst [vmem:[#allocation3 + $0xea8] sm:$0xff] %v3932
    %4031 = vst [vmem:[#allocation3 + $0xef0] sm:$0xff] %v3933
    %4032 = vst [vmem:[#allocation3 + $0xf38] sm:$0xff] %v3934
    %4033 = vst [vmem:[#allocation3 + $0xf80] sm:$0xff] %v3935
    %4034 = vst [vmem:[#allocation3 + $0xfc8] sm:$0xff] %v3936
    %4035 = vst [vmem:[#allocation3 + $0x1010] sm:$0xff] %v3937
    %4036 = vst [vmem:[#allocation3 + $0x1058] sm:$0xff] %v3938
    %4037 = vst [vmem:[#allocation3 + $0x10a0] sm:$0xff] %v3939
    %4038 = vst [vmem:[#allocation3 + $0x10e8] sm:$0xff] %v3940
    %4039 = vst [vmem:[#allocation3 + $0x1130] sm:$0xff] %v3941
    %4040 = vst [vmem:[#allocation3 + $0x1178] sm:$0xff] %v3942
    %4041 = vst [vmem:[#allocation3 + $0x11c0] sm:$0xff] %v3943
    %4042 = vst [vmem:[#allocation3 + $0x1208] sm:$0xff] %v3944
    %4043 = vst [vmem:[#allocation3 + $0x1250] sm:$0xff] %v3945
    %4044 = vst [vmem:[#allocation3 + $0x1298] sm:$0xff] %v3946
    %4045 = vst [vmem:[#allocation3 + $0x12e0] sm:$0xff] %v3947
    %4046 = vst [vmem:[#allocation3 + $0x1328] sm:$0xff] %v3948
    %4047 = vst [vmem:[#allocation3 + $0x1370] sm:$0xff] %v3949
    %4048 = vst [vmem:[#allocation3 + $0x13b8] sm:$0xff] %v3950
    %4049 = vst [vmem:[#allocation3 + $0x1400] sm:$0xff] %v3951
    %4050 = vst [vmem:[#allocation3 + $0x1448] sm:$0xff] %v3952
    %4051 = vst [vmem:[#allocation3 + $0x1490] sm:$0xff] %v3953
    %4052 = vst [vmem:[#allocation3 + $0x14d8] sm:$0xff] %v3954
    %4053 = vst [vmem:[#allocation3 + $0x1520] sm:$0xff] %v3955
    %4054 = vst [vmem:[#allocation3 + $0x1568] sm:$0xff] %v3956
    %4055 = vst [vmem:[#allocation3 + $0x15b0] sm:$0xff] %v3957
    %4056 = vst [vmem:[#allocation3 + $0x15f8] sm:$0xff] %v3958
    %4057 = vst [vmem:[#allocation3 + $0x1640] sm:$0xff] %v3959
    %4058 = vst [vmem:[#allocation3 + $0x1688] sm:$0xff] %v3960
    %4059 = vst [vmem:[#allocation3 + $0x16d0] sm:$0xff] %v3961
    %4060 = vst [vmem:[#allocation3 + $0x1718] sm:$0xff] %v3962
    %4061 = vst [vmem:[#allocation3 + $0x1760] sm:$0xff] %v3963
    %4062 = vst [vmem:[#allocation3 + $0x17a8] sm:$0xff] %v3964
    %4063 = vst [vmem:[#allocation3 + $0x17f0] sm:$0xff] %v3965
    %4064 = vst [vmem:[#allocation3 + $0x1838] sm:$0xff] %v3966
    %4065 = vst [vmem:[#allocation3 + $0x1880] sm:$0xff] %v3967
    %4066 = vst [vmem:[#allocation3 + $0x18c8] sm:$0xff] %v3968
    %4067 = vst [vmem:[#allocation3 + $0x1910] sm:$0xff] %v3969
    %4068 = vst [vmem:[#allocation3 + $0x1958] sm:$0xff] %v3970
    %4069 = vst [vmem:[#allocation3 + $0x19a0] sm:$0xff] %v3971
    %4070 = vst [vmem:[#allocation3 + $0x19e8] sm:$0xff] %v3972
    %4071 = vst [vmem:[#allocation3 + $0x1a30] sm:$0xff] %v3973
    %4072 = vst [vmem:[#allocation3 + $0x1a78] sm:$0xff] %v3974
    %4073 = vst [vmem:[#allocation3 + $0x1ac0] sm:$0xff] %v3975
    %4074 = vst [vmem:[#allocation3 + $0x1b08] sm:$0xff] %v3976
    %4075 = vst [vmem:[#allocation3 + $0x1b50] sm:$0xff] %v3977
    %v4076 = vld [vmem:[#allocation2 + $0x5] sm:$0xff]
    %v4077 = vld [vmem:[#allocation2 + $0xd] sm:$0xff]
    %v4078 = vld [vmem:[#allocation2 + $0x15] sm:$0xff]
    %v4079 = vld [vmem:[#allocation2 + $0x1d] sm:$0xff]
    %v4080 = vld [vmem:[#allocation2 + $0x25] sm:$0xff]
    %v4081 = vld [vmem:[#allocation2 + $0x2d] sm:$0xff]
    %v4082 = vld [vmem:[#allocation2 + $0x35] sm:$0xff]
    %v4083 = vld [vmem:[#allocation2 + $0x3d] sm:$0xff]
    %v4084 = vld [vmem:[#allocation2 + $0x45] sm:$0xff]
    %v4085 = vld [vmem:[#allocation2 + $0x4d] sm:$0xff]
    %v4086 = vld [vmem:[#allocation2 + $0x55] sm:$0xff]
    %v4087 = vld [vmem:[#allocation2 + $0x5d] sm:$0xff]
    %v4088 = vld [vmem:[#allocation2 + $0x65] sm:$0xff]
    %v4089 = vld [vmem:[#allocation2 + $0x6d] sm:$0xff]
    %v4090 = vld [vmem:[#allocation2 + $0x75] sm:$0xff]
    %v4091 = vld [vmem:[#allocation2 + $0x7d] sm:$0xff]
    %v4092 = vld [vmem:[#allocation2 + $0x85] sm:$0xff]
    %v4093 = vld [vmem:[#allocation2 + $0x8d] sm:$0xff]
    %v4094 = vld [vmem:[#allocation2 + $0x95] sm:$0xff]
    %v4095 = vld [vmem:[#allocation2 + $0x9d] sm:$0xff]
    %v4096 = vld [vmem:[#allocation2 + $0xa5] sm:$0xff]
    %v4097 = vld [vmem:[#allocation2 + $0xad] sm:$0xff]
    %v4098 = vld [vmem:[#allocation2 + $0xb5] sm:$0xff]
    %v4099 = vld [vmem:[#allocation2 + $0xbd] sm:$0xff]
    %v4100 = vld [vmem:[#allocation2 + $0xc5] sm:$0xff]
    %v4101 = vld [vmem:[#allocation2 + $0xcd] sm:$0xff]
    %v4102 = vld [vmem:[#allocation2 + $0xd5] sm:$0xff]
    %v4103 = vld [vmem:[#allocation2 + $0xdd] sm:$0xff]
    %v4104 = vld [vmem:[#allocation2 + $0xe5] sm:$0xff]
    %v4105 = vld [vmem:[#allocation2 + $0xed] sm:$0xff]
    %v4106 = vld [vmem:[#allocation2 + $0xf5] sm:$0xff]
    %v4107 = vld [vmem:[#allocation2 + $0xfd] sm:$0xff]
    %v4108 = vld [vmem:[#allocation2 + $0x105] sm:$0xff]
    %v4109 = vld [vmem:[#allocation2 + $0x10d] sm:$0xff]
    %v4110 = vld [vmem:[#allocation2 + $0x115] sm:$0xff]
    %v4111 = vld [vmem:[#allocation2 + $0x11d] sm:$0xff]
    %v4112 = vld [vmem:[#allocation2 + $0x125] sm:$0xff]
    %v4113 = vld [vmem:[#allocation2 + $0x12d] sm:$0xff]
    %v4114 = vld [vmem:[#allocation2 + $0x135] sm:$0xff]
    %v4115 = vld [vmem:[#allocation2 + $0x13d] sm:$0xff]
    %v4116 = vld [vmem:[#allocation2 + $0x145] sm:$0xff]
    %v4117 = vld [vmem:[#allocation2 + $0x14d] sm:$0xff]
    %v4118 = vld [vmem:[#allocation2 + $0x155] sm:$0xff]
    %v4119 = vld [vmem:[#allocation2 + $0x15d] sm:$0xff]
    %v4120 = vld [vmem:[#allocation2 + $0x165] sm:$0xff]
    %v4121 = vld [vmem:[#allocation2 + $0x16d] sm:$0xff]
    %v4122 = vld [vmem:[#allocation2 + $0x175] sm:$0xff]
    %v4123 = vld [vmem:[#allocation2 + $0x17d] sm:$0xff]
    %v4124 = vld [vmem:[#allocation2 + $0x185] sm:$0xff]
    %v4125 = vld [vmem:[#allocation2 + $0x18d] sm:$0xff]
    %v4126 = vld [vmem:[#allocation2 + $0x195] sm:$0xff]
    %v4127 = vld [vmem:[#allocation2 + $0x19d] sm:$0xff]
    %v4128 = vld [vmem:[#allocation2 + $0x1a5] sm:$0xff]
    %v4129 = vld [vmem:[#allocation2 + $0x1ad] sm:$0xff]
    %v4130 = vld [vmem:[#allocation2 + $0x1b5] sm:$0xff]
    %v4131 = vld [vmem:[#allocation2 + $0x1bd] sm:$0xff]
    %v4132 = vld [vmem:[#allocation2 + $0x1c5] sm:$0xff]
    %v4133 = vld [vmem:[#allocation2 + $0x1cd] sm:$0xff]
    %v4134 = vld [vmem:[#allocation2 + $0x1d5] sm:$0xff]
    %v4135 = vld [vmem:[#allocation2 + $0x1dd] sm:$0xff]
    %v4136 = vld [vmem:[#allocation2 + $0x1e5] sm:$0xff]
    %v4137 = vld [vmem:[#allocation2 + $0x1ed] sm:$0xff]
    %v4138 = vld [vmem:[#allocation2 + $0x1f5] sm:$0xff]
    %v4139 = vld [vmem:[#allocation2 + $0x1fd] sm:$0xff]
    %v4140 = vld [vmem:[#allocation2 + $0x205] sm:$0xff]
    %v4141 = vld [vmem:[#allocation2 + $0x20d] sm:$0xff]
    %v4142 = vld [vmem:[#allocation2 + $0x215] sm:$0xff]
    %v4143 = vld [vmem:[#allocation2 + $0x21d] sm:$0xff]
    %v4144 = vld [vmem:[#allocation2 + $0x225] sm:$0xff]
    %v4145 = vld [vmem:[#allocation2 + $0x22d] sm:$0xff]
    %v4146 = vld [vmem:[#allocation2 + $0x235] sm:$0xff]
    %v4147 = vld [vmem:[#allocation2 + $0x23d] sm:$0xff]
    %v4148 = vld [vmem:[#allocation2 + $0x245] sm:$0xff]
    %v4149 = vld [vmem:[#allocation2 + $0x24d] sm:$0xff]
    %v4150 = vld [vmem:[#allocation2 + $0x255] sm:$0xff]
    %v4151 = vld [vmem:[#allocation2 + $0x25d] sm:$0xff]
    %v4152 = vld [vmem:[#allocation2 + $0x265] sm:$0xff]
    %v4153 = vld [vmem:[#allocation2 + $0x26d] sm:$0xff]
    %v4154 = vld [vmem:[#allocation2 + $0x275] sm:$0xff]
    %v4155 = vld [vmem:[#allocation2 + $0x27d] sm:$0xff]
    %v4156 = vld [vmem:[#allocation2 + $0x285] sm:$0xff]
    %v4157 = vld [vmem:[#allocation2 + $0x28d] sm:$0xff]
    %v4158 = vld [vmem:[#allocation2 + $0x295] sm:$0xff]
    %v4159 = vld [vmem:[#allocation2 + $0x29d] sm:$0xff]
    %v4160 = vld [vmem:[#allocation2 + $0x2a5] sm:$0xff]
    %v4161 = vld [vmem:[#allocation2 + $0x2ad] sm:$0xff]
    %v4162 = vld [vmem:[#allocation2 + $0x2b5] sm:$0xff]
    %v4163 = vld [vmem:[#allocation2 + $0x2bd] sm:$0xff]
    %v4164 = vld [vmem:[#allocation2 + $0x2c5] sm:$0xff]
    %v4165 = vld [vmem:[#allocation2 + $0x2cd] sm:$0xff]
    %v4166 = vld [vmem:[#allocation2 + $0x2d5] sm:$0xff]
    %v4167 = vld [vmem:[#allocation2 + $0x2dd] sm:$0xff]
    %v4168 = vld [vmem:[#allocation2 + $0x2e5] sm:$0xff]
    %v4169 = vld [vmem:[#allocation2 + $0x2ed] sm:$0xff]
    %v4170 = vld [vmem:[#allocation2 + $0x2f5] sm:$0xff]
    %v4171 = vld [vmem:[#allocation2 + $0x2fd] sm:$0xff]
    %v4172 = vld [vmem:[#allocation2 + $0x305] sm:$0xff]
    %v4173 = vld [vmem:[#allocation2 + $0x30d] sm:$0xff]
    %v4174 = vsel %vm3292, 1, 0
    %v4175 = vsel %vm3293, 1, 0
    %v4176 = vsel %vm3294, 1, 0
    %v4177 = vsel %vm3295, 1, 0
    %v4178 = vsel %vm3296, 1, 0
    %v4179 = vsel %vm3297, 1, 0
    %v4180 = vsel %vm3298, 1, 0
    %v4181 = vsel %vm3299, 1, 0
    %v4182 = vsel %vm3300, 1, 0
    %v4183 = vsel %vm3301, 1, 0
    %v4184 = vsel %vm3302, 1, 0
    %v4185 = vsel %vm3303, 1, 0
    %v4186 = vsel %vm3304, 1, 0
    %v4187 = vsel %vm3305, 1, 0
    %v4188 = vsel %vm3306, 1, 0
    %v4189 = vsel %vm3307, 1, 0
    %v4190 = vsel %vm3308, 1, 0
    %v4191 = vsel %vm3309, 1, 0
    %v4192 = vsel %vm3310, 1, 0
    %v4193 = vsel %vm3311, 1, 0
    %v4194 = vsel %vm3312, 1, 0
    %v4195 = vsel %vm3313, 1, 0
    %v4196 = vsel %vm3314, 1, 0
    %v4197 = vsel %vm3315, 1, 0
    %v4198 = vsel %vm3316, 1, 0
    %v4199 = vsel %vm3317, 1, 0
    %v4200 = vsel %vm3318, 1, 0
    %v4201 = vsel %vm3319, 1, 0
    %v4202 = vsel %vm3320, 1, 0
    %v4203 = vsel %vm3321, 1, 0
    %v4204 = vsel %vm3322, 1, 0
    %v4205 = vsel %vm3323, 1, 0
    %v4206 = vsel %vm3324, 1, 0
    %v4207 = vsel %vm3325, 1, 0
    %v4208 = vsel %vm3326, 1, 0
    %v4209 = vsel %vm3327, 1, 0
    %v4210 = vsel %vm3328, 1, 0
    %v4211 = vsel %vm3329, 1, 0
    %v4212 = vsel %vm3330, 1, 0
    %v4213 = vsel %vm3331, 1, 0
    %v4214 = vsel %vm3332, 1, 0
    %v4215 = vsel %vm3333, 1, 0
    %v4216 = vsel %vm3334, 1, 0
    %v4217 = vsel %vm3335, 1, 0
    %v4218 = vsel %vm3336, 1, 0
    %v4219 = vsel %vm3337, 1, 0
    %v4220 = vsel %vm3338, 1, 0
    %v4221 = vsel %vm3339, 1, 0
    %v4222 = vsel %vm3340, 1, 0
    %v4223 = vsel %vm3341, 1, 0
    %v4224 = vsel %vm3342, 1, 0
    %v4225 = vsel %vm3343, 1, 0
    %v4226 = vsel %vm3344, 1, 0
    %v4227 = vsel %vm3345, 1, 0
    %v4228 = vsel %vm3346, 1, 0
    %v4229 = vsel %vm3347, 1, 0
    %v4230 = vsel %vm3348, 1, 0
    %v4231 = vsel %vm3349, 1, 0
    %v4232 = vsel %vm3350, 1, 0
    %v4233 = vsel %vm3351, 1, 0
    %v4234 = vsel %vm3352, 1, 0
    %v4235 = vsel %vm3353, 1, 0
    %v4236 = vsel %vm3354, 1, 0
    %v4237 = vsel %vm3355, 1, 0
    %v4238 = vsel %vm3356, 1, 0
    %v4239 = vsel %vm3357, 1, 0
    %v4240 = vsel %vm3358, 1, 0
    %v4241 = vsel %vm3359, 1, 0
    %v4242 = vsel %vm3360, 1, 0
    %v4243 = vsel %vm3361, 1, 0
    %v4244 = vsel %vm3362, 1, 0
    %v4245 = vsel %vm3363, 1, 0
    %v4246 = vsel %vm3364, 1, 0
    %v4247 = vsel %vm3365, 1, 0
    %v4248 = vsel %vm3366, 1, 0
    %v4249 = vsel %vm3367, 1, 0
    %v4250 = vsel %vm3368, 1, 0
    %v4251 = vsel %vm3369, 1, 0
    %v4252 = vsel %vm3370, 1, 0
    %v4253 = vsel %vm3371, 1, 0
    %v4254 = vsel %vm3372, 1, 0
    %v4255 = vsel %vm3373, 1, 0
    %v4256 = vsel %vm3374, 1, 0
    %v4257 = vsel %vm3375, 1, 0
    %v4258 = vsel %vm3376, 1, 0
    %v4259 = vsel %vm3377, 1, 0
    %v4260 = vsel %vm3378, 1, 0
    %v4261 = vsel %vm3379, 1, 0
    %v4262 = vsel %vm3380, 1, 0
    %v4263 = vsel %vm3381, 1, 0
    %v4264 = vsel %vm3382, 1, 0
    %v4265 = vsel %vm3383, 1, 0
    %v4266 = vsel %vm3384, 1, 0
    %v4267 = vsel %vm3385, 1, 0
    %v4268 = vsel %vm3386, 1, 0
    %v4269 = vsel %vm3387, 1, 0
    %v4270 = vsel %vm3388, 1, 0
    %v4271 = vsel %vm3389, 1, 0
    %vm4272 = vcmp.eq.s32.totalorder %v4174, 1
    %vm4273 = vcmp.eq.s32.totalorder %v4175, 1
    %vm4274 = vcmp.eq.s32.totalorder %v4176, 1
    %vm4275 = vcmp.eq.s32.totalorder %v4177, 1
    %vm4276 = vcmp.eq.s32.totalorder %v4178, 1
    %vm4277 = vcmp.eq.s32.totalorder %v4179, 1
    %vm4278 = vcmp.eq.s32.totalorder %v4180, 1
    %vm4279 = vcmp.eq.s32.totalorder %v4181, 1
    %vm4280 = vcmp.eq.s32.totalorder %v4182, 1
    %vm4281 = vcmp.eq.s32.totalorder %v4183, 1
    %vm4282 = vcmp.eq.s32.totalorder %v4184, 1
    %vm4283 = vcmp.eq.s32.totalorder %v4185, 1
    %vm4284 = vcmp.eq.s32.totalorder %v4186, 1
    %vm4285 = vcmp.eq.s32.totalorder %v4187, 1
    %vm4286 = vcmp.eq.s32.totalorder %v4188, 1
    %vm4287 = vcmp.eq.s32.totalorder %v4189, 1
    %vm4288 = vcmp.eq.s32.totalorder %v4190, 1
    %vm4289 = vcmp.eq.s32.totalorder %v4191, 1
    %vm4290 = vcmp.eq.s32.totalorder %v4192, 1
    %vm4291 = vcmp.eq.s32.totalorder %v4193, 1
    %vm4292 = vcmp.eq.s32.totalorder %v4194, 1
    %vm4293 = vcmp.eq.s32.totalorder %v4195, 1
    %vm4294 = vcmp.eq.s32.totalorder %v4196, 1
    %vm4295 = vcmp.eq.s32.totalorder %v4197, 1
    %vm4296 = vcmp.eq.s32.totalorder %v4198, 1
    %vm4297 = vcmp.eq.s32.totalorder %v4199, 1
    %vm4298 = vcmp.eq.s32.totalorder %v4200, 1
    %vm4299 = vcmp.eq.s32.totalorder %v4201, 1
    %vm4300 = vcmp.eq.s32.totalorder %v4202, 1
    %vm4301 = vcmp.eq.s32.totalorder %v4203, 1
    %vm4302 = vcmp.eq.s32.totalorder %v4204, 1
    %vm4303 = vcmp.eq.s32.totalorder %v4205, 1
    %vm4304 = vcmp.eq.s32.totalorder %v4206, 1
    %vm4305 = vcmp.eq.s32.totalorder %v4207, 1
    %vm4306 = vcmp.eq.s32.totalorder %v4208, 1
    %vm4307 = vcmp.eq.s32.totalorder %v4209, 1
    %vm4308 = vcmp.eq.s32.totalorder %v4210, 1
    %vm4309 = vcmp.eq.s32.totalorder %v4211, 1
    %vm4310 = vcmp.eq.s32.totalorder %v4212, 1
    %vm4311 = vcmp.eq.s32.totalorder %v4213, 1
    %vm4312 = vcmp.eq.s32.totalorder %v4214, 1
    %vm4313 = vcmp.eq.s32.totalorder %v4215, 1
    %vm4314 = vcmp.eq.s32.totalorder %v4216, 1
    %vm4315 = vcmp.eq.s32.totalorder %v4217, 1
    %vm4316 = vcmp.eq.s32.totalorder %v4218, 1
    %vm4317 = vcmp.eq.s32.totalorder %v4219, 1
    %vm4318 = vcmp.eq.s32.totalorder %v4220, 1
    %vm4319 = vcmp.eq.s32.totalorder %v4221, 1
    %vm4320 = vcmp.eq.s32.totalorder %v4222, 1
    %vm4321 = vcmp.eq.s32.totalorder %v4223, 1
    %vm4322 = vcmp.eq.s32.totalorder %v4224, 1
    %vm4323 = vcmp.eq.s32.totalorder %v4225, 1
    %vm4324 = vcmp.eq.s32.totalorder %v4226, 1
    %vm4325 = vcmp.eq.s32.totalorder %v4227, 1
    %vm4326 = vcmp.eq.s32.totalorder %v4228, 1
    %vm4327 = vcmp.eq.s32.totalorder %v4229, 1
    %vm4328 = vcmp.eq.s32.totalorder %v4230, 1
    %vm4329 = vcmp.eq.s32.totalorder %v4231, 1
    %vm4330 = vcmp.eq.s32.totalorder %v4232, 1
    %vm4331 = vcmp.eq.s32.totalorder %v4233, 1
    %vm4332 = vcmp.eq.s32.totalorder %v4234, 1
    %vm4333 = vcmp.eq.s32.totalorder %v4235, 1
    %vm4334 = vcmp.eq.s32.totalorder %v4236, 1
    %vm4335 = vcmp.eq.s32.totalorder %v4237, 1
    %vm4336 = vcmp.eq.s32.totalorder %v4238, 1
    %vm4337 = vcmp.eq.s32.totalorder %v4239, 1
    %vm4338 = vcmp.eq.s32.totalorder %v4240, 1
    %vm4339 = vcmp.eq.s32.totalorder %v4241, 1
    %vm4340 = vcmp.eq.s32.totalorder %v4242, 1
    %vm4341 = vcmp.eq.s32.totalorder %v4243, 1
    %vm4342 = vcmp.eq.s32.totalorder %v4244, 1
    %vm4343 = vcmp.eq.s32.totalorder %v4245, 1
    %vm4344 = vcmp.eq.s32.totalorder %v4246, 1
    %vm4345 = vcmp.eq.s32.totalorder %v4247, 1
    %vm4346 = vcmp.eq.s32.totalorder %v4248, 1
    %vm4347 = vcmp.eq.s32.totalorder %v4249, 1
    %vm4348 = vcmp.eq.s32.totalorder %v4250, 1
    %vm4349 = vcmp.eq.s32.totalorder %v4251, 1
    %vm4350 = vcmp.eq.s32.totalorder %v4252, 1
    %vm4351 = vcmp.eq.s32.totalorder %v4253, 1
    %vm4352 = vcmp.eq.s32.totalorder %v4254, 1
    %vm4353 = vcmp.eq.s32.totalorder %v4255, 1
    %vm4354 = vcmp.eq.s32.totalorder %v4256, 1
    %vm4355 = vcmp.eq.s32.totalorder %v4257, 1
    %vm4356 = vcmp.eq.s32.totalorder %v4258, 1
    %vm4357 = vcmp.eq.s32.totalorder %v4259, 1
    %vm4358 = vcmp.eq.s32.totalorder %v4260, 1
    %vm4359 = vcmp.eq.s32.totalorder %v4261, 1
    %vm4360 = vcmp.eq.s32.totalorder %v4262, 1
    %vm4361 = vcmp.eq.s32.totalorder %v4263, 1
    %vm4362 = vcmp.eq.s32.totalorder %v4264, 1
    %vm4363 = vcmp.eq.s32.totalorder %v4265, 1
    %vm4364 = vcmp.eq.s32.totalorder %v4266, 1
    %vm4365 = vcmp.eq.s32.totalorder %v4267, 1
    %vm4366 = vcmp.eq.s32.totalorder %v4268, 1
    %vm4367 = vcmp.eq.s32.totalorder %v4269, 1
    %vm4368 = vcmp.eq.s32.totalorder %v4270, 1
    %vm4369 = vcmp.eq.s32.totalorder %v4271, 1
    %v4370 = vsel %vm4272, %v4076, 0.0
    %v4371 = vsel %vm4273, %v4077, 0.0
    %v4372 = vsel %vm4274, %v4078, 0.0
    %v4373 = vsel %vm4275, %v4079, 0.0
    %v4374 = vsel %vm4276, %v4080, 0.0
    %v4375 = vsel %vm4277, %v4081, 0.0
    %v4376 = vsel %vm4278, %v4082, 0.0
    %v4377 = vsel %vm4279, %v4083, 0.0
    %v4378 = vsel %vm4280, %v4084, 0.0
    %v4379 = vsel %vm4281, %v4085, 0.0
    %v4380 = vsel %vm4282, %v4086, 0.0
    %v4381 = vsel %vm4283, %v4087, 0.0
    %v4382 = vsel %vm4284, %v4088, 0.0
    %v4383 = vsel %vm4285, %v4089, 0.0
    %v4384 = vsel %vm4286, %v4090, 0.0
    %v4385 = vsel %vm4287, %v4091, 0.0
    %v4386 = vsel %vm4288, %v4092, 0.0
    %v4387 = vsel %vm4289, %v4093, 0.0
    %v4388 = vsel %vm4290, %v4094, 0.0
    %v4389 = vsel %vm4291, %v4095, 0.0
    %v4390 = vsel %vm4292, %v4096, 0.0
    %v4391 = vsel %vm4293, %v4097, 0.0
    %v4392 = vsel %vm4294, %v4098, 0.0
    %v4393 = vsel %vm4295, %v4099, 0.0
    %v4394 = vsel %vm4296, %v4100, 0.0
    %v4395 = vsel %vm4297, %v4101, 0.0
    %v4396 = vsel %vm4298, %v4102, 0.0
    %v4397 = vsel %vm4299, %v4103, 0.0
    %v4398 = vsel %vm4300, %v4104, 0.0
    %v4399 = vsel %vm4301, %v4105, 0.0
    %v4400 = vsel %vm4302, %v4106, 0.0
    %v4401 = vsel %vm4303, %v4107, 0.0
    %v4402 = vsel %vm4304, %v4108, 0.0
    %v4403 = vsel %vm4305, %v4109, 0.0
    %v4404 = vsel %vm4306, %v4110, 0.0
    %v4405 = vsel %vm4307, %v4111, 0.0
    %v4406 = vsel %vm4308, %v4112, 0.0
    %v4407 = vsel %vm4309, %v4113, 0.0
    %v4408 = vsel %vm4310, %v4114, 0.0
    %v4409 = vsel %vm4311, %v4115, 0.0
    %v4410 = vsel %vm4312, %v4116, 0.0
    %v4411 = vsel %vm4313, %v4117, 0.0
    %v4412 = vsel %vm4314, %v4118, 0.0
    %v4413 = vsel %vm4315, %v4119, 0.0
    %v4414 = vsel %vm4316, %v4120, 0.0
    %v4415 = vsel %vm4317, %v4121, 0.0
    %v4416 = vsel %vm4318, %v4122, 0.0
    %v4417 = vsel %vm4319, %v4123, 0.0
    %v4418 = vsel %vm4320, %v4124, 0.0
    %v4419 = vsel %vm4321, %v4125, 0.0
    %v4420 = vsel %vm4322, %v4126, 0.0
    %v4421 = vsel %vm4323, %v4127, 0.0
    %v4422 = vsel %vm4324, %v4128, 0.0
    %v4423 = vsel %vm4325, %v4129, 0.0
    %v4424 = vsel %vm4326, %v4130, 0.0
    %v4425 = vsel %vm4327, %v4131, 0.0
    %v4426 = vsel %vm4328, %v4132, 0.0
    %v4427 = vsel %vm4329, %v4133, 0.0
    %v4428 = vsel %vm4330, %v4134, 0.0
    %v4429 = vsel %vm4331, %v4135, 0.0
    %v4430 = vsel %vm4332, %v4136, 0.0
    %v4431 = vsel %vm4333, %v4137, 0.0
    %v4432 = vsel %vm4334, %v4138, 0.0
    %v4433 = vsel %vm4335, %v4139, 0.0
    %v4434 = vsel %vm4336, %v4140, 0.0
    %v4435 = vsel %vm4337, %v4141, 0.0
    %v4436 = vsel %vm4338, %v4142, 0.0
    %v4437 = vsel %vm4339, %v4143, 0.0
    %v4438 = vsel %vm4340, %v4144, 0.0
    %v4439 = vsel %vm4341, %v4145, 0.0
    %v4440 = vsel %vm4342, %v4146, 0.0
    %v4441 = vsel %vm4343, %v4147, 0.0
    %v4442 = vsel %vm4344, %v4148, 0.0
    %v4443 = vsel %vm4345, %v4149, 0.0
    %v4444 = vsel %vm4346, %v4150, 0.0
    %v4445 = vsel %vm4347, %v4151, 0.0
    %v4446 = vsel %vm4348, %v4152, 0.0
    %v4447 = vsel %vm4349, %v4153, 0.0
    %v4448 = vsel %vm4350, %v4154, 0.0
    %v4449 = vsel %vm4351, %v4155, 0.0
    %v4450 = vsel %vm4352, %v4156, 0.0
    %v4451 = vsel %vm4353, %v4157, 0.0
    %v4452 = vsel %vm4354, %v4158, 0.0
    %v4453 = vsel %vm4355, %v4159, 0.0
    %v4454 = vsel %vm4356, %v4160, 0.0
    %v4455 = vsel %vm4357, %v4161, 0.0
    %v4456 = vsel %vm4358, %v4162, 0.0
    %v4457 = vsel %vm4359, %v4163, 0.0
    %v4458 = vsel %vm4360, %v4164, 0.0
    %v4459 = vsel %vm4361, %v4165, 0.0
    %v4460 = vsel %vm4362, %v4166, 0.0
    %v4461 = vsel %vm4363, %v4167, 0.0
    %v4462 = vsel %vm4364, %v4168, 0.0
    %v4463 = vsel %vm4365, %v4169, 0.0
    %v4464 = vsel %vm4366, %v4170, 0.0
    %v4465 = vsel %vm4367, %v4171, 0.0
    %v4466 = vsel %vm4368, %v4172, 0.0
    %v4467 = vsel %vm4369, %v4173, 0.0
    %4468 = vst [vmem:[#allocation3 + $0x10] sm:$0xff] %v4370
    %4469 = vst [vmem:[#allocation3 + $0x58] sm:$0xff] %v4371
    %4470 = vst [vmem:[#allocation3 + $0xa0] sm:$0xff] %v4372
    %4471 = vst [vmem:[#allocation3 + $0xe8] sm:$0xff] %v4373
    %4472 = vst [vmem:[#allocation3 + $0x130] sm:$0xff] %v4374
    %4473 = vst [vmem:[#allocation3 + $0x178] sm:$0xff] %v4375
    %4474 = vst [vmem:[#allocation3 + $0x1c0] sm:$0xff] %v4376
    %4475 = vst [vmem:[#allocation3 + $0x208] sm:$0xff] %v4377
    %4476 = vst [vmem:[#allocation3 + $0x250] sm:$0xff] %v4378
    %4477 = vst [vmem:[#allocation3 + $0x298] sm:$0xff] %v4379
    %4478 = vst [vmem:[#allocation3 + $0x2e0] sm:$0xff] %v4380
    %4479 = vst [vmem:[#allocation3 + $0x328] sm:$0xff] %v4381
    %4480 = vst [vmem:[#allocation3 + $0x370] sm:$0xff] %v4382
    %4481 = vst [vmem:[#allocation3 + $0x3b8] sm:$0xff] %v4383
    %4482 = vst [vmem:[#allocation3 + $0x400] sm:$0xff] %v4384
    %4483 = vst [vmem:[#allocation3 + $0x448] sm:$0xff] %v4385
    %4484 = vst [vmem:[#allocation3 + $0x490] sm:$0xff] %v4386
    %4485 = vst [vmem:[#allocation3 + $0x4d8] sm:$0xff] %v4387
    %4486 = vst [vmem:[#allocation3 + $0x520] sm:$0xff] %v4388
    %4487 = vst [vmem:[#allocation3 + $0x568] sm:$0xff] %v4389
    %4488 = vst [vmem:[#allocation3 + $0x5b0] sm:$0xff] %v4390
    %4489 = vst [vmem:[#allocation3 + $0x5f8] sm:$0xff] %v4391
    %4490 = vst [vmem:[#allocation3 + $0x640] sm:$0xff] %v4392
    %4491 = vst [vmem:[#allocation3 + $0x688] sm:$0xff] %v4393
    %4492 = vst [vmem:[#allocation3 + $0x6d0] sm:$0xff] %v4394
    %4493 = vst [vmem:[#allocation3 + $0x718] sm:$0xff] %v4395
    %4494 = vst [vmem:[#allocation3 + $0x760] sm:$0xff] %v4396
    %4495 = vst [vmem:[#allocation3 + $0x7a8] sm:$0xff] %v4397
    %4496 = vst [vmem:[#allocation3 + $0x7f0] sm:$0xff] %v4398
    %4497 = vst [vmem:[#allocation3 + $0x838] sm:$0xff] %v4399
    %4498 = vst [vmem:[#allocation3 + $0x880] sm:$0xff] %v4400
    %4499 = vst [vmem:[#allocation3 + $0x8c8] sm:$0xff] %v4401
    %4500 = vst [vmem:[#allocation3 + $0x910] sm:$0xff] %v4402
    %4501 = vst [vmem:[#allocation3 + $0x958] sm:$0xff] %v4403
    %4502 = vst [vmem:[#allocation3 + $0x9a0] sm:$0xff] %v4404
    %4503 = vst [vmem:[#allocation3 + $0x9e8] sm:$0xff] %v4405
    %4504 = vst [vmem:[#allocation3 + $0xa30] sm:$0xff] %v4406
    %4505 = vst [vmem:[#allocation3 + $0xa78] sm:$0xff] %v4407
    %4506 = vst [vmem:[#allocation3 + $0xac0] sm:$0xff] %v4408
    %4507 = vst [vmem:[#allocation3 + $0xb08] sm:$0xff] %v4409
    %4508 = vst [vmem:[#allocation3 + $0xb50] sm:$0xff] %v4410
    %4509 = vst [vmem:[#allocation3 + $0xb98] sm:$0xff] %v4411
    %4510 = vst [vmem:[#allocation3 + $0xbe0] sm:$0xff] %v4412
    %4511 = vst [vmem:[#allocation3 + $0xc28] sm:$0xff] %v4413
    %4512 = vst [vmem:[#allocation3 + $0xc70] sm:$0xff] %v4414
    %4513 = vst [vmem:[#allocation3 + $0xcb8] sm:$0xff] %v4415
    %4514 = vst [vmem:[#allocation3 + $0xd00] sm:$0xff] %v4416
    %4515 = vst [vmem:[#allocation3 + $0xd48] sm:$0xff] %v4417
    %4516 = vst [vmem:[#allocation3 + $0xd90] sm:$0xff] %v4418
    %4517 = vst [vmem:[#allocation3 + $0xdd8] sm:$0xff] %v4419
    %4518 = vst [vmem:[#allocation3 + $0xe20] sm:$0xff] %v4420
    %4519 = vst [vmem:[#allocation3 + $0xe68] sm:$0xff] %v4421
    %4520 = vst [vmem:[#allocation3 + $0xeb0] sm:$0xff] %v4422
    %4521 = vst [vmem:[#allocation3 + $0xef8] sm:$0xff] %v4423
    %4522 = vst [vmem:[#allocation3 + $0xf40] sm:$0xff] %v4424
    %4523 = vst [vmem:[#allocation3 + $0xf88] sm:$0xff] %v4425
    %4524 = vst [vmem:[#allocation3 + $0xfd0] sm:$0xff] %v4426
    %4525 = vst [vmem:[#allocation3 + $0x1018] sm:$0xff] %v4427
    %4526 = vst [vmem:[#allocation3 + $0x1060] sm:$0xff] %v4428
    %4527 = vst [vmem:[#allocation3 + $0x10a8] sm:$0xff] %v4429
    %4528 = vst [vmem:[#allocation3 + $0x10f0] sm:$0xff] %v4430
    %4529 = vst [vmem:[#allocation3 + $0x1138] sm:$0xff] %v4431
    %4530 = vst [vmem:[#allocation3 + $0x1180] sm:$0xff] %v4432
    %4531 = vst [vmem:[#allocation3 + $0x11c8] sm:$0xff] %v4433
    %4532 = vst [vmem:[#allocation3 + $0x1210] sm:$0xff] %v4434
    %4533 = vst [vmem:[#allocation3 + $0x1258] sm:$0xff] %v4435
    %4534 = vst [vmem:[#allocation3 + $0x12a0] sm:$0xff] %v4436
    %4535 = vst [vmem:[#allocation3 + $0x12e8] sm:$0xff] %v4437
    %4536 = vst [vmem:[#allocation3 + $0x1330] sm:$0xff] %v4438
    %4537 = vst [vmem:[#allocation3 + $0x1378] sm:$0xff] %v4439
    %4538 = vst [vmem:[#allocation3 + $0x13c0] sm:$0xff] %v4440
    %4539 = vst [vmem:[#allocation3 + $0x1408] sm:$0xff] %v4441
    %4540 = vst [vmem:[#allocation3 + $0x1450] sm:$0xff] %v4442
    %4541 = vst [vmem:[#allocation3 + $0x1498] sm:$0xff] %v4443
    %4542 = vst [vmem:[#allocation3 + $0x14e0] sm:$0xff] %v4444
    %4543 = vst [vmem:[#allocation3 + $0x1528] sm:$0xff] %v4445
    %4544 = vst [vmem:[#allocation3 + $0x1570] sm:$0xff] %v4446
    %4545 = vst [vmem:[#allocation3 + $0x15b8] sm:$0xff] %v4447
    %4546 = vst [vmem:[#allocation3 + $0x1600] sm:$0xff] %v4448
    %4547 = vst [vmem:[#allocation3 + $0x1648] sm:$0xff] %v4449
    %4548 = vst [vmem:[#allocation3 + $0x1690] sm:$0xff] %v4450
    %4549 = vst [vmem:[#allocation3 + $0x16d8] sm:$0xff] %v4451
    %4550 = vst [vmem:[#allocation3 + $0x1720] sm:$0xff] %v4452
    %4551 = vst [vmem:[#allocation3 + $0x1768] sm:$0xff] %v4453
    %4552 = vst [vmem:[#allocation3 + $0x17b0] sm:$0xff] %v4454
    %4553 = vst [vmem:[#allocation3 + $0x17f8] sm:$0xff] %v4455
    %4554 = vst [vmem:[#allocation3 + $0x1840] sm:$0xff] %v4456
    %4555 = vst [vmem:[#allocation3 + $0x1888] sm:$0xff] %v4457
    %4556 = vst [vmem:[#allocation3 + $0x18d0] sm:$0xff] %v4458
    %4557 = vst [vmem:[#allocation3 + $0x1918] sm:$0xff] %v4459
    %4558 = vst [vmem:[#allocation3 + $0x1960] sm:$0xff] %v4460
    %4559 = vst [vmem:[#allocation3 + $0x19a8] sm:$0xff] %v4461
    %4560 = vst [vmem:[#allocation3 + $0x19f0] sm:$0xff] %v4462
    %4561 = vst [vmem:[#allocation3 + $0x1a38] sm:$0xff] %v4463
    %4562 = vst [vmem:[#allocation3 + $0x1a80] sm:$0xff] %v4464
    %4563 = vst [vmem:[#allocation3 + $0x1ac8] sm:$0xff] %v4465
    %4564 = vst [vmem:[#allocation3 + $0x1b10] sm:$0xff] %v4466
    %4565 = vst [vmem:[#allocation3 + $0x1b58] sm:$0xff] %v4467
    %v4566 = vld [vmem:[#allocation2 + $0x1f] sm:$0xff]
    %v4567 = vld [vmem:[#allocation2 + $0x27] sm:$0xff]
    %v4568 = vld [vmem:[#allocation2 + $0x2f] sm:$0xff]
    %v4569 = vld [vmem:[#allocation2 + $0x37] sm:$0xff]
    %v4570 = vld [vmem:[#allocation2 + $0x3f] sm:$0xff]
    %v4571 = vld [vmem:[#allocation2 + $0x47] sm:$0xff]
    %v4572 = vld [vmem:[#allocation2 + $0x4f] sm:$0xff]
    %v4573 = vld [vmem:[#allocation2 + $0x57] sm:$0xff]
    %v4574 = vld [vmem:[#allocation2 + $0x5f] sm:$0xff]
    %v4575 = vld [vmem:[#allocation2 + $0x67] sm:$0xff]
    %v4576 = vld [vmem:[#allocation2 + $0x6f] sm:$0xff]
    %v4577 = vld [vmem:[#allocation2 + $0x77] sm:$0xff]
    %v4578 = vld [vmem:[#allocation2 + $0x7f] sm:$0xff]
    %v4579 = vld [vmem:[#allocation2 + $0x87] sm:$0xff]
    %v4580 = vld [vmem:[#allocation2 + $0x8f] sm:$0xff]
    %v4581 = vld [vmem:[#allocation2 + $0x97] sm:$0xff]
    %v4582 = vld [vmem:[#allocation2 + $0x9f] sm:$0xff]
    %v4583 = vld [vmem:[#allocation2 + $0xa7] sm:$0xff]
    %v4584 = vld [vmem:[#allocation2 + $0xaf] sm:$0xff]
    %v4585 = vld [vmem:[#allocation2 + $0xb7] sm:$0xff]
    %v4586 = vld [vmem:[#allocation2 + $0xbf] sm:$0xff]
    %v4587 = vld [vmem:[#allocation2 + $0xc7] sm:$0xff]
    %v4588 = vld [vmem:[#allocation2 + $0xcf] sm:$0xff]
    %v4589 = vld [vmem:[#allocation2 + $0xd7] sm:$0xff]
    %v4590 = vld [vmem:[#allocation2 + $0xdf] sm:$0xff]
    %v4591 = vld [vmem:[#allocation2 + $0xe7] sm:$0xff]
    %v4592 = vld [vmem:[#allocation2 + $0xef] sm:$0xff]
    %v4593 = vld [vmem:[#allocation2 + $0xf7] sm:$0xff]
    %v4594 = vld [vmem:[#allocation2 + $0xff] sm:$0xff]
    %v4595 = vld [vmem:[#allocation2 + $0x107] sm:$0xff]
    %v4596 = vld [vmem:[#allocation2 + $0x10f] sm:$0xff]
    %v4597 = vld [vmem:[#allocation2 + $0x117] sm:$0xff]
    %v4598 = vld [vmem:[#allocation2 + $0x11f] sm:$0xff]
    %v4599 = vld [vmem:[#allocation2 + $0x127] sm:$0xff]
    %v4600 = vld [vmem:[#allocation2 + $0x12f] sm:$0xff]
    %v4601 = vld [vmem:[#allocation2 + $0x137] sm:$0xff]
    %v4602 = vld [vmem:[#allocation2 + $0x13f] sm:$0xff]
    %v4603 = vld [vmem:[#allocation2 + $0x147] sm:$0xff]
    %v4604 = vld [vmem:[#allocation2 + $0x14f] sm:$0xff]
    %v4605 = vld [vmem:[#allocation2 + $0x157] sm:$0xff]
    %v4606 = vld [vmem:[#allocation2 + $0x15f] sm:$0xff]
    %v4607 = vld [vmem:[#allocation2 + $0x167] sm:$0xff]
    %v4608 = vld [vmem:[#allocation2 + $0x16f] sm:$0xff]
    %v4609 = vld [vmem:[#allocation2 + $0x177] sm:$0xff]
    %v4610 = vld [vmem:[#allocation2 + $0x17f] sm:$0xff]
    %v4611 = vld [vmem:[#allocation2 + $0x187] sm:$0xff]
    %v4612 = vld [vmem:[#allocation2 + $0x18f] sm:$0xff]
    %v4613 = vld [vmem:[#allocation2 + $0x197] sm:$0xff]
    %v4614 = vld [vmem:[#allocation2 + $0x19f] sm:$0xff]
    %v4615 = vld [vmem:[#allocation2 + $0x1a7] sm:$0xff]
    %v4616 = vld [vmem:[#allocation2 + $0x1af] sm:$0xff]
    %v4617 = vld [vmem:[#allocation2 + $0x1b7] sm:$0xff]
    %v4618 = vld [vmem:[#allocation2 + $0x1bf] sm:$0xff]
    %v4619 = vld [vmem:[#allocation2 + $0x1c7] sm:$0xff]
    %v4620 = vld [vmem:[#allocation2 + $0x1cf] sm:$0xff]
    %v4621 = vld [vmem:[#allocation2 + $0x1d7] sm:$0xff]
    %v4622 = vld [vmem:[#allocation2 + $0x1df] sm:$0xff]
    %v4623 = vld [vmem:[#allocation2 + $0x1e7] sm:$0xff]
    %v4624 = vld [vmem:[#allocation2 + $0x1ef] sm:$0xff]
    %v4625 = vld [vmem:[#allocation2 + $0x1f7] sm:$0xff]
    %v4626 = vld [vmem:[#allocation2 + $0x1ff] sm:$0xff]
    %v4627 = vld [vmem:[#allocation2 + $0x207] sm:$0xff]
    %v4628 = vld [vmem:[#allocation2 + $0x20f] sm:$0xff]
    %v4629 = vld [vmem:[#allocation2 + $0x217] sm:$0xff]
    %v4630 = vld [vmem:[#allocation2 + $0x21f] sm:$0xff]
    %v4631 = vld [vmem:[#allocation2 + $0x227] sm:$0xff]
    %v4632 = vld [vmem:[#allocation2 + $0x22f] sm:$0xff]
    %v4633 = vld [vmem:[#allocation2 + $0x237] sm:$0xff]
    %v4634 = vld [vmem:[#allocation2 + $0x23f] sm:$0xff]
    %v4635 = vld [vmem:[#allocation2 + $0x247] sm:$0xff]
    %v4636 = vld [vmem:[#allocation2 + $0x24f] sm:$0xff]
    %v4637 = vld [vmem:[#allocation2 + $0x257] sm:$0xff]
    %v4638 = vld [vmem:[#allocation2 + $0x25f] sm:$0xff]
    %v4639 = vld [vmem:[#allocation2 + $0x267] sm:$0xff]
    %v4640 = vld [vmem:[#allocation2 + $0x26f] sm:$0xff]
    %v4641 = vld [vmem:[#allocation2 + $0x277] sm:$0xff]
    %v4642 = vld [vmem:[#allocation2 + $0x27f] sm:$0xff]
    %v4643 = vld [vmem:[#allocation2 + $0x287] sm:$0xff]
    %v4644 = vld [vmem:[#allocation2 + $0x28f] sm:$0xff]
    %v4645 = vld [vmem:[#allocation2 + $0x297] sm:$0xff]
    %v4646 = vld [vmem:[#allocation2 + $0x29f] sm:$0xff]
    %v4647 = vld [vmem:[#allocation2 + $0x2a7] sm:$0xff]
    %v4648 = vld [vmem:[#allocation2 + $0x2af] sm:$0xff]
    %v4649 = vld [vmem:[#allocation2 + $0x2b7] sm:$0xff]
    %v4650 = vld [vmem:[#allocation2 + $0x2bf] sm:$0xff]
    %v4651 = vld [vmem:[#allocation2 + $0x2c7] sm:$0xff]
    %v4652 = vld [vmem:[#allocation2 + $0x2cf] sm:$0xff]
    %v4653 = vld [vmem:[#allocation2 + $0x2d7] sm:$0xff]
    %v4654 = vld [vmem:[#allocation2 + $0x2df] sm:$0xff]
    %v4655 = vld [vmem:[#allocation2 + $0x2e7] sm:$0xff]
    %v4656 = vld [vmem:[#allocation2 + $0x2ef] sm:$0xff]
    %v4657 = vld [vmem:[#allocation2 + $0x2f7] sm:$0xff]
    %v4658 = vld [vmem:[#allocation2 + $0x2ff] sm:$0xff]
    %v4659 = vld [vmem:[#allocation2 + $0x307] sm:$0xff]
    %v4660 = vld [vmem:[#allocation2 + $0x30f] sm:$0xff]
    %v4661 = vld [vmem:[#allocation2 + $0x317] sm:$0xff]
    %v4662 = vld [vmem:[#allocation2 + $0x31f] sm:$0xff]
    %v4663 = vld [vmem:[#allocation2 + $0x327] sm:$0xff]
    %v4664 = vsel %vm3586, %v4566, 0.0
    %v4665 = vsel %vm3587, %v4567, 0.0
    %v4666 = vsel %vm3588, %v4568, 0.0
    %v4667 = vsel %vm3589, %v4569, 0.0
    %v4668 = vsel %vm3590, %v4570, 0.0
    %v4669 = vsel %vm3591, %v4571, 0.0
    %v4670 = vsel %vm3592, %v4572, 0.0
    %v4671 = vsel %vm3593, %v4573, 0.0
    %v4672 = vsel %vm3594, %v4574, 0.0
    %v4673 = vsel %vm3595, %v4575, 0.0
    %v4674 = vsel %vm3596, %v4576, 0.0
    %v4675 = vsel %vm3597, %v4577, 0.0
    %v4676 = vsel %vm3598, %v4578, 0.0
    %v4677 = vsel %vm3599, %v4579, 0.0
    %v4678 = vsel %vm3600, %v4580, 0.0
    %v4679 = vsel %vm3601, %v4581, 0.0
    %v4680 = vsel %vm3602, %v4582, 0.0
    %v4681 = vsel %vm3603, %v4583, 0.0
    %v4682 = vsel %vm3604, %v4584, 0.0
    %v4683 = vsel %vm3605, %v4585, 0.0
    %v4684 = vsel %vm3606, %v4586, 0.0
    %v4685 = vsel %vm3607, %v4587, 0.0
    %v4686 = vsel %vm3608, %v4588, 0.0
    %v4687 = vsel %vm3609, %v4589, 0.0
    %v4688 = vsel %vm3610, %v4590, 0.0
    %v4689 = vsel %vm3611, %v4591, 0.0
    %v4690 = vsel %vm3612, %v4592, 0.0
    %v4691 = vsel %vm3613, %v4593, 0.0
    %v4692 = vsel %vm3614, %v4594, 0.0
    %v4693 = vsel %vm3615, %v4595, 0.0
    %v4694 = vsel %vm3616, %v4596, 0.0
    %v4695 = vsel %vm3617, %v4597, 0.0
    %v4696 = vsel %vm3618, %v4598, 0.0
    %v4697 = vsel %vm3619, %v4599, 0.0
    %v4698 = vsel %vm3620, %v4600, 0.0
    %v4699 = vsel %vm3621, %v4601, 0.0
    %v4700 = vsel %vm3622, %v4602, 0.0
    %v4701 = vsel %vm3623, %v4603, 0.0
    %v4702 = vsel %vm3624, %v4604, 0.0
    %v4703 = vsel %vm3625, %v4605, 0.0
    %v4704 = vsel %vm3626, %v4606, 0.0
    %v4705 = vsel %vm3627, %v4607, 0.0
    %v4706 = vsel %vm3628, %v4608, 0.0
    %v4707 = vsel %vm3629, %v4609, 0.0
    %v4708 = vsel %vm3630, %v4610, 0.0
    %v4709 = vsel %vm3631, %v4611, 0.0
    %v4710 = vsel %vm3632, %v4612, 0.0
    %v4711 = vsel %vm3633, %v4613, 0.0
    %v4712 = vsel %vm3634, %v4614, 0.0
    %v4713 = vsel %vm3635, %v4615, 0.0
    %v4714 = vsel %vm3636, %v4616, 0.0
    %v4715 = vsel %vm3637, %v4617, 0.0
    %v4716 = vsel %vm3638, %v4618, 0.0
    %v4717 = vsel %vm3639, %v4619, 0.0
    %v4718 = vsel %vm3640, %v4620, 0.0
    %v4719 = vsel %vm3641, %v4621, 0.0
    %v4720 = vsel %vm3642, %v4622, 0.0
    %v4721 = vsel %vm3643, %v4623, 0.0
    %v4722 = vsel %vm3644, %v4624, 0.0
    %v4723 = vsel %vm3645, %v4625, 0.0
    %v4724 = vsel %vm3646, %v4626, 0.0
    %v4725 = vsel %vm3647, %v4627, 0.0
    %v4726 = vsel %vm3648, %v4628, 0.0
    %v4727 = vsel %vm3649, %v4629, 0.0
    %v4728 = vsel %vm3650, %v4630, 0.0
    %v4729 = vsel %vm3651, %v4631, 0.0
    %v4730 = vsel %vm3652, %v4632, 0.0
    %v4731 = vsel %vm3653, %v4633, 0.0
    %v4732 = vsel %vm3654, %v4634, 0.0
    %v4733 = vsel %vm3655, %v4635, 0.0
    %v4734 = vsel %vm3656, %v4636, 0.0
    %v4735 = vsel %vm3657, %v4637, 0.0
    %v4736 = vsel %vm3658, %v4638, 0.0
    %v4737 = vsel %vm3659, %v4639, 0.0
    %v4738 = vsel %vm3660, %v4640, 0.0
    %v4739 = vsel %vm3661, %v4641, 0.0
    %v4740 = vsel %vm3662, %v4642, 0.0
    %v4741 = vsel %vm3663, %v4643, 0.0
    %v4742 = vsel %vm3664, %v4644, 0.0
    %v4743 = vsel %vm3665, %v4645, 0.0
    %v4744 = vsel %vm3666, %v4646, 0.0
    %v4745 = vsel %vm3667, %v4647, 0.0
    %v4746 = vsel %vm3668, %v4648, 0.0
    %v4747 = vsel %vm3669, %v4649, 0.0
    %v4748 = vsel %vm3670, %v4650, 0.0
    %v4749 = vsel %vm3671, %v4651, 0.0
    %v4750 = vsel %vm3672, %v4652, 0.0
    %v4751 = vsel %vm3673, %v4653, 0.0
    %v4752 = vsel %vm3674, %v4654, 0.0
    %v4753 = vsel %vm3675, %v4655, 0.0
    %v4754 = vsel %vm3676, %v4656, 0.0
    %v4755 = vsel %vm3677, %v4657, 0.0
    %v4756 = vsel %vm3678, %v4658, 0.0
    %v4757 = vsel %vm3679, %v4659, 0.0
    %v4758 = vsel %vm3680, %v4660, 0.0
    %v4759 = vsel %vm3681, %v4661, 0.0
    %v4760 = vsel %vm3682, %v4662, 0.0
    %v4761 = vsel %vm3683, %v4663, 0.0
    %4762 = vst [vmem:[#allocation3 + $0x18] sm:$0xff] %v4664
    %4763 = vst [vmem:[#allocation3 + $0x60] sm:$0xff] %v4665
    %4764 = vst [vmem:[#allocation3 + $0xa8] sm:$0xff] %v4666
    %4765 = vst [vmem:[#allocation3 + $0xf0] sm:$0xff] %v4667
    %4766 = vst [vmem:[#allocation3 + $0x138] sm:$0xff] %v4668
    %4767 = vst [vmem:[#allocation3 + $0x180] sm:$0xff] %v4669
    %4768 = vst [vmem:[#allocation3 + $0x1c8] sm:$0xff] %v4670
    %4769 = vst [vmem:[#allocation3 + $0x210] sm:$0xff] %v4671
    %4770 = vst [vmem:[#allocation3 + $0x258] sm:$0xff] %v4672
    %4771 = vst [vmem:[#allocation3 + $0x2a0] sm:$0xff] %v4673
    %4772 = vst [vmem:[#allocation3 + $0x2e8] sm:$0xff] %v4674
    %4773 = vst [vmem:[#allocation3 + $0x330] sm:$0xff] %v4675
    %4774 = vst [vmem:[#allocation3 + $0x378] sm:$0xff] %v4676
    %4775 = vst [vmem:[#allocation3 + $0x3c0] sm:$0xff] %v4677
    %4776 = vst [vmem:[#allocation3 + $0x408] sm:$0xff] %v4678
    %4777 = vst [vmem:[#allocation3 + $0x450] sm:$0xff] %v4679
    %4778 = vst [vmem:[#allocation3 + $0x498] sm:$0xff] %v4680
    %4779 = vst [vmem:[#allocation3 + $0x4e0] sm:$0xff] %v4681
    %4780 = vst [vmem:[#allocation3 + $0x528] sm:$0xff] %v4682
    %4781 = vst [vmem:[#allocation3 + $0x570] sm:$0xff] %v4683
    %4782 = vst [vmem:[#allocation3 + $0x5b8] sm:$0xff] %v4684
    %4783 = vst [vmem:[#allocation3 + $0x600] sm:$0xff] %v4685
    %4784 = vst [vmem:[#allocation3 + $0x648] sm:$0xff] %v4686
    %4785 = vst [vmem:[#allocation3 + $0x690] sm:$0xff] %v4687
    %4786 = vst [vmem:[#allocation3 + $0x6d8] sm:$0xff] %v4688
    %4787 = vst [vmem:[#allocation3 + $0x720] sm:$0xff] %v4689
    %4788 = vst [vmem:[#allocation3 + $0x768] sm:$0xff] %v4690
    %4789 = vst [vmem:[#allocation3 + $0x7b0] sm:$0xff] %v4691
    %4790 = vst [vmem:[#allocation3 + $0x7f8] sm:$0xff] %v4692
    %4791 = vst [vmem:[#allocation3 + $0x840] sm:$0xff] %v4693
    %4792 = vst [vmem:[#allocation3 + $0x888] sm:$0xff] %v4694
    %4793 = vst [vmem:[#allocation3 + $0x8d0] sm:$0xff] %v4695
    %4794 = vst [vmem:[#allocation3 + $0x918] sm:$0xff] %v4696
    %4795 = vst [vmem:[#allocation3 + $0x960] sm:$0xff] %v4697
    %4796 = vst [vmem:[#allocation3 + $0x9a8] sm:$0xff] %v4698
    %4797 = vst [vmem:[#allocation3 + $0x9f0] sm:$0xff] %v4699
    %4798 = vst [vmem:[#allocation3 + $0xa38] sm:$0xff] %v4700
    %4799 = vst [vmem:[#allocation3 + $0xa80] sm:$0xff] %v4701
    %4800 = vst [vmem:[#allocation3 + $0xac8] sm:$0xff] %v4702
    %4801 = vst [vmem:[#allocation3 + $0xb10] sm:$0xff] %v4703
    %4802 = vst [vmem:[#allocation3 + $0xb58] sm:$0xff] %v4704
    %4803 = vst [vmem:[#allocation3 + $0xba0] sm:$0xff] %v4705
    %4804 = vst [vmem:[#allocation3 + $0xbe8] sm:$0xff] %v4706
    %4805 = vst [vmem:[#allocation3 + $0xc30] sm:$0xff] %v4707
    %4806 = vst [vmem:[#allocation3 + $0xc78] sm:$0xff] %v4708
    %4807 = vst [vmem:[#allocation3 + $0xcc0] sm:$0xff] %v4709
    %4808 = vst [vmem:[#allocation3 + $0xd08] sm:$0xff] %v4710
    %4809 = vst [vmem:[#allocation3 + $0xd50] sm:$0xff] %v4711
    %4810 = vst [vmem:[#allocation3 + $0xd98] sm:$0xff] %v4712
    %4811 = vst [vmem:[#allocation3 + $0xde0] sm:$0xff] %v4713
    %4812 = vst [vmem:[#allocation3 + $0xe28] sm:$0xff] %v4714
    %4813 = vst [vmem:[#allocation3 + $0xe70] sm:$0xff] %v4715
    %4814 = vst [vmem:[#allocation3 + $0xeb8] sm:$0xff] %v4716
    %4815 = vst [vmem:[#allocation3 + $0xf00] sm:$0xff] %v4717
    %4816 = vst [vmem:[#allocation3 + $0xf48] sm:$0xff] %v4718
    %4817 = vst [vmem:[#allocation3 + $0xf90] sm:$0xff] %v4719
    %4818 = vst [vmem:[#allocation3 + $0xfd8] sm:$0xff] %v4720
    %4819 = vst [vmem:[#allocation3 + $0x1020] sm:$0xff] %v4721
    %4820 = vst [vmem:[#allocation3 + $0x1068] sm:$0xff] %v4722
    %4821 = vst [vmem:[#allocation3 + $0x10b0] sm:$0xff] %v4723
    %4822 = vst [vmem:[#allocation3 + $0x10f8] sm:$0xff] %v4724
    %4823 = vst [vmem:[#allocation3 + $0x1140] sm:$0xff] %v4725
    %4824 = vst [vmem:[#allocation3 + $0x1188] sm:$0xff] %v4726
    %4825 = vst [vmem:[#allocation3 + $0x11d0] sm:$0xff] %v4727
    %4826 = vst [vmem:[#allocation3 + $0x1218] sm:$0xff] %v4728
    %4827 = vst [vmem:[#allocation3 + $0x1260] sm:$0xff] %v4729
    %4828 = vst [vmem:[#allocation3 + $0x12a8] sm:$0xff] %v4730
    %4829 = vst [vmem:[#allocation3 + $0x12f0] sm:$0xff] %v4731
    %4830 = vst [vmem:[#allocation3 + $0x1338] sm:$0xff] %v4732
    %4831 = vst [vmem:[#allocation3 + $0x1380] sm:$0xff] %v4733
    %4832 = vst [vmem:[#allocation3 + $0x13c8] sm:$0xff] %v4734
    %4833 = vst [vmem:[#allocation3 + $0x1410] sm:$0xff] %v4735
    %4834 = vst [vmem:[#allocation3 + $0x1458] sm:$0xff] %v4736
    %4835 = vst [vmem:[#allocation3 + $0x14a0] sm:$0xff] %v4737
    %4836 = vst [vmem:[#allocation3 + $0x14e8] sm:$0xff] %v4738
    %4837 = vst [vmem:[#allocation3 + $0x1530] sm:$0xff] %v4739
    %4838 = vst [vmem:[#allocation3 + $0x1578] sm:$0xff] %v4740
    %4839 = vst [vmem:[#allocation3 + $0x15c0] sm:$0xff] %v4741
    %4840 = vst [vmem:[#allocation3 + $0x1608] sm:$0xff] %v4742
    %4841 = vst [vmem:[#allocation3 + $0x1650] sm:$0xff] %v4743
    %4842 = vst [vmem:[#allocation3 + $0x1698] sm:$0xff] %v4744
    %4843 = vst [vmem:[#allocation3 + $0x16e0] sm:$0xff] %v4745
    %4844 = vst [vmem:[#allocation3 + $0x1728] sm:$0xff] %v4746
    %4845 = vst [vmem:[#allocation3 + $0x1770] sm:$0xff] %v4747
    %4846 = vst [vmem:[#allocation3 + $0x17b8] sm:$0xff] %v4748
    %4847 = vst [vmem:[#allocation3 + $0x1800] sm:$0xff] %v4749
    %4848 = vst [vmem:[#allocation3 + $0x1848] sm:$0xff] %v4750
    %4849 = vst [vmem:[#allocation3 + $0x1890] sm:$0xff] %v4751
    %4850 = vst [vmem:[#allocation3 + $0x18d8] sm:$0xff] %v4752
    %4851 = vst [vmem:[#allocation3 + $0x1920] sm:$0xff] %v4753
    %4852 = vst [vmem:[#allocation3 + $0x1968] sm:$0xff] %v4754
    %4853 = vst [vmem:[#allocation3 + $0x19b0] sm:$0xff] %v4755
    %4854 = vst [vmem:[#allocation3 + $0x19f8] sm:$0xff] %v4756
    %4855 = vst [vmem:[#allocation3 + $0x1a40] sm:$0xff] %v4757
    %4856 = vst [vmem:[#allocation3 + $0x1a88] sm:$0xff] %v4758
    %4857 = vst [vmem:[#allocation3 + $0x1ad0] sm:$0xff] %v4759
    %4858 = vst [vmem:[#allocation3 + $0x1b18] sm:$0xff] %v4760
    %4859 = vst [vmem:[#allocation3 + $0x1b60] sm:$0xff] %v4761
    %v4860 = vld [vmem:[#allocation2 + $0x20] sm:$0xff]
    %v4861 = vld [vmem:[#allocation2 + $0x28] sm:$0xff]
    %v4862 = vld [vmem:[#allocation2 + $0x30] sm:$0xff]
    %v4863 = vld [vmem:[#allocation2 + $0x38] sm:$0xff]
    %v4864 = vld [vmem:[#allocation2 + $0x40] sm:$0xff]
    %v4865 = vld [vmem:[#allocation2 + $0x48] sm:$0xff]
    %v4866 = vld [vmem:[#allocation2 + $0x50] sm:$0xff]
    %v4867 = vld [vmem:[#allocation2 + $0x58] sm:$0xff]
    %v4868 = vld [vmem:[#allocation2 + $0x60] sm:$0xff]
    %v4869 = vld [vmem:[#allocation2 + $0x68] sm:$0xff]
    %v4870 = vld [vmem:[#allocation2 + $0x70] sm:$0xff]
    %v4871 = vld [vmem:[#allocation2 + $0x78] sm:$0xff]
    %v4872 = vld [vmem:[#allocation2 + $0x80] sm:$0xff]
    %v4873 = vld [vmem:[#allocation2 + $0x88] sm:$0xff]
    %v4874 = vld [vmem:[#allocation2 + $0x90] sm:$0xff]
    %v4875 = vld [vmem:[#allocation2 + $0x98] sm:$0xff]
    %v4876 = vld [vmem:[#allocation2 + $0xa0] sm:$0xff]
    %v4877 = vld [vmem:[#allocation2 + $0xa8] sm:$0xff]
    %v4878 = vld [vmem:[#allocation2 + $0xb0] sm:$0xff]
    %v4879 = vld [vmem:[#allocation2 + $0xb8] sm:$0xff]
    %v4880 = vld [vmem:[#allocation2 + $0xc0] sm:$0xff]
    %v4881 = vld [vmem:[#allocation2 + $0xc8] sm:$0xff]
    %v4882 = vld [vmem:[#allocation2 + $0xd0] sm:$0xff]
    %v4883 = vld [vmem:[#allocation2 + $0xd8] sm:$0xff]
    %v4884 = vld [vmem:[#allocation2 + $0xe0] sm:$0xff]
    %v4885 = vld [vmem:[#allocation2 + $0xe8] sm:$0xff]
    %v4886 = vld [vmem:[#allocation2 + $0xf0] sm:$0xff]
    %v4887 = vld [vmem:[#allocation2 + $0xf8] sm:$0xff]
    %v4888 = vld [vmem:[#allocation2 + $0x100] sm:$0xff]
    %v4889 = vld [vmem:[#allocation2 + $0x108] sm:$0xff]
    %v4890 = vld [vmem:[#allocation2 + $0x110] sm:$0xff]
    %v4891 = vld [vmem:[#allocation2 + $0x118] sm:$0xff]
    %v4892 = vld [vmem:[#allocation2 + $0x120] sm:$0xff]
    %v4893 = vld [vmem:[#allocation2 + $0x128] sm:$0xff]
    %v4894 = vld [vmem:[#allocation2 + $0x130] sm:$0xff]
    %v4895 = vld [vmem:[#allocation2 + $0x138] sm:$0xff]
    %v4896 = vld [vmem:[#allocation2 + $0x140] sm:$0xff]
    %v4897 = vld [vmem:[#allocation2 + $0x148] sm:$0xff]
    %v4898 = vld [vmem:[#allocation2 + $0x150] sm:$0xff]
    %v4899 = vld [vmem:[#allocation2 + $0x158] sm:$0xff]
    %v4900 = vld [vmem:[#allocation2 + $0x160] sm:$0xff]
    %v4901 = vld [vmem:[#allocation2 + $0x168] sm:$0xff]
    %v4902 = vld [vmem:[#allocation2 + $0x170] sm:$0xff]
    %v4903 = vld [vmem:[#allocation2 + $0x178] sm:$0xff]
    %v4904 = vld [vmem:[#allocation2 + $0x180] sm:$0xff]
    %v4905 = vld [vmem:[#allocation2 + $0x188] sm:$0xff]
    %v4906 = vld [vmem:[#allocation2 + $0x190] sm:$0xff]
    %v4907 = vld [vmem:[#allocation2 + $0x198] sm:$0xff]
    %v4908 = vld [vmem:[#allocation2 + $0x1a0] sm:$0xff]
    %v4909 = vld [vmem:[#allocation2 + $0x1a8] sm:$0xff]
    %v4910 = vld [vmem:[#allocation2 + $0x1b0] sm:$0xff]
    %v4911 = vld [vmem:[#allocation2 + $0x1b8] sm:$0xff]
    %v4912 = vld [vmem:[#allocation2 + $0x1c0] sm:$0xff]
    %v4913 = vld [vmem:[#allocation2 + $0x1c8] sm:$0xff]
    %v4914 = vld [vmem:[#allocation2 + $0x1d0] sm:$0xff]
    %v4915 = vld [vmem:[#allocation2 + $0x1d8] sm:$0xff]
    %v4916 = vld [vmem:[#allocation2 + $0x1e0] sm:$0xff]
    %v4917 = vld [vmem:[#allocation2 + $0x1e8] sm:$0xff]
    %v4918 = vld [vmem:[#allocation2 + $0x1f0] sm:$0xff]
    %v4919 = vld [vmem:[#allocation2 + $0x1f8] sm:$0xff]
    %v4920 = vld [vmem:[#allocation2 + $0x200] sm:$0xff]
    %v4921 = vld [vmem:[#allocation2 + $0x208] sm:$0xff]
    %v4922 = vld [vmem:[#allocation2 + $0x210] sm:$0xff]
    %v4923 = vld [vmem:[#allocation2 + $0x218] sm:$0xff]
    %v4924 = vld [vmem:[#allocation2 + $0x220] sm:$0xff]
    %v4925 = vld [vmem:[#allocation2 + $0x228] sm:$0xff]
    %v4926 = vld [vmem:[#allocation2 + $0x230] sm:$0xff]
    %v4927 = vld [vmem:[#allocation2 + $0x238] sm:$0xff]
    %v4928 = vld [vmem:[#allocation2 + $0x240] sm:$0xff]
    %v4929 = vld [vmem:[#allocation2 + $0x248] sm:$0xff]
    %v4930 = vld [vmem:[#allocation2 + $0x250] sm:$0xff]
    %v4931 = vld [vmem:[#allocation2 + $0x258] sm:$0xff]
    %v4932 = vld [vmem:[#allocation2 + $0x260] sm:$0xff]
    %v4933 = vld [vmem:[#allocation2 + $0x268] sm:$0xff]
    %v4934 = vld [vmem:[#allocation2 + $0x270] sm:$0xff]
    %v4935 = vld [vmem:[#allocation2 + $0x278] sm:$0xff]
    %v4936 = vld [vmem:[#allocation2 + $0x280] sm:$0xff]
    %v4937 = vld [vmem:[#allocation2 + $0x288] sm:$0xff]
    %v4938 = vld [vmem:[#allocation2 + $0x290] sm:$0xff]
    %v4939 = vld [vmem:[#allocation2 + $0x298] sm:$0xff]
    %v4940 = vld [vmem:[#allocation2 + $0x2a0] sm:$0xff]
    %v4941 = vld [vmem:[#allocation2 + $0x2a8] sm:$0xff]
    %v4942 = vld [vmem:[#allocation2 + $0x2b0] sm:$0xff]
    %v4943 = vld [vmem:[#allocation2 + $0x2b8] sm:$0xff]
    %v4944 = vld [vmem:[#allocation2 + $0x2c0] sm:$0xff]
    %v4945 = vld [vmem:[#allocation2 + $0x2c8] sm:$0xff]
    %v4946 = vld [vmem:[#allocation2 + $0x2d0] sm:$0xff]
    %v4947 = vld [vmem:[#allocation2 + $0x2d8] sm:$0xff]
    %v4948 = vld [vmem:[#allocation2 + $0x2e0] sm:$0xff]
    %v4949 = vld [vmem:[#allocation2 + $0x2e8] sm:$0xff]
    %v4950 = vld [vmem:[#allocation2 + $0x2f0] sm:$0xff]
    %v4951 = vld [vmem:[#allocation2 + $0x2f8] sm:$0xff]
    %v4952 = vld [vmem:[#allocation2 + $0x300] sm:$0xff]
    %v4953 = vld [vmem:[#allocation2 + $0x308] sm:$0xff]
    %v4954 = vld [vmem:[#allocation2 + $0x310] sm:$0xff]
    %v4955 = vld [vmem:[#allocation2 + $0x318] sm:$0xff]
    %v4956 = vld [vmem:[#allocation2 + $0x320] sm:$0xff]
    %v4957 = vld [vmem:[#allocation2 + $0x328] sm:$0xff]
    %4958 = vst [vmem:[#allocation3 + $0x20] sm:$0xff] %v4860
    %4959 = vst [vmem:[#allocation3 + $0x68] sm:$0xff] %v4861
    %4960 = vst [vmem:[#allocation3 + $0xb0] sm:$0xff] %v4862
    %4961 = vst [vmem:[#allocation3 + $0xf8] sm:$0xff] %v4863
    %4962 = vst [vmem:[#allocation3 + $0x140] sm:$0xff] %v4864
    %4963 = vst [vmem:[#allocation3 + $0x188] sm:$0xff] %v4865
    %4964 = vst [vmem:[#allocation3 + $0x1d0] sm:$0xff] %v4866
    %4965 = vst [vmem:[#allocation3 + $0x218] sm:$0xff] %v4867
    %4966 = vst [vmem:[#allocation3 + $0x260] sm:$0xff] %v4868
    %4967 = vst [vmem:[#allocation3 + $0x2a8] sm:$0xff] %v4869
    %4968 = vst [vmem:[#allocation3 + $0x2f0] sm:$0xff] %v4870
    %4969 = vst [vmem:[#allocation3 + $0x338] sm:$0xff] %v4871
    %4970 = vst [vmem:[#allocation3 + $0x380] sm:$0xff] %v4872
    %4971 = vst [vmem:[#allocation3 + $0x3c8] sm:$0xff] %v4873
    %4972 = vst [vmem:[#allocation3 + $0x410] sm:$0xff] %v4874
    %4973 = vst [vmem:[#allocation3 + $0x458] sm:$0xff] %v4875
    %4974 = vst [vmem:[#allocation3 + $0x4a0] sm:$0xff] %v4876
    %4975 = vst [vmem:[#allocation3 + $0x4e8] sm:$0xff] %v4877
    %4976 = vst [vmem:[#allocation3 + $0x530] sm:$0xff] %v4878
    %4977 = vst [vmem:[#allocation3 + $0x578] sm:$0xff] %v4879
    %4978 = vst [vmem:[#allocation3 + $0x5c0] sm:$0xff] %v4880
    %4979 = vst [vmem:[#allocation3 + $0x608] sm:$0xff] %v4881
    %4980 = vst [vmem:[#allocation3 + $0x650] sm:$0xff] %v4882
    %4981 = vst [vmem:[#allocation3 + $0x698] sm:$0xff] %v4883
    %4982 = vst [vmem:[#allocation3 + $0x6e0] sm:$0xff] %v4884
    %4983 = vst [vmem:[#allocation3 + $0x728] sm:$0xff] %v4885
    %4984 = vst [vmem:[#allocation3 + $0x770] sm:$0xff] %v4886
    %4985 = vst [vmem:[#allocation3 + $0x7b8] sm:$0xff] %v4887
    %4986 = vst [vmem:[#allocation3 + $0x800] sm:$0xff] %v4888
    %4987 = vst [vmem:[#allocation3 + $0x848] sm:$0xff] %v4889
    %4988 = vst [vmem:[#allocation3 + $0x890] sm:$0xff] %v4890
    %4989 = vst [vmem:[#allocation3 + $0x8d8] sm:$0xff] %v4891
    %4990 = vst [vmem:[#allocation3 + $0x920] sm:$0xff] %v4892
    %4991 = vst [vmem:[#allocation3 + $0x968] sm:$0xff] %v4893
    %4992 = vst [vmem:[#allocation3 + $0x9b0] sm:$0xff] %v4894
    %4993 = vst [vmem:[#allocation3 + $0x9f8] sm:$0xff] %v4895
    %4994 = vst [vmem:[#allocation3 + $0xa40] sm:$0xff] %v4896
    %4995 = vst [vmem:[#allocation3 + $0xa88] sm:$0xff] %v4897
    %4996 = vst [vmem:[#allocation3 + $0xad0] sm:$0xff] %v4898
    %4997 = vst [vmem:[#allocation3 + $0xb18] sm:$0xff] %v4899
    %4998 = vst [vmem:[#allocation3 + $0xb60] sm:$0xff] %v4900
    %4999 = vst [vmem:[#allocation3 + $0xba8] sm:$0xff] %v4901
    %5000 = vst [vmem:[#allocation3 + $0xbf0] sm:$0xff] %v4902
    %5001 = vst [vmem:[#allocation3 + $0xc38] sm:$0xff] %v4903
    %5002 = vst [vmem:[#allocation3 + $0xc80] sm:$0xff] %v4904
    %5003 = vst [vmem:[#allocation3 + $0xcc8] sm:$0xff] %v4905
    %5004 = vst [vmem:[#allocation3 + $0xd10] sm:$0xff] %v4906
    %5005 = vst [vmem:[#allocation3 + $0xd58] sm:$0xff] %v4907
    %5006 = vst [vmem:[#allocation3 + $0xda0] sm:$0xff] %v4908
    %5007 = vst [vmem:[#allocation3 + $0xde8] sm:$0xff] %v4909
    %5008 = vst [vmem:[#allocation3 + $0xe30] sm:$0xff] %v4910
    %5009 = vst [vmem:[#allocation3 + $0xe78] sm:$0xff] %v4911
    %5010 = vst [vmem:[#allocation3 + $0xec0] sm:$0xff] %v4912
    %5011 = vst [vmem:[#allocation3 + $0xf08] sm:$0xff] %v4913
    %5012 = vst [vmem:[#allocation3 + $0xf50] sm:$0xff] %v4914
    %5013 = vst [vmem:[#allocation3 + $0xf98] sm:$0xff] %v4915
    %5014 = vst [vmem:[#allocation3 + $0xfe0] sm:$0xff] %v4916
    %5015 = vst [vmem:[#allocation3 + $0x1028] sm:$0xff] %v4917
    %5016 = vst [vmem:[#allocation3 + $0x1070] sm:$0xff] %v4918
    %5017 = vst [vmem:[#allocation3 + $0x10b8] sm:$0xff] %v4919
    %5018 = vst [vmem:[#allocation3 + $0x1100] sm:$0xff] %v4920
    %5019 = vst [vmem:[#allocation3 + $0x1148] sm:$0xff] %v4921
    %5020 = vst [vmem:[#allocation3 + $0x1190] sm:$0xff] %v4922
    %5021 = vst [vmem:[#allocation3 + $0x11d8] sm:$0xff] %v4923
    %5022 = vst [vmem:[#allocation3 + $0x1220] sm:$0xff] %v4924
    %5023 = vst [vmem:[#allocation3 + $0x1268] sm:$0xff] %v4925
    %5024 = vst [vmem:[#allocation3 + $0x12b0] sm:$0xff] %v4926
    %5025 = vst [vmem:[#allocation3 + $0x12f8] sm:$0xff] %v4927
    %5026 = vst [vmem:[#allocation3 + $0x1340] sm:$0xff] %v4928
    %5027 = vst [vmem:[#allocation3 + $0x1388] sm:$0xff] %v4929
    %5028 = vst [vmem:[#allocation3 + $0x13d0] sm:$0xff] %v4930
    %5029 = vst [vmem:[#allocation3 + $0x1418] sm:$0xff] %v4931
    %5030 = vst [vmem:[#allocation3 + $0x1460] sm:$0xff] %v4932
    %5031 = vst [vmem:[#allocation3 + $0x14a8] sm:$0xff] %v4933
    %5032 = vst [vmem:[#allocation3 + $0x14f0] sm:$0xff] %v4934
    %5033 = vst [vmem:[#allocation3 + $0x1538] sm:$0xff] %v4935
    %5034 = vst [vmem:[#allocation3 + $0x1580] sm:$0xff] %v4936
    %5035 = vst [vmem:[#allocation3 + $0x15c8] sm:$0xff] %v4937
    %5036 = vst [vmem:[#allocation3 + $0x1610] sm:$0xff] %v4938
    %5037 = vst [vmem:[#allocation3 + $0x1658] sm:$0xff] %v4939
    %5038 = vst [vmem:[#allocation3 + $0x16a0] sm:$0xff] %v4940
    %5039 = vst [vmem:[#allocation3 + $0x16e8] sm:$0xff] %v4941
    %5040 = vst [vmem:[#allocation3 + $0x1730] sm:$0xff] %v4942
    %5041 = vst [vmem:[#allocation3 + $0x1778] sm:$0xff] %v4943
    %5042 = vst [vmem:[#allocation3 + $0x17c0] sm:$0xff] %v4944
    %5043 = vst [vmem:[#allocation3 + $0x1808] sm:$0xff] %v4945
    %5044 = vst [vmem:[#allocation3 + $0x1850] sm:$0xff] %v4946
    %5045 = vst [vmem:[#allocation3 + $0x1898] sm:$0xff] %v4947
    %5046 = vst [vmem:[#allocation3 + $0x18e0] sm:$0xff] %v4948
    %5047 = vst [vmem:[#allocation3 + $0x1928] sm:$0xff] %v4949
    %5048 = vst [vmem:[#allocation3 + $0x1970] sm:$0xff] %v4950
    %5049 = vst [vmem:[#allocation3 + $0x19b8] sm:$0xff] %v4951
    %5050 = vst [vmem:[#allocation3 + $0x1a00] sm:$0xff] %v4952
    %5051 = vst [vmem:[#allocation3 + $0x1a48] sm:$0xff] %v4953
    %5052 = vst [vmem:[#allocation3 + $0x1a90] sm:$0xff] %v4954
    %5053 = vst [vmem:[#allocation3 + $0x1ad8] sm:$0xff] %v4955
    %5054 = vst [vmem:[#allocation3 + $0x1b20] sm:$0xff] %v4956
    %5055 = vst [vmem:[#allocation3 + $0x1b68] sm:$0xff] %v4957
    %v5056 = vld [vmem:[#allocation2 + $0x21] sm:$0xff]
    %v5057 = vld [vmem:[#allocation2 + $0x29] sm:$0xff]
    %v5058 = vld [vmem:[#allocation2 + $0x31] sm:$0xff]
    %v5059 = vld [vmem:[#allocation2 + $0x39] sm:$0xff]
    %v5060 = vld [vmem:[#allocation2 + $0x41] sm:$0xff]
    %v5061 = vld [vmem:[#allocation2 + $0x49] sm:$0xff]
    %v5062 = vld [vmem:[#allocation2 + $0x51] sm:$0xff]
    %v5063 = vld [vmem:[#allocation2 + $0x59] sm:$0xff]
    %v5064 = vld [vmem:[#allocation2 + $0x61] sm:$0xff]
    %v5065 = vld [vmem:[#allocation2 + $0x69] sm:$0xff]
    %v5066 = vld [vmem:[#allocation2 + $0x71] sm:$0xff]
    %v5067 = vld [vmem:[#allocation2 + $0x79] sm:$0xff]
    %v5068 = vld [vmem:[#allocation2 + $0x81] sm:$0xff]
    %v5069 = vld [vmem:[#allocation2 + $0x89] sm:$0xff]
    %v5070 = vld [vmem:[#allocation2 + $0x91] sm:$0xff]
    %v5071 = vld [vmem:[#allocation2 + $0x99] sm:$0xff]
    %v5072 = vld [vmem:[#allocation2 + $0xa1] sm:$0xff]
    %v5073 = vld [vmem:[#allocation2 + $0xa9] sm:$0xff]
    %v5074 = vld [vmem:[#allocation2 + $0xb1] sm:$0xff]
    %v5075 = vld [vmem:[#allocation2 + $0xb9] sm:$0xff]
    %v5076 = vld [vmem:[#allocation2 + $0xc1] sm:$0xff]
    %v5077 = vld [vmem:[#allocation2 + $0xc9] sm:$0xff]
    %v5078 = vld [vmem:[#allocation2 + $0xd1] sm:$0xff]
    %v5079 = vld [vmem:[#allocation2 + $0xd9] sm:$0xff]
    %v5080 = vld [vmem:[#allocation2 + $0xe1] sm:$0xff]
    %v5081 = vld [vmem:[#allocation2 + $0xe9] sm:$0xff]
    %v5082 = vld [vmem:[#allocation2 + $0xf1] sm:$0xff]
    %v5083 = vld [vmem:[#allocation2 + $0xf9] sm:$0xff]
    %v5084 = vld [vmem:[#allocation2 + $0x101] sm:$0xff]
    %v5085 = vld [vmem:[#allocation2 + $0x109] sm:$0xff]
    %v5086 = vld [vmem:[#allocation2 + $0x111] sm:$0xff]
    %v5087 = vld [vmem:[#allocation2 + $0x119] sm:$0xff]
    %v5088 = vld [vmem:[#allocation2 + $0x121] sm:$0xff]
    %v5089 = vld [vmem:[#allocation2 + $0x129] sm:$0xff]
    %v5090 = vld [vmem:[#allocation2 + $0x131] sm:$0xff]
    %v5091 = vld [vmem:[#allocation2 + $0x139] sm:$0xff]
    %v5092 = vld [vmem:[#allocation2 + $0x141] sm:$0xff]
    %v5093 = vld [vmem:[#allocation2 + $0x149] sm:$0xff]
    %v5094 = vld [vmem:[#allocation2 + $0x151] sm:$0xff]
    %v5095 = vld [vmem:[#allocation2 + $0x159] sm:$0xff]
    %v5096 = vld [vmem:[#allocation2 + $0x161] sm:$0xff]
    %v5097 = vld [vmem:[#allocation2 + $0x169] sm:$0xff]
    %v5098 = vld [vmem:[#allocation2 + $0x171] sm:$0xff]
    %v5099 = vld [vmem:[#allocation2 + $0x179] sm:$0xff]
    %v5100 = vld [vmem:[#allocation2 + $0x181] sm:$0xff]
    %v5101 = vld [vmem:[#allocation2 + $0x189] sm:$0xff]
    %v5102 = vld [vmem:[#allocation2 + $0x191] sm:$0xff]
    %v5103 = vld [vmem:[#allocation2 + $0x199] sm:$0xff]
    %v5104 = vld [vmem:[#allocation2 + $0x1a1] sm:$0xff]
    %v5105 = vld [vmem:[#allocation2 + $0x1a9] sm:$0xff]
    %v5106 = vld [vmem:[#allocation2 + $0x1b1] sm:$0xff]
    %v5107 = vld [vmem:[#allocation2 + $0x1b9] sm:$0xff]
    %v5108 = vld [vmem:[#allocation2 + $0x1c1] sm:$0xff]
    %v5109 = vld [vmem:[#allocation2 + $0x1c9] sm:$0xff]
    %v5110 = vld [vmem:[#allocation2 + $0x1d1] sm:$0xff]
    %v5111 = vld [vmem:[#allocation2 + $0x1d9] sm:$0xff]
    %v5112 = vld [vmem:[#allocation2 + $0x1e1] sm:$0xff]
    %v5113 = vld [vmem:[#allocation2 + $0x1e9] sm:$0xff]
    %v5114 = vld [vmem:[#allocation2 + $0x1f1] sm:$0xff]
    %v5115 = vld [vmem:[#allocation2 + $0x1f9] sm:$0xff]
    %v5116 = vld [vmem:[#allocation2 + $0x201] sm:$0xff]
    %v5117 = vld [vmem:[#allocation2 + $0x209] sm:$0xff]
    %v5118 = vld [vmem:[#allocation2 + $0x211] sm:$0xff]
    %v5119 = vld [vmem:[#allocation2 + $0x219] sm:$0xff]
    %v5120 = vld [vmem:[#allocation2 + $0x221] sm:$0xff]
    %v5121 = vld [vmem:[#allocation2 + $0x229] sm:$0xff]
    %v5122 = vld [vmem:[#allocation2 + $0x231] sm:$0xff]
    %v5123 = vld [vmem:[#allocation2 + $0x239] sm:$0xff]
    %v5124 = vld [vmem:[#allocation2 + $0x241] sm:$0xff]
    %v5125 = vld [vmem:[#allocation2 + $0x249] sm:$0xff]
    %v5126 = vld [vmem:[#allocation2 + $0x251] sm:$0xff]
    %v5127 = vld [vmem:[#allocation2 + $0x259] sm:$0xff]
    %v5128 = vld [vmem:[#allocation2 + $0x261] sm:$0xff]
    %v5129 = vld [vmem:[#allocation2 + $0x269] sm:$0xff]
    %v5130 = vld [vmem:[#allocation2 + $0x271] sm:$0xff]
    %v5131 = vld [vmem:[#allocation2 + $0x279] sm:$0xff]
    %v5132 = vld [vmem:[#allocation2 + $0x281] sm:$0xff]
    %v5133 = vld [vmem:[#allocation2 + $0x289] sm:$0xff]
    %v5134 = vld [vmem:[#allocation2 + $0x291] sm:$0xff]
    %v5135 = vld [vmem:[#allocation2 + $0x299] sm:$0xff]
    %v5136 = vld [vmem:[#allocation2 + $0x2a1] sm:$0xff]
    %v5137 = vld [vmem:[#allocation2 + $0x2a9] sm:$0xff]
    %v5138 = vld [vmem:[#allocation2 + $0x2b1] sm:$0xff]
    %v5139 = vld [vmem:[#allocation2 + $0x2b9] sm:$0xff]
    %v5140 = vld [vmem:[#allocation2 + $0x2c1] sm:$0xff]
    %v5141 = vld [vmem:[#allocation2 + $0x2c9] sm:$0xff]
    %v5142 = vld [vmem:[#allocation2 + $0x2d1] sm:$0xff]
    %v5143 = vld [vmem:[#allocation2 + $0x2d9] sm:$0xff]
    %v5144 = vld [vmem:[#allocation2 + $0x2e1] sm:$0xff]
    %v5145 = vld [vmem:[#allocation2 + $0x2e9] sm:$0xff]
    %v5146 = vld [vmem:[#allocation2 + $0x2f1] sm:$0xff]
    %v5147 = vld [vmem:[#allocation2 + $0x2f9] sm:$0xff]
    %v5148 = vld [vmem:[#allocation2 + $0x301] sm:$0xff]
    %v5149 = vld [vmem:[#allocation2 + $0x309] sm:$0xff]
    %v5150 = vld [vmem:[#allocation2 + $0x311] sm:$0xff]
    %v5151 = vld [vmem:[#allocation2 + $0x319] sm:$0xff]
    %v5152 = vld [vmem:[#allocation2 + $0x321] sm:$0xff]
    %v5153 = vld [vmem:[#allocation2 + $0x329] sm:$0xff]
    %v5154 = vsel %vm4272, %v5056, 0.0
    %v5155 = vsel %vm4273, %v5057, 0.0
    %v5156 = vsel %vm4274, %v5058, 0.0
    %v5157 = vsel %vm4275, %v5059, 0.0
    %v5158 = vsel %vm4276, %v5060, 0.0
    %v5159 = vsel %vm4277, %v5061, 0.0
    %v5160 = vsel %vm4278, %v5062, 0.0
    %v5161 = vsel %vm4279, %v5063, 0.0
    %v5162 = vsel %vm4280, %v5064, 0.0
    %v5163 = vsel %vm4281, %v5065, 0.0
    %v5164 = vsel %vm4282, %v5066, 0.0
    %v5165 = vsel %vm4283, %v5067, 0.0
    %v5166 = vsel %vm4284, %v5068, 0.0
    %v5167 = vsel %vm4285, %v5069, 0.0
    %v5168 = vsel %vm4286, %v5070, 0.0
    %v5169 = vsel %vm4287, %v5071, 0.0
    %v5170 = vsel %vm4288, %v5072, 0.0
    %v5171 = vsel %vm4289, %v5073, 0.0
    %v5172 = vsel %vm4290, %v5074, 0.0
    %v5173 = vsel %vm4291, %v5075, 0.0
    %v5174 = vsel %vm4292, %v5076, 0.0
    %v5175 = vsel %vm4293, %v5077, 0.0
    %v5176 = vsel %vm4294, %v5078, 0.0
    %v5177 = vsel %vm4295, %v5079, 0.0
    %v5178 = vsel %vm4296, %v5080, 0.0
    %v5179 = vsel %vm4297, %v5081, 0.0
    %v5180 = vsel %vm4298, %v5082, 0.0
    %v5181 = vsel %vm4299, %v5083, 0.0
    %v5182 = vsel %vm4300, %v5084, 0.0
    %v5183 = vsel %vm4301, %v5085, 0.0
    %v5184 = vsel %vm4302, %v5086, 0.0
    %v5185 = vsel %vm4303, %v5087, 0.0
    %v5186 = vsel %vm4304, %v5088, 0.0
    %v5187 = vsel %vm4305, %v5089, 0.0
    %v5188 = vsel %vm4306, %v5090, 0.0
    %v5189 = vsel %vm4307, %v5091, 0.0
    %v5190 = vsel %vm4308, %v5092, 0.0
    %v5191 = vsel %vm4309, %v5093, 0.0
    %v5192 = vsel %vm4310, %v5094, 0.0
    %v5193 = vsel %vm4311, %v5095, 0.0
    %v5194 = vsel %vm4312, %v5096, 0.0
    %v5195 = vsel %vm4313, %v5097, 0.0
    %v5196 = vsel %vm4314, %v5098, 0.0
    %v5197 = vsel %vm4315, %v5099, 0.0
    %v5198 = vsel %vm4316, %v5100, 0.0
    %v5199 = vsel %vm4317, %v5101, 0.0
    %v5200 = vsel %vm4318, %v5102, 0.0
    %v5201 = vsel %vm4319, %v5103, 0.0
    %v5202 = vsel %vm4320, %v5104, 0.0
    %v5203 = vsel %vm4321, %v5105, 0.0
    %v5204 = vsel %vm4322, %v5106, 0.0
    %v5205 = vsel %vm4323, %v5107, 0.0
    %v5206 = vsel %vm4324, %v5108, 0.0
    %v5207 = vsel %vm4325, %v5109, 0.0
    %v5208 = vsel %vm4326, %v5110, 0.0
    %v5209 = vsel %vm4327, %v5111, 0.0
    %v5210 = vsel %vm4328, %v5112, 0.0
    %v5211 = vsel %vm4329, %v5113, 0.0
    %v5212 = vsel %vm4330, %v5114, 0.0
    %v5213 = vsel %vm4331, %v5115, 0.0
    %v5214 = vsel %vm4332, %v5116, 0.0
    %v5215 = vsel %vm4333, %v5117, 0.0
    %v5216 = vsel %vm4334, %v5118, 0.0
    %v5217 = vsel %vm4335, %v5119, 0.0
    %v5218 = vsel %vm4336, %v5120, 0.0
    %v5219 = vsel %vm4337, %v5121, 0.0
    %v5220 = vsel %vm4338, %v5122, 0.0
    %v5221 = vsel %vm4339, %v5123, 0.0
    %v5222 = vsel %vm4340, %v5124, 0.0
    %v5223 = vsel %vm4341, %v5125, 0.0
    %v5224 = vsel %vm4342, %v5126, 0.0
    %v5225 = vsel %vm4343, %v5127, 0.0
    %v5226 = vsel %vm4344, %v5128, 0.0
    %v5227 = vsel %vm4345, %v5129, 0.0
    %v5228 = vsel %vm4346, %v5130, 0.0
    %v5229 = vsel %vm4347, %v5131, 0.0
    %v5230 = vsel %vm4348, %v5132, 0.0
    %v5231 = vsel %vm4349, %v5133, 0.0
    %v5232 = vsel %vm4350, %v5134, 0.0
    %v5233 = vsel %vm4351, %v5135, 0.0
    %v5234 = vsel %vm4352, %v5136, 0.0
    %v5235 = vsel %vm4353, %v5137, 0.0
    %v5236 = vsel %vm4354, %v5138, 0.0
    %v5237 = vsel %vm4355, %v5139, 0.0
    %v5238 = vsel %vm4356, %v5140, 0.0
    %v5239 = vsel %vm4357, %v5141, 0.0
    %v5240 = vsel %vm4358, %v5142, 0.0
    %v5241 = vsel %vm4359, %v5143, 0.0
    %v5242 = vsel %vm4360, %v5144, 0.0
    %v5243 = vsel %vm4361, %v5145, 0.0
    %v5244 = vsel %vm4362, %v5146, 0.0
    %v5245 = vsel %vm4363, %v5147, 0.0
    %v5246 = vsel %vm4364, %v5148, 0.0
    %v5247 = vsel %vm4365, %v5149, 0.0
    %v5248 = vsel %vm4366, %v5150, 0.0
    %v5249 = vsel %vm4367, %v5151, 0.0
    %v5250 = vsel %vm4368, %v5152, 0.0
    %v5251 = vsel %vm4369, %v5153, 0.0
    %5252 = vst [vmem:[#allocation3 + $0x28] sm:$0xff] %v5154
    %5253 = vst [vmem:[#allocation3 + $0x70] sm:$0xff] %v5155
    %5254 = vst [vmem:[#allocation3 + $0xb8] sm:$0xff] %v5156
    %5255 = vst [vmem:[#allocation3 + $0x100] sm:$0xff] %v5157
    %5256 = vst [vmem:[#allocation3 + $0x148] sm:$0xff] %v5158
    %5257 = vst [vmem:[#allocation3 + $0x190] sm:$0xff] %v5159
    %5258 = vst [vmem:[#allocation3 + $0x1d8] sm:$0xff] %v5160
    %5259 = vst [vmem:[#allocation3 + $0x220] sm:$0xff] %v5161
    %5260 = vst [vmem:[#allocation3 + $0x268] sm:$0xff] %v5162
    %5261 = vst [vmem:[#allocation3 + $0x2b0] sm:$0xff] %v5163
    %5262 = vst [vmem:[#allocation3 + $0x2f8] sm:$0xff] %v5164
    %5263 = vst [vmem:[#allocation3 + $0x340] sm:$0xff] %v5165
    %5264 = vst [vmem:[#allocation3 + $0x388] sm:$0xff] %v5166
    %5265 = vst [vmem:[#allocation3 + $0x3d0] sm:$0xff] %v5167
    %5266 = vst [vmem:[#allocation3 + $0x418] sm:$0xff] %v5168
    %5267 = vst [vmem:[#allocation3 + $0x460] sm:$0xff] %v5169
    %5268 = vst [vmem:[#allocation3 + $0x4a8] sm:$0xff] %v5170
    %5269 = vst [vmem:[#allocation3 + $0x4f0] sm:$0xff] %v5171
    %5270 = vst [vmem:[#allocation3 + $0x538] sm:$0xff] %v5172
    %5271 = vst [vmem:[#allocation3 + $0x580] sm:$0xff] %v5173
    %5272 = vst [vmem:[#allocation3 + $0x5c8] sm:$0xff] %v5174
    %5273 = vst [vmem:[#allocation3 + $0x610] sm:$0xff] %v5175
    %5274 = vst [vmem:[#allocation3 + $0x658] sm:$0xff] %v5176
    %5275 = vst [vmem:[#allocation3 + $0x6a0] sm:$0xff] %v5177
    %5276 = vst [vmem:[#allocation3 + $0x6e8] sm:$0xff] %v5178
    %5277 = vst [vmem:[#allocation3 + $0x730] sm:$0xff] %v5179
    %5278 = vst [vmem:[#allocation3 + $0x778] sm:$0xff] %v5180
    %5279 = vst [vmem:[#allocation3 + $0x7c0] sm:$0xff] %v5181
    %5280 = vst [vmem:[#allocation3 + $0x808] sm:$0xff] %v5182
    %5281 = vst [vmem:[#allocation3 + $0x850] sm:$0xff] %v5183
    %5282 = vst [vmem:[#allocation3 + $0x898] sm:$0xff] %v5184
    %5283 = vst [vmem:[#allocation3 + $0x8e0] sm:$0xff] %v5185
    %5284 = vst [vmem:[#allocation3 + $0x928] sm:$0xff] %v5186
    %5285 = vst [vmem:[#allocation3 + $0x970] sm:$0xff] %v5187
    %5286 = vst [vmem:[#allocation3 + $0x9b8] sm:$0xff] %v5188
    %5287 = vst [vmem:[#allocation3 + $0xa00] sm:$0xff] %v5189
    %5288 = vst [vmem:[#allocation3 + $0xa48] sm:$0xff] %v5190
    %5289 = vst [vmem:[#allocation3 + $0xa90] sm:$0xff] %v5191
    %5290 = vst [vmem:[#allocation3 + $0xad8] sm:$0xff] %v5192
    %5291 = vst [vmem:[#allocation3 + $0xb20] sm:$0xff] %v5193
    %5292 = vst [vmem:[#allocation3 + $0xb68] sm:$0xff] %v5194
    %5293 = vst [vmem:[#allocation3 + $0xbb0] sm:$0xff] %v5195
    %5294 = vst [vmem:[#allocation3 + $0xbf8] sm:$0xff] %v5196
    %5295 = vst [vmem:[#allocation3 + $0xc40] sm:$0xff] %v5197
    %5296 = vst [vmem:[#allocation3 + $0xc88] sm:$0xff] %v5198
    %5297 = vst [vmem:[#allocation3 + $0xcd0] sm:$0xff] %v5199
    %5298 = vst [vmem:[#allocation3 + $0xd18] sm:$0xff] %v5200
    %5299 = vst [vmem:[#allocation3 + $0xd60] sm:$0xff] %v5201
    %5300 = vst [vmem:[#allocation3 + $0xda8] sm:$0xff] %v5202
    %5301 = vst [vmem:[#allocation3 + $0xdf0] sm:$0xff] %v5203
    %5302 = vst [vmem:[#allocation3 + $0xe38] sm:$0xff] %v5204
    %5303 = vst [vmem:[#allocation3 + $0xe80] sm:$0xff] %v5205
    %5304 = vst [vmem:[#allocation3 + $0xec8] sm:$0xff] %v5206
    %5305 = vst [vmem:[#allocation3 + $0xf10] sm:$0xff] %v5207
    %5306 = vst [vmem:[#allocation3 + $0xf58] sm:$0xff] %v5208
    %5307 = vst [vmem:[#allocation3 + $0xfa0] sm:$0xff] %v5209
    %5308 = vst [vmem:[#allocation3 + $0xfe8] sm:$0xff] %v5210
    %5309 = vst [vmem:[#allocation3 + $0x1030] sm:$0xff] %v5211
    %5310 = vst [vmem:[#allocation3 + $0x1078] sm:$0xff] %v5212
    %5311 = vst [vmem:[#allocation3 + $0x10c0] sm:$0xff] %v5213
    %5312 = vst [vmem:[#allocation3 + $0x1108] sm:$0xff] %v5214
    %5313 = vst [vmem:[#allocation3 + $0x1150] sm:$0xff] %v5215
    %5314 = vst [vmem:[#allocation3 + $0x1198] sm:$0xff] %v5216
    %5315 = vst [vmem:[#allocation3 + $0x11e0] sm:$0xff] %v5217
    %5316 = vst [vmem:[#allocation3 + $0x1228] sm:$0xff] %v5218
    %5317 = vst [vmem:[#allocation3 + $0x1270] sm:$0xff] %v5219
    %5318 = vst [vmem:[#allocation3 + $0x12b8] sm:$0xff] %v5220
    %5319 = vst [vmem:[#allocation3 + $0x1300] sm:$0xff] %v5221
    %5320 = vst [vmem:[#allocation3 + $0x1348] sm:$0xff] %v5222
    %5321 = vst [vmem:[#allocation3 + $0x1390] sm:$0xff] %v5223
    %5322 = vst [vmem:[#allocation3 + $0x13d8] sm:$0xff] %v5224
    %5323 = vst [vmem:[#allocation3 + $0x1420] sm:$0xff] %v5225
    %5324 = vst [vmem:[#allocation3 + $0x1468] sm:$0xff] %v5226
    %5325 = vst [vmem:[#allocation3 + $0x14b0] sm:$0xff] %v5227
    %5326 = vst [vmem:[#allocation3 + $0x14f8] sm:$0xff] %v5228
    %5327 = vst [vmem:[#allocation3 + $0x1540] sm:$0xff] %v5229
    %5328 = vst [vmem:[#allocation3 + $0x1588] sm:$0xff] %v5230
    %5329 = vst [vmem:[#allocation3 + $0x15d0] sm:$0xff] %v5231
    %5330 = vst [vmem:[#allocation3 + $0x1618] sm:$0xff] %v5232
    %5331 = vst [vmem:[#allocation3 + $0x1660] sm:$0xff] %v5233
    %5332 = vst [vmem:[#allocation3 + $0x16a8] sm:$0xff] %v5234
    %5333 = vst [vmem:[#allocation3 + $0x16f0] sm:$0xff] %v5235
    %5334 = vst [vmem:[#allocation3 + $0x1738] sm:$0xff] %v5236
    %5335 = vst [vmem:[#allocation3 + $0x1780] sm:$0xff] %v5237
    %5336 = vst [vmem:[#allocation3 + $0x17c8] sm:$0xff] %v5238
    %5337 = vst [vmem:[#allocation3 + $0x1810] sm:$0xff] %v5239
    %5338 = vst [vmem:[#allocation3 + $0x1858] sm:$0xff] %v5240
    %5339 = vst [vmem:[#allocation3 + $0x18a0] sm:$0xff] %v5241
    %5340 = vst [vmem:[#allocation3 + $0x18e8] sm:$0xff] %v5242
    %5341 = vst [vmem:[#allocation3 + $0x1930] sm:$0xff] %v5243
    %5342 = vst [vmem:[#allocation3 + $0x1978] sm:$0xff] %v5244
    %5343 = vst [vmem:[#allocation3 + $0x19c0] sm:$0xff] %v5245
    %5344 = vst [vmem:[#allocation3 + $0x1a08] sm:$0xff] %v5246
    %5345 = vst [vmem:[#allocation3 + $0x1a50] sm:$0xff] %v5247
    %5346 = vst [vmem:[#allocation3 + $0x1a98] sm:$0xff] %v5248
    %5347 = vst [vmem:[#allocation3 + $0x1ae0] sm:$0xff] %v5249
    %5348 = vst [vmem:[#allocation3 + $0x1b28] sm:$0xff] %v5250
    %5349 = vst [vmem:[#allocation3 + $0x1b70] sm:$0xff] %v5251
    %v5350 = vld [vmem:[#allocation2 + $0x3b] sm:$0xff]
    %v5351 = vld [vmem:[#allocation2 + $0x43] sm:$0xff]
    %v5352 = vld [vmem:[#allocation2 + $0x4b] sm:$0xff]
    %v5353 = vld [vmem:[#allocation2 + $0x53] sm:$0xff]
    %v5354 = vld [vmem:[#allocation2 + $0x5b] sm:$0xff]
    %v5355 = vld [vmem:[#allocation2 + $0x63] sm:$0xff]
    %v5356 = vld [vmem:[#allocation2 + $0x6b] sm:$0xff]
    %v5357 = vld [vmem:[#allocation2 + $0x73] sm:$0xff]
    %v5358 = vld [vmem:[#allocation2 + $0x7b] sm:$0xff]
    %v5359 = vld [vmem:[#allocation2 + $0x83] sm:$0xff]
    %v5360 = vld [vmem:[#allocation2 + $0x8b] sm:$0xff]
    %v5361 = vld [vmem:[#allocation2 + $0x93] sm:$0xff]
    %v5362 = vld [vmem:[#allocation2 + $0x9b] sm:$0xff]
    %v5363 = vld [vmem:[#allocation2 + $0xa3] sm:$0xff]
    %v5364 = vld [vmem:[#allocation2 + $0xab] sm:$0xff]
    %v5365 = vld [vmem:[#allocation2 + $0xb3] sm:$0xff]
    %v5366 = vld [vmem:[#allocation2 + $0xbb] sm:$0xff]
    %v5367 = vld [vmem:[#allocation2 + $0xc3] sm:$0xff]
    %v5368 = vld [vmem:[#allocation2 + $0xcb] sm:$0xff]
    %v5369 = vld [vmem:[#allocation2 + $0xd3] sm:$0xff]
    %v5370 = vld [vmem:[#allocation2 + $0xdb] sm:$0xff]
    %v5371 = vld [vmem:[#allocation2 + $0xe3] sm:$0xff]
    %v5372 = vld [vmem:[#allocation2 + $0xeb] sm:$0xff]
    %v5373 = vld [vmem:[#allocation2 + $0xf3] sm:$0xff]
    %v5374 = vld [vmem:[#allocation2 + $0xfb] sm:$0xff]
    %v5375 = vld [vmem:[#allocation2 + $0x103] sm:$0xff]
    %v5376 = vld [vmem:[#allocation2 + $0x10b] sm:$0xff]
    %v5377 = vld [vmem:[#allocation2 + $0x113] sm:$0xff]
    %v5378 = vld [vmem:[#allocation2 + $0x11b] sm:$0xff]
    %v5379 = vld [vmem:[#allocation2 + $0x123] sm:$0xff]
    %v5380 = vld [vmem:[#allocation2 + $0x12b] sm:$0xff]
    %v5381 = vld [vmem:[#allocation2 + $0x133] sm:$0xff]
    %v5382 = vld [vmem:[#allocation2 + $0x13b] sm:$0xff]
    %v5383 = vld [vmem:[#allocation2 + $0x143] sm:$0xff]
    %v5384 = vld [vmem:[#allocation2 + $0x14b] sm:$0xff]
    %v5385 = vld [vmem:[#allocation2 + $0x153] sm:$0xff]
    %v5386 = vld [vmem:[#allocation2 + $0x15b] sm:$0xff]
    %v5387 = vld [vmem:[#allocation2 + $0x163] sm:$0xff]
    %v5388 = vld [vmem:[#allocation2 + $0x16b] sm:$0xff]
    %v5389 = vld [vmem:[#allocation2 + $0x173] sm:$0xff]
    %v5390 = vld [vmem:[#allocation2 + $0x17b] sm:$0xff]
    %v5391 = vld [vmem:[#allocation2 + $0x183] sm:$0xff]
    %v5392 = vld [vmem:[#allocation2 + $0x18b] sm:$0xff]
    %v5393 = vld [vmem:[#allocation2 + $0x193] sm:$0xff]
    %v5394 = vld [vmem:[#allocation2 + $0x19b] sm:$0xff]
    %v5395 = vld [vmem:[#allocation2 + $0x1a3] sm:$0xff]
    %v5396 = vld [vmem:[#allocation2 + $0x1ab] sm:$0xff]
    %v5397 = vld [vmem:[#allocation2 + $0x1b3] sm:$0xff]
    %v5398 = vld [vmem:[#allocation2 + $0x1bb] sm:$0xff]
    %v5399 = vld [vmem:[#allocation2 + $0x1c3] sm:$0xff]
    %v5400 = vld [vmem:[#allocation2 + $0x1cb] sm:$0xff]
    %v5401 = vld [vmem:[#allocation2 + $0x1d3] sm:$0xff]
    %v5402 = vld [vmem:[#allocation2 + $0x1db] sm:$0xff]
    %v5403 = vld [vmem:[#allocation2 + $0x1e3] sm:$0xff]
    %v5404 = vld [vmem:[#allocation2 + $0x1eb] sm:$0xff]
    %v5405 = vld [vmem:[#allocation2 + $0x1f3] sm:$0xff]
    %v5406 = vld [vmem:[#allocation2 + $0x1fb] sm:$0xff]
    %v5407 = vld [vmem:[#allocation2 + $0x203] sm:$0xff]
    %v5408 = vld [vmem:[#allocation2 + $0x20b] sm:$0xff]
    %v5409 = vld [vmem:[#allocation2 + $0x213] sm:$0xff]
    %v5410 = vld [vmem:[#allocation2 + $0x21b] sm:$0xff]
    %v5411 = vld [vmem:[#allocation2 + $0x223] sm:$0xff]
    %v5412 = vld [vmem:[#allocation2 + $0x22b] sm:$0xff]
    %v5413 = vld [vmem:[#allocation2 + $0x233] sm:$0xff]
    %v5414 = vld [vmem:[#allocation2 + $0x23b] sm:$0xff]
    %v5415 = vld [vmem:[#allocation2 + $0x243] sm:$0xff]
    %v5416 = vld [vmem:[#allocation2 + $0x24b] sm:$0xff]
    %v5417 = vld [vmem:[#allocation2 + $0x253] sm:$0xff]
    %v5418 = vld [vmem:[#allocation2 + $0x25b] sm:$0xff]
    %v5419 = vld [vmem:[#allocation2 + $0x263] sm:$0xff]
    %v5420 = vld [vmem:[#allocation2 + $0x26b] sm:$0xff]
    %v5421 = vld [vmem:[#allocation2 + $0x273] sm:$0xff]
    %v5422 = vld [vmem:[#allocation2 + $0x27b] sm:$0xff]
    %v5423 = vld [vmem:[#allocation2 + $0x283] sm:$0xff]
    %v5424 = vld [vmem:[#allocation2 + $0x28b] sm:$0xff]
    %v5425 = vld [vmem:[#allocation2 + $0x293] sm:$0xff]
    %v5426 = vld [vmem:[#allocation2 + $0x29b] sm:$0xff]
    %v5427 = vld [vmem:[#allocation2 + $0x2a3] sm:$0xff]
    %v5428 = vld [vmem:[#allocation2 + $0x2ab] sm:$0xff]
    %v5429 = vld [vmem:[#allocation2 + $0x2b3] sm:$0xff]
    %v5430 = vld [vmem:[#allocation2 + $0x2bb] sm:$0xff]
    %v5431 = vld [vmem:[#allocation2 + $0x2c3] sm:$0xff]
    %v5432 = vld [vmem:[#allocation2 + $0x2cb] sm:$0xff]
    %v5433 = vld [vmem:[#allocation2 + $0x2d3] sm:$0xff]
    %v5434 = vld [vmem:[#allocation2 + $0x2db] sm:$0xff]
    %v5435 = vld [vmem:[#allocation2 + $0x2e3] sm:$0xff]
    %v5436 = vld [vmem:[#allocation2 + $0x2eb] sm:$0xff]
    %v5437 = vld [vmem:[#allocation2 + $0x2f3] sm:$0xff]
    %v5438 = vld [vmem:[#allocation2 + $0x2fb] sm:$0xff]
    %v5439 = vld [vmem:[#allocation2 + $0x303] sm:$0xff]
    %v5440 = vld [vmem:[#allocation2 + $0x30b] sm:$0xff]
    %v5441 = vld [vmem:[#allocation2 + $0x313] sm:$0xff]
    %v5442 = vld [vmem:[#allocation2 + $0x31b] sm:$0xff]
    %v5443 = vld [vmem:[#allocation2 + $0x323] sm:$0xff]
    %v5444 = vld [vmem:[#allocation2 + $0x32b] sm:$0xff]
    %v5445 = vld [vmem:[#allocation2 + $0x333] sm:$0xff]
    %v5446 = vld [vmem:[#allocation2 + $0x33b] sm:$0xff]
    %v5447 = vld [vmem:[#allocation2 + $0x343] sm:$0xff]
    %v5448 = vsel %vm3586, %v5350, 0.0
    %v5449 = vsel %vm3587, %v5351, 0.0
    %v5450 = vsel %vm3588, %v5352, 0.0
    %v5451 = vsel %vm3589, %v5353, 0.0
    %v5452 = vsel %vm3590, %v5354, 0.0
    %v5453 = vsel %vm3591, %v5355, 0.0
    %v5454 = vsel %vm3592, %v5356, 0.0
    %v5455 = vsel %vm3593, %v5357, 0.0
    %v5456 = vsel %vm3594, %v5358, 0.0
    %v5457 = vsel %vm3595, %v5359, 0.0
    %v5458 = vsel %vm3596, %v5360, 0.0
    %v5459 = vsel %vm3597, %v5361, 0.0
    %v5460 = vsel %vm3598, %v5362, 0.0
    %v5461 = vsel %vm3599, %v5363, 0.0
    %v5462 = vsel %vm3600, %v5364, 0.0
    %v5463 = vsel %vm3601, %v5365, 0.0
    %v5464 = vsel %vm3602, %v5366, 0.0
    %v5465 = vsel %vm3603, %v5367, 0.0
    %v5466 = vsel %vm3604, %v5368, 0.0
    %v5467 = vsel %vm3605, %v5369, 0.0
    %v5468 = vsel %vm3606, %v5370, 0.0
    %v5469 = vsel %vm3607, %v5371, 0.0
    %v5470 = vsel %vm3608, %v5372, 0.0
    %v5471 = vsel %vm3609, %v5373, 0.0
    %v5472 = vsel %vm3610, %v5374, 0.0
    %v5473 = vsel %vm3611, %v5375, 0.0
    %v5474 = vsel %vm3612, %v5376, 0.0
    %v5475 = vsel %vm3613, %v5377, 0.0
    %v5476 = vsel %vm3614, %v5378, 0.0
    %v5477 = vsel %vm3615, %v5379, 0.0
    %v5478 = vsel %vm3616, %v5380, 0.0
    %v5479 = vsel %vm3617, %v5381, 0.0
    %v5480 = vsel %vm3618, %v5382, 0.0
    %v5481 = vsel %vm3619, %v5383, 0.0
    %v5482 = vsel %vm3620, %v5384, 0.0
    %v5483 = vsel %vm3621, %v5385, 0.0
    %v5484 = vsel %vm3622, %v5386, 0.0
    %v5485 = vsel %vm3623, %v5387, 0.0
    %v5486 = vsel %vm3624, %v5388, 0.0
    %v5487 = vsel %vm3625, %v5389, 0.0
    %v5488 = vsel %vm3626, %v5390, 0.0
    %v5489 = vsel %vm3627, %v5391, 0.0
    %v5490 = vsel %vm3628, %v5392, 0.0
    %v5491 = vsel %vm3629, %v5393, 0.0
    %v5492 = vsel %vm3630, %v5394, 0.0
    %v5493 = vsel %vm3631, %v5395, 0.0
    %v5494 = vsel %vm3632, %v5396, 0.0
    %v5495 = vsel %vm3633, %v5397, 0.0
    %v5496 = vsel %vm3634, %v5398, 0.0
    %v5497 = vsel %vm3635, %v5399, 0.0
    %v5498 = vsel %vm3636, %v5400, 0.0
    %v5499 = vsel %vm3637, %v5401, 0.0
    %v5500 = vsel %vm3638, %v5402, 0.0
    %v5501 = vsel %vm3639, %v5403, 0.0
    %v5502 = vsel %vm3640, %v5404, 0.0
    %v5503 = vsel %vm3641, %v5405, 0.0
    %v5504 = vsel %vm3642, %v5406, 0.0
    %v5505 = vsel %vm3643, %v5407, 0.0
    %v5506 = vsel %vm3644, %v5408, 0.0
    %v5507 = vsel %vm3645, %v5409, 0.0
    %v5508 = vsel %vm3646, %v5410, 0.0
    %v5509 = vsel %vm3647, %v5411, 0.0
    %v5510 = vsel %vm3648, %v5412, 0.0
    %v5511 = vsel %vm3649, %v5413, 0.0
    %v5512 = vsel %vm3650, %v5414, 0.0
    %v5513 = vsel %vm3651, %v5415, 0.0
    %v5514 = vsel %vm3652, %v5416, 0.0
    %v5515 = vsel %vm3653, %v5417, 0.0
    %v5516 = vsel %vm3654, %v5418, 0.0
    %v5517 = vsel %vm3655, %v5419, 0.0
    %v5518 = vsel %vm3656, %v5420, 0.0
    %v5519 = vsel %vm3657, %v5421, 0.0
    %v5520 = vsel %vm3658, %v5422, 0.0
    %v5521 = vsel %vm3659, %v5423, 0.0
    %v5522 = vsel %vm3660, %v5424, 0.0
    %v5523 = vsel %vm3661, %v5425, 0.0
    %v5524 = vsel %vm3662, %v5426, 0.0
    %v5525 = vsel %vm3663, %v5427, 0.0
    %v5526 = vsel %vm3664, %v5428, 0.0
    %v5527 = vsel %vm3665, %v5429, 0.0
    %v5528 = vsel %vm3666, %v5430, 0.0
    %v5529 = vsel %vm3667, %v5431, 0.0
    %v5530 = vsel %vm3668, %v5432, 0.0
    %v5531 = vsel %vm3669, %v5433, 0.0
    %v5532 = vsel %vm3670, %v5434, 0.0
    %v5533 = vsel %vm3671, %v5435, 0.0
    %v5534 = vsel %vm3672, %v5436, 0.0
    %v5535 = vsel %vm3673, %v5437, 0.0
    %v5536 = vsel %vm3674, %v5438, 0.0
    %v5537 = vsel %vm3675, %v5439, 0.0
    %v5538 = vsel %vm3676, %v5440, 0.0
    %v5539 = vsel %vm3677, %v5441, 0.0
    %v5540 = vsel %vm3678, %v5442, 0.0
    %v5541 = vsel %vm3679, %v5443, 0.0
    %v5542 = vsel %vm3680, %v5444, 0.0
    %v5543 = vsel %vm3681, %v5445, 0.0
    %v5544 = vsel %vm3682, %v5446, 0.0
    %v5545 = vsel %vm3683, %v5447, 0.0
    %5546 = vst [vmem:[#allocation3 + $0x30] sm:$0xff] %v5448
    %5547 = vst [vmem:[#allocation3 + $0x78] sm:$0xff] %v5449
    %5548 = vst [vmem:[#allocation3 + $0xc0] sm:$0xff] %v5450
    %5549 = vst [vmem:[#allocation3 + $0x108] sm:$0xff] %v5451
    %5550 = vst [vmem:[#allocation3 + $0x150] sm:$0xff] %v5452
    %5551 = vst [vmem:[#allocation3 + $0x198] sm:$0xff] %v5453
    %5552 = vst [vmem:[#allocation3 + $0x1e0] sm:$0xff] %v5454
    %5553 = vst [vmem:[#allocation3 + $0x228] sm:$0xff] %v5455
    %5554 = vst [vmem:[#allocation3 + $0x270] sm:$0xff] %v5456
    %5555 = vst [vmem:[#allocation3 + $0x2b8] sm:$0xff] %v5457
    %5556 = vst [vmem:[#allocation3 + $0x300] sm:$0xff] %v5458
    %5557 = vst [vmem:[#allocation3 + $0x348] sm:$0xff] %v5459
    %5558 = vst [vmem:[#allocation3 + $0x390] sm:$0xff] %v5460
    %5559 = vst [vmem:[#allocation3 + $0x3d8] sm:$0xff] %v5461
    %5560 = vst [vmem:[#allocation3 + $0x420] sm:$0xff] %v5462
    %5561 = vst [vmem:[#allocation3 + $0x468] sm:$0xff] %v5463
    %5562 = vst [vmem:[#allocation3 + $0x4b0] sm:$0xff] %v5464
    %5563 = vst [vmem:[#allocation3 + $0x4f8] sm:$0xff] %v5465
    %5564 = vst [vmem:[#allocation3 + $0x540] sm:$0xff] %v5466
    %5565 = vst [vmem:[#allocation3 + $0x588] sm:$0xff] %v5467
    %5566 = vst [vmem:[#allocation3 + $0x5d0] sm:$0xff] %v5468
    %5567 = vst [vmem:[#allocation3 + $0x618] sm:$0xff] %v5469
    %5568 = vst [vmem:[#allocation3 + $0x660] sm:$0xff] %v5470
    %5569 = vst [vmem:[#allocation3 + $0x6a8] sm:$0xff] %v5471
    %5570 = vst [vmem:[#allocation3 + $0x6f0] sm:$0xff] %v5472
    %5571 = vst [vmem:[#allocation3 + $0x738] sm:$0xff] %v5473
    %5572 = vst [vmem:[#allocation3 + $0x780] sm:$0xff] %v5474
    %5573 = vst [vmem:[#allocation3 + $0x7c8] sm:$0xff] %v5475
    %5574 = vst [vmem:[#allocation3 + $0x810] sm:$0xff] %v5476
    %5575 = vst [vmem:[#allocation3 + $0x858] sm:$0xff] %v5477
    %5576 = vst [vmem:[#allocation3 + $0x8a0] sm:$0xff] %v5478
    %5577 = vst [vmem:[#allocation3 + $0x8e8] sm:$0xff] %v5479
    %5578 = vst [vmem:[#allocation3 + $0x930] sm:$0xff] %v5480
    %5579 = vst [vmem:[#allocation3 + $0x978] sm:$0xff] %v5481
    %5580 = vst [vmem:[#allocation3 + $0x9c0] sm:$0xff] %v5482
    %5581 = vst [vmem:[#allocation3 + $0xa08] sm:$0xff] %v5483
    %5582 = vst [vmem:[#allocation3 + $0xa50] sm:$0xff] %v5484
    %5583 = vst [vmem:[#allocation3 + $0xa98] sm:$0xff] %v5485
    %5584 = vst [vmem:[#allocation3 + $0xae0] sm:$0xff] %v5486
    %5585 = vst [vmem:[#allocation3 + $0xb28] sm:$0xff] %v5487
    %5586 = vst [vmem:[#allocation3 + $0xb70] sm:$0xff] %v5488
    %5587 = vst [vmem:[#allocation3 + $0xbb8] sm:$0xff] %v5489
    %5588 = vst [vmem:[#allocation3 + $0xc00] sm:$0xff] %v5490
    %5589 = vst [vmem:[#allocation3 + $0xc48] sm:$0xff] %v5491
    %5590 = vst [vmem:[#allocation3 + $0xc90] sm:$0xff] %v5492
    %5591 = vst [vmem:[#allocation3 + $0xcd8] sm:$0xff] %v5493
    %5592 = vst [vmem:[#allocation3 + $0xd20] sm:$0xff] %v5494
    %5593 = vst [vmem:[#allocation3 + $0xd68] sm:$0xff] %v5495
    %5594 = vst [vmem:[#allocation3 + $0xdb0] sm:$0xff] %v5496
    %5595 = vst [vmem:[#allocation3 + $0xdf8] sm:$0xff] %v5497
    %5596 = vst [vmem:[#allocation3 + $0xe40] sm:$0xff] %v5498
    %5597 = vst [vmem:[#allocation3 + $0xe88] sm:$0xff] %v5499
    %5598 = vst [vmem:[#allocation3 + $0xed0] sm:$0xff] %v5500
    %5599 = vst [vmem:[#allocation3 + $0xf18] sm:$0xff] %v5501
    %5600 = vst [vmem:[#allocation3 + $0xf60] sm:$0xff] %v5502
    %5601 = vst [vmem:[#allocation3 + $0xfa8] sm:$0xff] %v5503
    %5602 = vst [vmem:[#allocation3 + $0xff0] sm:$0xff] %v5504
    %5603 = vst [vmem:[#allocation3 + $0x1038] sm:$0xff] %v5505
    %5604 = vst [vmem:[#allocation3 + $0x1080] sm:$0xff] %v5506
    %5605 = vst [vmem:[#allocation3 + $0x10c8] sm:$0xff] %v5507
    %5606 = vst [vmem:[#allocation3 + $0x1110] sm:$0xff] %v5508
    %5607 = vst [vmem:[#allocation3 + $0x1158] sm:$0xff] %v5509
    %5608 = vst [vmem:[#allocation3 + $0x11a0] sm:$0xff] %v5510
    %5609 = vst [vmem:[#allocation3 + $0x11e8] sm:$0xff] %v5511
    %5610 = vst [vmem:[#allocation3 + $0x1230] sm:$0xff] %v5512
    %5611 = vst [vmem:[#allocation3 + $0x1278] sm:$0xff] %v5513
    %5612 = vst [vmem:[#allocation3 + $0x12c0] sm:$0xff] %v5514
    %5613 = vst [vmem:[#allocation3 + $0x1308] sm:$0xff] %v5515
    %5614 = vst [vmem:[#allocation3 + $0x1350] sm:$0xff] %v5516
    %5615 = vst [vmem:[#allocation3 + $0x1398] sm:$0xff] %v5517
    %5616 = vst [vmem:[#allocation3 + $0x13e0] sm:$0xff] %v5518
    %5617 = vst [vmem:[#allocation3 + $0x1428] sm:$0xff] %v5519
    %5618 = vst [vmem:[#allocation3 + $0x1470] sm:$0xff] %v5520
    %5619 = vst [vmem:[#allocation3 + $0x14b8] sm:$0xff] %v5521
    %5620 = vst [vmem:[#allocation3 + $0x1500] sm:$0xff] %v5522
    %5621 = vst [vmem:[#allocation3 + $0x1548] sm:$0xff] %v5523
    %5622 = vst [vmem:[#allocation3 + $0x1590] sm:$0xff] %v5524
    %5623 = vst [vmem:[#allocation3 + $0x15d8] sm:$0xff] %v5525
    %5624 = vst [vmem:[#allocation3 + $0x1620] sm:$0xff] %v5526
    %5625 = vst [vmem:[#allocation3 + $0x1668] sm:$0xff] %v5527
    %5626 = vst [vmem:[#allocation3 + $0x16b0] sm:$0xff] %v5528
    %5627 = vst [vmem:[#allocation3 + $0x16f8] sm:$0xff] %v5529
    %5628 = vst [vmem:[#allocation3 + $0x1740] sm:$0xff] %v5530
    %5629 = vst [vmem:[#allocation3 + $0x1788] sm:$0xff] %v5531
    %5630 = vst [vmem:[#allocation3 + $0x17d0] sm:$0xff] %v5532
    %5631 = vst [vmem:[#allocation3 + $0x1818] sm:$0xff] %v5533
    %5632 = vst [vmem:[#allocation3 + $0x1860] sm:$0xff] %v5534
    %5633 = vst [vmem:[#allocation3 + $0x18a8] sm:$0xff] %v5535
    %5634 = vst [vmem:[#allocation3 + $0x18f0] sm:$0xff] %v5536
    %5635 = vst [vmem:[#allocation3 + $0x1938] sm:$0xff] %v5537
    %5636 = vst [vmem:[#allocation3 + $0x1980] sm:$0xff] %v5538
    %5637 = vst [vmem:[#allocation3 + $0x19c8] sm:$0xff] %v5539
    %5638 = vst [vmem:[#allocation3 + $0x1a10] sm:$0xff] %v5540
    %5639 = vst [vmem:[#allocation3 + $0x1a58] sm:$0xff] %v5541
    %5640 = vst [vmem:[#allocation3 + $0x1aa0] sm:$0xff] %v5542
    %5641 = vst [vmem:[#allocation3 + $0x1ae8] sm:$0xff] %v5543
    %5642 = vst [vmem:[#allocation3 + $0x1b30] sm:$0xff] %v5544
    %5643 = vst [vmem:[#allocation3 + $0x1b78] sm:$0xff] %v5545
    %v5644 = vld [vmem:[#allocation2 + $0x3c] sm:$0xff]
    %v5645 = vld [vmem:[#allocation2 + $0x44] sm:$0xff]
    %v5646 = vld [vmem:[#allocation2 + $0x4c] sm:$0xff]
    %v5647 = vld [vmem:[#allocation2 + $0x54] sm:$0xff]
    %v5648 = vld [vmem:[#allocation2 + $0x5c] sm:$0xff]
    %v5649 = vld [vmem:[#allocation2 + $0x64] sm:$0xff]
    %v5650 = vld [vmem:[#allocation2 + $0x6c] sm:$0xff]
    %v5651 = vld [vmem:[#allocation2 + $0x74] sm:$0xff]
    %v5652 = vld [vmem:[#allocation2 + $0x7c] sm:$0xff]
    %v5653 = vld [vmem:[#allocation2 + $0x84] sm:$0xff]
    %v5654 = vld [vmem:[#allocation2 + $0x8c] sm:$0xff]
    %v5655 = vld [vmem:[#allocation2 + $0x94] sm:$0xff]
    %v5656 = vld [vmem:[#allocation2 + $0x9c] sm:$0xff]
    %v5657 = vld [vmem:[#allocation2 + $0xa4] sm:$0xff]
    %v5658 = vld [vmem:[#allocation2 + $0xac] sm:$0xff]
    %v5659 = vld [vmem:[#allocation2 + $0xb4] sm:$0xff]
    %v5660 = vld [vmem:[#allocation2 + $0xbc] sm:$0xff]
    %v5661 = vld [vmem:[#allocation2 + $0xc4] sm:$0xff]
    %v5662 = vld [vmem:[#allocation2 + $0xcc] sm:$0xff]
    %v5663 = vld [vmem:[#allocation2 + $0xd4] sm:$0xff]
    %v5664 = vld [vmem:[#allocation2 + $0xdc] sm:$0xff]
    %v5665 = vld [vmem:[#allocation2 + $0xe4] sm:$0xff]
    %v5666 = vld [vmem:[#allocation2 + $0xec] sm:$0xff]
    %v5667 = vld [vmem:[#allocation2 + $0xf4] sm:$0xff]
    %v5668 = vld [vmem:[#allocation2 + $0xfc] sm:$0xff]
    %v5669 = vld [vmem:[#allocation2 + $0x104] sm:$0xff]
    %v5670 = vld [vmem:[#allocation2 + $0x10c] sm:$0xff]
    %v5671 = vld [vmem:[#allocation2 + $0x114] sm:$0xff]
    %v5672 = vld [vmem:[#allocation2 + $0x11c] sm:$0xff]
    %v5673 = vld [vmem:[#allocation2 + $0x124] sm:$0xff]
    %v5674 = vld [vmem:[#allocation2 + $0x12c] sm:$0xff]
    %v5675 = vld [vmem:[#allocation2 + $0x134] sm:$0xff]
    %v5676 = vld [vmem:[#allocation2 + $0x13c] sm:$0xff]
    %v5677 = vld [vmem:[#allocation2 + $0x144] sm:$0xff]
    %v5678 = vld [vmem:[#allocation2 + $0x14c] sm:$0xff]
    %v5679 = vld [vmem:[#allocation2 + $0x154] sm:$0xff]
    %v5680 = vld [vmem:[#allocation2 + $0x15c] sm:$0xff]
    %v5681 = vld [vmem:[#allocation2 + $0x164] sm:$0xff]
    %v5682 = vld [vmem:[#allocation2 + $0x16c] sm:$0xff]
    %v5683 = vld [vmem:[#allocation2 + $0x174] sm:$0xff]
    %v5684 = vld [vmem:[#allocation2 + $0x17c] sm:$0xff]
    %v5685 = vld [vmem:[#allocation2 + $0x184] sm:$0xff]
    %v5686 = vld [vmem:[#allocation2 + $0x18c] sm:$0xff]
    %v5687 = vld [vmem:[#allocation2 + $0x194] sm:$0xff]
    %v5688 = vld [vmem:[#allocation2 + $0x19c] sm:$0xff]
    %v5689 = vld [vmem:[#allocation2 + $0x1a4] sm:$0xff]
    %v5690 = vld [vmem:[#allocation2 + $0x1ac] sm:$0xff]
    %v5691 = vld [vmem:[#allocation2 + $0x1b4] sm:$0xff]
    %v5692 = vld [vmem:[#allocation2 + $0x1bc] sm:$0xff]
    %v5693 = vld [vmem:[#allocation2 + $0x1c4] sm:$0xff]
    %v5694 = vld [vmem:[#allocation2 + $0x1cc] sm:$0xff]
    %v5695 = vld [vmem:[#allocation2 + $0x1d4] sm:$0xff]
    %v5696 = vld [vmem:[#allocation2 + $0x1dc] sm:$0xff]
    %v5697 = vld [vmem:[#allocation2 + $0x1e4] sm:$0xff]
    %v5698 = vld [vmem:[#allocation2 + $0x1ec] sm:$0xff]
    %v5699 = vld [vmem:[#allocation2 + $0x1f4] sm:$0xff]
    %v5700 = vld [vmem:[#allocation2 + $0x1fc] sm:$0xff]
    %v5701 = vld [vmem:[#allocation2 + $0x204] sm:$0xff]
    %v5702 = vld [vmem:[#allocation2 + $0x20c] sm:$0xff]
    %v5703 = vld [vmem:[#allocation2 + $0x214] sm:$0xff]
    %v5704 = vld [vmem:[#allocation2 + $0x21c] sm:$0xff]
    %v5705 = vld [vmem:[#allocation2 + $0x224] sm:$0xff]
    %v5706 = vld [vmem:[#allocation2 + $0x22c] sm:$0xff]
    %v5707 = vld [vmem:[#allocation2 + $0x234] sm:$0xff]
    %v5708 = vld [vmem:[#allocation2 + $0x23c] sm:$0xff]
    %v5709 = vld [vmem:[#allocation2 + $0x244] sm:$0xff]
    %v5710 = vld [vmem:[#allocation2 + $0x24c] sm:$0xff]
    %v5711 = vld [vmem:[#allocation2 + $0x254] sm:$0xff]
    %v5712 = vld [vmem:[#allocation2 + $0x25c] sm:$0xff]
    %v5713 = vld [vmem:[#allocation2 + $0x264] sm:$0xff]
    %v5714 = vld [vmem:[#allocation2 + $0x26c] sm:$0xff]
    %v5715 = vld [vmem:[#allocation2 + $0x274] sm:$0xff]
    %v5716 = vld [vmem:[#allocation2 + $0x27c] sm:$0xff]
    %v5717 = vld [vmem:[#allocation2 + $0x284] sm:$0xff]
    %v5718 = vld [vmem:[#allocation2 + $0x28c] sm:$0xff]
    %v5719 = vld [vmem:[#allocation2 + $0x294] sm:$0xff]
    %v5720 = vld [vmem:[#allocation2 + $0x29c] sm:$0xff]
    %v5721 = vld [vmem:[#allocation2 + $0x2a4] sm:$0xff]
    %v5722 = vld [vmem:[#allocation2 + $0x2ac] sm:$0xff]
    %v5723 = vld [vmem:[#allocation2 + $0x2b4] sm:$0xff]
    %v5724 = vld [vmem:[#allocation2 + $0x2bc] sm:$0xff]
    %v5725 = vld [vmem:[#allocation2 + $0x2c4] sm:$0xff]
    %v5726 = vld [vmem:[#allocation2 + $0x2cc] sm:$0xff]
    %v5727 = vld [vmem:[#allocation2 + $0x2d4] sm:$0xff]
    %v5728 = vld [vmem:[#allocation2 + $0x2dc] sm:$0xff]
    %v5729 = vld [vmem:[#allocation2 + $0x2e4] sm:$0xff]
    %v5730 = vld [vmem:[#allocation2 + $0x2ec] sm:$0xff]
    %v5731 = vld [vmem:[#allocation2 + $0x2f4] sm:$0xff]
    %v5732 = vld [vmem:[#allocation2 + $0x2fc] sm:$0xff]
    %v5733 = vld [vmem:[#allocation2 + $0x304] sm:$0xff]
    %v5734 = vld [vmem:[#allocation2 + $0x30c] sm:$0xff]
    %v5735 = vld [vmem:[#allocation2 + $0x314] sm:$0xff]
    %v5736 = vld [vmem:[#allocation2 + $0x31c] sm:$0xff]
    %v5737 = vld [vmem:[#allocation2 + $0x324] sm:$0xff]
    %v5738 = vld [vmem:[#allocation2 + $0x32c] sm:$0xff]
    %v5739 = vld [vmem:[#allocation2 + $0x334] sm:$0xff]
    %v5740 = vld [vmem:[#allocation2 + $0x33c] sm:$0xff]
    %v5741 = vld [vmem:[#allocation2 + $0x344] sm:$0xff]
    %5742 = vst [vmem:[#allocation3 + $0x38] sm:$0xff] %v5644
    %5743 = vst [vmem:[#allocation3 + $0x80] sm:$0xff] %v5645
    %5744 = vst [vmem:[#allocation3 + $0xc8] sm:$0xff] %v5646
    %5745 = vst [vmem:[#allocation3 + $0x110] sm:$0xff] %v5647
    %5746 = vst [vmem:[#allocation3 + $0x158] sm:$0xff] %v5648
    %5747 = vst [vmem:[#allocation3 + $0x1a0] sm:$0xff] %v5649
    %5748 = vst [vmem:[#allocation3 + $0x1e8] sm:$0xff] %v5650
    %5749 = vst [vmem:[#allocation3 + $0x230] sm:$0xff] %v5651
    %5750 = vst [vmem:[#allocation3 + $0x278] sm:$0xff] %v5652
    %5751 = vst [vmem:[#allocation3 + $0x2c0] sm:$0xff] %v5653
    %5752 = vst [vmem:[#allocation3 + $0x308] sm:$0xff] %v5654
    %5753 = vst [vmem:[#allocation3 + $0x350] sm:$0xff] %v5655
    %5754 = vst [vmem:[#allocation3 + $0x398] sm:$0xff] %v5656
    %5755 = vst [vmem:[#allocation3 + $0x3e0] sm:$0xff] %v5657
    %5756 = vst [vmem:[#allocation3 + $0x428] sm:$0xff] %v5658
    %5757 = vst [vmem:[#allocation3 + $0x470] sm:$0xff] %v5659
    %5758 = vst [vmem:[#allocation3 + $0x4b8] sm:$0xff] %v5660
    %5759 = vst [vmem:[#allocation3 + $0x500] sm:$0xff] %v5661
    %5760 = vst [vmem:[#allocation3 + $0x548] sm:$0xff] %v5662
    %5761 = vst [vmem:[#allocation3 + $0x590] sm:$0xff] %v5663
    %5762 = vst [vmem:[#allocation3 + $0x5d8] sm:$0xff] %v5664
    %5763 = vst [vmem:[#allocation3 + $0x620] sm:$0xff] %v5665
    %5764 = vst [vmem:[#allocation3 + $0x668] sm:$0xff] %v5666
    %5765 = vst [vmem:[#allocation3 + $0x6b0] sm:$0xff] %v5667
    %5766 = vst [vmem:[#allocation3 + $0x6f8] sm:$0xff] %v5668
    %5767 = vst [vmem:[#allocation3 + $0x740] sm:$0xff] %v5669
    %5768 = vst [vmem:[#allocation3 + $0x788] sm:$0xff] %v5670
    %5769 = vst [vmem:[#allocation3 + $0x7d0] sm:$0xff] %v5671
    %5770 = vst [vmem:[#allocation3 + $0x818] sm:$0xff] %v5672
    %5771 = vst [vmem:[#allocation3 + $0x860] sm:$0xff] %v5673
    %5772 = vst [vmem:[#allocation3 + $0x8a8] sm:$0xff] %v5674
    %5773 = vst [vmem:[#allocation3 + $0x8f0] sm:$0xff] %v5675
    %5774 = vst [vmem:[#allocation3 + $0x938] sm:$0xff] %v5676
    %5775 = vst [vmem:[#allocation3 + $0x980] sm:$0xff] %v5677
    %5776 = vst [vmem:[#allocation3 + $0x9c8] sm:$0xff] %v5678
    %5777 = vst [vmem:[#allocation3 + $0xa10] sm:$0xff] %v5679
    %5778 = vst [vmem:[#allocation3 + $0xa58] sm:$0xff] %v5680
    %5779 = vst [vmem:[#allocation3 + $0xaa0] sm:$0xff] %v5681
    %5780 = vst [vmem:[#allocation3 + $0xae8] sm:$0xff] %v5682
    %5781 = vst [vmem:[#allocation3 + $0xb30] sm:$0xff] %v5683
    %5782 = vst [vmem:[#allocation3 + $0xb78] sm:$0xff] %v5684
    %5783 = vst [vmem:[#allocation3 + $0xbc0] sm:$0xff] %v5685
    %5784 = vst [vmem:[#allocation3 + $0xc08] sm:$0xff] %v5686
    %5785 = vst [vmem:[#allocation3 + $0xc50] sm:$0xff] %v5687
    %5786 = vst [vmem:[#allocation3 + $0xc98] sm:$0xff] %v5688
    %5787 = vst [vmem:[#allocation3 + $0xce0] sm:$0xff] %v5689
    %5788 = vst [vmem:[#allocation3 + $0xd28] sm:$0xff] %v5690
    %5789 = vst [vmem:[#allocation3 + $0xd70] sm:$0xff] %v5691
    %5790 = vst [vmem:[#allocation3 + $0xdb8] sm:$0xff] %v5692
    %5791 = vst [vmem:[#allocation3 + $0xe00] sm:$0xff] %v5693
    %5792 = vst [vmem:[#allocation3 + $0xe48] sm:$0xff] %v5694
    %5793 = vst [vmem:[#allocation3 + $0xe90] sm:$0xff] %v5695
    %5794 = vst [vmem:[#allocation3 + $0xed8] sm:$0xff] %v5696
    %5795 = vst [vmem:[#allocation3 + $0xf20] sm:$0xff] %v5697
    %5796 = vst [vmem:[#allocation3 + $0xf68] sm:$0xff] %v5698
    %5797 = vst [vmem:[#allocation3 + $0xfb0] sm:$0xff] %v5699
    %5798 = vst [vmem:[#allocation3 + $0xff8] sm:$0xff] %v5700
    %5799 = vst [vmem:[#allocation3 + $0x1040] sm:$0xff] %v5701
    %5800 = vst [vmem:[#allocation3 + $0x1088] sm:$0xff] %v5702
    %5801 = vst [vmem:[#allocation3 + $0x10d0] sm:$0xff] %v5703
    %5802 = vst [vmem:[#allocation3 + $0x1118] sm:$0xff] %v5704
    %5803 = vst [vmem:[#allocation3 + $0x1160] sm:$0xff] %v5705
    %5804 = vst [vmem:[#allocation3 + $0x11a8] sm:$0xff] %v5706
    %5805 = vst [vmem:[#allocation3 + $0x11f0] sm:$0xff] %v5707
    %5806 = vst [vmem:[#allocation3 + $0x1238] sm:$0xff] %v5708
    %5807 = vst [vmem:[#allocation3 + $0x1280] sm:$0xff] %v5709
    %5808 = vst [vmem:[#allocation3 + $0x12c8] sm:$0xff] %v5710
    %5809 = vst [vmem:[#allocation3 + $0x1310] sm:$0xff] %v5711
    %5810 = vst [vmem:[#allocation3 + $0x1358] sm:$0xff] %v5712
    %5811 = vst [vmem:[#allocation3 + $0x13a0] sm:$0xff] %v5713
    %5812 = vst [vmem:[#allocation3 + $0x13e8] sm:$0xff] %v5714
    %5813 = vst [vmem:[#allocation3 + $0x1430] sm:$0xff] %v5715
    %5814 = vst [vmem:[#allocation3 + $0x1478] sm:$0xff] %v5716
    %5815 = vst [vmem:[#allocation3 + $0x14c0] sm:$0xff] %v5717
    %5816 = vst [vmem:[#allocation3 + $0x1508] sm:$0xff] %v5718
    %5817 = vst [vmem:[#allocation3 + $0x1550] sm:$0xff] %v5719
    %5818 = vst [vmem:[#allocation3 + $0x1598] sm:$0xff] %v5720
    %5819 = vst [vmem:[#allocation3 + $0x15e0] sm:$0xff] %v5721
    %5820 = vst [vmem:[#allocation3 + $0x1628] sm:$0xff] %v5722
    %5821 = vst [vmem:[#allocation3 + $0x1670] sm:$0xff] %v5723
    %5822 = vst [vmem:[#allocation3 + $0x16b8] sm:$0xff] %v5724
    %5823 = vst [vmem:[#allocation3 + $0x1700] sm:$0xff] %v5725
    %5824 = vst [vmem:[#allocation3 + $0x1748] sm:$0xff] %v5726
    %5825 = vst [vmem:[#allocation3 + $0x1790] sm:$0xff] %v5727
    %5826 = vst [vmem:[#allocation3 + $0x17d8] sm:$0xff] %v5728
    %5827 = vst [vmem:[#allocation3 + $0x1820] sm:$0xff] %v5729
    %5828 = vst [vmem:[#allocation3 + $0x1868] sm:$0xff] %v5730
    %5829 = vst [vmem:[#allocation3 + $0x18b0] sm:$0xff] %v5731
    %5830 = vst [vmem:[#allocation3 + $0x18f8] sm:$0xff] %v5732
    %5831 = vst [vmem:[#allocation3 + $0x1940] sm:$0xff] %v5733
    %5832 = vst [vmem:[#allocation3 + $0x1988] sm:$0xff] %v5734
    %5833 = vst [vmem:[#allocation3 + $0x19d0] sm:$0xff] %v5735
    %5834 = vst [vmem:[#allocation3 + $0x1a18] sm:$0xff] %v5736
    %5835 = vst [vmem:[#allocation3 + $0x1a60] sm:$0xff] %v5737
    %5836 = vst [vmem:[#allocation3 + $0x1aa8] sm:$0xff] %v5738
    %5837 = vst [vmem:[#allocation3 + $0x1af0] sm:$0xff] %v5739
    %5838 = vst [vmem:[#allocation3 + $0x1b38] sm:$0xff] %v5740
    %5839 = vst [vmem:[#allocation3 + $0x1b80] sm:$0xff] %v5741
    %v5840 = vld [vmem:[#allocation2 + $0x3d] sm:$0xff]
    %v5841 = vld [vmem:[#allocation2 + $0x45] sm:$0xff]
    %v5842 = vld [vmem:[#allocation2 + $0x4d] sm:$0xff]
    %v5843 = vld [vmem:[#allocation2 + $0x55] sm:$0xff]
    %v5844 = vld [vmem:[#allocation2 + $0x5d] sm:$0xff]
    %v5845 = vld [vmem:[#allocation2 + $0x65] sm:$0xff]
    %v5846 = vld [vmem:[#allocation2 + $0x6d] sm:$0xff]
    %v5847 = vld [vmem:[#allocation2 + $0x75] sm:$0xff]
    %v5848 = vld [vmem:[#allocation2 + $0x7d] sm:$0xff]
    %v5849 = vld [vmem:[#allocation2 + $0x85] sm:$0xff]
    %v5850 = vld [vmem:[#allocation2 + $0x8d] sm:$0xff]
    %v5851 = vld [vmem:[#allocation2 + $0x95] sm:$0xff]
    %v5852 = vld [vmem:[#allocation2 + $0x9d] sm:$0xff]
    %v5853 = vld [vmem:[#allocation2 + $0xa5] sm:$0xff]
    %v5854 = vld [vmem:[#allocation2 + $0xad] sm:$0xff]
    %v5855 = vld [vmem:[#allocation2 + $0xb5] sm:$0xff]
    %v5856 = vld [vmem:[#allocation2 + $0xbd] sm:$0xff]
    %v5857 = vld [vmem:[#allocation2 + $0xc5] sm:$0xff]
    %v5858 = vld [vmem:[#allocation2 + $0xcd] sm:$0xff]
    %v5859 = vld [vmem:[#allocation2 + $0xd5] sm:$0xff]
    %v5860 = vld [vmem:[#allocation2 + $0xdd] sm:$0xff]
    %v5861 = vld [vmem:[#allocation2 + $0xe5] sm:$0xff]
    %v5862 = vld [vmem:[#allocation2 + $0xed] sm:$0xff]
    %v5863 = vld [vmem:[#allocation2 + $0xf5] sm:$0xff]
    %v5864 = vld [vmem:[#allocation2 + $0xfd] sm:$0xff]
    %v5865 = vld [vmem:[#allocation2 + $0x105] sm:$0xff]
    %v5866 = vld [vmem:[#allocation2 + $0x10d] sm:$0xff]
    %v5867 = vld [vmem:[#allocation2 + $0x115] sm:$0xff]
    %v5868 = vld [vmem:[#allocation2 + $0x11d] sm:$0xff]
    %v5869 = vld [vmem:[#allocation2 + $0x125] sm:$0xff]
    %v5870 = vld [vmem:[#allocation2 + $0x12d] sm:$0xff]
    %v5871 = vld [vmem:[#allocation2 + $0x135] sm:$0xff]
    %v5872 = vld [vmem:[#allocation2 + $0x13d] sm:$0xff]
    %v5873 = vld [vmem:[#allocation2 + $0x145] sm:$0xff]
    %v5874 = vld [vmem:[#allocation2 + $0x14d] sm:$0xff]
    %v5875 = vld [vmem:[#allocation2 + $0x155] sm:$0xff]
    %v5876 = vld [vmem:[#allocation2 + $0x15d] sm:$0xff]
    %v5877 = vld [vmem:[#allocation2 + $0x165] sm:$0xff]
    %v5878 = vld [vmem:[#allocation2 + $0x16d] sm:$0xff]
    %v5879 = vld [vmem:[#allocation2 + $0x175] sm:$0xff]
    %v5880 = vld [vmem:[#allocation2 + $0x17d] sm:$0xff]
    %v5881 = vld [vmem:[#allocation2 + $0x185] sm:$0xff]
    %v5882 = vld [vmem:[#allocation2 + $0x18d] sm:$0xff]
    %v5883 = vld [vmem:[#allocation2 + $0x195] sm:$0xff]
    %v5884 = vld [vmem:[#allocation2 + $0x19d] sm:$0xff]
    %v5885 = vld [vmem:[#allocation2 + $0x1a5] sm:$0xff]
    %v5886 = vld [vmem:[#allocation2 + $0x1ad] sm:$0xff]
    %v5887 = vld [vmem:[#allocation2 + $0x1b5] sm:$0xff]
    %v5888 = vld [vmem:[#allocation2 + $0x1bd] sm:$0xff]
    %v5889 = vld [vmem:[#allocation2 + $0x1c5] sm:$0xff]
    %v5890 = vld [vmem:[#allocation2 + $0x1cd] sm:$0xff]
    %v5891 = vld [vmem:[#allocation2 + $0x1d5] sm:$0xff]
    %v5892 = vld [vmem:[#allocation2 + $0x1dd] sm:$0xff]
    %v5893 = vld [vmem:[#allocation2 + $0x1e5] sm:$0xff]
    %v5894 = vld [vmem:[#allocation2 + $0x1ed] sm:$0xff]
    %v5895 = vld [vmem:[#allocation2 + $0x1f5] sm:$0xff]
    %v5896 = vld [vmem:[#allocation2 + $0x1fd] sm:$0xff]
    %v5897 = vld [vmem:[#allocation2 + $0x205] sm:$0xff]
    %v5898 = vld [vmem:[#allocation2 + $0x20d] sm:$0xff]
    %v5899 = vld [vmem:[#allocation2 + $0x215] sm:$0xff]
    %v5900 = vld [vmem:[#allocation2 + $0x21d] sm:$0xff]
    %v5901 = vld [vmem:[#allocation2 + $0x225] sm:$0xff]
    %v5902 = vld [vmem:[#allocation2 + $0x22d] sm:$0xff]
    %v5903 = vld [vmem:[#allocation2 + $0x235] sm:$0xff]
    %v5904 = vld [vmem:[#allocation2 + $0x23d] sm:$0xff]
    %v5905 = vld [vmem:[#allocation2 + $0x245] sm:$0xff]
    %v5906 = vld [vmem:[#allocation2 + $0x24d] sm:$0xff]
    %v5907 = vld [vmem:[#allocation2 + $0x255] sm:$0xff]
    %v5908 = vld [vmem:[#allocation2 + $0x25d] sm:$0xff]
    %v5909 = vld [vmem:[#allocation2 + $0x265] sm:$0xff]
    %v5910 = vld [vmem:[#allocation2 + $0x26d] sm:$0xff]
    %v5911 = vld [vmem:[#allocation2 + $0x275] sm:$0xff]
    %v5912 = vld [vmem:[#allocation2 + $0x27d] sm:$0xff]
    %v5913 = vld [vmem:[#allocation2 + $0x285] sm:$0xff]
    %v5914 = vld [vmem:[#allocation2 + $0x28d] sm:$0xff]
    %v5915 = vld [vmem:[#allocation2 + $0x295] sm:$0xff]
    %v5916 = vld [vmem:[#allocation2 + $0x29d] sm:$0xff]
    %v5917 = vld [vmem:[#allocation2 + $0x2a5] sm:$0xff]
    %v5918 = vld [vmem:[#allocation2 + $0x2ad] sm:$0xff]
    %v5919 = vld [vmem:[#allocation2 + $0x2b5] sm:$0xff]
    %v5920 = vld [vmem:[#allocation2 + $0x2bd] sm:$0xff]
    %v5921 = vld [vmem:[#allocation2 + $0x2c5] sm:$0xff]
    %v5922 = vld [vmem:[#allocation2 + $0x2cd] sm:$0xff]
    %v5923 = vld [vmem:[#allocation2 + $0x2d5] sm:$0xff]
    %v5924 = vld [vmem:[#allocation2 + $0x2dd] sm:$0xff]
    %v5925 = vld [vmem:[#allocation2 + $0x2e5] sm:$0xff]
    %v5926 = vld [vmem:[#allocation2 + $0x2ed] sm:$0xff]
    %v5927 = vld [vmem:[#allocation2 + $0x2f5] sm:$0xff]
    %v5928 = vld [vmem:[#allocation2 + $0x2fd] sm:$0xff]
    %v5929 = vld [vmem:[#allocation2 + $0x305] sm:$0xff]
    %v5930 = vld [vmem:[#allocation2 + $0x30d] sm:$0xff]
    %v5931 = vld [vmem:[#allocation2 + $0x315] sm:$0xff]
    %v5932 = vld [vmem:[#allocation2 + $0x31d] sm:$0xff]
    %v5933 = vld [vmem:[#allocation2 + $0x325] sm:$0xff]
    %v5934 = vld [vmem:[#allocation2 + $0x32d] sm:$0xff]
    %v5935 = vld [vmem:[#allocation2 + $0x335] sm:$0xff]
    %v5936 = vld [vmem:[#allocation2 + $0x33d] sm:$0xff]
    %v5937 = vld [vmem:[#allocation2 + $0x345] sm:$0xff]
    %v5938 = vsel %vm4272, %v5840, 0.0
    %v5939 = vsel %vm4273, %v5841, 0.0
    %v5940 = vsel %vm4274, %v5842, 0.0
    %v5941 = vsel %vm4275, %v5843, 0.0
    %v5942 = vsel %vm4276, %v5844, 0.0
    %v5943 = vsel %vm4277, %v5845, 0.0
    %v5944 = vsel %vm4278, %v5846, 0.0
    %v5945 = vsel %vm4279, %v5847, 0.0
    %v5946 = vsel %vm4280, %v5848, 0.0
    %v5947 = vsel %vm4281, %v5849, 0.0
    %v5948 = vsel %vm4282, %v5850, 0.0
    %v5949 = vsel %vm4283, %v5851, 0.0
    %v5950 = vsel %vm4284, %v5852, 0.0
    %v5951 = vsel %vm4285, %v5853, 0.0
    %v5952 = vsel %vm4286, %v5854, 0.0
    %v5953 = vsel %vm4287, %v5855, 0.0
    %v5954 = vsel %vm4288, %v5856, 0.0
    %v5955 = vsel %vm4289, %v5857, 0.0
    %v5956 = vsel %vm4290, %v5858, 0.0
    %v5957 = vsel %vm4291, %v5859, 0.0
    %v5958 = vsel %vm4292, %v5860, 0.0
    %v5959 = vsel %vm4293, %v5861, 0.0
    %v5960 = vsel %vm4294, %v5862, 0.0
    %v5961 = vsel %vm4295, %v5863, 0.0
    %v5962 = vsel %vm4296, %v5864, 0.0
    %v5963 = vsel %vm4297, %v5865, 0.0
    %v5964 = vsel %vm4298, %v5866, 0.0
    %v5965 = vsel %vm4299, %v5867, 0.0
    %v5966 = vsel %vm4300, %v5868, 0.0
    %v5967 = vsel %vm4301, %v5869, 0.0
    %v5968 = vsel %vm4302, %v5870, 0.0
    %v5969 = vsel %vm4303, %v5871, 0.0
    %v5970 = vsel %vm4304, %v5872, 0.0
    %v5971 = vsel %vm4305, %v5873, 0.0
    %v5972 = vsel %vm4306, %v5874, 0.0
    %v5973 = vsel %vm4307, %v5875, 0.0
    %v5974 = vsel %vm4308, %v5876, 0.0
    %v5975 = vsel %vm4309, %v5877, 0.0
    %v5976 = vsel %vm4310, %v5878, 0.0
    %v5977 = vsel %vm4311, %v5879, 0.0
    %v5978 = vsel %vm4312, %v5880, 0.0
    %v5979 = vsel %vm4313, %v5881, 0.0
    %v5980 = vsel %vm4314, %v5882, 0.0
    %v5981 = vsel %vm4315, %v5883, 0.0
    %v5982 = vsel %vm4316, %v5884, 0.0
    %v5983 = vsel %vm4317, %v5885, 0.0
    %v5984 = vsel %vm4318, %v5886, 0.0
    %v5985 = vsel %vm4319, %v5887, 0.0
    %v5986 = vsel %vm4320, %v5888, 0.0
    %v5987 = vsel %vm4321, %v5889, 0.0
    %v5988 = vsel %vm4322, %v5890, 0.0
    %v5989 = vsel %vm4323, %v5891, 0.0
    %v5990 = vsel %vm4324, %v5892, 0.0
    %v5991 = vsel %vm4325, %v5893, 0.0
    %v5992 = vsel %vm4326, %v5894, 0.0
    %v5993 = vsel %vm4327, %v5895, 0.0
    %v5994 = vsel %vm4328, %v5896, 0.0
    %v5995 = vsel %vm4329, %v5897, 0.0
    %v5996 = vsel %vm4330, %v5898, 0.0
    %v5997 = vsel %vm4331, %v5899, 0.0
    %v5998 = vsel %vm4332, %v5900, 0.0
    %v5999 = vsel %vm4333, %v5901, 0.0
    %v6000 = vsel %vm4334, %v5902, 0.0
    %v6001 = vsel %vm4335, %v5903, 0.0
    %v6002 = vsel %vm4336, %v5904, 0.0
    %v6003 = vsel %vm4337, %v5905, 0.0
    %v6004 = vsel %vm4338, %v5906, 0.0
    %v6005 = vsel %vm4339, %v5907, 0.0
    %v6006 = vsel %vm4340, %v5908, 0.0
    %v6007 = vsel %vm4341, %v5909, 0.0
    %v6008 = vsel %vm4342, %v5910, 0.0
    %v6009 = vsel %vm4343, %v5911, 0.0
    %v6010 = vsel %vm4344, %v5912, 0.0
    %v6011 = vsel %vm4345, %v5913, 0.0
    %v6012 = vsel %vm4346, %v5914, 0.0
    %v6013 = vsel %vm4347, %v5915, 0.0
    %v6014 = vsel %vm4348, %v5916, 0.0
    %v6015 = vsel %vm4349, %v5917, 0.0
    %v6016 = vsel %vm4350, %v5918, 0.0
    %v6017 = vsel %vm4351, %v5919, 0.0
    %v6018 = vsel %vm4352, %v5920, 0.0
    %v6019 = vsel %vm4353, %v5921, 0.0
    %v6020 = vsel %vm4354, %v5922, 0.0
    %v6021 = vsel %vm4355, %v5923, 0.0
    %v6022 = vsel %vm4356, %v5924, 0.0
    %v6023 = vsel %vm4357, %v5925, 0.0
    %v6024 = vsel %vm4358, %v5926, 0.0
    %v6025 = vsel %vm4359, %v5927, 0.0
    %v6026 = vsel %vm4360, %v5928, 0.0
    %v6027 = vsel %vm4361, %v5929, 0.0
    %v6028 = vsel %vm4362, %v5930, 0.0
    %v6029 = vsel %vm4363, %v5931, 0.0
    %v6030 = vsel %vm4364, %v5932, 0.0
    %v6031 = vsel %vm4365, %v5933, 0.0
    %v6032 = vsel %vm4366, %v5934, 0.0
    %v6033 = vsel %vm4367, %v5935, 0.0
    %v6034 = vsel %vm4368, %v5936, 0.0
    %v6035 = vsel %vm4369, %v5937, 0.0
    %6036 = vst [vmem:[#allocation3 + $0x40] sm:$0xff] %v5938
    %6037 = vst [vmem:[#allocation3 + $0x88] sm:$0xff] %v5939
    %6038 = vst [vmem:[#allocation3 + $0xd0] sm:$0xff] %v5940
    %6039 = vst [vmem:[#allocation3 + $0x118] sm:$0xff] %v5941
    %6040 = vst [vmem:[#allocation3 + $0x160] sm:$0xff] %v5942
    %6041 = vst [vmem:[#allocation3 + $0x1a8] sm:$0xff] %v5943
    %6042 = vst [vmem:[#allocation3 + $0x1f0] sm:$0xff] %v5944
    %6043 = vst [vmem:[#allocation3 + $0x238] sm:$0xff] %v5945
    %6044 = vst [vmem:[#allocation3 + $0x280] sm:$0xff] %v5946
    %6045 = vst [vmem:[#allocation3 + $0x2c8] sm:$0xff] %v5947
    %6046 = vst [vmem:[#allocation3 + $0x310] sm:$0xff] %v5948
    %6047 = vst [vmem:[#allocation3 + $0x358] sm:$0xff] %v5949
    %6048 = vst [vmem:[#allocation3 + $0x3a0] sm:$0xff] %v5950
    %6049 = vst [vmem:[#allocation3 + $0x3e8] sm:$0xff] %v5951
    %6050 = vst [vmem:[#allocation3 + $0x430] sm:$0xff] %v5952
    %6051 = vst [vmem:[#allocation3 + $0x478] sm:$0xff] %v5953
    %6052 = vst [vmem:[#allocation3 + $0x4c0] sm:$0xff] %v5954
    %6053 = vst [vmem:[#allocation3 + $0x508] sm:$0xff] %v5955
    %6054 = vst [vmem:[#allocation3 + $0x550] sm:$0xff] %v5956
    %6055 = vst [vmem:[#allocation3 + $0x598] sm:$0xff] %v5957
    %6056 = vst [vmem:[#allocation3 + $0x5e0] sm:$0xff] %v5958
    %6057 = vst [vmem:[#allocation3 + $0x628] sm:$0xff] %v5959
    %6058 = vst [vmem:[#allocation3 + $0x670] sm:$0xff] %v5960
    %6059 = vst [vmem:[#allocation3 + $0x6b8] sm:$0xff] %v5961
    %6060 = vst [vmem:[#allocation3 + $0x700] sm:$0xff] %v5962
    %6061 = vst [vmem:[#allocation3 + $0x748] sm:$0xff] %v5963
    %6062 = vst [vmem:[#allocation3 + $0x790] sm:$0xff] %v5964
    %6063 = vst [vmem:[#allocation3 + $0x7d8] sm:$0xff] %v5965
    %6064 = vst [vmem:[#allocation3 + $0x820] sm:$0xff] %v5966
    %6065 = vst [vmem:[#allocation3 + $0x868] sm:$0xff] %v5967
    %6066 = vst [vmem:[#allocation3 + $0x8b0] sm:$0xff] %v5968
    %6067 = vst [vmem:[#allocation3 + $0x8f8] sm:$0xff] %v5969
    %6068 = vst [vmem:[#allocation3 + $0x940] sm:$0xff] %v5970
    %6069 = vst [vmem:[#allocation3 + $0x988] sm:$0xff] %v5971
    %6070 = vst [vmem:[#allocation3 + $0x9d0] sm:$0xff] %v5972
    %6071 = vst [vmem:[#allocation3 + $0xa18] sm:$0xff] %v5973
    %6072 = vst [vmem:[#allocation3 + $0xa60] sm:$0xff] %v5974
    %6073 = vst [vmem:[#allocation3 + $0xaa8] sm:$0xff] %v5975
    %6074 = vst [vmem:[#allocation3 + $0xaf0] sm:$0xff] %v5976
    %6075 = vst [vmem:[#allocation3 + $0xb38] sm:$0xff] %v5977
    %6076 = vst [vmem:[#allocation3 + $0xb80] sm:$0xff] %v5978
    %6077 = vst [vmem:[#allocation3 + $0xbc8] sm:$0xff] %v5979
    %6078 = vst [vmem:[#allocation3 + $0xc10] sm:$0xff] %v5980
    %6079 = vst [vmem:[#allocation3 + $0xc58] sm:$0xff] %v5981
    %6080 = vst [vmem:[#allocation3 + $0xca0] sm:$0xff] %v5982
    %6081 = vst [vmem:[#allocation3 + $0xce8] sm:$0xff] %v5983
    %6082 = vst [vmem:[#allocation3 + $0xd30] sm:$0xff] %v5984
    %6083 = vst [vmem:[#allocation3 + $0xd78] sm:$0xff] %v5985
    %6084 = vst [vmem:[#allocation3 + $0xdc0] sm:$0xff] %v5986
    %6085 = vst [vmem:[#allocation3 + $0xe08] sm:$0xff] %v5987
    %6086 = vst [vmem:[#allocation3 + $0xe50] sm:$0xff] %v5988
    %6087 = vst [vmem:[#allocation3 + $0xe98] sm:$0xff] %v5989
    %6088 = vst [vmem:[#allocation3 + $0xee0] sm:$0xff] %v5990
    %6089 = vst [vmem:[#allocation3 + $0xf28] sm:$0xff] %v5991
    %6090 = vst [vmem:[#allocation3 + $0xf70] sm:$0xff] %v5992
    %6091 = vst [vmem:[#allocation3 + $0xfb8] sm:$0xff] %v5993
    %6092 = vst [vmem:[#allocation3 + $0x1000] sm:$0xff] %v5994
    %6093 = vst [vmem:[#allocation3 + $0x1048] sm:$0xff] %v5995
    %6094 = vst [vmem:[#allocation3 + $0x1090] sm:$0xff] %v5996
    %6095 = vst [vmem:[#allocation3 + $0x10d8] sm:$0xff] %v5997
    %6096 = vst [vmem:[#allocation3 + $0x1120] sm:$0xff] %v5998
    %6097 = vst [vmem:[#allocation3 + $0x1168] sm:$0xff] %v5999
    %6098 = vst [vmem:[#allocation3 + $0x11b0] sm:$0xff] %v6000
    %6099 = vst [vmem:[#allocation3 + $0x11f8] sm:$0xff] %v6001
    %6100 = vst [vmem:[#allocation3 + $0x1240] sm:$0xff] %v6002
    %6101 = vst [vmem:[#allocation3 + $0x1288] sm:$0xff] %v6003
    %6102 = vst [vmem:[#allocation3 + $0x12d0] sm:$0xff] %v6004
    %6103 = vst [vmem:[#allocation3 + $0x1318] sm:$0xff] %v6005
    %6104 = vst [vmem:[#allocation3 + $0x1360] sm:$0xff] %v6006
    %6105 = vst [vmem:[#allocation3 + $0x13a8] sm:$0xff] %v6007
    %6106 = vst [vmem:[#allocation3 + $0x13f0] sm:$0xff] %v6008
    %6107 = vst [vmem:[#allocation3 + $0x1438] sm:$0xff] %v6009
    %6108 = vst [vmem:[#allocation3 + $0x1480] sm:$0xff] %v6010
    %6109 = vst [vmem:[#allocation3 + $0x14c8] sm:$0xff] %v6011
    %6110 = vst [vmem:[#allocation3 + $0x1510] sm:$0xff] %v6012
    %6111 = vst [vmem:[#allocation3 + $0x1558] sm:$0xff] %v6013
    %6112 = vst [vmem:[#allocation3 + $0x15a0] sm:$0xff] %v6014
    %6113 = vst [vmem:[#allocation3 + $0x15e8] sm:$0xff] %v6015
    %6114 = vst [vmem:[#allocation3 + $0x1630] sm:$0xff] %v6016
    %6115 = vst [vmem:[#allocation3 + $0x1678] sm:$0xff] %v6017
    %6116 = vst [vmem:[#allocation3 + $0x16c0] sm:$0xff] %v6018
    %6117 = vst [vmem:[#allocation3 + $0x1708] sm:$0xff] %v6019
    %6118 = vst [vmem:[#allocation3 + $0x1750] sm:$0xff] %v6020
    %6119 = vst [vmem:[#allocation3 + $0x1798] sm:$0xff] %v6021
    %6120 = vst [vmem:[#allocation3 + $0x17e0] sm:$0xff] %v6022
    %6121 = vst [vmem:[#allocation3 + $0x1828] sm:$0xff] %v6023
    %6122 = vst [vmem:[#allocation3 + $0x1870] sm:$0xff] %v6024
    %6123 = vst [vmem:[#allocation3 + $0x18b8] sm:$0xff] %v6025
    %6124 = vst [vmem:[#allocation3 + $0x1900] sm:$0xff] %v6026
    %6125 = vst [vmem:[#allocation3 + $0x1948] sm:$0xff] %v6027
    %6126 = vst [vmem:[#allocation3 + $0x1990] sm:$0xff] %v6028
    %6127 = vst [vmem:[#allocation3 + $0x19d8] sm:$0xff] %v6029
    %6128 = vst [vmem:[#allocation3 + $0x1a20] sm:$0xff] %v6030
    %6129 = vst [vmem:[#allocation3 + $0x1a68] sm:$0xff] %v6031
    %6130 = vst [vmem:[#allocation3 + $0x1ab0] sm:$0xff] %v6032
    %6131 = vst [vmem:[#allocation3 + $0x1af8] sm:$0xff] %v6033
    %6132 = vst [vmem:[#allocation3 + $0x1b40] sm:$0xff] %v6034
    %6133 = vst [vmem:[#allocation3 + $0x1b88] sm:$0xff] %v6035
    %v6134 = vld [vmem:[#allocation3] sm:$0xff]
    %v6135 = vld [vmem:[#allocation3 + $0x8] sm:$0xff]
    %v6136 = vld [vmem:[#allocation3 + $0x10] sm:$0xff]
    %v6137 = vld [vmem:[#allocation3 + $0x18] sm:$0xff]
    %v6138 = vld [vmem:[#allocation3 + $0x20] sm:$0xff]
    %v6139 = vld [vmem:[#allocation3 + $0x28] sm:$0xff]
    %v6140 = vld [vmem:[#allocation3 + $0x30] sm:$0xff]
    %v6141 = vld [vmem:[#allocation3 + $0x38] sm:$0xff]
    %v6142 = vld [vmem:[#allocation3 + $0x40] sm:$0xff]
    %v6143 = vld [vmem:[#allocation3 + $0x48] sm:$0xff]
    %v6144 = vld [vmem:[#allocation3 + $0x50] sm:$0xff]
    %v6145 = vld [vmem:[#allocation3 + $0x58] sm:$0xff]
    %v6146 = vld [vmem:[#allocation3 + $0x60] sm:$0xff]
    %v6147 = vld [vmem:[#allocation3 + $0x68] sm:$0xff]
    %v6148 = vld [vmem:[#allocation3 + $0x70] sm:$0xff]
    %v6149 = vld [vmem:[#allocation3 + $0x78] sm:$0xff]
    %v6150 = vld [vmem:[#allocation3 + $0x80] sm:$0xff]
    %v6151 = vld [vmem:[#allocation3 + $0x88] sm:$0xff]
    %v6152 = vld [vmem:[#allocation3 + $0x90] sm:$0xff]
    %v6153 = vld [vmem:[#allocation3 + $0x98] sm:$0xff]
    %v6154 = vld [vmem:[#allocation3 + $0xa0] sm:$0xff]
    %v6155 = vld [vmem:[#allocation3 + $0xa8] sm:$0xff]
    %v6156 = vld [vmem:[#allocation3 + $0xb0] sm:$0xff]
    %v6157 = vld [vmem:[#allocation3 + $0xb8] sm:$0xff]
    %v6158 = vld [vmem:[#allocation3 + $0xc0] sm:$0xff]
    %v6159 = vld [vmem:[#allocation3 + $0xc8] sm:$0xff]
    %v6160 = vld [vmem:[#allocation3 + $0xd0] sm:$0xff]
    %v6161 = vld [vmem:[#allocation3 + $0xd8] sm:$0xff]
    %v6162 = vld [vmem:[#allocation3 + $0xe0] sm:$0xff]
    %v6163 = vld [vmem:[#allocation3 + $0xe8] sm:$0xff]
    %v6164 = vld [vmem:[#allocation3 + $0xf0] sm:$0xff]
    %v6165 = vld [vmem:[#allocation3 + $0xf8] sm:$0xff]
    %v6166 = vld [vmem:[#allocation3 + $0x100] sm:$0xff]
    %v6167 = vld [vmem:[#allocation3 + $0x108] sm:$0xff]
    %v6168 = vld [vmem:[#allocation3 + $0x110] sm:$0xff]
    %v6169 = vld [vmem:[#allocation3 + $0x118] sm:$0xff]
    %v6170 = vld [vmem:[#allocation3 + $0x120] sm:$0xff]
    %v6171 = vld [vmem:[#allocation3 + $0x128] sm:$0xff]
    %v6172 = vld [vmem:[#allocation3 + $0x130] sm:$0xff]
    %v6173 = vld [vmem:[#allocation3 + $0x138] sm:$0xff]
    %v6174 = vld [vmem:[#allocation3 + $0x140] sm:$0xff]
    %v6175 = vld [vmem:[#allocation3 + $0x148] sm:$0xff]
    %v6176 = vld [vmem:[#allocation3 + $0x150] sm:$0xff]
    %v6177 = vld [vmem:[#allocation3 + $0x158] sm:$0xff]
    %v6178 = vld [vmem:[#allocation3 + $0x160] sm:$0xff]
    %v6179 = vld [vmem:[#allocation3 + $0x168] sm:$0xff]
    %v6180 = vld [vmem:[#allocation3 + $0x170] sm:$0xff]
    %v6181 = vld [vmem:[#allocation3 + $0x178] sm:$0xff]
    %v6182 = vld [vmem:[#allocation3 + $0x180] sm:$0xff]
    %v6183 = vld [vmem:[#allocation3 + $0x188] sm:$0xff]
    %v6184 = vld [vmem:[#allocation3 + $0x190] sm:$0xff]
    %v6185 = vld [vmem:[#allocation3 + $0x198] sm:$0xff]
    %v6186 = vld [vmem:[#allocation3 + $0x1a0] sm:$0xff]
    %v6187 = vld [vmem:[#allocation3 + $0x1a8] sm:$0xff]
    %v6188 = vld [vmem:[#allocation3 + $0x1b0] sm:$0xff]
    %v6189 = vld [vmem:[#allocation3 + $0x1b8] sm:$0xff]
    %v6190 = vld [vmem:[#allocation3 + $0x1c0] sm:$0xff]
    %v6191 = vld [vmem:[#allocation3 + $0x1c8] sm:$0xff]
    %v6192 = vld [vmem:[#allocation3 + $0x1d0] sm:$0xff]
    %v6193 = vld [vmem:[#allocation3 + $0x1d8] sm:$0xff]
    %v6194 = vld [vmem:[#allocation3 + $0x1e0] sm:$0xff]
    %v6195 = vld [vmem:[#allocation3 + $0x1e8] sm:$0xff]
    %v6196 = vld [vmem:[#allocation3 + $0x1f0] sm:$0xff]
    %v6197 = vld [vmem:[#allocation3 + $0x1f8] sm:$0xff]
    %v6198 = vld [vmem:[#allocation3 + $0x200] sm:$0xff]
    %v6199 = vld [vmem:[#allocation3 + $0x208] sm:$0xff]
    %v6200 = vld [vmem:[#allocation3 + $0x210] sm:$0xff]
    %v6201 = vld [vmem:[#allocation3 + $0x218] sm:$0xff]
    %v6202 = vld [vmem:[#allocation3 + $0x220] sm:$0xff]
    %v6203 = vld [vmem:[#allocation3 + $0x228] sm:$0xff]
    %v6204 = vld [vmem:[#allocation3 + $0x230] sm:$0xff]
    %v6205 = vld [vmem:[#allocation3 + $0x238] sm:$0xff]
    %v6206 = vld [vmem:[#allocation3 + $0x240] sm:$0xff]
    %v6207 = vld [vmem:[#allocation3 + $0x248] sm:$0xff]
    %v6208 = vld [vmem:[#allocation3 + $0x250] sm:$0xff]
    %v6209 = vld [vmem:[#allocation3 + $0x258] sm:$0xff]
    %v6210 = vld [vmem:[#allocation3 + $0x260] sm:$0xff]
    %v6211 = vld [vmem:[#allocation3 + $0x268] sm:$0xff]
    %v6212 = vld [vmem:[#allocation3 + $0x270] sm:$0xff]
    %v6213 = vld [vmem:[#allocation3 + $0x278] sm:$0xff]
    %v6214 = vld [vmem:[#allocation3 + $0x280] sm:$0xff]
    %v6215 = vld [vmem:[#allocation3 + $0x288] sm:$0xff]
    %v6216 = vld [vmem:[#allocation3 + $0x290] sm:$0xff]
    %v6217 = vld [vmem:[#allocation3 + $0x298] sm:$0xff]
    %v6218 = vld [vmem:[#allocation3 + $0x2a0] sm:$0xff]
    %v6219 = vld [vmem:[#allocation3 + $0x2a8] sm:$0xff]
    %v6220 = vld [vmem:[#allocation3 + $0x2b0] sm:$0xff]
    %v6221 = vld [vmem:[#allocation3 + $0x2b8] sm:$0xff]
    %v6222 = vld [vmem:[#allocation3 + $0x2c0] sm:$0xff]
    %v6223 = vld [vmem:[#allocation3 + $0x2c8] sm:$0xff]
    %v6224 = vld [vmem:[#allocation3 + $0x2d0] sm:$0xff]
    %v6225 = vld [vmem:[#allocation3 + $0x2d8] sm:$0xff]
    %v6226 = vld [vmem:[#allocation3 + $0x2e0] sm:$0xff]
    %v6227 = vld [vmem:[#allocation3 + $0x2e8] sm:$0xff]
    %v6228 = vld [vmem:[#allocation3 + $0x2f0] sm:$0xff]
    %v6229 = vld [vmem:[#allocation3 + $0x2f8] sm:$0xff]
    %v6230 = vld [vmem:[#allocation3 + $0x300] sm:$0xff]
    %v6231 = vld [vmem:[#allocation3 + $0x308] sm:$0xff]
    %v6232 = vld [vmem:[#allocation3 + $0x310] sm:$0xff]
    %v6233 = vld [vmem:[#allocation3 + $0x318] sm:$0xff]
    %v6234 = vld [vmem:[#allocation3 + $0x320] sm:$0xff]
    %v6235 = vld [vmem:[#allocation3 + $0x328] sm:$0xff]
    %v6236 = vld [vmem:[#allocation3 + $0x330] sm:$0xff]
    %v6237 = vld [vmem:[#allocation3 + $0x338] sm:$0xff]
    %v6238 = vld [vmem:[#allocation3 + $0x340] sm:$0xff]
    %v6239 = vld [vmem:[#allocation3 + $0x348] sm:$0xff]
    %v6240 = vld [vmem:[#allocation3 + $0x350] sm:$0xff]
    %v6241 = vld [vmem:[#allocation3 + $0x358] sm:$0xff]
    %v6242 = vld [vmem:[#allocation3 + $0x360] sm:$0xff]
    %v6243 = vld [vmem:[#allocation3 + $0x368] sm:$0xff]
    %v6244 = vld [vmem:[#allocation3 + $0x370] sm:$0xff]
    %v6245 = vld [vmem:[#allocation3 + $0x378] sm:$0xff]
    %v6246 = vld [vmem:[#allocation3 + $0x380] sm:$0xff]
    %v6247 = vld [vmem:[#allocation3 + $0x388] sm:$0xff]
    %v6248 = vld [vmem:[#allocation3 + $0x390] sm:$0xff]
    %v6249 = vld [vmem:[#allocation3 + $0x398] sm:$0xff]
    %v6250 = vld [vmem:[#allocation3 + $0x3a0] sm:$0xff]
    %v6251 = vld [vmem:[#allocation3 + $0x3a8] sm:$0xff]
    %v6252 = vld [vmem:[#allocation3 + $0x3b0] sm:$0xff]
    %v6253 = vld [vmem:[#allocation3 + $0x3b8] sm:$0xff]
    %v6254 = vld [vmem:[#allocation3 + $0x3c0] sm:$0xff]
    %v6255 = vld [vmem:[#allocation3 + $0x3c8] sm:$0xff]
    %v6256 = vld [vmem:[#allocation3 + $0x3d0] sm:$0xff]
    %v6257 = vld [vmem:[#allocation3 + $0x3d8] sm:$0xff]
    %v6258 = vld [vmem:[#allocation3 + $0x3e0] sm:$0xff]
    %v6259 = vld [vmem:[#allocation3 + $0x3e8] sm:$0xff]
    %v6260 = vld [vmem:[#allocation3 + $0x3f0] sm:$0xff]
    %v6261 = vld [vmem:[#allocation3 + $0x3f8] sm:$0xff]
    %v6262 = vld [vmem:[#allocation3 + $0x400] sm:$0xff]
    %v6263 = vld [vmem:[#allocation3 + $0x408] sm:$0xff]
    %v6264 = vld [vmem:[#allocation3 + $0x410] sm:$0xff]
    %v6265 = vld [vmem:[#allocation3 + $0x418] sm:$0xff]
    %v6266 = vld [vmem:[#allocation3 + $0x420] sm:$0xff]
    %v6267 = vld [vmem:[#allocation3 + $0x428] sm:$0xff]
    %v6268 = vld [vmem:[#allocation3 + $0x430] sm:$0xff]
    %v6269 = vld [vmem:[#allocation3 + $0x438] sm:$0xff]
    %v6270 = vld [vmem:[#allocation3 + $0x440] sm:$0xff]
    %v6271 = vld [vmem:[#allocation3 + $0x448] sm:$0xff]
    %v6272 = vld [vmem:[#allocation3 + $0x450] sm:$0xff]
    %v6273 = vld [vmem:[#allocation3 + $0x458] sm:$0xff]
    %v6274 = vld [vmem:[#allocation3 + $0x460] sm:$0xff]
    %v6275 = vld [vmem:[#allocation3 + $0x468] sm:$0xff]
    %v6276 = vld [vmem:[#allocation3 + $0x470] sm:$0xff]
    %v6277 = vld [vmem:[#allocation3 + $0x478] sm:$0xff]
    %v6278 = vld [vmem:[#allocation3 + $0x480] sm:$0xff]
    %v6279 = vld [vmem:[#allocation3 + $0x488] sm:$0xff]
    %v6280 = vld [vmem:[#allocation3 + $0x490] sm:$0xff]
    %v6281 = vld [vmem:[#allocation3 + $0x498] sm:$0xff]
    %v6282 = vld [vmem:[#allocation3 + $0x4a0] sm:$0xff]
    %v6283 = vld [vmem:[#allocation3 + $0x4a8] sm:$0xff]
    %v6284 = vld [vmem:[#allocation3 + $0x4b0] sm:$0xff]
    %v6285 = vld [vmem:[#allocation3 + $0x4b8] sm:$0xff]
    %v6286 = vld [vmem:[#allocation3 + $0x4c0] sm:$0xff]
    %v6287 = vld [vmem:[#allocation3 + $0x4c8] sm:$0xff]
    %v6288 = vld [vmem:[#allocation3 + $0x4d0] sm:$0xff]
    %v6289 = vld [vmem:[#allocation3 + $0x4d8] sm:$0xff]
    %v6290 = vld [vmem:[#allocation3 + $0x4e0] sm:$0xff]
    %v6291 = vld [vmem:[#allocation3 + $0x4e8] sm:$0xff]
    %v6292 = vld [vmem:[#allocation3 + $0x4f0] sm:$0xff]
    %v6293 = vld [vmem:[#allocation3 + $0x4f8] sm:$0xff]
    %v6294 = vld [vmem:[#allocation3 + $0x500] sm:$0xff]
    %v6295 = vld [vmem:[#allocation3 + $0x508] sm:$0xff]
    %v6296 = vld [vmem:[#allocation3 + $0x510] sm:$0xff]
    %v6297 = vld [vmem:[#allocation3 + $0x518] sm:$0xff]
    %v6298 = vld [vmem:[#allocation3 + $0x520] sm:$0xff]
    %v6299 = vld [vmem:[#allocation3 + $0x528] sm:$0xff]
    %v6300 = vld [vmem:[#allocation3 + $0x530] sm:$0xff]
    %v6301 = vld [vmem:[#allocation3 + $0x538] sm:$0xff]
    %v6302 = vld [vmem:[#allocation3 + $0x540] sm:$0xff]
    %v6303 = vld [vmem:[#allocation3 + $0x548] sm:$0xff]
    %v6304 = vld [vmem:[#allocation3 + $0x550] sm:$0xff]
    %v6305 = vld [vmem:[#allocation3 + $0x558] sm:$0xff]
    %v6306 = vld [vmem:[#allocation3 + $0x560] sm:$0xff]
    %v6307 = vld [vmem:[#allocation3 + $0x568] sm:$0xff]
    %v6308 = vld [vmem:[#allocation3 + $0x570] sm:$0xff]
    %v6309 = vld [vmem:[#allocation3 + $0x578] sm:$0xff]
    %v6310 = vld [vmem:[#allocation3 + $0x580] sm:$0xff]
    %v6311 = vld [vmem:[#allocation3 + $0x588] sm:$0xff]
    %v6312 = vld [vmem:[#allocation3 + $0x590] sm:$0xff]
    %v6313 = vld [vmem:[#allocation3 + $0x598] sm:$0xff]
    %v6314 = vld [vmem:[#allocation3 + $0x5a0] sm:$0xff]
    %v6315 = vld [vmem:[#allocation3 + $0x5a8] sm:$0xff]
    %v6316 = vld [vmem:[#allocation3 + $0x5b0] sm:$0xff]
    %v6317 = vld [vmem:[#allocation3 + $0x5b8] sm:$0xff]
    %v6318 = vld [vmem:[#allocation3 + $0x5c0] sm:$0xff]
    %v6319 = vld [vmem:[#allocation3 + $0x5c8] sm:$0xff]
    %v6320 = vld [vmem:[#allocation3 + $0x5d0] sm:$0xff]
    %v6321 = vld [vmem:[#allocation3 + $0x5d8] sm:$0xff]
    %v6322 = vld [vmem:[#allocation3 + $0x5e0] sm:$0xff]
    %v6323 = vld [vmem:[#allocation3 + $0x5e8] sm:$0xff]
    %v6324 = vld [vmem:[#allocation3 + $0x5f0] sm:$0xff]
    %v6325 = vld [vmem:[#allocation3 + $0x5f8] sm:$0xff]
    %v6326 = vld [vmem:[#allocation3 + $0x600] sm:$0xff]
    %v6327 = vld [vmem:[#allocation3 + $0x608] sm:$0xff]
    %v6328 = vld [vmem:[#allocation3 + $0x610] sm:$0xff]
    %v6329 = vld [vmem:[#allocation3 + $0x618] sm:$0xff]
    %v6330 = vld [vmem:[#allocation3 + $0x620] sm:$0xff]
    %v6331 = vld [vmem:[#allocation3 + $0x628] sm:$0xff]
    %v6332 = vld [vmem:[#allocation3 + $0x630] sm:$0xff]
    %v6333 = vld [vmem:[#allocation3 + $0x638] sm:$0xff]
    %v6334 = vld [vmem:[#allocation3 + $0x640] sm:$0xff]
    %v6335 = vld [vmem:[#allocation3 + $0x648] sm:$0xff]
    %v6336 = vld [vmem:[#allocation3 + $0x650] sm:$0xff]
    %v6337 = vld [vmem:[#allocation3 + $0x658] sm:$0xff]
    %v6338 = vld [vmem:[#allocation3 + $0x660] sm:$0xff]
    %v6339 = vld [vmem:[#allocation3 + $0x668] sm:$0xff]
    %v6340 = vld [vmem:[#allocation3 + $0x670] sm:$0xff]
    %v6341 = vld [vmem:[#allocation3 + $0x678] sm:$0xff]
    %v6342 = vld [vmem:[#allocation3 + $0x680] sm:$0xff]
    %v6343 = vld [vmem:[#allocation3 + $0x688] sm:$0xff]
    %v6344 = vld [vmem:[#allocation3 + $0x690] sm:$0xff]
    %v6345 = vld [vmem:[#allocation3 + $0x698] sm:$0xff]
    %v6346 = vld [vmem:[#allocation3 + $0x6a0] sm:$0xff]
    %v6347 = vld [vmem:[#allocation3 + $0x6a8] sm:$0xff]
    %v6348 = vld [vmem:[#allocation3 + $0x6b0] sm:$0xff]
    %v6349 = vld [vmem:[#allocation3 + $0x6b8] sm:$0xff]
    %v6350 = vld [vmem:[#allocation3 + $0x6c0] sm:$0xff]
    %v6351 = vld [vmem:[#allocation3 + $0x6c8] sm:$0xff]
    %v6352 = vld [vmem:[#allocation3 + $0x6d0] sm:$0xff]
    %v6353 = vld [vmem:[#allocation3 + $0x6d8] sm:$0xff]
    %v6354 = vld [vmem:[#allocation3 + $0x6e0] sm:$0xff]
    %v6355 = vld [vmem:[#allocation3 + $0x6e8] sm:$0xff]
    %v6356 = vld [vmem:[#allocation3 + $0x6f0] sm:$0xff]
    %v6357 = vld [vmem:[#allocation3 + $0x6f8] sm:$0xff]
    %v6358 = vld [vmem:[#allocation3 + $0x700] sm:$0xff]
    %v6359 = vld [vmem:[#allocation3 + $0x708] sm:$0xff]
    %v6360 = vld [vmem:[#allocation3 + $0x710] sm:$0xff]
    %v6361 = vld [vmem:[#allocation3 + $0x718] sm:$0xff]
    %v6362 = vld [vmem:[#allocation3 + $0x720] sm:$0xff]
    %v6363 = vld [vmem:[#allocation3 + $0x728] sm:$0xff]
    %v6364 = vld [vmem:[#allocation3 + $0x730] sm:$0xff]
    %v6365 = vld [vmem:[#allocation3 + $0x738] sm:$0xff]
    %v6366 = vld [vmem:[#allocation3 + $0x740] sm:$0xff]
    %v6367 = vld [vmem:[#allocation3 + $0x748] sm:$0xff]
    %v6368 = vld [vmem:[#allocation3 + $0x750] sm:$0xff]
    %v6369 = vld [vmem:[#allocation3 + $0x758] sm:$0xff]
    %v6370 = vld [vmem:[#allocation3 + $0x760] sm:$0xff]
    %v6371 = vld [vmem:[#allocation3 + $0x768] sm:$0xff]
    %v6372 = vld [vmem:[#allocation3 + $0x770] sm:$0xff]
    %v6373 = vld [vmem:[#allocation3 + $0x778] sm:$0xff]
    %v6374 = vld [vmem:[#allocation3 + $0x780] sm:$0xff]
    %v6375 = vld [vmem:[#allocation3 + $0x788] sm:$0xff]
    %v6376 = vld [vmem:[#allocation3 + $0x790] sm:$0xff]
    %v6377 = vld [vmem:[#allocation3 + $0x798] sm:$0xff]
    %v6378 = vld [vmem:[#allocation3 + $0x7a0] sm:$0xff]
    %v6379 = vld [vmem:[#allocation3 + $0x7a8] sm:$0xff]
    %v6380 = vld [vmem:[#allocation3 + $0x7b0] sm:$0xff]
    %v6381 = vld [vmem:[#allocation3 + $0x7b8] sm:$0xff]
    %v6382 = vld [vmem:[#allocation3 + $0x7c0] sm:$0xff]
    %v6383 = vld [vmem:[#allocation3 + $0x7c8] sm:$0xff]
    %v6384 = vld [vmem:[#allocation3 + $0x7d0] sm:$0xff]
    %v6385 = vld [vmem:[#allocation3 + $0x7d8] sm:$0xff]
    %v6386 = vld [vmem:[#allocation3 + $0x7e0] sm:$0xff]
    %v6387 = vld [vmem:[#allocation3 + $0x7e8] sm:$0xff]
    %v6388 = vld [vmem:[#allocation3 + $0x7f0] sm:$0xff]
    %v6389 = vld [vmem:[#allocation3 + $0x7f8] sm:$0xff]
    %v6390 = vld [vmem:[#allocation3 + $0x800] sm:$0xff]
    %v6391 = vld [vmem:[#allocation3 + $0x808] sm:$0xff]
    %v6392 = vld [vmem:[#allocation3 + $0x810] sm:$0xff]
    %v6393 = vld [vmem:[#allocation3 + $0x818] sm:$0xff]
    %v6394 = vld [vmem:[#allocation3 + $0x820] sm:$0xff]
    %v6395 = vld [vmem:[#allocation3 + $0x828] sm:$0xff]
    %v6396 = vld [vmem:[#allocation3 + $0x830] sm:$0xff]
    %v6397 = vld [vmem:[#allocation3 + $0x838] sm:$0xff]
    %v6398 = vld [vmem:[#allocation3 + $0x840] sm:$0xff]
    %v6399 = vld [vmem:[#allocation3 + $0x848] sm:$0xff]
    %v6400 = vld [vmem:[#allocation3 + $0x850] sm:$0xff]
    %v6401 = vld [vmem:[#allocation3 + $0x858] sm:$0xff]
    %v6402 = vld [vmem:[#allocation3 + $0x860] sm:$0xff]
    %v6403 = vld [vmem:[#allocation3 + $0x868] sm:$0xff]
    %v6404 = vld [vmem:[#allocation3 + $0x870] sm:$0xff]
    %v6405 = vld [vmem:[#allocation3 + $0x878] sm:$0xff]
    %v6406 = vld [vmem:[#allocation3 + $0x880] sm:$0xff]
    %v6407 = vld [vmem:[#allocation3 + $0x888] sm:$0xff]
    %v6408 = vld [vmem:[#allocation3 + $0x890] sm:$0xff]
    %v6409 = vld [vmem:[#allocation3 + $0x898] sm:$0xff]
    %v6410 = vld [vmem:[#allocation3 + $0x8a0] sm:$0xff]
    %v6411 = vld [vmem:[#allocation3 + $0x8a8] sm:$0xff]
    %v6412 = vld [vmem:[#allocation3 + $0x8b0] sm:$0xff]
    %v6413 = vld [vmem:[#allocation3 + $0x8b8] sm:$0xff]
    %v6414 = vld [vmem:[#allocation3 + $0x8c0] sm:$0xff]
    %v6415 = vld [vmem:[#allocation3 + $0x8c8] sm:$0xff]
    %v6416 = vld [vmem:[#allocation3 + $0x8d0] sm:$0xff]
    %v6417 = vld [vmem:[#allocation3 + $0x8d8] sm:$0xff]
    %v6418 = vld [vmem:[#allocation3 + $0x8e0] sm:$0xff]
    %v6419 = vld [vmem:[#allocation3 + $0x8e8] sm:$0xff]
    %v6420 = vld [vmem:[#allocation3 + $0x8f0] sm:$0xff]
    %v6421 = vld [vmem:[#allocation3 + $0x8f8] sm:$0xff]
    %v6422 = vld [vmem:[#allocation3 + $0x900] sm:$0xff]
    %v6423 = vld [vmem:[#allocation3 + $0x908] sm:$0xff]
    %v6424 = vld [vmem:[#allocation3 + $0x910] sm:$0xff]
    %v6425 = vld [vmem:[#allocation3 + $0x918] sm:$0xff]
    %v6426 = vld [vmem:[#allocation3 + $0x920] sm:$0xff]
    %v6427 = vld [vmem:[#allocation3 + $0x928] sm:$0xff]
    %v6428 = vld [vmem:[#allocation3 + $0x930] sm:$0xff]
    %v6429 = vld [vmem:[#allocation3 + $0x938] sm:$0xff]
    %v6430 = vld [vmem:[#allocation3 + $0x940] sm:$0xff]
    %v6431 = vld [vmem:[#allocation3 + $0x948] sm:$0xff]
    %v6432 = vld [vmem:[#allocation3 + $0x950] sm:$0xff]
    %v6433 = vld [vmem:[#allocation3 + $0x958] sm:$0xff]
    %v6434 = vld [vmem:[#allocation3 + $0x960] sm:$0xff]
    %v6435 = vld [vmem:[#allocation3 + $0x968] sm:$0xff]
    %v6436 = vld [vmem:[#allocation3 + $0x970] sm:$0xff]
    %v6437 = vld [vmem:[#allocation3 + $0x978] sm:$0xff]
    %v6438 = vld [vmem:[#allocation3 + $0x980] sm:$0xff]
    %v6439 = vld [vmem:[#allocation3 + $0x988] sm:$0xff]
    %v6440 = vld [vmem:[#allocation3 + $0x990] sm:$0xff]
    %v6441 = vld [vmem:[#allocation3 + $0x998] sm:$0xff]
    %v6442 = vld [vmem:[#allocation3 + $0x9a0] sm:$0xff]
    %v6443 = vld [vmem:[#allocation3 + $0x9a8] sm:$0xff]
    %v6444 = vld [vmem:[#allocation3 + $0x9b0] sm:$0xff]
    %v6445 = vld [vmem:[#allocation3 + $0x9b8] sm:$0xff]
    %v6446 = vld [vmem:[#allocation3 + $0x9c0] sm:$0xff]
    %v6447 = vld [vmem:[#allocation3 + $0x9c8] sm:$0xff]
    %v6448 = vld [vmem:[#allocation3 + $0x9d0] sm:$0xff]
    %v6449 = vld [vmem:[#allocation3 + $0x9d8] sm:$0xff]
    %v6450 = vld [vmem:[#allocation3 + $0x9e0] sm:$0xff]
    %v6451 = vld [vmem:[#allocation3 + $0x9e8] sm:$0xff]
    %v6452 = vld [vmem:[#allocation3 + $0x9f0] sm:$0xff]
    %v6453 = vld [vmem:[#allocation3 + $0x9f8] sm:$0xff]
    %v6454 = vld [vmem:[#allocation3 + $0xa00] sm:$0xff]
    %v6455 = vld [vmem:[#allocation3 + $0xa08] sm:$0xff]
    %v6456 = vld [vmem:[#allocation3 + $0xa10] sm:$0xff]
    %v6457 = vld [vmem:[#allocation3 + $0xa18] sm:$0xff]
    %v6458 = vld [vmem:[#allocation3 + $0xa20] sm:$0xff]
    %v6459 = vld [vmem:[#allocation3 + $0xa28] sm:$0xff]
    %v6460 = vld [vmem:[#allocation3 + $0xa30] sm:$0xff]
    %v6461 = vld [vmem:[#allocation3 + $0xa38] sm:$0xff]
    %v6462 = vld [vmem:[#allocation3 + $0xa40] sm:$0xff]
    %v6463 = vld [vmem:[#allocation3 + $0xa48] sm:$0xff]
    %v6464 = vld [vmem:[#allocation3 + $0xa50] sm:$0xff]
    %v6465 = vld [vmem:[#allocation3 + $0xa58] sm:$0xff]
    %v6466 = vld [vmem:[#allocation3 + $0xa60] sm:$0xff]
    %v6467 = vld [vmem:[#allocation3 + $0xa68] sm:$0xff]
    %v6468 = vld [vmem:[#allocation3 + $0xa70] sm:$0xff]
    %v6469 = vld [vmem:[#allocation3 + $0xa78] sm:$0xff]
    %v6470 = vld [vmem:[#allocation3 + $0xa80] sm:$0xff]
    %v6471 = vld [vmem:[#allocation3 + $0xa88] sm:$0xff]
    %v6472 = vld [vmem:[#allocation3 + $0xa90] sm:$0xff]
    %v6473 = vld [vmem:[#allocation3 + $0xa98] sm:$0xff]
    %v6474 = vld [vmem:[#allocation3 + $0xaa0] sm:$0xff]
    %v6475 = vld [vmem:[#allocation3 + $0xaa8] sm:$0xff]
    %v6476 = vld [vmem:[#allocation3 + $0xab0] sm:$0xff]
    %v6477 = vld [vmem:[#allocation3 + $0xab8] sm:$0xff]
    %v6478 = vld [vmem:[#allocation3 + $0xac0] sm:$0xff]
    %v6479 = vld [vmem:[#allocation3 + $0xac8] sm:$0xff]
    %v6480 = vld [vmem:[#allocation3 + $0xad0] sm:$0xff]
    %v6481 = vld [vmem:[#allocation3 + $0xad8] sm:$0xff]
    %v6482 = vld [vmem:[#allocation3 + $0xae0] sm:$0xff]
    %v6483 = vld [vmem:[#allocation3 + $0xae8] sm:$0xff]
    %v6484 = vld [vmem:[#allocation3 + $0xaf0] sm:$0xff]
    %v6485 = vld [vmem:[#allocation3 + $0xaf8] sm:$0xff]
    %v6486 = vld [vmem:[#allocation3 + $0xb00] sm:$0xff]
    %v6487 = vld [vmem:[#allocation3 + $0xb08] sm:$0xff]
    %v6488 = vld [vmem:[#allocation3 + $0xb10] sm:$0xff]
    %v6489 = vld [vmem:[#allocation3 + $0xb18] sm:$0xff]
    %v6490 = vld [vmem:[#allocation3 + $0xb20] sm:$0xff]
    %v6491 = vld [vmem:[#allocation3 + $0xb28] sm:$0xff]
    %v6492 = vld [vmem:[#allocation3 + $0xb30] sm:$0xff]
    %v6493 = vld [vmem:[#allocation3 + $0xb38] sm:$0xff]
    %v6494 = vld [vmem:[#allocation3 + $0xb40] sm:$0xff]
    %v6495 = vld [vmem:[#allocation3 + $0xb48] sm:$0xff]
    %v6496 = vld [vmem:[#allocation3 + $0xb50] sm:$0xff]
    %v6497 = vld [vmem:[#allocation3 + $0xb58] sm:$0xff]
    %v6498 = vld [vmem:[#allocation3 + $0xb60] sm:$0xff]
    %v6499 = vld [vmem:[#allocation3 + $0xb68] sm:$0xff]
    %v6500 = vld [vmem:[#allocation3 + $0xb70] sm:$0xff]
    %v6501 = vld [vmem:[#allocation3 + $0xb78] sm:$0xff]
    %v6502 = vld [vmem:[#allocation3 + $0xb80] sm:$0xff]
    %v6503 = vld [vmem:[#allocation3 + $0xb88] sm:$0xff]
    %v6504 = vld [vmem:[#allocation3 + $0xb90] sm:$0xff]
    %v6505 = vld [vmem:[#allocation3 + $0xb98] sm:$0xff]
    %v6506 = vld [vmem:[#allocation3 + $0xba0] sm:$0xff]
    %v6507 = vld [vmem:[#allocation3 + $0xba8] sm:$0xff]
    %v6508 = vld [vmem:[#allocation3 + $0xbb0] sm:$0xff]
    %v6509 = vld [vmem:[#allocation3 + $0xbb8] sm:$0xff]
    %v6510 = vld [vmem:[#allocation3 + $0xbc0] sm:$0xff]
    %v6511 = vld [vmem:[#allocation3 + $0xbc8] sm:$0xff]
    %v6512 = vld [vmem:[#allocation3 + $0xbd0] sm:$0xff]
    %v6513 = vld [vmem:[#allocation3 + $0xbd8] sm:$0xff]
    %v6514 = vld [vmem:[#allocation3 + $0xbe0] sm:$0xff]
    %v6515 = vld [vmem:[#allocation3 + $0xbe8] sm:$0xff]
    %v6516 = vld [vmem:[#allocation3 + $0xbf0] sm:$0xff]
    %v6517 = vld [vmem:[#allocation3 + $0xbf8] sm:$0xff]
    %v6518 = vld [vmem:[#allocation3 + $0xc00] sm:$0xff]
    %v6519 = vld [vmem:[#allocation3 + $0xc08] sm:$0xff]
    %v6520 = vld [vmem:[#allocation3 + $0xc10] sm:$0xff]
    %v6521 = vld [vmem:[#allocation3 + $0xc18] sm:$0xff]
    %v6522 = vld [vmem:[#allocation3 + $0xc20] sm:$0xff]
    %v6523 = vld [vmem:[#allocation3 + $0xc28] sm:$0xff]
    %v6524 = vld [vmem:[#allocation3 + $0xc30] sm:$0xff]
    %v6525 = vld [vmem:[#allocation3 + $0xc38] sm:$0xff]
    %v6526 = vld [vmem:[#allocation3 + $0xc40] sm:$0xff]
    %v6527 = vld [vmem:[#allocation3 + $0xc48] sm:$0xff]
    %v6528 = vld [vmem:[#allocation3 + $0xc50] sm:$0xff]
    %v6529 = vld [vmem:[#allocation3 + $0xc58] sm:$0xff]
    %v6530 = vld [vmem:[#allocation3 + $0xc60] sm:$0xff]
    %v6531 = vld [vmem:[#allocation3 + $0xc68] sm:$0xff]
    %v6532 = vld [vmem:[#allocation3 + $0xc70] sm:$0xff]
    %v6533 = vld [vmem:[#allocation3 + $0xc78] sm:$0xff]
    %v6534 = vld [vmem:[#allocation3 + $0xc80] sm:$0xff]
    %v6535 = vld [vmem:[#allocation3 + $0xc88] sm:$0xff]
    %v6536 = vld [vmem:[#allocation3 + $0xc90] sm:$0xff]
    %v6537 = vld [vmem:[#allocation3 + $0xc98] sm:$0xff]
    %v6538 = vld [vmem:[#allocation3 + $0xca0] sm:$0xff]
    %v6539 = vld [vmem:[#allocation3 + $0xca8] sm:$0xff]
    %v6540 = vld [vmem:[#allocation3 + $0xcb0] sm:$0xff]
    %v6541 = vld [vmem:[#allocation3 + $0xcb8] sm:$0xff]
    %v6542 = vld [vmem:[#allocation3 + $0xcc0] sm:$0xff]
    %v6543 = vld [vmem:[#allocation3 + $0xcc8] sm:$0xff]
    %v6544 = vld [vmem:[#allocation3 + $0xcd0] sm:$0xff]
    %v6545 = vld [vmem:[#allocation3 + $0xcd8] sm:$0xff]
    %v6546 = vld [vmem:[#allocation3 + $0xce0] sm:$0xff]
    %v6547 = vld [vmem:[#allocation3 + $0xce8] sm:$0xff]
    %v6548 = vld [vmem:[#allocation3 + $0xcf0] sm:$0xff]
    %v6549 = vld [vmem:[#allocation3 + $0xcf8] sm:$0xff]
    %v6550 = vld [vmem:[#allocation3 + $0xd00] sm:$0xff]
    %v6551 = vld [vmem:[#allocation3 + $0xd08] sm:$0xff]
    %v6552 = vld [vmem:[#allocation3 + $0xd10] sm:$0xff]
    %v6553 = vld [vmem:[#allocation3 + $0xd18] sm:$0xff]
    %v6554 = vld [vmem:[#allocation3 + $0xd20] sm:$0xff]
    %v6555 = vld [vmem:[#allocation3 + $0xd28] sm:$0xff]
    %v6556 = vld [vmem:[#allocation3 + $0xd30] sm:$0xff]
    %v6557 = vld [vmem:[#allocation3 + $0xd38] sm:$0xff]
    %v6558 = vld [vmem:[#allocation3 + $0xd40] sm:$0xff]
    %v6559 = vld [vmem:[#allocation3 + $0xd48] sm:$0xff]
    %v6560 = vld [vmem:[#allocation3 + $0xd50] sm:$0xff]
    %v6561 = vld [vmem:[#allocation3 + $0xd58] sm:$0xff]
    %v6562 = vld [vmem:[#allocation3 + $0xd60] sm:$0xff]
    %v6563 = vld [vmem:[#allocation3 + $0xd68] sm:$0xff]
    %v6564 = vld [vmem:[#allocation3 + $0xd70] sm:$0xff]
    %v6565 = vld [vmem:[#allocation3 + $0xd78] sm:$0xff]
    %v6566 = vld [vmem:[#allocation3 + $0xd80] sm:$0xff]
    %v6567 = vld [vmem:[#allocation3 + $0xd88] sm:$0xff]
    %v6568 = vld [vmem:[#allocation3 + $0xd90] sm:$0xff]
    %v6569 = vld [vmem:[#allocation3 + $0xd98] sm:$0xff]
    %v6570 = vld [vmem:[#allocation3 + $0xda0] sm:$0xff]
    %v6571 = vld [vmem:[#allocation3 + $0xda8] sm:$0xff]
    %v6572 = vld [vmem:[#allocation3 + $0xdb0] sm:$0xff]
    %v6573 = vld [vmem:[#allocation3 + $0xdb8] sm:$0xff]
    %v6574 = vld [vmem:[#allocation3 + $0xdc0] sm:$0xff]
    %v6575 = vld [vmem:[#allocation3 + $0xdc8] sm:$0xff]
    %v6576 = vld [vmem:[#allocation3 + $0xdd0] sm:$0xff]
    %v6577 = vld [vmem:[#allocation3 + $0xdd8] sm:$0xff]
    %v6578 = vld [vmem:[#allocation3 + $0xde0] sm:$0xff]
    %v6579 = vld [vmem:[#allocation3 + $0xde8] sm:$0xff]
    %v6580 = vld [vmem:[#allocation3 + $0xdf0] sm:$0xff]
    %v6581 = vld [vmem:[#allocation3 + $0xdf8] sm:$0xff]
    %v6582 = vld [vmem:[#allocation3 + $0xe00] sm:$0xff]
    %v6583 = vld [vmem:[#allocation3 + $0xe08] sm:$0xff]
    %v6584 = vld [vmem:[#allocation3 + $0xe10] sm:$0xff]
    %v6585 = vld [vmem:[#allocation3 + $0xe18] sm:$0xff]
    %v6586 = vld [vmem:[#allocation3 + $0xe20] sm:$0xff]
    %v6587 = vld [vmem:[#allocation3 + $0xe28] sm:$0xff]
    %v6588 = vld [vmem:[#allocation3 + $0xe30] sm:$0xff]
    %v6589 = vld [vmem:[#allocation3 + $0xe38] sm:$0xff]
    %v6590 = vld [vmem:[#allocation3 + $0xe40] sm:$0xff]
    %v6591 = vld [vmem:[#allocation3 + $0xe48] sm:$0xff]
    %v6592 = vld [vmem:[#allocation3 + $0xe50] sm:$0xff]
    %v6593 = vld [vmem:[#allocation3 + $0xe58] sm:$0xff]
    %v6594 = vld [vmem:[#allocation3 + $0xe60] sm:$0xff]
    %v6595 = vld [vmem:[#allocation3 + $0xe68] sm:$0xff]
    %v6596 = vld [vmem:[#allocation3 + $0xe70] sm:$0xff]
    %v6597 = vld [vmem:[#allocation3 + $0xe78] sm:$0xff]
    %v6598 = vld [vmem:[#allocation3 + $0xe80] sm:$0xff]
    %v6599 = vld [vmem:[#allocation3 + $0xe88] sm:$0xff]
    %v6600 = vld [vmem:[#allocation3 + $0xe90] sm:$0xff]
    %v6601 = vld [vmem:[#allocation3 + $0xe98] sm:$0xff]
    %v6602 = vld [vmem:[#allocation3 + $0xea0] sm:$0xff]
    %v6603 = vld [vmem:[#allocation3 + $0xea8] sm:$0xff]
    %v6604 = vld [vmem:[#allocation3 + $0xeb0] sm:$0xff]
    %v6605 = vld [vmem:[#allocation3 + $0xeb8] sm:$0xff]
    %v6606 = vld [vmem:[#allocation3 + $0xec0] sm:$0xff]
    %v6607 = vld [vmem:[#allocation3 + $0xec8] sm:$0xff]
    %v6608 = vld [vmem:[#allocation3 + $0xed0] sm:$0xff]
    %v6609 = vld [vmem:[#allocation3 + $0xed8] sm:$0xff]
    %v6610 = vld [vmem:[#allocation3 + $0xee0] sm:$0xff]
    %v6611 = vld [vmem:[#allocation3 + $0xee8] sm:$0xff]
    %v6612 = vld [vmem:[#allocation3 + $0xef0] sm:$0xff]
    %v6613 = vld [vmem:[#allocation3 + $0xef8] sm:$0xff]
    %v6614 = vld [vmem:[#allocation3 + $0xf00] sm:$0xff]
    %v6615 = vld [vmem:[#allocation3 + $0xf08] sm:$0xff]
    %v6616 = vld [vmem:[#allocation3 + $0xf10] sm:$0xff]
    %v6617 = vld [vmem:[#allocation3 + $0xf18] sm:$0xff]
    %v6618 = vld [vmem:[#allocation3 + $0xf20] sm:$0xff]
    %v6619 = vld [vmem:[#allocation3 + $0xf28] sm:$0xff]
    %v6620 = vld [vmem:[#allocation3 + $0xf30] sm:$0xff]
    %v6621 = vld [vmem:[#allocation3 + $0xf38] sm:$0xff]
    %v6622 = vld [vmem:[#allocation3 + $0xf40] sm:$0xff]
    %v6623 = vld [vmem:[#allocation3 + $0xf48] sm:$0xff]
    %v6624 = vld [vmem:[#allocation3 + $0xf50] sm:$0xff]
    %v6625 = vld [vmem:[#allocation3 + $0xf58] sm:$0xff]
    %v6626 = vld [vmem:[#allocation3 + $0xf60] sm:$0xff]
    %v6627 = vld [vmem:[#allocation3 + $0xf68] sm:$0xff]
    %v6628 = vld [vmem:[#allocation3 + $0xf70] sm:$0xff]
    %v6629 = vld [vmem:[#allocation3 + $0xf78] sm:$0xff]
    %v6630 = vld [vmem:[#allocation3 + $0xf80] sm:$0xff]
    %v6631 = vld [vmem:[#allocation3 + $0xf88] sm:$0xff]
    %v6632 = vld [vmem:[#allocation3 + $0xf90] sm:$0xff]
    %v6633 = vld [vmem:[#allocation3 + $0xf98] sm:$0xff]
    %v6634 = vld [vmem:[#allocation3 + $0xfa0] sm:$0xff]
    %v6635 = vld [vmem:[#allocation3 + $0xfa8] sm:$0xff]
    %v6636 = vld [vmem:[#allocation3 + $0xfb0] sm:$0xff]
    %v6637 = vld [vmem:[#allocation3 + $0xfb8] sm:$0xff]
    %v6638 = vld [vmem:[#allocation3 + $0xfc0] sm:$0xff]
    %v6639 = vld [vmem:[#allocation3 + $0xfc8] sm:$0xff]
    %v6640 = vld [vmem:[#allocation3 + $0xfd0] sm:$0xff]
    %v6641 = vld [vmem:[#allocation3 + $0xfd8] sm:$0xff]
    %v6642 = vld [vmem:[#allocation3 + $0xfe0] sm:$0xff]
    %v6643 = vld [vmem:[#allocation3 + $0xfe8] sm:$0xff]
    %v6644 = vld [vmem:[#allocation3 + $0xff0] sm:$0xff]
    %v6645 = vld [vmem:[#allocation3 + $0xff8] sm:$0xff]
    %v6646 = vld [vmem:[#allocation3 + $0x1000] sm:$0xff]
    %v6647 = vld [vmem:[#allocation3 + $0x1008] sm:$0xff]
    %v6648 = vld [vmem:[#allocation3 + $0x1010] sm:$0xff]
    %v6649 = vld [vmem:[#allocation3 + $0x1018] sm:$0xff]
    %v6650 = vld [vmem:[#allocation3 + $0x1020] sm:$0xff]
    %v6651 = vld [vmem:[#allocation3 + $0x1028] sm:$0xff]
    %v6652 = vld [vmem:[#allocation3 + $0x1030] sm:$0xff]
    %v6653 = vld [vmem:[#allocation3 + $0x1038] sm:$0xff]
    %v6654 = vld [vmem:[#allocation3 + $0x1040] sm:$0xff]
    %v6655 = vld [vmem:[#allocation3 + $0x1048] sm:$0xff]
    %v6656 = vld [vmem:[#allocation3 + $0x1050] sm:$0xff]
    %v6657 = vld [vmem:[#allocation3 + $0x1058] sm:$0xff]
    %v6658 = vld [vmem:[#allocation3 + $0x1060] sm:$0xff]
    %v6659 = vld [vmem:[#allocation3 + $0x1068] sm:$0xff]
    %v6660 = vld [vmem:[#allocation3 + $0x1070] sm:$0xff]
    %v6661 = vld [vmem:[#allocation3 + $0x1078] sm:$0xff]
    %v6662 = vld [vmem:[#allocation3 + $0x1080] sm:$0xff]
    %v6663 = vld [vmem:[#allocation3 + $0x1088] sm:$0xff]
    %v6664 = vld [vmem:[#allocation3 + $0x1090] sm:$0xff]
    %v6665 = vld [vmem:[#allocation3 + $0x1098] sm:$0xff]
    %v6666 = vld [vmem:[#allocation3 + $0x10a0] sm:$0xff]
    %v6667 = vld [vmem:[#allocation3 + $0x10a8] sm:$0xff]
    %v6668 = vld [vmem:[#allocation3 + $0x10b0] sm:$0xff]
    %v6669 = vld [vmem:[#allocation3 + $0x10b8] sm:$0xff]
    %v6670 = vld [vmem:[#allocation3 + $0x10c0] sm:$0xff]
    %v6671 = vld [vmem:[#allocation3 + $0x10c8] sm:$0xff]
    %v6672 = vld [vmem:[#allocation3 + $0x10d0] sm:$0xff]
    %v6673 = vld [vmem:[#allocation3 + $0x10d8] sm:$0xff]
    %v6674 = vld [vmem:[#allocation3 + $0x10e0] sm:$0xff]
    %v6675 = vld [vmem:[#allocation3 + $0x10e8] sm:$0xff]
    %v6676 = vld [vmem:[#allocation3 + $0x10f0] sm:$0xff]
    %v6677 = vld [vmem:[#allocation3 + $0x10f8] sm:$0xff]
    %v6678 = vld [vmem:[#allocation3 + $0x1100] sm:$0xff]
    %v6679 = vld [vmem:[#allocation3 + $0x1108] sm:$0xff]
    %v6680 = vld [vmem:[#allocation3 + $0x1110] sm:$0xff]
    %v6681 = vld [vmem:[#allocation3 + $0x1118] sm:$0xff]
    %v6682 = vld [vmem:[#allocation3 + $0x1120] sm:$0xff]
    %v6683 = vld [vmem:[#allocation3 + $0x1128] sm:$0xff]
    %v6684 = vld [vmem:[#allocation3 + $0x1130] sm:$0xff]
    %v6685 = vld [vmem:[#allocation3 + $0x1138] sm:$0xff]
    %v6686 = vld [vmem:[#allocation3 + $0x1140] sm:$0xff]
    %v6687 = vld [vmem:[#allocation3 + $0x1148] sm:$0xff]
    %v6688 = vld [vmem:[#allocation3 + $0x1150] sm:$0xff]
    %v6689 = vld [vmem:[#allocation3 + $0x1158] sm:$0xff]
    %v6690 = vld [vmem:[#allocation3 + $0x1160] sm:$0xff]
    %v6691 = vld [vmem:[#allocation3 + $0x1168] sm:$0xff]
    %v6692 = vld [vmem:[#allocation3 + $0x1170] sm:$0xff]
    %v6693 = vld [vmem:[#allocation3 + $0x1178] sm:$0xff]
    %v6694 = vld [vmem:[#allocation3 + $0x1180] sm:$0xff]
    %v6695 = vld [vmem:[#allocation3 + $0x1188] sm:$0xff]
    %v6696 = vld [vmem:[#allocation3 + $0x1190] sm:$0xff]
    %v6697 = vld [vmem:[#allocation3 + $0x1198] sm:$0xff]
    %v6698 = vld [vmem:[#allocation3 + $0x11a0] sm:$0xff]
    %v6699 = vld [vmem:[#allocation3 + $0x11a8] sm:$0xff]
    %v6700 = vld [vmem:[#allocation3 + $0x11b0] sm:$0xff]
    %v6701 = vld [vmem:[#allocation3 + $0x11b8] sm:$0xff]
    %v6702 = vld [vmem:[#allocation3 + $0x11c0] sm:$0xff]
    %v6703 = vld [vmem:[#allocation3 + $0x11c8] sm:$0xff]
    %v6704 = vld [vmem:[#allocation3 + $0x11d0] sm:$0xff]
    %v6705 = vld [vmem:[#allocation3 + $0x11d8] sm:$0xff]
    %v6706 = vld [vmem:[#allocation3 + $0x11e0] sm:$0xff]
    %v6707 = vld [vmem:[#allocation3 + $0x11e8] sm:$0xff]
    %v6708 = vld [vmem:[#allocation3 + $0x11f0] sm:$0xff]
    %v6709 = vld [vmem:[#allocation3 + $0x11f8] sm:$0xff]
    %v6710 = vld [vmem:[#allocation3 + $0x1200] sm:$0xff]
    %v6711 = vld [vmem:[#allocation3 + $0x1208] sm:$0xff]
    %v6712 = vld [vmem:[#allocation3 + $0x1210] sm:$0xff]
    %v6713 = vld [vmem:[#allocation3 + $0x1218] sm:$0xff]
    %v6714 = vld [vmem:[#allocation3 + $0x1220] sm:$0xff]
    %v6715 = vld [vmem:[#allocation3 + $0x1228] sm:$0xff]
    %v6716 = vld [vmem:[#allocation3 + $0x1230] sm:$0xff]
    %v6717 = vld [vmem:[#allocation3 + $0x1238] sm:$0xff]
    %v6718 = vld [vmem:[#allocation3 + $0x1240] sm:$0xff]
    %v6719 = vld [vmem:[#allocation3 + $0x1248] sm:$0xff]
    %v6720 = vld [vmem:[#allocation3 + $0x1250] sm:$0xff]
    %v6721 = vld [vmem:[#allocation3 + $0x1258] sm:$0xff]
    %v6722 = vld [vmem:[#allocation3 + $0x1260] sm:$0xff]
    %v6723 = vld [vmem:[#allocation3 + $0x1268] sm:$0xff]
    %v6724 = vld [vmem:[#allocation3 + $0x1270] sm:$0xff]
    %v6725 = vld [vmem:[#allocation3 + $0x1278] sm:$0xff]
    %v6726 = vld [vmem:[#allocation3 + $0x1280] sm:$0xff]
    %v6727 = vld [vmem:[#allocation3 + $0x1288] sm:$0xff]
    %v6728 = vld [vmem:[#allocation3 + $0x1290] sm:$0xff]
    %v6729 = vld [vmem:[#allocation3 + $0x1298] sm:$0xff]
    %v6730 = vld [vmem:[#allocation3 + $0x12a0] sm:$0xff]
    %v6731 = vld [vmem:[#allocation3 + $0x12a8] sm:$0xff]
    %v6732 = vld [vmem:[#allocation3 + $0x12b0] sm:$0xff]
    %v6733 = vld [vmem:[#allocation3 + $0x12b8] sm:$0xff]
    %v6734 = vld [vmem:[#allocation3 + $0x12c0] sm:$0xff]
    %v6735 = vld [vmem:[#allocation3 + $0x12c8] sm:$0xff]
    %v6736 = vld [vmem:[#allocation3 + $0x12d0] sm:$0xff]
    %v6737 = vld [vmem:[#allocation3 + $0x12d8] sm:$0xff]
    %v6738 = vld [vmem:[#allocation3 + $0x12e0] sm:$0xff]
    %v6739 = vld [vmem:[#allocation3 + $0x12e8] sm:$0xff]
    %v6740 = vld [vmem:[#allocation3 + $0x12f0] sm:$0xff]
    %v6741 = vld [vmem:[#allocation3 + $0x12f8] sm:$0xff]
    %v6742 = vld [vmem:[#allocation3 + $0x1300] sm:$0xff]
    %v6743 = vld [vmem:[#allocation3 + $0x1308] sm:$0xff]
    %v6744 = vld [vmem:[#allocation3 + $0x1310] sm:$0xff]
    %v6745 = vld [vmem:[#allocation3 + $0x1318] sm:$0xff]
    %v6746 = vld [vmem:[#allocation3 + $0x1320] sm:$0xff]
    %v6747 = vld [vmem:[#allocation3 + $0x1328] sm:$0xff]
    %v6748 = vld [vmem:[#allocation3 + $0x1330] sm:$0xff]
    %v6749 = vld [vmem:[#allocation3 + $0x1338] sm:$0xff]
    %v6750 = vld [vmem:[#allocation3 + $0x1340] sm:$0xff]
    %v6751 = vld [vmem:[#allocation3 + $0x1348] sm:$0xff]
    %v6752 = vld [vmem:[#allocation3 + $0x1350] sm:$0xff]
    %v6753 = vld [vmem:[#allocation3 + $0x1358] sm:$0xff]
    %v6754 = vld [vmem:[#allocation3 + $0x1360] sm:$0xff]
    %v6755 = vld [vmem:[#allocation3 + $0x1368] sm:$0xff]
    %v6756 = vld [vmem:[#allocation3 + $0x1370] sm:$0xff]
    %v6757 = vld [vmem:[#allocation3 + $0x1378] sm:$0xff]
    %v6758 = vld [vmem:[#allocation3 + $0x1380] sm:$0xff]
    %v6759 = vld [vmem:[#allocation3 + $0x1388] sm:$0xff]
    %v6760 = vld [vmem:[#allocation3 + $0x1390] sm:$0xff]
    %v6761 = vld [vmem:[#allocation3 + $0x1398] sm:$0xff]
    %v6762 = vld [vmem:[#allocation3 + $0x13a0] sm:$0xff]
    %v6763 = vld [vmem:[#allocation3 + $0x13a8] sm:$0xff]
    %v6764 = vld [vmem:[#allocation3 + $0x13b0] sm:$0xff]
    %v6765 = vld [vmem:[#allocation3 + $0x13b8] sm:$0xff]
    %v6766 = vld [vmem:[#allocation3 + $0x13c0] sm:$0xff]
    %v6767 = vld [vmem:[#allocation3 + $0x13c8] sm:$0xff]
    %v6768 = vld [vmem:[#allocation3 + $0x13d0] sm:$0xff]
    %v6769 = vld [vmem:[#allocation3 + $0x13d8] sm:$0xff]
    %v6770 = vld [vmem:[#allocation3 + $0x13e0] sm:$0xff]
    %v6771 = vld [vmem:[#allocation3 + $0x13e8] sm:$0xff]
    %v6772 = vld [vmem:[#allocation3 + $0x13f0] sm:$0xff]
    %v6773 = vld [vmem:[#allocation3 + $0x13f8] sm:$0xff]
    %v6774 = vld [vmem:[#allocation3 + $0x1400] sm:$0xff]
    %v6775 = vld [vmem:[#allocation3 + $0x1408] sm:$0xff]
    %v6776 = vld [vmem:[#allocation3 + $0x1410] sm:$0xff]
    %v6777 = vld [vmem:[#allocation3 + $0x1418] sm:$0xff]
    %v6778 = vld [vmem:[#allocation3 + $0x1420] sm:$0xff]
    %v6779 = vld [vmem:[#allocation3 + $0x1428] sm:$0xff]
    %v6780 = vld [vmem:[#allocation3 + $0x1430] sm:$0xff]
    %v6781 = vld [vmem:[#allocation3 + $0x1438] sm:$0xff]
    %v6782 = vld [vmem:[#allocation3 + $0x1440] sm:$0xff]
    %v6783 = vld [vmem:[#allocation3 + $0x1448] sm:$0xff]
    %v6784 = vld [vmem:[#allocation3 + $0x1450] sm:$0xff]
    %v6785 = vld [vmem:[#allocation3 + $0x1458] sm:$0xff]
    %v6786 = vld [vmem:[#allocation3 + $0x1460] sm:$0xff]
    %v6787 = vld [vmem:[#allocation3 + $0x1468] sm:$0xff]
    %v6788 = vld [vmem:[#allocation3 + $0x1470] sm:$0xff]
    %v6789 = vld [vmem:[#allocation3 + $0x1478] sm:$0xff]
    %v6790 = vld [vmem:[#allocation3 + $0x1480] sm:$0xff]
    %v6791 = vld [vmem:[#allocation3 + $0x1488] sm:$0xff]
    %v6792 = vld [vmem:[#allocation3 + $0x1490] sm:$0xff]
    %v6793 = vld [vmem:[#allocation3 + $0x1498] sm:$0xff]
    %v6794 = vld [vmem:[#allocation3 + $0x14a0] sm:$0xff]
    %v6795 = vld [vmem:[#allocation3 + $0x14a8] sm:$0xff]
    %v6796 = vld [vmem:[#allocation3 + $0x14b0] sm:$0xff]
    %v6797 = vld [vmem:[#allocation3 + $0x14b8] sm:$0xff]
    %v6798 = vld [vmem:[#allocation3 + $0x14c0] sm:$0xff]
    %v6799 = vld [vmem:[#allocation3 + $0x14c8] sm:$0xff]
    %v6800 = vld [vmem:[#allocation3 + $0x14d0] sm:$0xff]
    %v6801 = vld [vmem:[#allocation3 + $0x14d8] sm:$0xff]
    %v6802 = vld [vmem:[#allocation3 + $0x14e0] sm:$0xff]
    %v6803 = vld [vmem:[#allocation3 + $0x14e8] sm:$0xff]
    %v6804 = vld [vmem:[#allocation3 + $0x14f0] sm:$0xff]
    %v6805 = vld [vmem:[#allocation3 + $0x14f8] sm:$0xff]
    %v6806 = vld [vmem:[#allocation3 + $0x1500] sm:$0xff]
    %v6807 = vld [vmem:[#allocation3 + $0x1508] sm:$0xff]
    %v6808 = vld [vmem:[#allocation3 + $0x1510] sm:$0xff]
    %v6809 = vld [vmem:[#allocation3 + $0x1518] sm:$0xff]
    %v6810 = vld [vmem:[#allocation3 + $0x1520] sm:$0xff]
    %v6811 = vld [vmem:[#allocation3 + $0x1528] sm:$0xff]
    %v6812 = vld [vmem:[#allocation3 + $0x1530] sm:$0xff]
    %v6813 = vld [vmem:[#allocation3 + $0x1538] sm:$0xff]
    %v6814 = vld [vmem:[#allocation3 + $0x1540] sm:$0xff]
    %v6815 = vld [vmem:[#allocation3 + $0x1548] sm:$0xff]
    %v6816 = vld [vmem:[#allocation3 + $0x1550] sm:$0xff]
    %v6817 = vld [vmem:[#allocation3 + $0x1558] sm:$0xff]
    %v6818 = vld [vmem:[#allocation3 + $0x1560] sm:$0xff]
    %v6819 = vld [vmem:[#allocation3 + $0x1568] sm:$0xff]
    %v6820 = vld [vmem:[#allocation3 + $0x1570] sm:$0xff]
    %v6821 = vld [vmem:[#allocation3 + $0x1578] sm:$0xff]
    %v6822 = vld [vmem:[#allocation3 + $0x1580] sm:$0xff]
    %v6823 = vld [vmem:[#allocation3 + $0x1588] sm:$0xff]
    %v6824 = vld [vmem:[#allocation3 + $0x1590] sm:$0xff]
    %v6825 = vld [vmem:[#allocation3 + $0x1598] sm:$0xff]
    %v6826 = vld [vmem:[#allocation3 + $0x15a0] sm:$0xff]
    %v6827 = vld [vmem:[#allocation3 + $0x15a8] sm:$0xff]
    %v6828 = vld [vmem:[#allocation3 + $0x15b0] sm:$0xff]
    %v6829 = vld [vmem:[#allocation3 + $0x15b8] sm:$0xff]
    %v6830 = vld [vmem:[#allocation3 + $0x15c0] sm:$0xff]
    %v6831 = vld [vmem:[#allocation3 + $0x15c8] sm:$0xff]
    %v6832 = vld [vmem:[#allocation3 + $0x15d0] sm:$0xff]
    %v6833 = vld [vmem:[#allocation3 + $0x15d8] sm:$0xff]
    %v6834 = vld [vmem:[#allocation3 + $0x15e0] sm:$0xff]
    %v6835 = vld [vmem:[#allocation3 + $0x15e8] sm:$0xff]
    %v6836 = vld [vmem:[#allocation3 + $0x15f0] sm:$0xff]
    %v6837 = vld [vmem:[#allocation3 + $0x15f8] sm:$0xff]
    %v6838 = vld [vmem:[#allocation3 + $0x1600] sm:$0xff]
    %v6839 = vld [vmem:[#allocation3 + $0x1608] sm:$0xff]
    %v6840 = vld [vmem:[#allocation3 + $0x1610] sm:$0xff]
    %v6841 = vld [vmem:[#allocation3 + $0x1618] sm:$0xff]
    %v6842 = vld [vmem:[#allocation3 + $0x1620] sm:$0xff]
    %v6843 = vld [vmem:[#allocation3 + $0x1628] sm:$0xff]
    %v6844 = vld [vmem:[#allocation3 + $0x1630] sm:$0xff]
    %v6845 = vld [vmem:[#allocation3 + $0x1638] sm:$0xff]
    %v6846 = vld [vmem:[#allocation3 + $0x1640] sm:$0xff]
    %v6847 = vld [vmem:[#allocation3 + $0x1648] sm:$0xff]
    %v6848 = vld [vmem:[#allocation3 + $0x1650] sm:$0xff]
    %v6849 = vld [vmem:[#allocation3 + $0x1658] sm:$0xff]
    %v6850 = vld [vmem:[#allocation3 + $0x1660] sm:$0xff]
    %v6851 = vld [vmem:[#allocation3 + $0x1668] sm:$0xff]
    %v6852 = vld [vmem:[#allocation3 + $0x1670] sm:$0xff]
    %v6853 = vld [vmem:[#allocation3 + $0x1678] sm:$0xff]
    %v6854 = vld [vmem:[#allocation3 + $0x1680] sm:$0xff]
    %v6855 = vld [vmem:[#allocation3 + $0x1688] sm:$0xff]
    %v6856 = vld [vmem:[#allocation3 + $0x1690] sm:$0xff]
    %v6857 = vld [vmem:[#allocation3 + $0x1698] sm:$0xff]
    %v6858 = vld [vmem:[#allocation3 + $0x16a0] sm:$0xff]
    %v6859 = vld [vmem:[#allocation3 + $0x16a8] sm:$0xff]
    %v6860 = vld [vmem:[#allocation3 + $0x16b0] sm:$0xff]
    %v6861 = vld [vmem:[#allocation3 + $0x16b8] sm:$0xff]
    %v6862 = vld [vmem:[#allocation3 + $0x16c0] sm:$0xff]
    %v6863 = vld [vmem:[#allocation3 + $0x16c8] sm:$0xff]
    %v6864 = vld [vmem:[#allocation3 + $0x16d0] sm:$0xff]
    %v6865 = vld [vmem:[#allocation3 + $0x16d8] sm:$0xff]
    %v6866 = vld [vmem:[#allocation3 + $0x16e0] sm:$0xff]
    %v6867 = vld [vmem:[#allocation3 + $0x16e8] sm:$0xff]
    %v6868 = vld [vmem:[#allocation3 + $0x16f0] sm:$0xff]
    %v6869 = vld [vmem:[#allocation3 + $0x16f8] sm:$0xff]
    %v6870 = vld [vmem:[#allocation3 + $0x1700] sm:$0xff]
    %v6871 = vld [vmem:[#allocation3 + $0x1708] sm:$0xff]
    %v6872 = vld [vmem:[#allocation3 + $0x1710] sm:$0xff]
    %v6873 = vld [vmem:[#allocation3 + $0x1718] sm:$0xff]
    %v6874 = vld [vmem:[#allocation3 + $0x1720] sm:$0xff]
    %v6875 = vld [vmem:[#allocation3 + $0x1728] sm:$0xff]
    %v6876 = vld [vmem:[#allocation3 + $0x1730] sm:$0xff]
    %v6877 = vld [vmem:[#allocation3 + $0x1738] sm:$0xff]
    %v6878 = vld [vmem:[#allocation3 + $0x1740] sm:$0xff]
    %v6879 = vld [vmem:[#allocation3 + $0x1748] sm:$0xff]
    %v6880 = vld [vmem:[#allocation3 + $0x1750] sm:$0xff]
    %v6881 = vld [vmem:[#allocation3 + $0x1758] sm:$0xff]
    %v6882 = vld [vmem:[#allocation3 + $0x1760] sm:$0xff]
    %v6883 = vld [vmem:[#allocation3 + $0x1768] sm:$0xff]
    %v6884 = vld [vmem:[#allocation3 + $0x1770] sm:$0xff]
    %v6885 = vld [vmem:[#allocation3 + $0x1778] sm:$0xff]
    %v6886 = vld [vmem:[#allocation3 + $0x1780] sm:$0xff]
    %v6887 = vld [vmem:[#allocation3 + $0x1788] sm:$0xff]
    %v6888 = vld [vmem:[#allocation3 + $0x1790] sm:$0xff]
    %v6889 = vld [vmem:[#allocation3 + $0x1798] sm:$0xff]
    %v6890 = vld [vmem:[#allocation3 + $0x17a0] sm:$0xff]
    %v6891 = vld [vmem:[#allocation3 + $0x17a8] sm:$0xff]
    %v6892 = vld [vmem:[#allocation3 + $0x17b0] sm:$0xff]
    %v6893 = vld [vmem:[#allocation3 + $0x17b8] sm:$0xff]
    %v6894 = vld [vmem:[#allocation3 + $0x17c0] sm:$0xff]
    %v6895 = vld [vmem:[#allocation3 + $0x17c8] sm:$0xff]
    %v6896 = vld [vmem:[#allocation3 + $0x17d0] sm:$0xff]
    %v6897 = vld [vmem:[#allocation3 + $0x17d8] sm:$0xff]
    %v6898 = vld [vmem:[#allocation3 + $0x17e0] sm:$0xff]
    %v6899 = vld [vmem:[#allocation3 + $0x17e8] sm:$0xff]
    %v6900 = vld [vmem:[#allocation3 + $0x17f0] sm:$0xff]
    %v6901 = vld [vmem:[#allocation3 + $0x17f8] sm:$0xff]
    %v6902 = vld [vmem:[#allocation3 + $0x1800] sm:$0xff]
    %v6903 = vld [vmem:[#allocation3 + $0x1808] sm:$0xff]
    %v6904 = vld [vmem:[#allocation3 + $0x1810] sm:$0xff]
    %v6905 = vld [vmem:[#allocation3 + $0x1818] sm:$0xff]
    %v6906 = vld [vmem:[#allocation3 + $0x1820] sm:$0xff]
    %v6907 = vld [vmem:[#allocation3 + $0x1828] sm:$0xff]
    %v6908 = vld [vmem:[#allocation3 + $0x1830] sm:$0xff]
    %v6909 = vld [vmem:[#allocation3 + $0x1838] sm:$0xff]
    %v6910 = vld [vmem:[#allocation3 + $0x1840] sm:$0xff]
    %v6911 = vld [vmem:[#allocation3 + $0x1848] sm:$0xff]
    %v6912 = vld [vmem:[#allocation3 + $0x1850] sm:$0xff]
    %v6913 = vld [vmem:[#allocation3 + $0x1858] sm:$0xff]
    %v6914 = vld [vmem:[#allocation3 + $0x1860] sm:$0xff]
    %v6915 = vld [vmem:[#allocation3 + $0x1868] sm:$0xff]
    %v6916 = vld [vmem:[#allocation3 + $0x1870] sm:$0xff]
    %v6917 = vld [vmem:[#allocation3 + $0x1878] sm:$0xff]
    %v6918 = vld [vmem:[#allocation3 + $0x1880] sm:$0xff]
    %v6919 = vld [vmem:[#allocation3 + $0x1888] sm:$0xff]
    %v6920 = vld [vmem:[#allocation3 + $0x1890] sm:$0xff]
    %v6921 = vld [vmem:[#allocation3 + $0x1898] sm:$0xff]
    %v6922 = vld [vmem:[#allocation3 + $0x18a0] sm:$0xff]
    %v6923 = vld [vmem:[#allocation3 + $0x18a8] sm:$0xff]
    %v6924 = vld [vmem:[#allocation3 + $0x18b0] sm:$0xff]
    %v6925 = vld [vmem:[#allocation3 + $0x18b8] sm:$0xff]
    %v6926 = vld [vmem:[#allocation3 + $0x18c0] sm:$0xff]
    %v6927 = vld [vmem:[#allocation3 + $0x18c8] sm:$0xff]
    %v6928 = vld [vmem:[#allocation3 + $0x18d0] sm:$0xff]
    %v6929 = vld [vmem:[#allocation3 + $0x18d8] sm:$0xff]
    %v6930 = vld [vmem:[#allocation3 + $0x18e0] sm:$0xff]
    %v6931 = vld [vmem:[#allocation3 + $0x18e8] sm:$0xff]
    %v6932 = vld [vmem:[#allocation3 + $0x18f0] sm:$0xff]
    %v6933 = vld [vmem:[#allocation3 + $0x18f8] sm:$0xff]
    %v6934 = vld [vmem:[#allocation3 + $0x1900] sm:$0xff]
    %v6935 = vld [vmem:[#allocation3 + $0x1908] sm:$0xff]
    %v6936 = vld [vmem:[#allocation3 + $0x1910] sm:$0xff]
    %v6937 = vld [vmem:[#allocation3 + $0x1918] sm:$0xff]
    %v6938 = vld [vmem:[#allocation3 + $0x1920] sm:$0xff]
    %v6939 = vld [vmem:[#allocation3 + $0x1928] sm:$0xff]
    %v6940 = vld [vmem:[#allocation3 + $0x1930] sm:$0xff]
    %v6941 = vld [vmem:[#allocation3 + $0x1938] sm:$0xff]
    %v6942 = vld [vmem:[#allocation3 + $0x1940] sm:$0xff]
    %v6943 = vld [vmem:[#allocation3 + $0x1948] sm:$0xff]
    %v6944 = vld [vmem:[#allocation3 + $0x1950] sm:$0xff]
    %v6945 = vld [vmem:[#allocation3 + $0x1958] sm:$0xff]
    %v6946 = vld [vmem:[#allocation3 + $0x1960] sm:$0xff]
    %v6947 = vld [vmem:[#allocation3 + $0x1968] sm:$0xff]
    %v6948 = vld [vmem:[#allocation3 + $0x1970] sm:$0xff]
    %v6949 = vld [vmem:[#allocation3 + $0x1978] sm:$0xff]
    %v6950 = vld [vmem:[#allocation3 + $0x1980] sm:$0xff]
    %v6951 = vld [vmem:[#allocation3 + $0x1988] sm:$0xff]
    %v6952 = vld [vmem:[#allocation3 + $0x1990] sm:$0xff]
    %v6953 = vld [vmem:[#allocation3 + $0x1998] sm:$0xff]
    %v6954 = vld [vmem:[#allocation3 + $0x19a0] sm:$0xff]
    %v6955 = vld [vmem:[#allocation3 + $0x19a8] sm:$0xff]
    %v6956 = vld [vmem:[#allocation3 + $0x19b0] sm:$0xff]
    %v6957 = vld [vmem:[#allocation3 + $0x19b8] sm:$0xff]
    %v6958 = vld [vmem:[#allocation3 + $0x19c0] sm:$0xff]
    %v6959 = vld [vmem:[#allocation3 + $0x19c8] sm:$0xff]
    %v6960 = vld [vmem:[#allocation3 + $0x19d0] sm:$0xff]
    %v6961 = vld [vmem:[#allocation3 + $0x19d8] sm:$0xff]
    %v6962 = vld [vmem:[#allocation3 + $0x19e0] sm:$0xff]
    %v6963 = vld [vmem:[#allocation3 + $0x19e8] sm:$0xff]
    %v6964 = vld [vmem:[#allocation3 + $0x19f0] sm:$0xff]
    %v6965 = vld [vmem:[#allocation3 + $0x19f8] sm:$0xff]
    %v6966 = vld [vmem:[#allocation3 + $0x1a00] sm:$0xff]
    %v6967 = vld [vmem:[#allocation3 + $0x1a08] sm:$0xff]
    %v6968 = vld [vmem:[#allocation3 + $0x1a10] sm:$0xff]
    %v6969 = vld [vmem:[#allocation3 + $0x1a18] sm:$0xff]
    %v6970 = vld [vmem:[#allocation3 + $0x1a20] sm:$0xff]
    %v6971 = vld [vmem:[#allocation3 + $0x1a28] sm:$0xff]
    %v6972 = vld [vmem:[#allocation3 + $0x1a30] sm:$0xff]
    %v6973 = vld [vmem:[#allocation3 + $0x1a38] sm:$0xff]
    %v6974 = vld [vmem:[#allocation3 + $0x1a40] sm:$0xff]
    %v6975 = vld [vmem:[#allocation3 + $0x1a48] sm:$0xff]
    %v6976 = vld [vmem:[#allocation3 + $0x1a50] sm:$0xff]
    %v6977 = vld [vmem:[#allocation3 + $0x1a58] sm:$0xff]
    %v6978 = vld [vmem:[#allocation3 + $0x1a60] sm:$0xff]
    %v6979 = vld [vmem:[#allocation3 + $0x1a68] sm:$0xff]
    %v6980 = vld [vmem:[#allocation3 + $0x1a70] sm:$0xff]
    %v6981 = vld [vmem:[#allocation3 + $0x1a78] sm:$0xff]
    %v6982 = vld [vmem:[#allocation3 + $0x1a80] sm:$0xff]
    %v6983 = vld [vmem:[#allocation3 + $0x1a88] sm:$0xff]
    %v6984 = vld [vmem:[#allocation3 + $0x1a90] sm:$0xff]
    %v6985 = vld [vmem:[#allocation3 + $0x1a98] sm:$0xff]
    %v6986 = vld [vmem:[#allocation3 + $0x1aa0] sm:$0xff]
    %v6987 = vld [vmem:[#allocation3 + $0x1aa8] sm:$0xff]
    %v6988 = vld [vmem:[#allocation3 + $0x1ab0] sm:$0xff]
    %v6989 = vld [vmem:[#allocation3 + $0x1ab8] sm:$0xff]
    %v6990 = vld [vmem:[#allocation3 + $0x1ac0] sm:$0xff]
    %v6991 = vld [vmem:[#allocation3 + $0x1ac8] sm:$0xff]
    %v6992 = vld [vmem:[#allocation3 + $0x1ad0] sm:$0xff]
    %v6993 = vld [vmem:[#allocation3 + $0x1ad8] sm:$0xff]
    %v6994 = vld [vmem:[#allocation3 + $0x1ae0] sm:$0xff]
    %v6995 = vld [vmem:[#allocation3 + $0x1ae8] sm:$0xff]
    %v6996 = vld [vmem:[#allocation3 + $0x1af0] sm:$0xff]
    %v6997 = vld [vmem:[#allocation3 + $0x1af8] sm:$0xff]
    %v6998 = vld [vmem:[#allocation3 + $0x1b00] sm:$0xff]
    %v6999 = vld [vmem:[#allocation3 + $0x1b08] sm:$0xff]
    %v7000 = vld [vmem:[#allocation3 + $0x1b10] sm:$0xff]
    %v7001 = vld [vmem:[#allocation3 + $0x1b18] sm:$0xff]
    %v7002 = vld [vmem:[#allocation3 + $0x1b20] sm:$0xff]
    %v7003 = vld [vmem:[#allocation3 + $0x1b28] sm:$0xff]
    %v7004 = vld [vmem:[#allocation3 + $0x1b30] sm:$0xff]
    %v7005 = vld [vmem:[#allocation3 + $0x1b38] sm:$0xff]
    %v7006 = vld [vmem:[#allocation3 + $0x1b40] sm:$0xff]
    %v7007 = vld [vmem:[#allocation3 + $0x1b48] sm:$0xff]
    %v7008 = vld [vmem:[#allocation3 + $0x1b50] sm:$0xff]
    %v7009 = vld [vmem:[#allocation3 + $0x1b58] sm:$0xff]
    %v7010 = vld [vmem:[#allocation3 + $0x1b60] sm:$0xff]
    %v7011 = vld [vmem:[#allocation3 + $0x1b68] sm:$0xff]
    %v7012 = vld [vmem:[#allocation3 + $0x1b70] sm:$0xff]
    %v7013 = vld [vmem:[#allocation3 + $0x1b78] sm:$0xff]
    %v7014 = vld [vmem:[#allocation3 + $0x1b80] sm:$0xff]
    %v7015 = vld [vmem:[#allocation3 + $0x1b88] sm:$0xff]
    %v7016 = vld [vmem:[%s1] sm:$0xff]
    %v7017 = vld [vmem:[%s1 + $0x8] sm:$0xff]
    %v7018 = vld [vmem:[%s1 + $0x10] sm:$0xff]
    %v7019 = vld [vmem:[%s1 + $0x18] sm:$0xff]
    %v7020 = vld [vmem:[%s1 + $0x20] sm:$0xff]
    %v7021 = vld [vmem:[%s1 + $0x28] sm:$0xff]
    %v7022 = vld [vmem:[%s1 + $0x30] sm:$0xff]
    %v7023 = vld [vmem:[%s1 + $0x38] sm:$0xff]
    %v7024 = vld [vmem:[%s1 + $0x40] sm:$0xff]
    %v7025 = vld [vmem:[%s1 + $0x48] sm:$0xff]
    %v7026 = vld [vmem:[%s1 + $0x50] sm:$0xff]
    %v7027 = vld [vmem:[%s1 + $0x58] sm:$0xff]
    %v7028 = vld [vmem:[%s1 + $0x60] sm:$0xff]
    %v7029 = vld [vmem:[%s1 + $0x68] sm:$0xff]
    %v7030 = vld [vmem:[%s1 + $0x70] sm:$0xff]
    %v7031 = vld [vmem:[%s1 + $0x78] sm:$0xff]
    %v7032 = vld [vmem:[%s1 + $0x80] sm:$0xff]
    %v7033 = vld [vmem:[%s1 + $0x88] sm:$0xff]
    %v7034 = vld [vmem:[%s1 + $0x90] sm:$0xff]
    %v7035 = vld [vmem:[%s1 + $0x98] sm:$0xff]
    %v7036 = vld [vmem:[%s1 + $0xa0] sm:$0xff]
    %v7037 = vld [vmem:[%s1 + $0xa8] sm:$0xff]
    %v7038 = vld [vmem:[%s1 + $0xb0] sm:$0xff]
    %v7039 = vld [vmem:[%s1 + $0xb8] sm:$0xff]
    %v7040 = vld [vmem:[%s1 + $0xc0] sm:$0xff]
    %v7041 = vld [vmem:[%s1 + $0xc8] sm:$0xff]
    %v7042 = vld [vmem:[%s1 + $0xd0] sm:$0xff]
    %v7043 = vld [vmem:[%s1 + $0xd8] sm:$0xff]
    %v7044 = vld [vmem:[%s1 + $0xe0] sm:$0xff]
    %v7045 = vld [vmem:[%s1 + $0xe8] sm:$0xff]
    %v7046 = vld [vmem:[%s1 + $0xf0] sm:$0xff]
    %v7047 = vld [vmem:[%s1 + $0xf8] sm:$0xff]
    %v7048 = vld [vmem:[%s1 + $0x100] sm:$0xff]
    %v7049 = vld [vmem:[%s1 + $0x108] sm:$0xff]
    %v7050 = vld [vmem:[%s1 + $0x110] sm:$0xff]
    %v7051 = vld [vmem:[%s1 + $0x118] sm:$0xff]
    %v7052 = vld [vmem:[%s1 + $0x120] sm:$0xff]
    %v7053 = vld [vmem:[%s1 + $0x128] sm:$0xff]
    %v7054 = vld [vmem:[%s1 + $0x130] sm:$0xff]
    %v7055 = vld [vmem:[%s1 + $0x138] sm:$0xff]
    %v7056 = vld [vmem:[%s1 + $0x140] sm:$0xff]
    %v7057 = vld [vmem:[%s1 + $0x148] sm:$0xff]
    %v7058 = vld [vmem:[%s1 + $0x150] sm:$0xff]
    %v7059 = vld [vmem:[%s1 + $0x158] sm:$0xff]
    %v7060 = vld [vmem:[%s1 + $0x160] sm:$0xff]
    %v7061 = vld [vmem:[%s1 + $0x168] sm:$0xff]
    %v7062 = vld [vmem:[%s1 + $0x170] sm:$0xff]
    %v7063 = vld [vmem:[%s1 + $0x178] sm:$0xff]
    %v7064 = vld [vmem:[%s1 + $0x180] sm:$0xff]
    %v7065 = vld [vmem:[%s1 + $0x188] sm:$0xff]
    %v7066 = vld [vmem:[%s1 + $0x190] sm:$0xff]
    %v7067 = vld [vmem:[%s1 + $0x198] sm:$0xff]
    %v7068 = vld [vmem:[%s1 + $0x1a0] sm:$0xff]
    %v7069 = vld [vmem:[%s1 + $0x1a8] sm:$0xff]
    %v7070 = vld [vmem:[%s1 + $0x1b0] sm:$0xff]
    %v7071 = vld [vmem:[%s1 + $0x1b8] sm:$0xff]
    %v7072 = vld [vmem:[%s1 + $0x1c0] sm:$0xff]
    %v7073 = vld [vmem:[%s1 + $0x1c8] sm:$0xff]
    %v7074 = vld [vmem:[%s1 + $0x1d0] sm:$0xff]
    %v7075 = vld [vmem:[%s1 + $0x1d8] sm:$0xff]
    %v7076 = vld [vmem:[%s1 + $0x1e0] sm:$0xff]
    %v7077 = vld [vmem:[%s1 + $0x1e8] sm:$0xff]
    %v7078 = vld [vmem:[%s1 + $0x1f0] sm:$0xff]
    %v7079 = vld [vmem:[%s1 + $0x1f8] sm:$0xff]
    %v7080 = vld [vmem:[%s1 + $0x200] sm:$0xff]
    %v7081 = vld [vmem:[%s1 + $0x208] sm:$0xff]
    %v7082 = vld [vmem:[%s1 + $0x210] sm:$0xff]
    %v7083 = vld [vmem:[%s1 + $0x218] sm:$0xff]
    %v7084 = vld [vmem:[%s1 + $0x220] sm:$0xff]
    %v7085 = vld [vmem:[%s1 + $0x228] sm:$0xff]
    %v7086 = vld [vmem:[%s1 + $0x230] sm:$0xff]
    %v7087 = vld [vmem:[%s1 + $0x238] sm:$0xff]
    %v7088 = vld [vmem:[%s1 + $0x240] sm:$0xff]
    %v7089 = vld [vmem:[%s1 + $0x248] sm:$0xff]
    %v7090 = vld [vmem:[%s1 + $0x250] sm:$0xff]
    %v7091 = vld [vmem:[%s1 + $0x258] sm:$0xff]
    %v7092 = vld [vmem:[%s1 + $0x260] sm:$0xff]
    %v7093 = vld [vmem:[%s1 + $0x268] sm:$0xff]
    %v7094 = vld [vmem:[%s1 + $0x270] sm:$0xff]
    %v7095 = vld [vmem:[%s1 + $0x278] sm:$0xff]
    %v7096 = vld [vmem:[%s1 + $0x280] sm:$0xff]
    %v7097 = vld [vmem:[%s1 + $0x288] sm:$0xff]
    %v7098 = vld [vmem:[%s1 + $0x290] sm:$0xff]
    %v7099 = vld [vmem:[%s1 + $0x298] sm:$0xff]
    %v7100 = vld [vmem:[%s1 + $0x2a0] sm:$0xff]
    %v7101 = vld [vmem:[%s1 + $0x2a8] sm:$0xff]
    %v7102 = vld [vmem:[%s1 + $0x2b0] sm:$0xff]
    %v7103 = vld [vmem:[%s1 + $0x2b8] sm:$0xff]
    %v7104 = vld [vmem:[%s1 + $0x2c0] sm:$0xff]
    %v7105 = vld [vmem:[%s1 + $0x2c8] sm:$0xff]
    %v7106 = vld [vmem:[%s1 + $0x2d0] sm:$0xff]
    %v7107 = vld [vmem:[%s1 + $0x2d8] sm:$0xff]
    %v7108 = vld [vmem:[%s1 + $0x2e0] sm:$0xff]
    %v7109 = vld [vmem:[%s1 + $0x2e8] sm:$0xff]
    %v7110 = vld [vmem:[%s1 + $0x2f0] sm:$0xff]
    %v7111 = vld [vmem:[%s1 + $0x2f8] sm:$0xff]
    %v7112 = vld [vmem:[%s1 + $0x300] sm:$0xff]
    %v7113 = vld [vmem:[%s1 + $0x308] sm:$0xff]
    %v7114 = vld [vmem:[%s1 + $0x310] sm:$0xff]
    %v7115 = vld [vmem:[%s1 + $0x318] sm:$0xff]
    %v7116 = vld [vmem:[%s1 + $0x320] sm:$0xff]
    %v7117 = vld [vmem:[%s1 + $0x328] sm:$0xff]
    %v7118 = vld [vmem:[%s1 + $0x330] sm:$0xff]
    %v7119 = vld [vmem:[%s1 + $0x338] sm:$0xff]
    %v7120 = vld [vmem:[%s1 + $0x340] sm:$0xff]
    %v7121 = vld [vmem:[%s1 + $0x348] sm:$0xff]
    %v7122 = vld [vmem:[%s1 + $0x350] sm:$0xff]
    %v7123 = vld [vmem:[%s1 + $0x358] sm:$0xff]
    %v7124 = vld [vmem:[%s1 + $0x360] sm:$0xff]
    %v7125 = vld [vmem:[%s1 + $0x368] sm:$0xff]
    %v7126 = vld [vmem:[%s1 + $0x370] sm:$0xff]
    %v7127 = vld [vmem:[%s1 + $0x378] sm:$0xff]
    %v7128 = vld [vmem:[%s1 + $0x380] sm:$0xff]
    %v7129 = vld [vmem:[%s1 + $0x388] sm:$0xff]
    %v7130 = vld [vmem:[%s1 + $0x390] sm:$0xff]
    %v7131 = vld [vmem:[%s1 + $0x398] sm:$0xff]
    %v7132 = vld [vmem:[%s1 + $0x3a0] sm:$0xff]
    %v7133 = vld [vmem:[%s1 + $0x3a8] sm:$0xff]
    %v7134 = vld [vmem:[%s1 + $0x3b0] sm:$0xff]
    %v7135 = vld [vmem:[%s1 + $0x3b8] sm:$0xff]
    %v7136 = vld [vmem:[%s1 + $0x3c0] sm:$0xff]
    %v7137 = vld [vmem:[%s1 + $0x3c8] sm:$0xff]
    %v7138 = vld [vmem:[%s1 + $0x3d0] sm:$0xff]
    %v7139 = vld [vmem:[%s1 + $0x3d8] sm:$0xff]
    %v7140 = vld [vmem:[%s1 + $0x3e0] sm:$0xff]
    %v7141 = vld [vmem:[%s1 + $0x3e8] sm:$0xff]
    %v7142 = vld [vmem:[%s1 + $0x3f0] sm:$0xff]
    %v7143 = vld [vmem:[%s1 + $0x3f8] sm:$0xff]
    %v7144 = vld [vmem:[%s1 + $0x400] sm:$0xff]
    %v7145 = vld [vmem:[%s1 + $0x408] sm:$0xff]
    %v7146 = vld [vmem:[%s1 + $0x410] sm:$0xff]
    %v7147 = vld [vmem:[%s1 + $0x418] sm:$0xff]
    %v7148 = vld [vmem:[%s1 + $0x420] sm:$0xff]
    %v7149 = vld [vmem:[%s1 + $0x428] sm:$0xff]
    %v7150 = vld [vmem:[%s1 + $0x430] sm:$0xff]
    %v7151 = vld [vmem:[%s1 + $0x438] sm:$0xff]
    %v7152 = vld [vmem:[%s1 + $0x440] sm:$0xff]
    %v7153 = vld [vmem:[%s1 + $0x448] sm:$0xff]
    %v7154 = vld [vmem:[%s1 + $0x450] sm:$0xff]
    %v7155 = vld [vmem:[%s1 + $0x458] sm:$0xff]
    %v7156 = vld [vmem:[%s1 + $0x460] sm:$0xff]
    %v7157 = vld [vmem:[%s1 + $0x468] sm:$0xff]
    %v7158 = vld [vmem:[%s1 + $0x470] sm:$0xff]
    %v7159 = vld [vmem:[%s1 + $0x478] sm:$0xff]
    %7160 = vmatprep.subr.mxu0 0.0
    %7161 = vmatpush1.msra.mxu0 %v7031
    %7162 = vmatprep.subr.mxu0 0.0
    %7163 = vmatpush1.msra.mxu0 %v7030
    %7164 = vmatprep.subr.mxu0 0.0
    %7165 = vmatpush1.msra.mxu0 %v7029
    %7166 = vmatprep.subr.mxu0 0.0
    %7167 = vmatpush1.msra.mxu0 %v7028
    %7168 = vmatprep.subr.mxu0 0.0
    %7169 = vmatpush1.msra.mxu0 %v7027
    %7170 = vmatprep.subr.mxu0 0.0
    %7171 = vmatpush1.msra.mxu0 %v7026
    %7172 = vmatprep.subr.mxu0 0.0
    %7173 = vmatpush1.msra.mxu0 %v7025
    %7174 = vmatprep.subr.mxu0 0.0
    %7175 = vmatpush1.msra.mxu0 %v7024
    %7176 = vmatprep.subr.mxu0 0.0
    %7177 = vmatpush1.msra.mxu0 %v7023
    %7178 = vmatprep.subr.mxu0 0.0
    %7179 = vmatpush1.msra.mxu0 %v7022
    %7180 = vmatprep.subr.mxu0 0.0
    %7181 = vmatpush1.msra.mxu0 %v7021
    %7182 = vmatprep.subr.mxu0 0.0
    %7183 = vmatpush1.msra.mxu0 %v7020
    %7184 = vmatprep.subr.mxu0 0.0
    %7185 = vmatpush1.msra.mxu0 %v7019
    %7186 = vmatprep.subr.mxu0 0.0
    %7187 = vmatpush1.msra.mxu0 %v7018
    %7188 = vmatprep.subr.mxu0 0.0
    %7189 = vmatpush1.msra.mxu0 %v7017
    %7190 = vmatprep.subr.mxu0 0.0
    %7191 = vmatpush1.msra.mxu0 %v7016
    %7192 = vmatprep.subr.mxu0 0.0
    %7193 = vmatpush2.msra.mxu0 %v7047
    %7194 = vmatprep.subr.mxu0 0.0
    %7195 = vmatpush2.msra.mxu0 %v7046
    %7196 = vmatprep.subr.mxu0 0.0
    %7197 = vmatpush2.msra.mxu0 %v7045
    %7198 = vmatprep.subr.mxu0 0.0
    %7199 = vmatpush2.msra.mxu0 %v7044
    %7200 = vmatprep.subr.mxu0 0.0
    %7201 = vmatpush2.msra.mxu0 %v7043
    %7202 = vmatprep.subr.mxu0 0.0
    %7203 = vmatpush2.msra.mxu0 %v7042
    %7204 = vmatprep.subr.mxu0 0.0
    %7205 = vmatpush2.msra.mxu0 %v7041
    %7206 = vmatprep.subr.mxu0 0.0
    %7207 = vmatpush2.msra.mxu0 %v7040
    %7208 = vmatprep.subr.mxu0 0.0
    %7209 = vmatpush2.msra.mxu0 %v7039
    %7210 = vmatprep.subr.mxu0 0.0
    %7211 = vmatpush2.msra.mxu0 %v7038
    %7212 = vmatprep.subr.mxu0 0.0
    %7213 = vmatpush2.msra.mxu0 %v7037
    %7214 = vmatprep.subr.mxu0 0.0
    %7215 = vmatpush2.msra.mxu0 %v7036
    %7216 = vmatprep.subr.mxu0 0.0
    %7217 = vmatpush2.msra.mxu0 %v7035
    %7218 = vmatprep.subr.mxu0 0.0
    %7219 = vmatpush2.msra.mxu0 %v7034
    %7220 = vmatprep.subr.mxu0 0.0
    %7221 = vmatpush2.msra.mxu0 %v7033
    %7222 = vmatprep.subr.mxu0 0.0
    %7223 = vmatpush2.msra.mxu0 %v7032
    %7224 = vmatprep.mubr.f32.mxu0 %v6135
    %7225 = vmatmul.mubr.f32.gmra.mxu0 %v6134
    %v7226 = vpop.f32.mrf.mxu0
    %v7227 = vadd.f32 0.0, %v7226
    %v7228 = vpop.f32.mrf.mxu0
    %7229 = vmatprep.mubr.f32.mxu0 %v6144
    %7230 = vmatmul.mubr.f32.gmra.mxu0 %v6143
    %v7231 = vpop.f32.mrf.mxu0
    %v7232 = vadd.f32 0.0, %v7231
    %v7233 = vpop.f32.mrf.mxu0
    %7234 = vmatprep.mubr.f32.mxu0 %v6153
    %7235 = vmatmul.mubr.f32.gmra.mxu0 %v6152
    %v7236 = vpop.f32.mrf.mxu0
    %v7237 = vadd.f32 0.0, %v7236
    %v7238 = vpop.f32.mrf.mxu0
    %7239 = vmatprep.mubr.f32.mxu0 %v6162
    %7240 = vmatmul.mubr.f32.gmra.mxu0 %v6161
    %v7241 = vpop.f32.mrf.mxu0
    %v7242 = vadd.f32 0.0, %v7241
    %v7243 = vpop.f32.mrf.mxu0
    %7244 = vmatprep.mubr.f32.mxu0 %v6171
    %7245 = vmatmul.mubr.f32.gmra.mxu0 %v6170
    %v7246 = vpop.f32.mrf.mxu0
    %v7247 = vadd.f32 0.0, %v7246
    %v7248 = vpop.f32.mrf.mxu0
    %7249 = vmatprep.mubr.f32.mxu0 %v6180
    %7250 = vmatmul.mubr.f32.gmra.mxu0 %v6179
    %v7251 = vpop.f32.mrf.mxu0
    %v7252 = vadd.f32 0.0, %v7251
    %v7253 = vpop.f32.mrf.mxu0
    %7254 = vmatprep.mubr.f32.mxu0 %v6189
    %7255 = vmatmul.mubr.f32.gmra.mxu0 %v6188
    %v7256 = vpop.f32.mrf.mxu0
    %v7257 = vadd.f32 0.0, %v7256
    %v7258 = vpop.f32.mrf.mxu0
    %7259 = vmatprep.mubr.f32.mxu0 %v6198
    %7260 = vmatmul.mubr.f32.gmra.mxu0 %v6197
    %v7261 = vpop.f32.mrf.mxu0
    %v7262 = vadd.f32 0.0, %v7261
    %v7263 = vpop.f32.mrf.mxu0
    %7264 = vmatprep.mubr.f32.mxu0 %v6207
    %7265 = vmatmul.mubr.f32.gmra.mxu0 %v6206
    %v7266 = vpop.f32.mrf.mxu0
    %v7267 = vadd.f32 0.0, %v7266
    %v7268 = vpop.f32.mrf.mxu0
    %7269 = vmatprep.mubr.f32.mxu0 %v6216
    %7270 = vmatmul.mubr.f32.gmra.mxu0 %v6215
    %v7271 = vpop.f32.mrf.mxu0
    %v7272 = vadd.f32 0.0, %v7271
    %v7273 = vpop.f32.mrf.mxu0
    %7274 = vmatprep.mubr.f32.mxu0 %v6225
    %7275 = vmatmul.mubr.f32.gmra.mxu0 %v6224
    %v7276 = vpop.f32.mrf.mxu0
    %v7277 = vadd.f32 0.0, %v7276
    %v7278 = vpop.f32.mrf.mxu0
    %7279 = vmatprep.mubr.f32.mxu0 %v6234
    %7280 = vmatmul.mubr.f32.gmra.mxu0 %v6233
    %v7281 = vpop.f32.mrf.mxu0
    %v7282 = vadd.f32 0.0, %v7281
    %v7283 = vpop.f32.mrf.mxu0
    %7284 = vmatprep.mubr.f32.mxu0 %v6243
    %7285 = vmatmul.mubr.f32.gmra.mxu0 %v6242
    %v7286 = vpop.f32.mrf.mxu0
    %v7287 = vadd.f32 0.0, %v7286
    %v7288 = vpop.f32.mrf.mxu0
    %7289 = vmatprep.mubr.f32.mxu0 %v6252
    %7290 = vmatmul.mubr.f32.gmra.mxu0 %v6251
    %v7291 = vpop.f32.mrf.mxu0
    %v7292 = vadd.f32 0.0, %v7291
    %v7293 = vpop.f32.mrf.mxu0
    %7294 = vmatprep.mubr.f32.mxu0 %v6261
    %7295 = vmatmul.mubr.f32.gmra.mxu0 %v6260
    %v7296 = vpop.f32.mrf.mxu0
    %v7297 = vadd.f32 0.0, %v7296
    %v7298 = vpop.f32.mrf.mxu0
    %7299 = vmatprep.mubr.f32.mxu0 %v6270
    %7300 = vmatmul.mubr.f32.gmra.mxu0 %v6269
    %v7301 = vpop.f32.mrf.mxu0
    %v7302 = vadd.f32 0.0, %v7301
    %v7303 = vpop.f32.mrf.mxu0
    %7304 = vmatprep.mubr.f32.mxu0 %v6279
    %7305 = vmatmul.mubr.f32.gmra.mxu0 %v6278
    %v7306 = vpop.f32.mrf.mxu0
    %v7307 = vadd.f32 0.0, %v7306
    %v7308 = vpop.f32.mrf.mxu0
    %7309 = vmatprep.mubr.f32.mxu0 %v6288
    %7310 = vmatmul.mubr.f32.gmra.mxu0 %v6287
    %v7311 = vpop.f32.mrf.mxu0
    %v7312 = vadd.f32 0.0, %v7311
    %v7313 = vpop.f32.mrf.mxu0
    %7314 = vmatprep.mubr.f32.mxu0 %v6297
    %7315 = vmatmul.mubr.f32.gmra.mxu0 %v6296
    %v7316 = vpop.f32.mrf.mxu0
    %v7317 = vadd.f32 0.0, %v7316
    %v7318 = vpop.f32.mrf.mxu0
    %7319 = vmatprep.mubr.f32.mxu0 %v6306
    %7320 = vmatmul.mubr.f32.gmra.mxu0 %v6305
    %v7321 = vpop.f32.mrf.mxu0
    %v7322 = vadd.f32 0.0, %v7321
    %v7323 = vpop.f32.mrf.mxu0
    %7324 = vmatprep.mubr.f32.mxu0 %v6315
    %7325 = vmatmul.mubr.f32.gmra.mxu0 %v6314
    %v7326 = vpop.f32.mrf.mxu0
    %v7327 = vadd.f32 0.0, %v7326
    %v7328 = vpop.f32.mrf.mxu0
    %7329 = vmatprep.mubr.f32.mxu0 %v6324
    %7330 = vmatmul.mubr.f32.gmra.mxu0 %v6323
    %v7331 = vpop.f32.mrf.mxu0
    %v7332 = vadd.f32 0.0, %v7331
    %v7333 = vpop.f32.mrf.mxu0
    %7334 = vmatprep.mubr.f32.mxu0 %v6333
    %7335 = vmatmul.mubr.f32.gmra.mxu0 %v6332
    %v7336 = vpop.f32.mrf.mxu0
    %v7337 = vadd.f32 0.0, %v7336
    %v7338 = vpop.f32.mrf.mxu0
    %7339 = vmatprep.mubr.f32.mxu0 %v6342
    %7340 = vmatmul.mubr.f32.gmra.mxu0 %v6341
    %v7341 = vpop.f32.mrf.mxu0
    %v7342 = vadd.f32 0.0, %v7341
    %v7343 = vpop.f32.mrf.mxu0
    %7344 = vmatprep.mubr.f32.mxu0 %v6351
    %7345 = vmatmul.mubr.f32.gmra.mxu0 %v6350
    %v7346 = vpop.f32.mrf.mxu0
    %v7347 = vadd.f32 0.0, %v7346
    %v7348 = vpop.f32.mrf.mxu0
    %7349 = vmatprep.mubr.f32.mxu0 %v6360
    %7350 = vmatmul.mubr.f32.gmra.mxu0 %v6359
    %v7351 = vpop.f32.mrf.mxu0
    %v7352 = vadd.f32 0.0, %v7351
    %v7353 = vpop.f32.mrf.mxu0
    %7354 = vmatprep.mubr.f32.mxu0 %v6369
    %7355 = vmatmul.mubr.f32.gmra.mxu0 %v6368
    %v7356 = vpop.f32.mrf.mxu0
    %v7357 = vadd.f32 0.0, %v7356
    %v7358 = vpop.f32.mrf.mxu0
    %7359 = vmatprep.mubr.f32.mxu0 %v6378
    %7360 = vmatmul.mubr.f32.gmra.mxu0 %v6377
    %v7361 = vpop.f32.mrf.mxu0
    %v7362 = vadd.f32 0.0, %v7361
    %v7363 = vpop.f32.mrf.mxu0
    %7364 = vmatprep.mubr.f32.mxu0 %v6387
    %7365 = vmatmul.mubr.f32.gmra.mxu0 %v6386
    %v7366 = vpop.f32.mrf.mxu0
    %v7367 = vadd.f32 0.0, %v7366
    %v7368 = vpop.f32.mrf.mxu0
    %7369 = vmatprep.mubr.f32.mxu0 %v6396
    %7370 = vmatmul.mubr.f32.gmra.mxu0 %v6395
    %v7371 = vpop.f32.mrf.mxu0
    %v7372 = vadd.f32 0.0, %v7371
    %v7373 = vpop.f32.mrf.mxu0
    %7374 = vmatprep.mubr.f32.mxu0 %v6405
    %7375 = vmatmul.mubr.f32.gmra.mxu0 %v6404
    %v7376 = vpop.f32.mrf.mxu0
    %v7377 = vadd.f32 0.0, %v7376
    %v7378 = vpop.f32.mrf.mxu0
    %7379 = vmatprep.mubr.f32.mxu0 %v6414
    %7380 = vmatmul.mubr.f32.gmra.mxu0 %v6413
    %v7381 = vpop.f32.mrf.mxu0
    %v7382 = vadd.f32 0.0, %v7381
    %v7383 = vpop.f32.mrf.mxu0
    %7384 = vmatprep.mubr.f32.mxu0 %v6423
    %7385 = vmatmul.mubr.f32.gmra.mxu0 %v6422
    %v7386 = vpop.f32.mrf.mxu0
    %v7387 = vadd.f32 0.0, %v7386
    %v7388 = vpop.f32.mrf.mxu0
    %7389 = vmatprep.mubr.f32.mxu0 %v6432
    %7390 = vmatmul.mubr.f32.gmra.mxu0 %v6431
    %v7391 = vpop.f32.mrf.mxu0
    %v7392 = vadd.f32 0.0, %v7391
    %v7393 = vpop.f32.mrf.mxu0
    %7394 = vmatprep.mubr.f32.mxu0 %v6441
    %7395 = vmatmul.mubr.f32.gmra.mxu0 %v6440
    %v7396 = vpop.f32.mrf.mxu0
    %v7397 = vadd.f32 0.0, %v7396
    %v7398 = vpop.f32.mrf.mxu0
    %7399 = vmatprep.mubr.f32.mxu0 %v6450
    %7400 = vmatmul.mubr.f32.gmra.mxu0 %v6449
    %v7401 = vpop.f32.mrf.mxu0
    %v7402 = vadd.f32 0.0, %v7401
    %v7403 = vpop.f32.mrf.mxu0
    %7404 = vmatprep.mubr.f32.mxu0 %v6459
    %7405 = vmatmul.mubr.f32.gmra.mxu0 %v6458
    %v7406 = vpop.f32.mrf.mxu0
    %v7407 = vadd.f32 0.0, %v7406
    %v7408 = vpop.f32.mrf.mxu0
    %7409 = vmatprep.mubr.f32.mxu0 %v6468
    %7410 = vmatmul.mubr.f32.gmra.mxu0 %v6467
    %v7411 = vpop.f32.mrf.mxu0
    %v7412 = vadd.f32 0.0, %v7411
    %v7413 = vpop.f32.mrf.mxu0
    %7414 = vmatprep.mubr.f32.mxu0 %v6477
    %7415 = vmatmul.mubr.f32.gmra.mxu0 %v6476
    %v7416 = vpop.f32.mrf.mxu0
    %v7417 = vadd.f32 0.0, %v7416
    %v7418 = vpop.f32.mrf.mxu0
    %7419 = vmatprep.mubr.f32.mxu0 %v6486
    %7420 = vmatmul.mubr.f32.gmra.mxu0 %v6485
    %v7421 = vpop.f32.mrf.mxu0
    %v7422 = vadd.f32 0.0, %v7421
    %v7423 = vpop.f32.mrf.mxu0
    %7424 = vmatprep.mubr.f32.mxu0 %v6495
    %7425 = vmatmul.mubr.f32.gmra.mxu0 %v6494
    %v7426 = vpop.f32.mrf.mxu0
    %v7427 = vadd.f32 0.0, %v7426
    %v7428 = vpop.f32.mrf.mxu0
    %7429 = vmatprep.mubr.f32.mxu0 %v6504
    %7430 = vmatmul.mubr.f32.gmra.mxu0 %v6503
    %v7431 = vpop.f32.mrf.mxu0
    %v7432 = vadd.f32 0.0, %v7431
    %v7433 = vpop.f32.mrf.mxu0
    %7434 = vmatprep.mubr.f32.mxu0 %v6513
    %7435 = vmatmul.mubr.f32.gmra.mxu0 %v6512
    %v7436 = vpop.f32.mrf.mxu0
    %v7437 = vadd.f32 0.0, %v7436
    %v7438 = vpop.f32.mrf.mxu0
    %7439 = vmatprep.mubr.f32.mxu0 %v6522
    %7440 = vmatmul.mubr.f32.gmra.mxu0 %v6521
    %v7441 = vpop.f32.mrf.mxu0
    %v7442 = vadd.f32 0.0, %v7441
    %v7443 = vpop.f32.mrf.mxu0
    %7444 = vmatprep.mubr.f32.mxu0 %v6531
    %7445 = vmatmul.mubr.f32.gmra.mxu0 %v6530
    %v7446 = vpop.f32.mrf.mxu0
    %v7447 = vadd.f32 0.0, %v7446
    %v7448 = vpop.f32.mrf.mxu0
    %7449 = vmatprep.mubr.f32.mxu0 %v6540
    %7450 = vmatmul.mubr.f32.gmra.mxu0 %v6539
    %v7451 = vpop.f32.mrf.mxu0
    %v7452 = vadd.f32 0.0, %v7451
    %v7453 = vpop.f32.mrf.mxu0
    %7454 = vmatprep.mubr.f32.mxu0 %v6549
    %7455 = vmatmul.mubr.f32.gmra.mxu0 %v6548
    %v7456 = vpop.f32.mrf.mxu0
    %v7457 = vadd.f32 0.0, %v7456
    %v7458 = vpop.f32.mrf.mxu0
    %7459 = vmatprep.mubr.f32.mxu0 %v6558
    %7460 = vmatmul.mubr.f32.gmra.mxu0 %v6557
    %v7461 = vpop.f32.mrf.mxu0
    %v7462 = vadd.f32 0.0, %v7461
    %v7463 = vpop.f32.mrf.mxu0
    %7464 = vmatprep.mubr.f32.mxu0 %v6567
    %7465 = vmatmul.mubr.f32.gmra.mxu0 %v6566
    %v7466 = vpop.f32.mrf.mxu0
    %v7467 = vadd.f32 0.0, %v7466
    %v7468 = vpop.f32.mrf.mxu0
    %7469 = vmatprep.mubr.f32.mxu0 %v6576
    %7470 = vmatmul.mubr.f32.gmra.mxu0 %v6575
    %v7471 = vpop.f32.mrf.mxu0
    %v7472 = vadd.f32 0.0, %v7471
    %v7473 = vpop.f32.mrf.mxu0
    %7474 = vmatprep.mubr.f32.mxu0 %v6585
    %7475 = vmatmul.mubr.f32.gmra.mxu0 %v6584
    %v7476 = vpop.f32.mrf.mxu0
    %v7477 = vadd.f32 0.0, %v7476
    %v7478 = vpop.f32.mrf.mxu0
    %7479 = vmatprep.mubr.f32.mxu0 %v6594
    %7480 = vmatmul.mubr.f32.gmra.mxu0 %v6593
    %v7481 = vpop.f32.mrf.mxu0
    %v7482 = vadd.f32 0.0, %v7481
    %v7483 = vpop.f32.mrf.mxu0
    %7484 = vmatprep.mubr.f32.mxu0 %v6603
    %7485 = vmatmul.mubr.f32.gmra.mxu0 %v6602
    %v7486 = vpop.f32.mrf.mxu0
    %v7487 = vadd.f32 0.0, %v7486
    %v7488 = vpop.f32.mrf.mxu0
    %7489 = vmatprep.mubr.f32.mxu0 %v6612
    %7490 = vmatmul.mubr.f32.gmra.mxu0 %v6611
    %v7491 = vpop.f32.mrf.mxu0
    %v7492 = vadd.f32 0.0, %v7491
    %v7493 = vpop.f32.mrf.mxu0
    %7494 = vmatprep.mubr.f32.mxu0 %v6621
    %7495 = vmatmul.mubr.f32.gmra.mxu0 %v6620
    %v7496 = vpop.f32.mrf.mxu0
    %v7497 = vadd.f32 0.0, %v7496
    %v7498 = vpop.f32.mrf.mxu0
    %7499 = vmatprep.mubr.f32.mxu0 %v6630
    %7500 = vmatmul.mubr.f32.gmra.mxu0 %v6629
    %v7501 = vpop.f32.mrf.mxu0
    %v7502 = vadd.f32 0.0, %v7501
    %v7503 = vpop.f32.mrf.mxu0
    %7504 = vmatprep.mubr.f32.mxu0 %v6639
    %7505 = vmatmul.mubr.f32.gmra.mxu0 %v6638
    %v7506 = vpop.f32.mrf.mxu0
    %v7507 = vadd.f32 0.0, %v7506
    %v7508 = vpop.f32.mrf.mxu0
    %7509 = vmatprep.mubr.f32.mxu0 %v6648
    %7510 = vmatmul.mubr.f32.gmra.mxu0 %v6647
    %v7511 = vpop.f32.mrf.mxu0
    %v7512 = vadd.f32 0.0, %v7511
    %v7513 = vpop.f32.mrf.mxu0
    %7514 = vmatprep.mubr.f32.mxu0 %v6657
    %7515 = vmatmul.mubr.f32.gmra.mxu0 %v6656
    %v7516 = vpop.f32.mrf.mxu0
    %v7517 = vadd.f32 0.0, %v7516
    %v7518 = vpop.f32.mrf.mxu0
    %7519 = vmatprep.mubr.f32.mxu0 %v6666
    %7520 = vmatmul.mubr.f32.gmra.mxu0 %v6665
    %v7521 = vpop.f32.mrf.mxu0
    %v7522 = vadd.f32 0.0, %v7521
    %v7523 = vpop.f32.mrf.mxu0
    %7524 = vmatprep.mubr.f32.mxu0 %v6675
    %7525 = vmatmul.mubr.f32.gmra.mxu0 %v6674
    %v7526 = vpop.f32.mrf.mxu0
    %v7527 = vadd.f32 0.0, %v7526
    %v7528 = vpop.f32.mrf.mxu0
    %7529 = vmatprep.mubr.f32.mxu0 %v6684
    %7530 = vmatmul.mubr.f32.gmra.mxu0 %v6683
    %v7531 = vpop.f32.mrf.mxu0
    %v7532 = vadd.f32 0.0, %v7531
    %v7533 = vpop.f32.mrf.mxu0
    %7534 = vmatprep.mubr.f32.mxu0 %v6693
    %7535 = vmatmul.mubr.f32.gmra.mxu0 %v6692
    %v7536 = vpop.f32.mrf.mxu0
    %v7537 = vadd.f32 0.0, %v7536
    %v7538 = vpop.f32.mrf.mxu0
    %7539 = vmatprep.mubr.f32.mxu0 %v6702
    %7540 = vmatmul.mubr.f32.gmra.mxu0 %v6701
    %v7541 = vpop.f32.mrf.mxu0
    %v7542 = vadd.f32 0.0, %v7541
    %v7543 = vpop.f32.mrf.mxu0
    %7544 = vmatprep.mubr.f32.mxu0 %v6711
    %7545 = vmatmul.mubr.f32.gmra.mxu0 %v6710
    %v7546 = vpop.f32.mrf.mxu0
    %v7547 = vadd.f32 0.0, %v7546
    %v7548 = vpop.f32.mrf.mxu0
    %7549 = vmatprep.mubr.f32.mxu0 %v6720
    %7550 = vmatmul.mubr.f32.gmra.mxu0 %v6719
    %v7551 = vpop.f32.mrf.mxu0
    %v7552 = vadd.f32 0.0, %v7551
    %v7553 = vpop.f32.mrf.mxu0
    %7554 = vmatprep.mubr.f32.mxu0 %v6729
    %7555 = vmatmul.mubr.f32.gmra.mxu0 %v6728
    %v7556 = vpop.f32.mrf.mxu0
    %v7557 = vadd.f32 0.0, %v7556
    %v7558 = vpop.f32.mrf.mxu0
    %7559 = vmatprep.mubr.f32.mxu0 %v6738
    %7560 = vmatmul.mubr.f32.gmra.mxu0 %v6737
    %v7561 = vpop.f32.mrf.mxu0
    %v7562 = vadd.f32 0.0, %v7561
    %v7563 = vpop.f32.mrf.mxu0
    %7564 = vmatprep.mubr.f32.mxu0 %v6747
    %7565 = vmatmul.mubr.f32.gmra.mxu0 %v6746
    %v7566 = vpop.f32.mrf.mxu0
    %v7567 = vadd.f32 0.0, %v7566
    %v7568 = vpop.f32.mrf.mxu0
    %7569 = vmatprep.mubr.f32.mxu0 %v6756
    %7570 = vmatmul.mubr.f32.gmra.mxu0 %v6755
    %v7571 = vpop.f32.mrf.mxu0
    %v7572 = vadd.f32 0.0, %v7571
    %v7573 = vpop.f32.mrf.mxu0
    %7574 = vmatprep.mubr.f32.mxu0 %v6765
    %7575 = vmatmul.mubr.f32.gmra.mxu0 %v6764
    %v7576 = vpop.f32.mrf.mxu0
    %v7577 = vadd.f32 0.0, %v7576
    %v7578 = vpop.f32.mrf.mxu0
    %7579 = vmatprep.mubr.f32.mxu0 %v6774
    %7580 = vmatmul.mubr.f32.gmra.mxu0 %v6773
    %v7581 = vpop.f32.mrf.mxu0
    %v7582 = vadd.f32 0.0, %v7581
    %v7583 = vpop.f32.mrf.mxu0
    %7584 = vmatprep.mubr.f32.mxu0 %v6783
    %7585 = vmatmul.mubr.f32.gmra.mxu0 %v6782
    %v7586 = vpop.f32.mrf.mxu0
    %v7587 = vadd.f32 0.0, %v7586
    %v7588 = vpop.f32.mrf.mxu0
    %7589 = vmatprep.mubr.f32.mxu0 %v6792
    %7590 = vmatmul.mubr.f32.gmra.mxu0 %v6791
    %v7591 = vpop.f32.mrf.mxu0
    %v7592 = vadd.f32 0.0, %v7591
    %v7593 = vpop.f32.mrf.mxu0
    %7594 = vmatprep.mubr.f32.mxu0 %v6801
    %7595 = vmatmul.mubr.f32.gmra.mxu0 %v6800
    %v7596 = vpop.f32.mrf.mxu0
    %v7597 = vadd.f32 0.0, %v7596
    %v7598 = vpop.f32.mrf.mxu0
    %7599 = vmatprep.mubr.f32.mxu0 %v6810
    %7600 = vmatmul.mubr.f32.gmra.mxu0 %v6809
    %v7601 = vpop.f32.mrf.mxu0
    %v7602 = vadd.f32 0.0, %v7601
    %v7603 = vpop.f32.mrf.mxu0
    %7604 = vmatprep.mubr.f32.mxu0 %v6819
    %7605 = vmatmul.mubr.f32.gmra.mxu0 %v6818
    %v7606 = vpop.f32.mrf.mxu0
    %v7607 = vadd.f32 0.0, %v7606
    %v7608 = vpop.f32.mrf.mxu0
    %7609 = vmatprep.mubr.f32.mxu0 %v6828
    %7610 = vmatmul.mubr.f32.gmra.mxu0 %v6827
    %v7611 = vpop.f32.mrf.mxu0
    %v7612 = vadd.f32 0.0, %v7611
    %v7613 = vpop.f32.mrf.mxu0
    %7614 = vmatprep.mubr.f32.mxu0 %v6837
    %7615 = vmatmul.mubr.f32.gmra.mxu0 %v6836
    %v7616 = vpop.f32.mrf.mxu0
    %v7617 = vadd.f32 0.0, %v7616
    %v7618 = vpop.f32.mrf.mxu0
    %7619 = vmatprep.mubr.f32.mxu0 %v6846
    %7620 = vmatmul.mubr.f32.gmra.mxu0 %v6845
    %v7621 = vpop.f32.mrf.mxu0
    %v7622 = vadd.f32 0.0, %v7621
    %v7623 = vpop.f32.mrf.mxu0
    %7624 = vmatprep.mubr.f32.mxu0 %v6855
    %7625 = vmatmul.mubr.f32.gmra.mxu0 %v6854
    %v7626 = vpop.f32.mrf.mxu0
    %v7627 = vadd.f32 0.0, %v7626
    %v7628 = vpop.f32.mrf.mxu0
    %7629 = vmatprep.mubr.f32.mxu0 %v6864
    %7630 = vmatmul.mubr.f32.gmra.mxu0 %v6863
    %v7631 = vpop.f32.mrf.mxu0
    %v7632 = vadd.f32 0.0, %v7631
    %v7633 = vpop.f32.mrf.mxu0
    %7634 = vmatprep.mubr.f32.mxu0 %v6873
    %7635 = vmatmul.mubr.f32.gmra.mxu0 %v6872
    %v7636 = vpop.f32.mrf.mxu0
    %v7637 = vadd.f32 0.0, %v7636
    %v7638 = vpop.f32.mrf.mxu0
    %7639 = vmatprep.mubr.f32.mxu0 %v6882
    %7640 = vmatmul.mubr.f32.gmra.mxu0 %v6881
    %v7641 = vpop.f32.mrf.mxu0
    %v7642 = vadd.f32 0.0, %v7641
    %v7643 = vpop.f32.mrf.mxu0
    %7644 = vmatprep.mubr.f32.mxu0 %v6891
    %7645 = vmatmul.mubr.f32.gmra.mxu0 %v6890
    %v7646 = vpop.f32.mrf.mxu0
    %v7647 = vadd.f32 0.0, %v7646
    %v7648 = vpop.f32.mrf.mxu0
    %7649 = vmatprep.mubr.f32.mxu0 %v6900
    %7650 = vmatmul.mubr.f32.gmra.mxu0 %v6899
    %v7651 = vpop.f32.mrf.mxu0
    %v7652 = vadd.f32 0.0, %v7651
    %v7653 = vpop.f32.mrf.mxu0
    %7654 = vmatprep.mubr.f32.mxu0 %v6909
    %7655 = vmatmul.mubr.f32.gmra.mxu0 %v6908
    %v7656 = vpop.f32.mrf.mxu0
    %v7657 = vadd.f32 0.0, %v7656
    %v7658 = vpop.f32.mrf.mxu0
    %7659 = vmatprep.mubr.f32.mxu0 %v6918
    %7660 = vmatmul.mubr.f32.gmra.mxu0 %v6917
    %v7661 = vpop.f32.mrf.mxu0
    %v7662 = vadd.f32 0.0, %v7661
    %v7663 = vpop.f32.mrf.mxu0
    %7664 = vmatprep.mubr.f32.mxu0 %v6927
    %7665 = vmatmul.mubr.f32.gmra.mxu0 %v6926
    %v7666 = vpop.f32.mrf.mxu0
    %v7667 = vadd.f32 0.0, %v7666
    %v7668 = vpop.f32.mrf.mxu0
    %7669 = vmatprep.mubr.f32.mxu0 %v6936
    %7670 = vmatmul.mubr.f32.gmra.mxu0 %v6935
    %v7671 = vpop.f32.mrf.mxu0
    %v7672 = vadd.f32 0.0, %v7671
    %v7673 = vpop.f32.mrf.mxu0
    %7674 = vmatprep.mubr.f32.mxu0 %v6945
    %7675 = vmatmul.mubr.f32.gmra.mxu0 %v6944
    %v7676 = vpop.f32.mrf.mxu0
    %v7677 = vadd.f32 0.0, %v7676
    %v7678 = vpop.f32.mrf.mxu0
    %7679 = vmatprep.mubr.f32.mxu0 %v6954
    %7680 = vmatmul.mubr.f32.gmra.mxu0 %v6953
    %v7681 = vpop.f32.mrf.mxu0
    %v7682 = vadd.f32 0.0, %v7681
    %v7683 = vpop.f32.mrf.mxu0
    %7684 = vmatprep.mubr.f32.mxu0 %v6963
    %7685 = vmatmul.mubr.f32.gmra.mxu0 %v6962
    %v7686 = vpop.f32.mrf.mxu0
    %v7687 = vadd.f32 0.0, %v7686
    %v7688 = vpop.f32.mrf.mxu0
    %7689 = vmatprep.mubr.f32.mxu0 %v6972
    %7690 = vmatmul.mubr.f32.gmra.mxu0 %v6971
    %v7691 = vpop.f32.mrf.mxu0
    %v7692 = vadd.f32 0.0, %v7691
    %v7693 = vpop.f32.mrf.mxu0
    %7694 = vmatprep.mubr.f32.mxu0 %v6981
    %7695 = vmatmul.mubr.f32.gmra.mxu0 %v6980
    %v7696 = vpop.f32.mrf.mxu0
    %v7697 = vadd.f32 0.0, %v7696
    %v7698 = vpop.f32.mrf.mxu0
    %7699 = vmatprep.mubr.f32.mxu0 %v6990
    %7700 = vmatmul.mubr.f32.gmra.mxu0 %v6989
    %v7701 = vpop.f32.mrf.mxu0
    %v7702 = vadd.f32 0.0, %v7701
    %v7703 = vpop.f32.mrf.mxu0
    %7704 = vmatprep.mubr.f32.mxu0 %v6999
    %7705 = vmatmul.mubr.f32.gmra.mxu0 %v6998
    %v7706 = vpop.f32.mrf.mxu0
    %v7707 = vadd.f32 0.0, %v7706
    %v7708 = vpop.f32.mrf.mxu0
    %7709 = vmatprep.mubr.f32.mxu0 %v7008
    %7710 = vmatmul.mubr.f32.gmra.mxu0 %v7007
    %v7711 = vpop.f32.mrf.mxu0
    %v7712 = vadd.f32 0.0, %v7711
    %v7713 = vpop.f32.mrf.mxu0
    %7714 = vdwg.mxu0
    %7715 = vmatprep.subr.mxu0 0.0
    %7716 = vmatpush1.msra.mxu0 %v7063
    %7717 = vmatprep.subr.mxu0 0.0
    %7718 = vmatpush1.msra.mxu0 %v7062
    %7719 = vmatprep.subr.mxu0 0.0
    %7720 = vmatpush1.msra.mxu0 %v7061
    %7721 = vmatprep.subr.mxu0 0.0
    %7722 = vmatpush1.msra.mxu0 %v7060
    %7723 = vmatprep.subr.mxu0 0.0
    %7724 = vmatpush1.msra.mxu0 %v7059
    %7725 = vmatprep.subr.mxu0 0.0
    %7726 = vmatpush1.msra.mxu0 %v7058
    %7727 = vmatprep.subr.mxu0 0.0
    %7728 = vmatpush1.msra.mxu0 %v7057
    %7729 = vmatprep.subr.mxu0 0.0
    %7730 = vmatpush1.msra.mxu0 %v7056
    %7731 = vmatprep.subr.mxu0 0.0
    %7732 = vmatpush1.msra.mxu0 %v7055
    %7733 = vmatprep.subr.mxu0 0.0
    %7734 = vmatpush1.msra.mxu0 %v7054
    %7735 = vmatprep.subr.mxu0 0.0
    %7736 = vmatpush1.msra.mxu0 %v7053
    %7737 = vmatprep.subr.mxu0 0.0
    %7738 = vmatpush1.msra.mxu0 %v7052
    %7739 = vmatprep.subr.mxu0 0.0
    %7740 = vmatpush1.msra.mxu0 %v7051
    %7741 = vmatprep.subr.mxu0 0.0
    %7742 = vmatpush1.msra.mxu0 %v7050
    %7743 = vmatprep.subr.mxu0 0.0
    %7744 = vmatpush1.msra.mxu0 %v7049
    %7745 = vmatprep.subr.mxu0 0.0
    %7746 = vmatpush1.msra.mxu0 %v7048
    %7747 = vmatprep.subr.mxu0 0.0
    %7748 = vmatpush2.msra.mxu0 %v7079
    %7749 = vmatprep.subr.mxu0 0.0
    %7750 = vmatpush2.msra.mxu0 %v7078
    %7751 = vmatprep.subr.mxu0 0.0
    %7752 = vmatpush2.msra.mxu0 %v7077
    %7753 = vmatprep.subr.mxu0 0.0
    %7754 = vmatpush2.msra.mxu0 %v7076
    %7755 = vmatprep.subr.mxu0 0.0
    %7756 = vmatpush2.msra.mxu0 %v7075
    %7757 = vmatprep.subr.mxu0 0.0
    %7758 = vmatpush2.msra.mxu0 %v7074
    %7759 = vmatprep.subr.mxu0 0.0
    %7760 = vmatpush2.msra.mxu0 %v7073
    %7761 = vmatprep.subr.mxu0 0.0
    %7762 = vmatpush2.msra.mxu0 %v7072
    %7763 = vmatprep.subr.mxu0 0.0
    %7764 = vmatpush2.msra.mxu0 %v7071
    %7765 = vmatprep.subr.mxu0 0.0
    %7766 = vmatpush2.msra.mxu0 %v7070
    %7767 = vmatprep.subr.mxu0 0.0
    %7768 = vmatpush2.msra.mxu0 %v7069
    %7769 = vmatprep.subr.mxu0 0.0
    %7770 = vmatpush2.msra.mxu0 %v7068
    %7771 = vmatprep.subr.mxu0 0.0
    %7772 = vmatpush2.msra.mxu0 %v7067
    %7773 = vmatprep.subr.mxu0 0.0
    %7774 = vmatpush2.msra.mxu0 %v7066
    %7775 = vmatprep.subr.mxu0 0.0
    %7776 = vmatpush2.msra.mxu0 %v7065
    %7777 = vmatprep.subr.mxu0 0.0
    %7778 = vmatpush2.msra.mxu0 %v7064
    %7779 = vmatprep.mubr.f32.mxu0 %v6137
    %7780 = vmatmul.mubr.f32.gmra.mxu0 %v6136
    %v7781 = vpop.f32.mrf.mxu0
    %v7782 = vadd.f32 %v7227, %v7781
    %v7783 = vpop.f32.mrf.mxu0
    %7784 = vmatprep.mubr.f32.mxu0 %v6146
    %7785 = vmatmul.mubr.f32.gmra.mxu0 %v6145
    %v7786 = vpop.f32.mrf.mxu0
    %v7787 = vadd.f32 %v7232, %v7786
    %v7788 = vpop.f32.mrf.mxu0
    %7789 = vmatprep.mubr.f32.mxu0 %v6155
    %7790 = vmatmul.mubr.f32.gmra.mxu0 %v6154
    %v7791 = vpop.f32.mrf.mxu0
    %v7792 = vadd.f32 %v7237, %v7791
    %v7793 = vpop.f32.mrf.mxu0
    %7794 = vmatprep.mubr.f32.mxu0 %v6164
    %7795 = vmatmul.mubr.f32.gmra.mxu0 %v6163
    %v7796 = vpop.f32.mrf.mxu0
    %v7797 = vadd.f32 %v7242, %v7796
    %v7798 = vpop.f32.mrf.mxu0
    %7799 = vmatprep.mubr.f32.mxu0 %v6173
    %7800 = vmatmul.mubr.f32.gmra.mxu0 %v6172
    %v7801 = vpop.f32.mrf.mxu0
    %v7802 = vadd.f32 %v7247, %v7801
    %v7803 = vpop.f32.mrf.mxu0
    %7804 = vmatprep.mubr.f32.mxu0 %v6182
    %7805 = vmatmul.mubr.f32.gmra.mxu0 %v6181
    %v7806 = vpop.f32.mrf.mxu0
    %v7807 = vadd.f32 %v7252, %v7806
    %v7808 = vpop.f32.mrf.mxu0
    %7809 = vmatprep.mubr.f32.mxu0 %v6191
    %7810 = vmatmul.mubr.f32.gmra.mxu0 %v6190
    %v7811 = vpop.f32.mrf.mxu0
    %v7812 = vadd.f32 %v7257, %v7811
    %v7813 = vpop.f32.mrf.mxu0
    %7814 = vmatprep.mubr.f32.mxu0 %v6200
    %7815 = vmatmul.mubr.f32.gmra.mxu0 %v6199
    %v7816 = vpop.f32.mrf.mxu0
    %v7817 = vadd.f32 %v7262, %v7816
    %v7818 = vpop.f32.mrf.mxu0
    %7819 = vmatprep.mubr.f32.mxu0 %v6209
    %7820 = vmatmul.mubr.f32.gmra.mxu0 %v6208
    %v7821 = vpop.f32.mrf.mxu0
    %v7822 = vadd.f32 %v7267, %v7821
    %v7823 = vpop.f32.mrf.mxu0
    %7824 = vmatprep.mubr.f32.mxu0 %v6218
    %7825 = vmatmul.mubr.f32.gmra.mxu0 %v6217
    %v7826 = vpop.f32.mrf.mxu0
    %v7827 = vadd.f32 %v7272, %v7826
    %v7828 = vpop.f32.mrf.mxu0
    %7829 = vmatprep.mubr.f32.mxu0 %v6227
    %7830 = vmatmul.mubr.f32.gmra.mxu0 %v6226
    %v7831 = vpop.f32.mrf.mxu0
    %v7832 = vadd.f32 %v7277, %v7831
    %v7833 = vpop.f32.mrf.mxu0
    %7834 = vmatprep.mubr.f32.mxu0 %v6236
    %7835 = vmatmul.mubr.f32.gmra.mxu0 %v6235
    %v7836 = vpop.f32.mrf.mxu0
    %v7837 = vadd.f32 %v7282, %v7836
    %v7838 = vpop.f32.mrf.mxu0
    %7839 = vmatprep.mubr.f32.mxu0 %v6245
    %7840 = vmatmul.mubr.f32.gmra.mxu0 %v6244
    %v7841 = vpop.f32.mrf.mxu0
    %v7842 = vadd.f32 %v7287, %v7841
    %v7843 = vpop.f32.mrf.mxu0
    %7844 = vmatprep.mubr.f32.mxu0 %v6254
    %7845 = vmatmul.mubr.f32.gmra.mxu0 %v6253
    %v7846 = vpop.f32.mrf.mxu0
    %v7847 = vadd.f32 %v7292, %v7846
    %v7848 = vpop.f32.mrf.mxu0
    %7849 = vmatprep.mubr.f32.mxu0 %v6263
    %7850 = vmatmul.mubr.f32.gmra.mxu0 %v6262
    %v7851 = vpop.f32.mrf.mxu0
    %v7852 = vadd.f32 %v7297, %v7851
    %v7853 = vpop.f32.mrf.mxu0
    %7854 = vmatprep.mubr.f32.mxu0 %v6272
    %7855 = vmatmul.mubr.f32.gmra.mxu0 %v6271
    %v7856 = vpop.f32.mrf.mxu0
    %v7857 = vadd.f32 %v7302, %v7856
    %v7858 = vpop.f32.mrf.mxu0
    %7859 = vmatprep.mubr.f32.mxu0 %v6281
    %7860 = vmatmul.mubr.f32.gmra.mxu0 %v6280
    %v7861 = vpop.f32.mrf.mxu0
    %v7862 = vadd.f32 %v7307, %v7861
    %v7863 = vpop.f32.mrf.mxu0
    %7864 = vmatprep.mubr.f32.mxu0 %v6290
    %7865 = vmatmul.mubr.f32.gmra.mxu0 %v6289
    %v7866 = vpop.f32.mrf.mxu0
    %v7867 = vadd.f32 %v7312, %v7866
    %v7868 = vpop.f32.mrf.mxu0
    %7869 = vmatprep.mubr.f32.mxu0 %v6299
    %7870 = vmatmul.mubr.f32.gmra.mxu0 %v6298
    %v7871 = vpop.f32.mrf.mxu0
    %v7872 = vadd.f32 %v7317, %v7871
    %v7873 = vpop.f32.mrf.mxu0
    %7874 = vmatprep.mubr.f32.mxu0 %v6308
    %7875 = vmatmul.mubr.f32.gmra.mxu0 %v6307
    %v7876 = vpop.f32.mrf.mxu0
    %v7877 = vadd.f32 %v7322, %v7876
    %v7878 = vpop.f32.mrf.mxu0
    %7879 = vmatprep.mubr.f32.mxu0 %v6317
    %7880 = vmatmul.mubr.f32.gmra.mxu0 %v6316
    %v7881 = vpop.f32.mrf.mxu0
    %v7882 = vadd.f32 %v7327, %v7881
    %v7883 = vpop.f32.mrf.mxu0
    %7884 = vmatprep.mubr.f32.mxu0 %v6326
    %7885 = vmatmul.mubr.f32.gmra.mxu0 %v6325
    %v7886 = vpop.f32.mrf.mxu0
    %v7887 = vadd.f32 %v7332, %v7886
    %v7888 = vpop.f32.mrf.mxu0
    %7889 = vmatprep.mubr.f32.mxu0 %v6335
    %7890 = vmatmul.mubr.f32.gmra.mxu0 %v6334
    %v7891 = vpop.f32.mrf.mxu0
    %v7892 = vadd.f32 %v7337, %v7891
    %v7893 = vpop.f32.mrf.mxu0
    %7894 = vmatprep.mubr.f32.mxu0 %v6344
    %7895 = vmatmul.mubr.f32.gmra.mxu0 %v6343
    %v7896 = vpop.f32.mrf.mxu0
    %v7897 = vadd.f32 %v7342, %v7896
    %v7898 = vpop.f32.mrf.mxu0
    %7899 = vmatprep.mubr.f32.mxu0 %v6353
    %7900 = vmatmul.mubr.f32.gmra.mxu0 %v6352
    %v7901 = vpop.f32.mrf.mxu0
    %v7902 = vadd.f32 %v7347, %v7901
    %v7903 = vpop.f32.mrf.mxu0
    %7904 = vmatprep.mubr.f32.mxu0 %v6362
    %7905 = vmatmul.mubr.f32.gmra.mxu0 %v6361
    %v7906 = vpop.f32.mrf.mxu0
    %v7907 = vadd.f32 %v7352, %v7906
    %v7908 = vpop.f32.mrf.mxu0
    %7909 = vmatprep.mubr.f32.mxu0 %v6371
    %7910 = vmatmul.mubr.f32.gmra.mxu0 %v6370
    %v7911 = vpop.f32.mrf.mxu0
    %v7912 = vadd.f32 %v7357, %v7911
    %v7913 = vpop.f32.mrf.mxu0
    %7914 = vmatprep.mubr.f32.mxu0 %v6380
    %7915 = vmatmul.mubr.f32.gmra.mxu0 %v6379
    %v7916 = vpop.f32.mrf.mxu0
    %v7917 = vadd.f32 %v7362, %v7916
    %v7918 = vpop.f32.mrf.mxu0
    %7919 = vmatprep.mubr.f32.mxu0 %v6389
    %7920 = vmatmul.mubr.f32.gmra.mxu0 %v6388
    %v7921 = vpop.f32.mrf.mxu0
    %v7922 = vadd.f32 %v7367, %v7921
    %v7923 = vpop.f32.mrf.mxu0
    %7924 = vmatprep.mubr.f32.mxu0 %v6398
    %7925 = vmatmul.mubr.f32.gmra.mxu0 %v6397
    %v7926 = vpop.f32.mrf.mxu0
    %v7927 = vadd.f32 %v7372, %v7926
    %v7928 = vpop.f32.mrf.mxu0
    %7929 = vmatprep.mubr.f32.mxu0 %v6407
    %7930 = vmatmul.mubr.f32.gmra.mxu0 %v6406
    %v7931 = vpop.f32.mrf.mxu0
    %v7932 = vadd.f32 %v7377, %v7931
    %v7933 = vpop.f32.mrf.mxu0
    %7934 = vmatprep.mubr.f32.mxu0 %v6416
    %7935 = vmatmul.mubr.f32.gmra.mxu0 %v6415
    %v7936 = vpop.f32.mrf.mxu0
    %v7937 = vadd.f32 %v7382, %v7936
    %v7938 = vpop.f32.mrf.mxu0
    %7939 = vmatprep.mubr.f32.mxu0 %v6425
    %7940 = vmatmul.mubr.f32.gmra.mxu0 %v6424
    %v7941 = vpop.f32.mrf.mxu0
    %v7942 = vadd.f32 %v7387, %v7941
    %v7943 = vpop.f32.mrf.mxu0
    %7944 = vmatprep.mubr.f32.mxu0 %v6434
    %7945 = vmatmul.mubr.f32.gmra.mxu0 %v6433
    %v7946 = vpop.f32.mrf.mxu0
    %v7947 = vadd.f32 %v7392, %v7946
    %v7948 = vpop.f32.mrf.mxu0
    %7949 = vmatprep.mubr.f32.mxu0 %v6443
    %7950 = vmatmul.mubr.f32.gmra.mxu0 %v6442
    %v7951 = vpop.f32.mrf.mxu0
    %v7952 = vadd.f32 %v7397, %v7951
    %v7953 = vpop.f32.mrf.mxu0
    %7954 = vmatprep.mubr.f32.mxu0 %v6452
    %7955 = vmatmul.mubr.f32.gmra.mxu0 %v6451
    %v7956 = vpop.f32.mrf.mxu0
    %v7957 = vadd.f32 %v7402, %v7956
    %v7958 = vpop.f32.mrf.mxu0
    %7959 = vmatprep.mubr.f32.mxu0 %v6461
    %7960 = vmatmul.mubr.f32.gmra.mxu0 %v6460
    %v7961 = vpop.f32.mrf.mxu0
    %v7962 = vadd.f32 %v7407, %v7961
    %v7963 = vpop.f32.mrf.mxu0
    %7964 = vmatprep.mubr.f32.mxu0 %v6470
    %7965 = vmatmul.mubr.f32.gmra.mxu0 %v6469
    %v7966 = vpop.f32.mrf.mxu0
    %v7967 = vadd.f32 %v7412, %v7966
    %v7968 = vpop.f32.mrf.mxu0
    %7969 = vmatprep.mubr.f32.mxu0 %v6479
    %7970 = vmatmul.mubr.f32.gmra.mxu0 %v6478
    %v7971 = vpop.f32.mrf.mxu0
    %v7972 = vadd.f32 %v7417, %v7971
    %v7973 = vpop.f32.mrf.mxu0
    %7974 = vmatprep.mubr.f32.mxu0 %v6488
    %7975 = vmatmul.mubr.f32.gmra.mxu0 %v6487
    %v7976 = vpop.f32.mrf.mxu0
    %v7977 = vadd.f32 %v7422, %v7976
    %v7978 = vpop.f32.mrf.mxu0
    %7979 = vmatprep.mubr.f32.mxu0 %v6497
    %7980 = vmatmul.mubr.f32.gmra.mxu0 %v6496
    %v7981 = vpop.f32.mrf.mxu0
    %v7982 = vadd.f32 %v7427, %v7981
    %v7983 = vpop.f32.mrf.mxu0
    %7984 = vmatprep.mubr.f32.mxu0 %v6506
    %7985 = vmatmul.mubr.f32.gmra.mxu0 %v6505
    %v7986 = vpop.f32.mrf.mxu0
    %v7987 = vadd.f32 %v7432, %v7986
    %v7988 = vpop.f32.mrf.mxu0
    %7989 = vmatprep.mubr.f32.mxu0 %v6515
    %7990 = vmatmul.mubr.f32.gmra.mxu0 %v6514
    %v7991 = vpop.f32.mrf.mxu0
    %v7992 = vadd.f32 %v7437, %v7991
    %v7993 = vpop.f32.mrf.mxu0
    %7994 = vmatprep.mubr.f32.mxu0 %v6524
    %7995 = vmatmul.mubr.f32.gmra.mxu0 %v6523
    %v7996 = vpop.f32.mrf.mxu0
    %v7997 = vadd.f32 %v7442, %v7996
    %v7998 = vpop.f32.mrf.mxu0
    %7999 = vmatprep.mubr.f32.mxu0 %v6533
    %8000 = vmatmul.mubr.f32.gmra.mxu0 %v6532
    %v8001 = vpop.f32.mrf.mxu0
    %v8002 = vadd.f32 %v7447, %v8001
    %v8003 = vpop.f32.mrf.mxu0
    %8004 = vmatprep.mubr.f32.mxu0 %v6542
    %8005 = vmatmul.mubr.f32.gmra.mxu0 %v6541
    %v8006 = vpop.f32.mrf.mxu0
    %v8007 = vadd.f32 %v7452, %v8006
    %v8008 = vpop.f32.mrf.mxu0
    %8009 = vmatprep.mubr.f32.mxu0 %v6551
    %8010 = vmatmul.mubr.f32.gmra.mxu0 %v6550
    %v8011 = vpop.f32.mrf.mxu0
    %v8012 = vadd.f32 %v7457, %v8011
    %v8013 = vpop.f32.mrf.mxu0
    %8014 = vmatprep.mubr.f32.mxu0 %v6560
    %8015 = vmatmul.mubr.f32.gmra.mxu0 %v6559
    %v8016 = vpop.f32.mrf.mxu0
    %v8017 = vadd.f32 %v7462, %v8016
    %v8018 = vpop.f32.mrf.mxu0
    %8019 = vmatprep.mubr.f32.mxu0 %v6569
    %8020 = vmatmul.mubr.f32.gmra.mxu0 %v6568
    %v8021 = vpop.f32.mrf.mxu0
    %v8022 = vadd.f32 %v7467, %v8021
    %v8023 = vpop.f32.mrf.mxu0
    %8024 = vmatprep.mubr.f32.mxu0 %v6578
    %8025 = vmatmul.mubr.f32.gmra.mxu0 %v6577
    %v8026 = vpop.f32.mrf.mxu0
    %v8027 = vadd.f32 %v7472, %v8026
    %v8028 = vpop.f32.mrf.mxu0
    %8029 = vmatprep.mubr.f32.mxu0 %v6587
    %8030 = vmatmul.mubr.f32.gmra.mxu0 %v6586
    %v8031 = vpop.f32.mrf.mxu0
    %v8032 = vadd.f32 %v7477, %v8031
    %v8033 = vpop.f32.mrf.mxu0
    %8034 = vmatprep.mubr.f32.mxu0 %v6596
    %8035 = vmatmul.mubr.f32.gmra.mxu0 %v6595
    %v8036 = vpop.f32.mrf.mxu0
    %v8037 = vadd.f32 %v7482, %v8036
    %v8038 = vpop.f32.mrf.mxu0
    %8039 = vmatprep.mubr.f32.mxu0 %v6605
    %8040 = vmatmul.mubr.f32.gmra.mxu0 %v6604
    %v8041 = vpop.f32.mrf.mxu0
    %v8042 = vadd.f32 %v7487, %v8041
    %v8043 = vpop.f32.mrf.mxu0
    %8044 = vmatprep.mubr.f32.mxu0 %v6614
    %8045 = vmatmul.mubr.f32.gmra.mxu0 %v6613
    %v8046 = vpop.f32.mrf.mxu0
    %v8047 = vadd.f32 %v7492, %v8046
    %v8048 = vpop.f32.mrf.mxu0
    %8049 = vmatprep.mubr.f32.mxu0 %v6623
    %8050 = vmatmul.mubr.f32.gmra.mxu0 %v6622
    %v8051 = vpop.f32.mrf.mxu0
    %v8052 = vadd.f32 %v7497, %v8051
    %v8053 = vpop.f32.mrf.mxu0
    %8054 = vmatprep.mubr.f32.mxu0 %v6632
    %8055 = vmatmul.mubr.f32.gmra.mxu0 %v6631
    %v8056 = vpop.f32.mrf.mxu0
    %v8057 = vadd.f32 %v7502, %v8056
    %v8058 = vpop.f32.mrf.mxu0
    %8059 = vmatprep.mubr.f32.mxu0 %v6641
    %8060 = vmatmul.mubr.f32.gmra.mxu0 %v6640
    %v8061 = vpop.f32.mrf.mxu0
    %v8062 = vadd.f32 %v7507, %v8061
    %v8063 = vpop.f32.mrf.mxu0
    %8064 = vmatprep.mubr.f32.mxu0 %v6650
    %8065 = vmatmul.mubr.f32.gmra.mxu0 %v6649
    %v8066 = vpop.f32.mrf.mxu0
    %v8067 = vadd.f32 %v7512, %v8066
    %v8068 = vpop.f32.mrf.mxu0
    %8069 = vmatprep.mubr.f32.mxu0 %v6659
    %8070 = vmatmul.mubr.f32.gmra.mxu0 %v6658
    %v8071 = vpop.f32.mrf.mxu0
    %v8072 = vadd.f32 %v7517, %v8071
    %v8073 = vpop.f32.mrf.mxu0
    %8074 = vmatprep.mubr.f32.mxu0 %v6668
    %8075 = vmatmul.mubr.f32.gmra.mxu0 %v6667
    %v8076 = vpop.f32.mrf.mxu0
    %v8077 = vadd.f32 %v7522, %v8076
    %v8078 = vpop.f32.mrf.mxu0
    %8079 = vmatprep.mubr.f32.mxu0 %v6677
    %8080 = vmatmul.mubr.f32.gmra.mxu0 %v6676
    %v8081 = vpop.f32.mrf.mxu0
    %v8082 = vadd.f32 %v7527, %v8081
    %v8083 = vpop.f32.mrf.mxu0
    %8084 = vmatprep.mubr.f32.mxu0 %v6686
    %8085 = vmatmul.mubr.f32.gmra.mxu0 %v6685
    %v8086 = vpop.f32.mrf.mxu0
    %v8087 = vadd.f32 %v7532, %v8086
    %v8088 = vpop.f32.mrf.mxu0
    %8089 = vmatprep.mubr.f32.mxu0 %v6695
    %8090 = vmatmul.mubr.f32.gmra.mxu0 %v6694
    %v8091 = vpop.f32.mrf.mxu0
    %v8092 = vadd.f32 %v7537, %v8091
    %v8093 = vpop.f32.mrf.mxu0
    %8094 = vmatprep.mubr.f32.mxu0 %v6704
    %8095 = vmatmul.mubr.f32.gmra.mxu0 %v6703
    %v8096 = vpop.f32.mrf.mxu0
    %v8097 = vadd.f32 %v7542, %v8096
    %v8098 = vpop.f32.mrf.mxu0
    %8099 = vmatprep.mubr.f32.mxu0 %v6713
    %8100 = vmatmul.mubr.f32.gmra.mxu0 %v6712
    %v8101 = vpop.f32.mrf.mxu0
    %v8102 = vadd.f32 %v7547, %v8101
    %v8103 = vpop.f32.mrf.mxu0
    %8104 = vmatprep.mubr.f32.mxu0 %v6722
    %8105 = vmatmul.mubr.f32.gmra.mxu0 %v6721
    %v8106 = vpop.f32.mrf.mxu0
    %v8107 = vadd.f32 %v7552, %v8106
    %v8108 = vpop.f32.mrf.mxu0
    %8109 = vmatprep.mubr.f32.mxu0 %v6731
    %8110 = vmatmul.mubr.f32.gmra.mxu0 %v6730
    %v8111 = vpop.f32.mrf.mxu0
    %v8112 = vadd.f32 %v7557, %v8111
    %v8113 = vpop.f32.mrf.mxu0
    %8114 = vmatprep.mubr.f32.mxu0 %v6740
    %8115 = vmatmul.mubr.f32.gmra.mxu0 %v6739
    %v8116 = vpop.f32.mrf.mxu0
    %v8117 = vadd.f32 %v7562, %v8116
    %v8118 = vpop.f32.mrf.mxu0
    %8119 = vmatprep.mubr.f32.mxu0 %v6749
    %8120 = vmatmul.mubr.f32.gmra.mxu0 %v6748
    %v8121 = vpop.f32.mrf.mxu0
    %v8122 = vadd.f32 %v7567, %v8121
    %v8123 = vpop.f32.mrf.mxu0
    %8124 = vmatprep.mubr.f32.mxu0 %v6758
    %8125 = vmatmul.mubr.f32.gmra.mxu0 %v6757
    %v8126 = vpop.f32.mrf.mxu0
    %v8127 = vadd.f32 %v7572, %v8126
    %v8128 = vpop.f32.mrf.mxu0
    %8129 = vmatprep.mubr.f32.mxu0 %v6767
    %8130 = vmatmul.mubr.f32.gmra.mxu0 %v6766
    %v8131 = vpop.f32.mrf.mxu0
    %v8132 = vadd.f32 %v7577, %v8131
    %v8133 = vpop.f32.mrf.mxu0
    %8134 = vmatprep.mubr.f32.mxu0 %v6776
    %8135 = vmatmul.mubr.f32.gmra.mxu0 %v6775
    %v8136 = vpop.f32.mrf.mxu0
    %v8137 = vadd.f32 %v7582, %v8136
    %v8138 = vpop.f32.mrf.mxu0
    %8139 = vmatprep.mubr.f32.mxu0 %v6785
    %8140 = vmatmul.mubr.f32.gmra.mxu0 %v6784
    %v8141 = vpop.f32.mrf.mxu0
    %v8142 = vadd.f32 %v7587, %v8141
    %v8143 = vpop.f32.mrf.mxu0
    %8144 = vmatprep.mubr.f32.mxu0 %v6794
    %8145 = vmatmul.mubr.f32.gmra.mxu0 %v6793
    %v8146 = vpop.f32.mrf.mxu0
    %v8147 = vadd.f32 %v7592, %v8146
    %v8148 = vpop.f32.mrf.mxu0
    %8149 = vmatprep.mubr.f32.mxu0 %v6803
    %8150 = vmatmul.mubr.f32.gmra.mxu0 %v6802
    %v8151 = vpop.f32.mrf.mxu0
    %v8152 = vadd.f32 %v7597, %v8151
    %v8153 = vpop.f32.mrf.mxu0
    %8154 = vmatprep.mubr.f32.mxu0 %v6812
    %8155 = vmatmul.mubr.f32.gmra.mxu0 %v6811
    %v8156 = vpop.f32.mrf.mxu0
    %v8157 = vadd.f32 %v7602, %v8156
    %v8158 = vpop.f32.mrf.mxu0
    %8159 = vmatprep.mubr.f32.mxu0 %v6821
    %8160 = vmatmul.mubr.f32.gmra.mxu0 %v6820
    %v8161 = vpop.f32.mrf.mxu0
    %v8162 = vadd.f32 %v7607, %v8161
    %v8163 = vpop.f32.mrf.mxu0
    %8164 = vmatprep.mubr.f32.mxu0 %v6830
    %8165 = vmatmul.mubr.f32.gmra.mxu0 %v6829
    %v8166 = vpop.f32.mrf.mxu0
    %v8167 = vadd.f32 %v7612, %v8166
    %v8168 = vpop.f32.mrf.mxu0
    %8169 = vmatprep.mubr.f32.mxu0 %v6839
    %8170 = vmatmul.mubr.f32.gmra.mxu0 %v6838
    %v8171 = vpop.f32.mrf.mxu0
    %v8172 = vadd.f32 %v7617, %v8171
    %v8173 = vpop.f32.mrf.mxu0
    %8174 = vmatprep.mubr.f32.mxu0 %v6848
    %8175 = vmatmul.mubr.f32.gmra.mxu0 %v6847
    %v8176 = vpop.f32.mrf.mxu0
    %v8177 = vadd.f32 %v7622, %v8176
    %v8178 = vpop.f32.mrf.mxu0
    %8179 = vmatprep.mubr.f32.mxu0 %v6857
    %8180 = vmatmul.mubr.f32.gmra.mxu0 %v6856
    %v8181 = vpop.f32.mrf.mxu0
    %v8182 = vadd.f32 %v7627, %v8181
    %v8183 = vpop.f32.mrf.mxu0
    %8184 = vmatprep.mubr.f32.mxu0 %v6866
    %8185 = vmatmul.mubr.f32.gmra.mxu0 %v6865
    %v8186 = vpop.f32.mrf.mxu0
    %v8187 = vadd.f32 %v7632, %v8186
    %v8188 = vpop.f32.mrf.mxu0
    %8189 = vmatprep.mubr.f32.mxu0 %v6875
    %8190 = vmatmul.mubr.f32.gmra.mxu0 %v6874
    %v8191 = vpop.f32.mrf.mxu0
    %v8192 = vadd.f32 %v7637, %v8191
    %v8193 = vpop.f32.mrf.mxu0
    %8194 = vmatprep.mubr.f32.mxu0 %v6884
    %8195 = vmatmul.mubr.f32.gmra.mxu0 %v6883
    %v8196 = vpop.f32.mrf.mxu0
    %v8197 = vadd.f32 %v7642, %v8196
    %v8198 = vpop.f32.mrf.mxu0
    %8199 = vmatprep.mubr.f32.mxu0 %v6893
    %8200 = vmatmul.mubr.f32.gmra.mxu0 %v6892
    %v8201 = vpop.f32.mrf.mxu0
    %v8202 = vadd.f32 %v7647, %v8201
    %v8203 = vpop.f32.mrf.mxu0
    %8204 = vmatprep.mubr.f32.mxu0 %v6902
    %8205 = vmatmul.mubr.f32.gmra.mxu0 %v6901
    %v8206 = vpop.f32.mrf.mxu0
    %v8207 = vadd.f32 %v7652, %v8206
    %v8208 = vpop.f32.mrf.mxu0
    %8209 = vmatprep.mubr.f32.mxu0 %v6911
    %8210 = vmatmul.mubr.f32.gmra.mxu0 %v6910
    %v8211 = vpop.f32.mrf.mxu0
    %v8212 = vadd.f32 %v7657, %v8211
    %v8213 = vpop.f32.mrf.mxu0
    %8214 = vmatprep.mubr.f32.mxu0 %v6920
    %8215 = vmatmul.mubr.f32.gmra.mxu0 %v6919
    %v8216 = vpop.f32.mrf.mxu0
    %v8217 = vadd.f32 %v7662, %v8216
    %v8218 = vpop.f32.mrf.mxu0
    %8219 = vmatprep.mubr.f32.mxu0 %v6929
    %8220 = vmatmul.mubr.f32.gmra.mxu0 %v6928
    %v8221 = vpop.f32.mrf.mxu0
    %v8222 = vadd.f32 %v7667, %v8221
    %v8223 = vpop.f32.mrf.mxu0
    %8224 = vmatprep.mubr.f32.mxu0 %v6938
    %8225 = vmatmul.mubr.f32.gmra.mxu0 %v6937
    %v8226 = vpop.f32.mrf.mxu0
    %v8227 = vadd.f32 %v7672, %v8226
    %v8228 = vpop.f32.mrf.mxu0
    %8229 = vmatprep.mubr.f32.mxu0 %v6947
    %8230 = vmatmul.mubr.f32.gmra.mxu0 %v6946
    %v8231 = vpop.f32.mrf.mxu0
    %v8232 = vadd.f32 %v7677, %v8231
    %v8233 = vpop.f32.mrf.mxu0
    %8234 = vmatprep.mubr.f32.mxu0 %v6956
    %8235 = vmatmul.mubr.f32.gmra.mxu0 %v6955
    %v8236 = vpop.f32.mrf.mxu0
    %v8237 = vadd.f32 %v7682, %v8236
    %v8238 = vpop.f32.mrf.mxu0
    %8239 = vmatprep.mubr.f32.mxu0 %v6965
    %8240 = vmatmul.mubr.f32.gmra.mxu0 %v6964
    %v8241 = vpop.f32.mrf.mxu0
    %v8242 = vadd.f32 %v7687, %v8241
    %v8243 = vpop.f32.mrf.mxu0
    %8244 = vmatprep.mubr.f32.mxu0 %v6974
    %8245 = vmatmul.mubr.f32.gmra.mxu0 %v6973
    %v8246 = vpop.f32.mrf.mxu0
    %v8247 = vadd.f32 %v7692, %v8246
    %v8248 = vpop.f32.mrf.mxu0
    %8249 = vmatprep.mubr.f32.mxu0 %v6983
    %8250 = vmatmul.mubr.f32.gmra.mxu0 %v6982
    %v8251 = vpop.f32.mrf.mxu0
    %v8252 = vadd.f32 %v7697, %v8251
    %v8253 = vpop.f32.mrf.mxu0
    %8254 = vmatprep.mubr.f32.mxu0 %v6992
    %8255 = vmatmul.mubr.f32.gmra.mxu0 %v6991
    %v8256 = vpop.f32.mrf.mxu0
    %v8257 = vadd.f32 %v7702, %v8256
    %v8258 = vpop.f32.mrf.mxu0
    %8259 = vmatprep.mubr.f32.mxu0 %v7001
    %8260 = vmatmul.mubr.f32.gmra.mxu0 %v7000
    %v8261 = vpop.f32.mrf.mxu0
    %v8262 = vadd.f32 %v7707, %v8261
    %v8263 = vpop.f32.mrf.mxu0
    %8264 = vmatprep.mubr.f32.mxu0 %v7010
    %8265 = vmatmul.mubr.f32.gmra.mxu0 %v7009
    %v8266 = vpop.f32.mrf.mxu0
    %v8267 = vadd.f32 %v7712, %v8266
    %v8268 = vpop.f32.mrf.mxu0
    %8269 = vdwg.mxu0
    %8270 = vmatprep.subr.mxu0 0.0
    %8271 = vmatpush1.msra.mxu0 %v7095
    %8272 = vmatprep.subr.mxu0 0.0
    %8273 = vmatpush1.msra.mxu0 %v7094
    %8274 = vmatprep.subr.mxu0 0.0
    %8275 = vmatpush1.msra.mxu0 %v7093
    %8276 = vmatprep.subr.mxu0 0.0
    %8277 = vmatpush1.msra.mxu0 %v7092
    %8278 = vmatprep.subr.mxu0 0.0
    %8279 = vmatpush1.msra.mxu0 %v7091
    %8280 = vmatprep.subr.mxu0 0.0
    %8281 = vmatpush1.msra.mxu0 %v7090
    %8282 = vmatprep.subr.mxu0 0.0
    %8283 = vmatpush1.msra.mxu0 %v7089
    %8284 = vmatprep.subr.mxu0 0.0
    %8285 = vmatpush1.msra.mxu0 %v7088
    %8286 = vmatprep.subr.mxu0 0.0
    %8287 = vmatpush1.msra.mxu0 %v7087
    %8288 = vmatprep.subr.mxu0 0.0
    %8289 = vmatpush1.msra.mxu0 %v7086
    %8290 = vmatprep.subr.mxu0 0.0
    %8291 = vmatpush1.msra.mxu0 %v7085
    %8292 = vmatprep.subr.mxu0 0.0
    %8293 = vmatpush1.msra.mxu0 %v7084
    %8294 = vmatprep.subr.mxu0 0.0
    %8295 = vmatpush1.msra.mxu0 %v7083
    %8296 = vmatprep.subr.mxu0 0.0
    %8297 = vmatpush1.msra.mxu0 %v7082
    %8298 = vmatprep.subr.mxu0 0.0
    %8299 = vmatpush1.msra.mxu0 %v7081
    %8300 = vmatprep.subr.mxu0 0.0
    %8301 = vmatpush1.msra.mxu0 %v7080
    %8302 = vmatprep.subr.mxu0 0.0
    %8303 = vmatpush2.msra.mxu0 %v7111
    %8304 = vmatprep.subr.mxu0 0.0
    %8305 = vmatpush2.msra.mxu0 %v7110
    %8306 = vmatprep.subr.mxu0 0.0
    %8307 = vmatpush2.msra.mxu0 %v7109
    %8308 = vmatprep.subr.mxu0 0.0
    %8309 = vmatpush2.msra.mxu0 %v7108
    %8310 = vmatprep.subr.mxu0 0.0
    %8311 = vmatpush2.msra.mxu0 %v7107
    %8312 = vmatprep.subr.mxu0 0.0
    %8313 = vmatpush2.msra.mxu0 %v7106
    %8314 = vmatprep.subr.mxu0 0.0
    %8315 = vmatpush2.msra.mxu0 %v7105
    %8316 = vmatprep.subr.mxu0 0.0
    %8317 = vmatpush2.msra.mxu0 %v7104
    %8318 = vmatprep.subr.mxu0 0.0
    %8319 = vmatpush2.msra.mxu0 %v7103
    %8320 = vmatprep.subr.mxu0 0.0
    %8321 = vmatpush2.msra.mxu0 %v7102
    %8322 = vmatprep.subr.mxu0 0.0
    %8323 = vmatpush2.msra.mxu0 %v7101
    %8324 = vmatprep.subr.mxu0 0.0
    %8325 = vmatpush2.msra.mxu0 %v7100
    %8326 = vmatprep.subr.mxu0 0.0
    %8327 = vmatpush2.msra.mxu0 %v7099
    %8328 = vmatprep.subr.mxu0 0.0
    %8329 = vmatpush2.msra.mxu0 %v7098
    %8330 = vmatprep.subr.mxu0 0.0
    %8331 = vmatpush2.msra.mxu0 %v7097
    %8332 = vmatprep.subr.mxu0 0.0
    %8333 = vmatpush2.msra.mxu0 %v7096
    %8334 = vmatprep.mubr.f32.mxu0 %v6139
    %8335 = vmatmul.mubr.f32.gmra.mxu0 %v6138
    %v8336 = vpop.f32.mrf.mxu0
    %v8337 = vadd.f32 %v7782, %v8336
    %v8338 = vpop.f32.mrf.mxu0
    %8339 = vmatprep.mubr.f32.mxu0 %v6148
    %8340 = vmatmul.mubr.f32.gmra.mxu0 %v6147
    %v8341 = vpop.f32.mrf.mxu0
    %v8342 = vadd.f32 %v7787, %v8341
    %v8343 = vpop.f32.mrf.mxu0
    %8344 = vmatprep.mubr.f32.mxu0 %v6157
    %8345 = vmatmul.mubr.f32.gmra.mxu0 %v6156
    %v8346 = vpop.f32.mrf.mxu0
    %v8347 = vadd.f32 %v7792, %v8346
    %v8348 = vpop.f32.mrf.mxu0
    %8349 = vmatprep.mubr.f32.mxu0 %v6166
    %8350 = vmatmul.mubr.f32.gmra.mxu0 %v6165
    %v8351 = vpop.f32.mrf.mxu0
    %v8352 = vadd.f32 %v7797, %v8351
    %v8353 = vpop.f32.mrf.mxu0
    %8354 = vmatprep.mubr.f32.mxu0 %v6175
    %8355 = vmatmul.mubr.f32.gmra.mxu0 %v6174
    %v8356 = vpop.f32.mrf.mxu0
    %v8357 = vadd.f32 %v7802, %v8356
    %v8358 = vpop.f32.mrf.mxu0
    %8359 = vmatprep.mubr.f32.mxu0 %v6184
    %8360 = vmatmul.mubr.f32.gmra.mxu0 %v6183
    %v8361 = vpop.f32.mrf.mxu0
    %v8362 = vadd.f32 %v7807, %v8361
    %v8363 = vpop.f32.mrf.mxu0
    %8364 = vmatprep.mubr.f32.mxu0 %v6193
    %8365 = vmatmul.mubr.f32.gmra.mxu0 %v6192
    %v8366 = vpop.f32.mrf.mxu0
    %v8367 = vadd.f32 %v7812, %v8366
    %v8368 = vpop.f32.mrf.mxu0
    %8369 = vmatprep.mubr.f32.mxu0 %v6202
    %8370 = vmatmul.mubr.f32.gmra.mxu0 %v6201
    %v8371 = vpop.f32.mrf.mxu0
    %v8372 = vadd.f32 %v7817, %v8371
    %v8373 = vpop.f32.mrf.mxu0
    %8374 = vmatprep.mubr.f32.mxu0 %v6211
    %8375 = vmatmul.mubr.f32.gmra.mxu0 %v6210
    %v8376 = vpop.f32.mrf.mxu0
    %v8377 = vadd.f32 %v7822, %v8376
    %v8378 = vpop.f32.mrf.mxu0
    %8379 = vmatprep.mubr.f32.mxu0 %v6220
    %8380 = vmatmul.mubr.f32.gmra.mxu0 %v6219
    %v8381 = vpop.f32.mrf.mxu0
    %v8382 = vadd.f32 %v7827, %v8381
    %v8383 = vpop.f32.mrf.mxu0
    %8384 = vmatprep.mubr.f32.mxu0 %v6229
    %8385 = vmatmul.mubr.f32.gmra.mxu0 %v6228
    %v8386 = vpop.f32.mrf.mxu0
    %v8387 = vadd.f32 %v7832, %v8386
    %v8388 = vpop.f32.mrf.mxu0
    %8389 = vmatprep.mubr.f32.mxu0 %v6238
    %8390 = vmatmul.mubr.f32.gmra.mxu0 %v6237
    %v8391 = vpop.f32.mrf.mxu0
    %v8392 = vadd.f32 %v7837, %v8391
    %v8393 = vpop.f32.mrf.mxu0
    %8394 = vmatprep.mubr.f32.mxu0 %v6247
    %8395 = vmatmul.mubr.f32.gmra.mxu0 %v6246
    %v8396 = vpop.f32.mrf.mxu0
    %v8397 = vadd.f32 %v7842, %v8396
    %v8398 = vpop.f32.mrf.mxu0
    %8399 = vmatprep.mubr.f32.mxu0 %v6256
    %8400 = vmatmul.mubr.f32.gmra.mxu0 %v6255
    %v8401 = vpop.f32.mrf.mxu0
    %v8402 = vadd.f32 %v7847, %v8401
    %v8403 = vpop.f32.mrf.mxu0
    %8404 = vmatprep.mubr.f32.mxu0 %v6265
    %8405 = vmatmul.mubr.f32.gmra.mxu0 %v6264
    %v8406 = vpop.f32.mrf.mxu0
    %v8407 = vadd.f32 %v7852, %v8406
    %v8408 = vpop.f32.mrf.mxu0
    %8409 = vmatprep.mubr.f32.mxu0 %v6274
    %8410 = vmatmul.mubr.f32.gmra.mxu0 %v6273
    %v8411 = vpop.f32.mrf.mxu0
    %v8412 = vadd.f32 %v7857, %v8411
    %v8413 = vpop.f32.mrf.mxu0
    %8414 = vmatprep.mubr.f32.mxu0 %v6283
    %8415 = vmatmul.mubr.f32.gmra.mxu0 %v6282
    %v8416 = vpop.f32.mrf.mxu0
    %v8417 = vadd.f32 %v7862, %v8416
    %v8418 = vpop.f32.mrf.mxu0
    %8419 = vmatprep.mubr.f32.mxu0 %v6292
    %8420 = vmatmul.mubr.f32.gmra.mxu0 %v6291
    %v8421 = vpop.f32.mrf.mxu0
    %v8422 = vadd.f32 %v7867, %v8421
    %v8423 = vpop.f32.mrf.mxu0
    %8424 = vmatprep.mubr.f32.mxu0 %v6301
    %8425 = vmatmul.mubr.f32.gmra.mxu0 %v6300
    %v8426 = vpop.f32.mrf.mxu0
    %v8427 = vadd.f32 %v7872, %v8426
    %v8428 = vpop.f32.mrf.mxu0
    %8429 = vmatprep.mubr.f32.mxu0 %v6310
    %8430 = vmatmul.mubr.f32.gmra.mxu0 %v6309
    %v8431 = vpop.f32.mrf.mxu0
    %v8432 = vadd.f32 %v7877, %v8431
    %v8433 = vpop.f32.mrf.mxu0
    %8434 = vmatprep.mubr.f32.mxu0 %v6319
    %8435 = vmatmul.mubr.f32.gmra.mxu0 %v6318
    %v8436 = vpop.f32.mrf.mxu0
    %v8437 = vadd.f32 %v7882, %v8436
    %v8438 = vpop.f32.mrf.mxu0
    %8439 = vmatprep.mubr.f32.mxu0 %v6328
    %8440 = vmatmul.mubr.f32.gmra.mxu0 %v6327
    %v8441 = vpop.f32.mrf.mxu0
    %v8442 = vadd.f32 %v7887, %v8441
    %v8443 = vpop.f32.mrf.mxu0
    %8444 = vmatprep.mubr.f32.mxu0 %v6337
    %8445 = vmatmul.mubr.f32.gmra.mxu0 %v6336
    %v8446 = vpop.f32.mrf.mxu0
    %v8447 = vadd.f32 %v7892, %v8446
    %v8448 = vpop.f32.mrf.mxu0
    %8449 = vmatprep.mubr.f32.mxu0 %v6346
    %8450 = vmatmul.mubr.f32.gmra.mxu0 %v6345
    %v8451 = vpop.f32.mrf.mxu0
    %v8452 = vadd.f32 %v7897, %v8451
    %v8453 = vpop.f32.mrf.mxu0
    %8454 = vmatprep.mubr.f32.mxu0 %v6355
    %8455 = vmatmul.mubr.f32.gmra.mxu0 %v6354
    %v8456 = vpop.f32.mrf.mxu0
    %v8457 = vadd.f32 %v7902, %v8456
    %v8458 = vpop.f32.mrf.mxu0
    %8459 = vmatprep.mubr.f32.mxu0 %v6364
    %8460 = vmatmul.mubr.f32.gmra.mxu0 %v6363
    %v8461 = vpop.f32.mrf.mxu0
    %v8462 = vadd.f32 %v7907, %v8461
    %v8463 = vpop.f32.mrf.mxu0
    %8464 = vmatprep.mubr.f32.mxu0 %v6373
    %8465 = vmatmul.mubr.f32.gmra.mxu0 %v6372
    %v8466 = vpop.f32.mrf.mxu0
    %v8467 = vadd.f32 %v7912, %v8466
    %v8468 = vpop.f32.mrf.mxu0
    %8469 = vmatprep.mubr.f32.mxu0 %v6382
    %8470 = vmatmul.mubr.f32.gmra.mxu0 %v6381
    %v8471 = vpop.f32.mrf.mxu0
    %v8472 = vadd.f32 %v7917, %v8471
    %v8473 = vpop.f32.mrf.mxu0
    %8474 = vmatprep.mubr.f32.mxu0 %v6391
    %8475 = vmatmul.mubr.f32.gmra.mxu0 %v6390
    %v8476 = vpop.f32.mrf.mxu0
    %v8477 = vadd.f32 %v7922, %v8476
    %v8478 = vpop.f32.mrf.mxu0
    %8479 = vmatprep.mubr.f32.mxu0 %v6400
    %8480 = vmatmul.mubr.f32.gmra.mxu0 %v6399
    %v8481 = vpop.f32.mrf.mxu0
    %v8482 = vadd.f32 %v7927, %v8481
    %v8483 = vpop.f32.mrf.mxu0
    %8484 = vmatprep.mubr.f32.mxu0 %v6409
    %8485 = vmatmul.mubr.f32.gmra.mxu0 %v6408
    %v8486 = vpop.f32.mrf.mxu0
    %v8487 = vadd.f32 %v7932, %v8486
    %v8488 = vpop.f32.mrf.mxu0
    %8489 = vmatprep.mubr.f32.mxu0 %v6418
    %8490 = vmatmul.mubr.f32.gmra.mxu0 %v6417
    %v8491 = vpop.f32.mrf.mxu0
    %v8492 = vadd.f32 %v7937, %v8491
    %v8493 = vpop.f32.mrf.mxu0
    %8494 = vmatprep.mubr.f32.mxu0 %v6427
    %8495 = vmatmul.mubr.f32.gmra.mxu0 %v6426
    %v8496 = vpop.f32.mrf.mxu0
    %v8497 = vadd.f32 %v7942, %v8496
    %v8498 = vpop.f32.mrf.mxu0
    %8499 = vmatprep.mubr.f32.mxu0 %v6436
    %8500 = vmatmul.mubr.f32.gmra.mxu0 %v6435
    %v8501 = vpop.f32.mrf.mxu0
    %v8502 = vadd.f32 %v7947, %v8501
    %v8503 = vpop.f32.mrf.mxu0
    %8504 = vmatprep.mubr.f32.mxu0 %v6445
    %8505 = vmatmul.mubr.f32.gmra.mxu0 %v6444
    %v8506 = vpop.f32.mrf.mxu0
    %v8507 = vadd.f32 %v7952, %v8506
    %v8508 = vpop.f32.mrf.mxu0
    %8509 = vmatprep.mubr.f32.mxu0 %v6454
    %8510 = vmatmul.mubr.f32.gmra.mxu0 %v6453
    %v8511 = vpop.f32.mrf.mxu0
    %v8512 = vadd.f32 %v7957, %v8511
    %v8513 = vpop.f32.mrf.mxu0
    %8514 = vmatprep.mubr.f32.mxu0 %v6463
    %8515 = vmatmul.mubr.f32.gmra.mxu0 %v6462
    %v8516 = vpop.f32.mrf.mxu0
    %v8517 = vadd.f32 %v7962, %v8516
    %v8518 = vpop.f32.mrf.mxu0
    %8519 = vmatprep.mubr.f32.mxu0 %v6472
    %8520 = vmatmul.mubr.f32.gmra.mxu0 %v6471
    %v8521 = vpop.f32.mrf.mxu0
    %v8522 = vadd.f32 %v7967, %v8521
    %v8523 = vpop.f32.mrf.mxu0
    %8524 = vmatprep.mubr.f32.mxu0 %v6481
    %8525 = vmatmul.mubr.f32.gmra.mxu0 %v6480
    %v8526 = vpop.f32.mrf.mxu0
    %v8527 = vadd.f32 %v7972, %v8526
    %v8528 = vpop.f32.mrf.mxu0
    %8529 = vmatprep.mubr.f32.mxu0 %v6490
    %8530 = vmatmul.mubr.f32.gmra.mxu0 %v6489
    %v8531 = vpop.f32.mrf.mxu0
    %v8532 = vadd.f32 %v7977, %v8531
    %v8533 = vpop.f32.mrf.mxu0
    %8534 = vmatprep.mubr.f32.mxu0 %v6499
    %8535 = vmatmul.mubr.f32.gmra.mxu0 %v6498
    %v8536 = vpop.f32.mrf.mxu0
    %v8537 = vadd.f32 %v7982, %v8536
    %v8538 = vpop.f32.mrf.mxu0
    %8539 = vmatprep.mubr.f32.mxu0 %v6508
    %8540 = vmatmul.mubr.f32.gmra.mxu0 %v6507
    %v8541 = vpop.f32.mrf.mxu0
    %v8542 = vadd.f32 %v7987, %v8541
    %v8543 = vpop.f32.mrf.mxu0
    %8544 = vmatprep.mubr.f32.mxu0 %v6517
    %8545 = vmatmul.mubr.f32.gmra.mxu0 %v6516
    %v8546 = vpop.f32.mrf.mxu0
    %v8547 = vadd.f32 %v7992, %v8546
    %v8548 = vpop.f32.mrf.mxu0
    %8549 = vmatprep.mubr.f32.mxu0 %v6526
    %8550 = vmatmul.mubr.f32.gmra.mxu0 %v6525
    %v8551 = vpop.f32.mrf.mxu0
    %v8552 = vadd.f32 %v7997, %v8551
    %v8553 = vpop.f32.mrf.mxu0
    %8554 = vmatprep.mubr.f32.mxu0 %v6535
    %8555 = vmatmul.mubr.f32.gmra.mxu0 %v6534
    %v8556 = vpop.f32.mrf.mxu0
    %v8557 = vadd.f32 %v8002, %v8556
    %v8558 = vpop.f32.mrf.mxu0
    %8559 = vmatprep.mubr.f32.mxu0 %v6544
    %8560 = vmatmul.mubr.f32.gmra.mxu0 %v6543
    %v8561 = vpop.f32.mrf.mxu0
    %v8562 = vadd.f32 %v8007, %v8561
    %v8563 = vpop.f32.mrf.mxu0
    %8564 = vmatprep.mubr.f32.mxu0 %v6553
    %8565 = vmatmul.mubr.f32.gmra.mxu0 %v6552
    %v8566 = vpop.f32.mrf.mxu0
    %v8567 = vadd.f32 %v8012, %v8566
    %v8568 = vpop.f32.mrf.mxu0
    %8569 = vmatprep.mubr.f32.mxu0 %v6562
    %8570 = vmatmul.mubr.f32.gmra.mxu0 %v6561
    %v8571 = vpop.f32.mrf.mxu0
    %v8572 = vadd.f32 %v8017, %v8571
    %v8573 = vpop.f32.mrf.mxu0
    %8574 = vmatprep.mubr.f32.mxu0 %v6571
    %8575 = vmatmul.mubr.f32.gmra.mxu0 %v6570
    %v8576 = vpop.f32.mrf.mxu0
    %v8577 = vadd.f32 %v8022, %v8576
    %v8578 = vpop.f32.mrf.mxu0
    %8579 = vmatprep.mubr.f32.mxu0 %v6580
    %8580 = vmatmul.mubr.f32.gmra.mxu0 %v6579
    %v8581 = vpop.f32.mrf.mxu0
    %v8582 = vadd.f32 %v8027, %v8581
    %v8583 = vpop.f32.mrf.mxu0
    %8584 = vmatprep.mubr.f32.mxu0 %v6589
    %8585 = vmatmul.mubr.f32.gmra.mxu0 %v6588
    %v8586 = vpop.f32.mrf.mxu0
    %v8587 = vadd.f32 %v8032, %v8586
    %v8588 = vpop.f32.mrf.mxu0
    %8589 = vmatprep.mubr.f32.mxu0 %v6598
    %8590 = vmatmul.mubr.f32.gmra.mxu0 %v6597
    %v8591 = vpop.f32.mrf.mxu0
    %v8592 = vadd.f32 %v8037, %v8591
    %v8593 = vpop.f32.mrf.mxu0
    %8594 = vmatprep.mubr.f32.mxu0 %v6607
    %8595 = vmatmul.mubr.f32.gmra.mxu0 %v6606
    %v8596 = vpop.f32.mrf.mxu0
    %v8597 = vadd.f32 %v8042, %v8596
    %v8598 = vpop.f32.mrf.mxu0
    %8599 = vmatprep.mubr.f32.mxu0 %v6616
    %8600 = vmatmul.mubr.f32.gmra.mxu0 %v6615
    %v8601 = vpop.f32.mrf.mxu0
    %v8602 = vadd.f32 %v8047, %v8601
    %v8603 = vpop.f32.mrf.mxu0
    %8604 = vmatprep.mubr.f32.mxu0 %v6625
    %8605 = vmatmul.mubr.f32.gmra.mxu0 %v6624
    %v8606 = vpop.f32.mrf.mxu0
    %v8607 = vadd.f32 %v8052, %v8606
    %v8608 = vpop.f32.mrf.mxu0
    %8609 = vmatprep.mubr.f32.mxu0 %v6634
    %8610 = vmatmul.mubr.f32.gmra.mxu0 %v6633
    %v8611 = vpop.f32.mrf.mxu0
    %v8612 = vadd.f32 %v8057, %v8611
    %v8613 = vpop.f32.mrf.mxu0
    %8614 = vmatprep.mubr.f32.mxu0 %v6643
    %8615 = vmatmul.mubr.f32.gmra.mxu0 %v6642
    %v8616 = vpop.f32.mrf.mxu0
    %v8617 = vadd.f32 %v8062, %v8616
    %v8618 = vpop.f32.mrf.mxu0
    %8619 = vmatprep.mubr.f32.mxu0 %v6652
    %8620 = vmatmul.mubr.f32.gmra.mxu0 %v6651
    %v8621 = vpop.f32.mrf.mxu0
    %v8622 = vadd.f32 %v8067, %v8621
    %v8623 = vpop.f32.mrf.mxu0
    %8624 = vmatprep.mubr.f32.mxu0 %v6661
    %8625 = vmatmul.mubr.f32.gmra.mxu0 %v6660
    %v8626 = vpop.f32.mrf.mxu0
    %v8627 = vadd.f32 %v8072, %v8626
    %v8628 = vpop.f32.mrf.mxu0
    %8629 = vmatprep.mubr.f32.mxu0 %v6670
    %8630 = vmatmul.mubr.f32.gmra.mxu0 %v6669
    %v8631 = vpop.f32.mrf.mxu0
    %v8632 = vadd.f32 %v8077, %v8631
    %v8633 = vpop.f32.mrf.mxu0
    %8634 = vmatprep.mubr.f32.mxu0 %v6679
    %8635 = vmatmul.mubr.f32.gmra.mxu0 %v6678
    %v8636 = vpop.f32.mrf.mxu0
    %v8637 = vadd.f32 %v8082, %v8636
    %v8638 = vpop.f32.mrf.mxu0
    %8639 = vmatprep.mubr.f32.mxu0 %v6688
    %8640 = vmatmul.mubr.f32.gmra.mxu0 %v6687
    %v8641 = vpop.f32.mrf.mxu0
    %v8642 = vadd.f32 %v8087, %v8641
    %v8643 = vpop.f32.mrf.mxu0
    %8644 = vmatprep.mubr.f32.mxu0 %v6697
    %8645 = vmatmul.mubr.f32.gmra.mxu0 %v6696
    %v8646 = vpop.f32.mrf.mxu0
    %v8647 = vadd.f32 %v8092, %v8646
    %v8648 = vpop.f32.mrf.mxu0
    %8649 = vmatprep.mubr.f32.mxu0 %v6706
    %8650 = vmatmul.mubr.f32.gmra.mxu0 %v6705
    %v8651 = vpop.f32.mrf.mxu0
    %v8652 = vadd.f32 %v8097, %v8651
    %v8653 = vpop.f32.mrf.mxu0
    %8654 = vmatprep.mubr.f32.mxu0 %v6715
    %8655 = vmatmul.mubr.f32.gmra.mxu0 %v6714
    %v8656 = vpop.f32.mrf.mxu0
    %v8657 = vadd.f32 %v8102, %v8656
    %v8658 = vpop.f32.mrf.mxu0
    %8659 = vmatprep.mubr.f32.mxu0 %v6724
    %8660 = vmatmul.mubr.f32.gmra.mxu0 %v6723
    %v8661 = vpop.f32.mrf.mxu0
    %v8662 = vadd.f32 %v8107, %v8661
    %v8663 = vpop.f32.mrf.mxu0
    %8664 = vmatprep.mubr.f32.mxu0 %v6733
    %8665 = vmatmul.mubr.f32.gmra.mxu0 %v6732
    %v8666 = vpop.f32.mrf.mxu0
    %v8667 = vadd.f32 %v8112, %v8666
    %v8668 = vpop.f32.mrf.mxu0
    %8669 = vmatprep.mubr.f32.mxu0 %v6742
    %8670 = vmatmul.mubr.f32.gmra.mxu0 %v6741
    %v8671 = vpop.f32.mrf.mxu0
    %v8672 = vadd.f32 %v8117, %v8671
    %v8673 = vpop.f32.mrf.mxu0
    %8674 = vmatprep.mubr.f32.mxu0 %v6751
    %8675 = vmatmul.mubr.f32.gmra.mxu0 %v6750
    %v8676 = vpop.f32.mrf.mxu0
    %v8677 = vadd.f32 %v8122, %v8676
    %v8678 = vpop.f32.mrf.mxu0
    %8679 = vmatprep.mubr.f32.mxu0 %v6760
    %8680 = vmatmul.mubr.f32.gmra.mxu0 %v6759
    %v8681 = vpop.f32.mrf.mxu0
    %v8682 = vadd.f32 %v8127, %v8681
    %v8683 = vpop.f32.mrf.mxu0
    %8684 = vmatprep.mubr.f32.mxu0 %v6769
    %8685 = vmatmul.mubr.f32.gmra.mxu0 %v6768
    %v8686 = vpop.f32.mrf.mxu0
    %v8687 = vadd.f32 %v8132, %v8686
    %v8688 = vpop.f32.mrf.mxu0
    %8689 = vmatprep.mubr.f32.mxu0 %v6778
    %8690 = vmatmul.mubr.f32.gmra.mxu0 %v6777
    %v8691 = vpop.f32.mrf.mxu0
    %v8692 = vadd.f32 %v8137, %v8691
    %v8693 = vpop.f32.mrf.mxu0
    %8694 = vmatprep.mubr.f32.mxu0 %v6787
    %8695 = vmatmul.mubr.f32.gmra.mxu0 %v6786
    %v8696 = vpop.f32.mrf.mxu0
    %v8697 = vadd.f32 %v8142, %v8696
    %v8698 = vpop.f32.mrf.mxu0
    %8699 = vmatprep.mubr.f32.mxu0 %v6796
    %8700 = vmatmul.mubr.f32.gmra.mxu0 %v6795
    %v8701 = vpop.f32.mrf.mxu0
    %v8702 = vadd.f32 %v8147, %v8701
    %v8703 = vpop.f32.mrf.mxu0
    %8704 = vmatprep.mubr.f32.mxu0 %v6805
    %8705 = vmatmul.mubr.f32.gmra.mxu0 %v6804
    %v8706 = vpop.f32.mrf.mxu0
    %v8707 = vadd.f32 %v8152, %v8706
    %v8708 = vpop.f32.mrf.mxu0
    %8709 = vmatprep.mubr.f32.mxu0 %v6814
    %8710 = vmatmul.mubr.f32.gmra.mxu0 %v6813
    %v8711 = vpop.f32.mrf.mxu0
    %v8712 = vadd.f32 %v8157, %v8711
    %v8713 = vpop.f32.mrf.mxu0
    %8714 = vmatprep.mubr.f32.mxu0 %v6823
    %8715 = vmatmul.mubr.f32.gmra.mxu0 %v6822
    %v8716 = vpop.f32.mrf.mxu0
    %v8717 = vadd.f32 %v8162, %v8716
    %v8718 = vpop.f32.mrf.mxu0
    %8719 = vmatprep.mubr.f32.mxu0 %v6832
    %8720 = vmatmul.mubr.f32.gmra.mxu0 %v6831
    %v8721 = vpop.f32.mrf.mxu0
    %v8722 = vadd.f32 %v8167, %v8721
    %v8723 = vpop.f32.mrf.mxu0
    %8724 = vmatprep.mubr.f32.mxu0 %v6841
    %8725 = vmatmul.mubr.f32.gmra.mxu0 %v6840
    %v8726 = vpop.f32.mrf.mxu0
    %v8727 = vadd.f32 %v8172, %v8726
    %v8728 = vpop.f32.mrf.mxu0
    %8729 = vmatprep.mubr.f32.mxu0 %v6850
    %8730 = vmatmul.mubr.f32.gmra.mxu0 %v6849
    %v8731 = vpop.f32.mrf.mxu0
    %v8732 = vadd.f32 %v8177, %v8731
    %v8733 = vpop.f32.mrf.mxu0
    %8734 = vmatprep.mubr.f32.mxu0 %v6859
    %8735 = vmatmul.mubr.f32.gmra.mxu0 %v6858
    %v8736 = vpop.f32.mrf.mxu0
    %v8737 = vadd.f32 %v8182, %v8736
    %v8738 = vpop.f32.mrf.mxu0
    %8739 = vmatprep.mubr.f32.mxu0 %v6868
    %8740 = vmatmul.mubr.f32.gmra.mxu0 %v6867
    %v8741 = vpop.f32.mrf.mxu0
    %v8742 = vadd.f32 %v8187, %v8741
    %v8743 = vpop.f32.mrf.mxu0
    %8744 = vmatprep.mubr.f32.mxu0 %v6877
    %8745 = vmatmul.mubr.f32.gmra.mxu0 %v6876
    %v8746 = vpop.f32.mrf.mxu0
    %v8747 = vadd.f32 %v8192, %v8746
    %v8748 = vpop.f32.mrf.mxu0
    %8749 = vmatprep.mubr.f32.mxu0 %v6886
    %8750 = vmatmul.mubr.f32.gmra.mxu0 %v6885
    %v8751 = vpop.f32.mrf.mxu0
    %v8752 = vadd.f32 %v8197, %v8751
    %v8753 = vpop.f32.mrf.mxu0
    %8754 = vmatprep.mubr.f32.mxu0 %v6895
    %8755 = vmatmul.mubr.f32.gmra.mxu0 %v6894
    %v8756 = vpop.f32.mrf.mxu0
    %v8757 = vadd.f32 %v8202, %v8756
    %v8758 = vpop.f32.mrf.mxu0
    %8759 = vmatprep.mubr.f32.mxu0 %v6904
    %8760 = vmatmul.mubr.f32.gmra.mxu0 %v6903
    %v8761 = vpop.f32.mrf.mxu0
    %v8762 = vadd.f32 %v8207, %v8761
    %v8763 = vpop.f32.mrf.mxu0
    %8764 = vmatprep.mubr.f32.mxu0 %v6913
    %8765 = vmatmul.mubr.f32.gmra.mxu0 %v6912
    %v8766 = vpop.f32.mrf.mxu0
    %v8767 = vadd.f32 %v8212, %v8766
    %v8768 = vpop.f32.mrf.mxu0
    %8769 = vmatprep.mubr.f32.mxu0 %v6922
    %8770 = vmatmul.mubr.f32.gmra.mxu0 %v6921
    %v8771 = vpop.f32.mrf.mxu0
    %v8772 = vadd.f32 %v8217, %v8771
    %v8773 = vpop.f32.mrf.mxu0
    %8774 = vmatprep.mubr.f32.mxu0 %v6931
    %8775 = vmatmul.mubr.f32.gmra.mxu0 %v6930
    %v8776 = vpop.f32.mrf.mxu0
    %v8777 = vadd.f32 %v8222, %v8776
    %v8778 = vpop.f32.mrf.mxu0
    %8779 = vmatprep.mubr.f32.mxu0 %v6940
    %8780 = vmatmul.mubr.f32.gmra.mxu0 %v6939
    %v8781 = vpop.f32.mrf.mxu0
    %v8782 = vadd.f32 %v8227, %v8781
    %v8783 = vpop.f32.mrf.mxu0
    %8784 = vmatprep.mubr.f32.mxu0 %v6949
    %8785 = vmatmul.mubr.f32.gmra.mxu0 %v6948
    %v8786 = vpop.f32.mrf.mxu0
    %v8787 = vadd.f32 %v8232, %v8786
    %v8788 = vpop.f32.mrf.mxu0
    %8789 = vmatprep.mubr.f32.mxu0 %v6958
    %8790 = vmatmul.mubr.f32.gmra.mxu0 %v6957
    %v8791 = vpop.f32.mrf.mxu0
    %v8792 = vadd.f32 %v8237, %v8791
    %v8793 = vpop.f32.mrf.mxu0
    %8794 = vmatprep.mubr.f32.mxu0 %v6967
    %8795 = vmatmul.mubr.f32.gmra.mxu0 %v6966
    %v8796 = vpop.f32.mrf.mxu0
    %v8797 = vadd.f32 %v8242, %v8796
    %v8798 = vpop.f32.mrf.mxu0
    %8799 = vmatprep.mubr.f32.mxu0 %v6976
    %8800 = vmatmul.mubr.f32.gmra.mxu0 %v6975
    %v8801 = vpop.f32.mrf.mxu0
    %v8802 = vadd.f32 %v8247, %v8801
    %v8803 = vpop.f32.mrf.mxu0
    %8804 = vmatprep.mubr.f32.mxu0 %v6985
    %8805 = vmatmul.mubr.f32.gmra.mxu0 %v6984
    %v8806 = vpop.f32.mrf.mxu0
    %v8807 = vadd.f32 %v8252, %v8806
    %v8808 = vpop.f32.mrf.mxu0
    %8809 = vmatprep.mubr.f32.mxu0 %v6994
    %8810 = vmatmul.mubr.f32.gmra.mxu0 %v6993
    %v8811 = vpop.f32.mrf.mxu0
    %v8812 = vadd.f32 %v8257, %v8811
    %v8813 = vpop.f32.mrf.mxu0
    %8814 = vmatprep.mubr.f32.mxu0 %v7003
    %8815 = vmatmul.mubr.f32.gmra.mxu0 %v7002
    %v8816 = vpop.f32.mrf.mxu0
    %v8817 = vadd.f32 %v8262, %v8816
    %v8818 = vpop.f32.mrf.mxu0
    %8819 = vmatprep.mubr.f32.mxu0 %v7012
    %8820 = vmatmul.mubr.f32.gmra.mxu0 %v7011
    %v8821 = vpop.f32.mrf.mxu0
    %v8822 = vadd.f32 %v8267, %v8821
    %v8823 = vpop.f32.mrf.mxu0
    %8824 = vdwg.mxu0
    %8825 = vmatprep.subr.mxu0 0.0
    %8826 = vmatpush1.msra.mxu0 %v7127
    %8827 = vmatprep.subr.mxu0 0.0
    %8828 = vmatpush1.msra.mxu0 %v7126
    %8829 = vmatprep.subr.mxu0 0.0
    %8830 = vmatpush1.msra.mxu0 %v7125
    %8831 = vmatprep.subr.mxu0 0.0
    %8832 = vmatpush1.msra.mxu0 %v7124
    %8833 = vmatprep.subr.mxu0 0.0
    %8834 = vmatpush1.msra.mxu0 %v7123
    %8835 = vmatprep.subr.mxu0 0.0
    %8836 = vmatpush1.msra.mxu0 %v7122
    %8837 = vmatprep.subr.mxu0 0.0
    %8838 = vmatpush1.msra.mxu0 %v7121
    %8839 = vmatprep.subr.mxu0 0.0
    %8840 = vmatpush1.msra.mxu0 %v7120
    %8841 = vmatprep.subr.mxu0 0.0
    %8842 = vmatpush1.msra.mxu0 %v7119
    %8843 = vmatprep.subr.mxu0 0.0
    %8844 = vmatpush1.msra.mxu0 %v7118
    %8845 = vmatprep.subr.mxu0 0.0
    %8846 = vmatpush1.msra.mxu0 %v7117
    %8847 = vmatprep.subr.mxu0 0.0
    %8848 = vmatpush1.msra.mxu0 %v7116
    %8849 = vmatprep.subr.mxu0 0.0
    %8850 = vmatpush1.msra.mxu0 %v7115
    %8851 = vmatprep.subr.mxu0 0.0
    %8852 = vmatpush1.msra.mxu0 %v7114
    %8853 = vmatprep.subr.mxu0 0.0
    %8854 = vmatpush1.msra.mxu0 %v7113
    %8855 = vmatprep.subr.mxu0 0.0
    %8856 = vmatpush1.msra.mxu0 %v7112
    %8857 = vmatprep.subr.mxu0 0.0
    %8858 = vmatpush2.msra.mxu0 %v7143
    %8859 = vmatprep.subr.mxu0 0.0
    %8860 = vmatpush2.msra.mxu0 %v7142
    %8861 = vmatprep.subr.mxu0 0.0
    %8862 = vmatpush2.msra.mxu0 %v7141
    %8863 = vmatprep.subr.mxu0 0.0
    %8864 = vmatpush2.msra.mxu0 %v7140
    %8865 = vmatprep.subr.mxu0 0.0
    %8866 = vmatpush2.msra.mxu0 %v7139
    %8867 = vmatprep.subr.mxu0 0.0
    %8868 = vmatpush2.msra.mxu0 %v7138
    %8869 = vmatprep.subr.mxu0 0.0
    %8870 = vmatpush2.msra.mxu0 %v7137
    %8871 = vmatprep.subr.mxu0 0.0
    %8872 = vmatpush2.msra.mxu0 %v7136
    %8873 = vmatprep.subr.mxu0 0.0
    %8874 = vmatpush2.msra.mxu0 %v7135
    %8875 = vmatprep.subr.mxu0 0.0
    %8876 = vmatpush2.msra.mxu0 %v7134
    %8877 = vmatprep.subr.mxu0 0.0
    %8878 = vmatpush2.msra.mxu0 %v7133
    %8879 = vmatprep.subr.mxu0 0.0
    %8880 = vmatpush2.msra.mxu0 %v7132
    %8881 = vmatprep.subr.mxu0 0.0
    %8882 = vmatpush2.msra.mxu0 %v7131
    %8883 = vmatprep.subr.mxu0 0.0
    %8884 = vmatpush2.msra.mxu0 %v7130
    %8885 = vmatprep.subr.mxu0 0.0
    %8886 = vmatpush2.msra.mxu0 %v7129
    %8887 = vmatprep.subr.mxu0 0.0
    %8888 = vmatpush2.msra.mxu0 %v7128
    %8889 = vmatprep.mubr.f32.mxu0 %v6141
    %8890 = vmatmul.mubr.f32.gmra.mxu0 %v6140
    %v8891 = vpop.f32.mrf.mxu0
    %v8892 = vadd.f32 %v8337, %v8891
    %v8893 = vpop.f32.mrf.mxu0
    %8894 = vmatprep.mubr.f32.mxu0 %v6150
    %8895 = vmatmul.mubr.f32.gmra.mxu0 %v6149
    %v8896 = vpop.f32.mrf.mxu0
    %v8897 = vadd.f32 %v8342, %v8896
    %v8898 = vpop.f32.mrf.mxu0
    %8899 = vmatprep.mubr.f32.mxu0 %v6159
    %8900 = vmatmul.mubr.f32.gmra.mxu0 %v6158
    %v8901 = vpop.f32.mrf.mxu0
    %v8902 = vadd.f32 %v8347, %v8901
    %v8903 = vpop.f32.mrf.mxu0
    %8904 = vmatprep.mubr.f32.mxu0 %v6168
    %8905 = vmatmul.mubr.f32.gmra.mxu0 %v6167
    %v8906 = vpop.f32.mrf.mxu0
    %v8907 = vadd.f32 %v8352, %v8906
    %v8908 = vpop.f32.mrf.mxu0
    %8909 = vmatprep.mubr.f32.mxu0 %v6177
    %8910 = vmatmul.mubr.f32.gmra.mxu0 %v6176
    %v8911 = vpop.f32.mrf.mxu0
    %v8912 = vadd.f32 %v8357, %v8911
    %v8913 = vpop.f32.mrf.mxu0
    %8914 = vmatprep.mubr.f32.mxu0 %v6186
    %8915 = vmatmul.mubr.f32.gmra.mxu0 %v6185
    %v8916 = vpop.f32.mrf.mxu0
    %v8917 = vadd.f32 %v8362, %v8916
    %v8918 = vpop.f32.mrf.mxu0
    %8919 = vmatprep.mubr.f32.mxu0 %v6195
    %8920 = vmatmul.mubr.f32.gmra.mxu0 %v6194
    %v8921 = vpop.f32.mrf.mxu0
    %v8922 = vadd.f32 %v8367, %v8921
    %v8923 = vpop.f32.mrf.mxu0
    %8924 = vmatprep.mubr.f32.mxu0 %v6204
    %8925 = vmatmul.mubr.f32.gmra.mxu0 %v6203
    %v8926 = vpop.f32.mrf.mxu0
    %v8927 = vadd.f32 %v8372, %v8926
    %v8928 = vpop.f32.mrf.mxu0
    %8929 = vmatprep.mubr.f32.mxu0 %v6213
    %8930 = vmatmul.mubr.f32.gmra.mxu0 %v6212
    %v8931 = vpop.f32.mrf.mxu0
    %v8932 = vadd.f32 %v8377, %v8931
    %v8933 = vpop.f32.mrf.mxu0
    %8934 = vmatprep.mubr.f32.mxu0 %v6222
    %8935 = vmatmul.mubr.f32.gmra.mxu0 %v6221
    %v8936 = vpop.f32.mrf.mxu0
    %v8937 = vadd.f32 %v8382, %v8936
    %v8938 = vpop.f32.mrf.mxu0
    %8939 = vmatprep.mubr.f32.mxu0 %v6231
    %8940 = vmatmul.mubr.f32.gmra.mxu0 %v6230
    %v8941 = vpop.f32.mrf.mxu0
    %v8942 = vadd.f32 %v8387, %v8941
    %v8943 = vpop.f32.mrf.mxu0
    %8944 = vmatprep.mubr.f32.mxu0 %v6240
    %8945 = vmatmul.mubr.f32.gmra.mxu0 %v6239
    %v8946 = vpop.f32.mrf.mxu0
    %v8947 = vadd.f32 %v8392, %v8946
    %v8948 = vpop.f32.mrf.mxu0
    %8949 = vmatprep.mubr.f32.mxu0 %v6249
    %8950 = vmatmul.mubr.f32.gmra.mxu0 %v6248
    %v8951 = vpop.f32.mrf.mxu0
    %v8952 = vadd.f32 %v8397, %v8951
    %v8953 = vpop.f32.mrf.mxu0
    %8954 = vmatprep.mubr.f32.mxu0 %v6258
    %8955 = vmatmul.mubr.f32.gmra.mxu0 %v6257
    %v8956 = vpop.f32.mrf.mxu0
    %v8957 = vadd.f32 %v8402, %v8956
    %v8958 = vpop.f32.mrf.mxu0
    %8959 = vmatprep.mubr.f32.mxu0 %v6267
    %8960 = vmatmul.mubr.f32.gmra.mxu0 %v6266
    %v8961 = vpop.f32.mrf.mxu0
    %v8962 = vadd.f32 %v8407, %v8961
    %v8963 = vpop.f32.mrf.mxu0
    %8964 = vmatprep.mubr.f32.mxu0 %v6276
    %8965 = vmatmul.mubr.f32.gmra.mxu0 %v6275
    %v8966 = vpop.f32.mrf.mxu0
    %v8967 = vadd.f32 %v8412, %v8966
    %v8968 = vpop.f32.mrf.mxu0
    %8969 = vmatprep.mubr.f32.mxu0 %v6285
    %8970 = vmatmul.mubr.f32.gmra.mxu0 %v6284
    %v8971 = vpop.f32.mrf.mxu0
    %v8972 = vadd.f32 %v8417, %v8971
    %v8973 = vpop.f32.mrf.mxu0
    %8974 = vmatprep.mubr.f32.mxu0 %v6294
    %8975 = vmatmul.mubr.f32.gmra.mxu0 %v6293
    %v8976 = vpop.f32.mrf.mxu0
    %v8977 = vadd.f32 %v8422, %v8976
    %v8978 = vpop.f32.mrf.mxu0
    %8979 = vmatprep.mubr.f32.mxu0 %v6303
    %8980 = vmatmul.mubr.f32.gmra.mxu0 %v6302
    %v8981 = vpop.f32.mrf.mxu0
    %v8982 = vadd.f32 %v8427, %v8981
    %v8983 = vpop.f32.mrf.mxu0
    %8984 = vmatprep.mubr.f32.mxu0 %v6312
    %8985 = vmatmul.mubr.f32.gmra.mxu0 %v6311
    %v8986 = vpop.f32.mrf.mxu0
    %v8987 = vadd.f32 %v8432, %v8986
    %v8988 = vpop.f32.mrf.mxu0
    %8989 = vmatprep.mubr.f32.mxu0 %v6321
    %8990 = vmatmul.mubr.f32.gmra.mxu0 %v6320
    %v8991 = vpop.f32.mrf.mxu0
    %v8992 = vadd.f32 %v8437, %v8991
    %v8993 = vpop.f32.mrf.mxu0
    %8994 = vmatprep.mubr.f32.mxu0 %v6330
    %8995 = vmatmul.mubr.f32.gmra.mxu0 %v6329
    %v8996 = vpop.f32.mrf.mxu0
    %v8997 = vadd.f32 %v8442, %v8996
    %v8998 = vpop.f32.mrf.mxu0
    %8999 = vmatprep.mubr.f32.mxu0 %v6339
    %9000 = vmatmul.mubr.f32.gmra.mxu0 %v6338
    %v9001 = vpop.f32.mrf.mxu0
    %v9002 = vadd.f32 %v8447, %v9001
    %v9003 = vpop.f32.mrf.mxu0
    %9004 = vmatprep.mubr.f32.mxu0 %v6348
    %9005 = vmatmul.mubr.f32.gmra.mxu0 %v6347
    %v9006 = vpop.f32.mrf.mxu0
    %v9007 = vadd.f32 %v8452, %v9006
    %v9008 = vpop.f32.mrf.mxu0
    %9009 = vmatprep.mubr.f32.mxu0 %v6357
    %9010 = vmatmul.mubr.f32.gmra.mxu0 %v6356
    %v9011 = vpop.f32.mrf.mxu0
    %v9012 = vadd.f32 %v8457, %v9011
    %v9013 = vpop.f32.mrf.mxu0
    %9014 = vmatprep.mubr.f32.mxu0 %v6366
    %9015 = vmatmul.mubr.f32.gmra.mxu0 %v6365
    %v9016 = vpop.f32.mrf.mxu0
    %v9017 = vadd.f32 %v8462, %v9016
    %v9018 = vpop.f32.mrf.mxu0
    %9019 = vmatprep.mubr.f32.mxu0 %v6375
    %9020 = vmatmul.mubr.f32.gmra.mxu0 %v6374
    %v9021 = vpop.f32.mrf.mxu0
    %v9022 = vadd.f32 %v8467, %v9021
    %v9023 = vpop.f32.mrf.mxu0
    %9024 = vmatprep.mubr.f32.mxu0 %v6384
    %9025 = vmatmul.mubr.f32.gmra.mxu0 %v6383
    %v9026 = vpop.f32.mrf.mxu0
    %v9027 = vadd.f32 %v8472, %v9026
    %v9028 = vpop.f32.mrf.mxu0
    %9029 = vmatprep.mubr.f32.mxu0 %v6393
    %9030 = vmatmul.mubr.f32.gmra.mxu0 %v6392
    %v9031 = vpop.f32.mrf.mxu0
    %v9032 = vadd.f32 %v8477, %v9031
    %v9033 = vpop.f32.mrf.mxu0
    %9034 = vmatprep.mubr.f32.mxu0 %v6402
    %9035 = vmatmul.mubr.f32.gmra.mxu0 %v6401
    %v9036 = vpop.f32.mrf.mxu0
    %v9037 = vadd.f32 %v8482, %v9036
    %v9038 = vpop.f32.mrf.mxu0
    %9039 = vmatprep.mubr.f32.mxu0 %v6411
    %9040 = vmatmul.mubr.f32.gmra.mxu0 %v6410
    %v9041 = vpop.f32.mrf.mxu0
    %v9042 = vadd.f32 %v8487, %v9041
    %v9043 = vpop.f32.mrf.mxu0
    %9044 = vmatprep.mubr.f32.mxu0 %v6420
    %9045 = vmatmul.mubr.f32.gmra.mxu0 %v6419
    %v9046 = vpop.f32.mrf.mxu0
    %v9047 = vadd.f32 %v8492, %v9046
    %v9048 = vpop.f32.mrf.mxu0
    %9049 = vmatprep.mubr.f32.mxu0 %v6429
    %9050 = vmatmul.mubr.f32.gmra.mxu0 %v6428
    %v9051 = vpop.f32.mrf.mxu0
    %v9052 = vadd.f32 %v8497, %v9051
    %v9053 = vpop.f32.mrf.mxu0
    %9054 = vmatprep.mubr.f32.mxu0 %v6438
    %9055 = vmatmul.mubr.f32.gmra.mxu0 %v6437
    %v9056 = vpop.f32.mrf.mxu0
    %v9057 = vadd.f32 %v8502, %v9056
    %v9058 = vpop.f32.mrf.mxu0
    %9059 = vmatprep.mubr.f32.mxu0 %v6447
    %9060 = vmatmul.mubr.f32.gmra.mxu0 %v6446
    %v9061 = vpop.f32.mrf.mxu0
    %v9062 = vadd.f32 %v8507, %v9061
    %v9063 = vpop.f32.mrf.mxu0
    %9064 = vmatprep.mubr.f32.mxu0 %v6456
    %9065 = vmatmul.mubr.f32.gmra.mxu0 %v6455
    %v9066 = vpop.f32.mrf.mxu0
    %v9067 = vadd.f32 %v8512, %v9066
    %v9068 = vpop.f32.mrf.mxu0
    %9069 = vmatprep.mubr.f32.mxu0 %v6465
    %9070 = vmatmul.mubr.f32.gmra.mxu0 %v6464
    %v9071 = vpop.f32.mrf.mxu0
    %v9072 = vadd.f32 %v8517, %v9071
    %v9073 = vpop.f32.mrf.mxu0
    %9074 = vmatprep.mubr.f32.mxu0 %v6474
    %9075 = vmatmul.mubr.f32.gmra.mxu0 %v6473
    %v9076 = vpop.f32.mrf.mxu0
    %v9077 = vadd.f32 %v8522, %v9076
    %v9078 = vpop.f32.mrf.mxu0
    %9079 = vmatprep.mubr.f32.mxu0 %v6483
    %9080 = vmatmul.mubr.f32.gmra.mxu0 %v6482
    %v9081 = vpop.f32.mrf.mxu0
    %v9082 = vadd.f32 %v8527, %v9081
    %v9083 = vpop.f32.mrf.mxu0
    %9084 = vmatprep.mubr.f32.mxu0 %v6492
    %9085 = vmatmul.mubr.f32.gmra.mxu0 %v6491
    %v9086 = vpop.f32.mrf.mxu0
    %v9087 = vadd.f32 %v8532, %v9086
    %v9088 = vpop.f32.mrf.mxu0
    %9089 = vmatprep.mubr.f32.mxu0 %v6501
    %9090 = vmatmul.mubr.f32.gmra.mxu0 %v6500
    %v9091 = vpop.f32.mrf.mxu0
    %v9092 = vadd.f32 %v8537, %v9091
    %v9093 = vpop.f32.mrf.mxu0
    %9094 = vmatprep.mubr.f32.mxu0 %v6510
    %9095 = vmatmul.mubr.f32.gmra.mxu0 %v6509
    %v9096 = vpop.f32.mrf.mxu0
    %v9097 = vadd.f32 %v8542, %v9096
    %v9098 = vpop.f32.mrf.mxu0
    %9099 = vmatprep.mubr.f32.mxu0 %v6519
    %9100 = vmatmul.mubr.f32.gmra.mxu0 %v6518
    %v9101 = vpop.f32.mrf.mxu0
    %v9102 = vadd.f32 %v8547, %v9101
    %v9103 = vpop.f32.mrf.mxu0
    %9104 = vmatprep.mubr.f32.mxu0 %v6528
    %9105 = vmatmul.mubr.f32.gmra.mxu0 %v6527
    %v9106 = vpop.f32.mrf.mxu0
    %v9107 = vadd.f32 %v8552, %v9106
    %v9108 = vpop.f32.mrf.mxu0
    %9109 = vmatprep.mubr.f32.mxu0 %v6537
    %9110 = vmatmul.mubr.f32.gmra.mxu0 %v6536
    %v9111 = vpop.f32.mrf.mxu0
    %v9112 = vadd.f32 %v8557, %v9111
    %v9113 = vpop.f32.mrf.mxu0
    %9114 = vmatprep.mubr.f32.mxu0 %v6546
    %9115 = vmatmul.mubr.f32.gmra.mxu0 %v6545
    %v9116 = vpop.f32.mrf.mxu0
    %v9117 = vadd.f32 %v8562, %v9116
    %v9118 = vpop.f32.mrf.mxu0
    %9119 = vmatprep.mubr.f32.mxu0 %v6555
    %9120 = vmatmul.mubr.f32.gmra.mxu0 %v6554
    %v9121 = vpop.f32.mrf.mxu0
    %v9122 = vadd.f32 %v8567, %v9121
    %v9123 = vpop.f32.mrf.mxu0
    %9124 = vmatprep.mubr.f32.mxu0 %v6564
    %9125 = vmatmul.mubr.f32.gmra.mxu0 %v6563
    %v9126 = vpop.f32.mrf.mxu0
    %v9127 = vadd.f32 %v8572, %v9126
    %v9128 = vpop.f32.mrf.mxu0
    %9129 = vmatprep.mubr.f32.mxu0 %v6573
    %9130 = vmatmul.mubr.f32.gmra.mxu0 %v6572
    %v9131 = vpop.f32.mrf.mxu0
    %v9132 = vadd.f32 %v8577, %v9131
    %v9133 = vpop.f32.mrf.mxu0
    %9134 = vmatprep.mubr.f32.mxu0 %v6582
    %9135 = vmatmul.mubr.f32.gmra.mxu0 %v6581
    %v9136 = vpop.f32.mrf.mxu0
    %v9137 = vadd.f32 %v8582, %v9136
    %v9138 = vpop.f32.mrf.mxu0
    %9139 = vmatprep.mubr.f32.mxu0 %v6591
    %9140 = vmatmul.mubr.f32.gmra.mxu0 %v6590
    %v9141 = vpop.f32.mrf.mxu0
    %v9142 = vadd.f32 %v8587, %v9141
    %v9143 = vpop.f32.mrf.mxu0
    %9144 = vmatprep.mubr.f32.mxu0 %v6600
    %9145 = vmatmul.mubr.f32.gmra.mxu0 %v6599
    %v9146 = vpop.f32.mrf.mxu0
    %v9147 = vadd.f32 %v8592, %v9146
    %v9148 = vpop.f32.mrf.mxu0
    %9149 = vmatprep.mubr.f32.mxu0 %v6609
    %9150 = vmatmul.mubr.f32.gmra.mxu0 %v6608
    %v9151 = vpop.f32.mrf.mxu0
    %v9152 = vadd.f32 %v8597, %v9151
    %v9153 = vpop.f32.mrf.mxu0
    %9154 = vmatprep.mubr.f32.mxu0 %v6618
    %9155 = vmatmul.mubr.f32.gmra.mxu0 %v6617
    %v9156 = vpop.f32.mrf.mxu0
    %v9157 = vadd.f32 %v8602, %v9156
    %v9158 = vpop.f32.mrf.mxu0
    %9159 = vmatprep.mubr.f32.mxu0 %v6627
    %9160 = vmatmul.mubr.f32.gmra.mxu0 %v6626
    %v9161 = vpop.f32.mrf.mxu0
    %v9162 = vadd.f32 %v8607, %v9161
    %v9163 = vpop.f32.mrf.mxu0
    %9164 = vmatprep.mubr.f32.mxu0 %v6636
    %9165 = vmatmul.mubr.f32.gmra.mxu0 %v6635
    %v9166 = vpop.f32.mrf.mxu0
    %v9167 = vadd.f32 %v8612, %v9166
    %v9168 = vpop.f32.mrf.mxu0
    %9169 = vmatprep.mubr.f32.mxu0 %v6645
    %9170 = vmatmul.mubr.f32.gmra.mxu0 %v6644
    %v9171 = vpop.f32.mrf.mxu0
    %v9172 = vadd.f32 %v8617, %v9171
    %v9173 = vpop.f32.mrf.mxu0
    %9174 = vmatprep.mubr.f32.mxu0 %v6654
    %9175 = vmatmul.mubr.f32.gmra.mxu0 %v6653
    %v9176 = vpop.f32.mrf.mxu0
    %v9177 = vadd.f32 %v8622, %v9176
    %v9178 = vpop.f32.mrf.mxu0
    %9179 = vmatprep.mubr.f32.mxu0 %v6663
    %9180 = vmatmul.mubr.f32.gmra.mxu0 %v6662
    %v9181 = vpop.f32.mrf.mxu0
    %v9182 = vadd.f32 %v8627, %v9181
    %v9183 = vpop.f32.mrf.mxu0
    %9184 = vmatprep.mubr.f32.mxu0 %v6672
    %9185 = vmatmul.mubr.f32.gmra.mxu0 %v6671
    %v9186 = vpop.f32.mrf.mxu0
    %v9187 = vadd.f32 %v8632, %v9186
    %v9188 = vpop.f32.mrf.mxu0
    %9189 = vmatprep.mubr.f32.mxu0 %v6681
    %9190 = vmatmul.mubr.f32.gmra.mxu0 %v6680
    %v9191 = vpop.f32.mrf.mxu0
    %v9192 = vadd.f32 %v8637, %v9191
    %v9193 = vpop.f32.mrf.mxu0
    %9194 = vmatprep.mubr.f32.mxu0 %v6690
    %9195 = vmatmul.mubr.f32.gmra.mxu0 %v6689
    %v9196 = vpop.f32.mrf.mxu0
    %v9197 = vadd.f32 %v8642, %v9196
    %v9198 = vpop.f32.mrf.mxu0
    %9199 = vmatprep.mubr.f32.mxu0 %v6699
    %9200 = vmatmul.mubr.f32.gmra.mxu0 %v6698
    %v9201 = vpop.f32.mrf.mxu0
    %v9202 = vadd.f32 %v8647, %v9201
    %v9203 = vpop.f32.mrf.mxu0
    %9204 = vmatprep.mubr.f32.mxu0 %v6708
    %9205 = vmatmul.mubr.f32.gmra.mxu0 %v6707
    %v9206 = vpop.f32.mrf.mxu0
    %v9207 = vadd.f32 %v8652, %v9206
    %v9208 = vpop.f32.mrf.mxu0
    %9209 = vmatprep.mubr.f32.mxu0 %v6717
    %9210 = vmatmul.mubr.f32.gmra.mxu0 %v6716
    %v9211 = vpop.f32.mrf.mxu0
    %v9212 = vadd.f32 %v8657, %v9211
    %v9213 = vpop.f32.mrf.mxu0
    %9214 = vmatprep.mubr.f32.mxu0 %v6726
    %9215 = vmatmul.mubr.f32.gmra.mxu0 %v6725
    %v9216 = vpop.f32.mrf.mxu0
    %v9217 = vadd.f32 %v8662, %v9216
    %v9218 = vpop.f32.mrf.mxu0
    %9219 = vmatprep.mubr.f32.mxu0 %v6735
    %9220 = vmatmul.mubr.f32.gmra.mxu0 %v6734
    %v9221 = vpop.f32.mrf.mxu0
    %v9222 = vadd.f32 %v8667, %v9221
    %v9223 = vpop.f32.mrf.mxu0
    %9224 = vmatprep.mubr.f32.mxu0 %v6744
    %9225 = vmatmul.mubr.f32.gmra.mxu0 %v6743
    %v9226 = vpop.f32.mrf.mxu0
    %v9227 = vadd.f32 %v8672, %v9226
    %v9228 = vpop.f32.mrf.mxu0
    %9229 = vmatprep.mubr.f32.mxu0 %v6753
    %9230 = vmatmul.mubr.f32.gmra.mxu0 %v6752
    %v9231 = vpop.f32.mrf.mxu0
    %v9232 = vadd.f32 %v8677, %v9231
    %v9233 = vpop.f32.mrf.mxu0
    %9234 = vmatprep.mubr.f32.mxu0 %v6762
    %9235 = vmatmul.mubr.f32.gmra.mxu0 %v6761
    %v9236 = vpop.f32.mrf.mxu0
    %v9237 = vadd.f32 %v8682, %v9236
    %v9238 = vpop.f32.mrf.mxu0
    %9239 = vmatprep.mubr.f32.mxu0 %v6771
    %9240 = vmatmul.mubr.f32.gmra.mxu0 %v6770
    %v9241 = vpop.f32.mrf.mxu0
    %v9242 = vadd.f32 %v8687, %v9241
    %v9243 = vpop.f32.mrf.mxu0
    %9244 = vmatprep.mubr.f32.mxu0 %v6780
    %9245 = vmatmul.mubr.f32.gmra.mxu0 %v6779
    %v9246 = vpop.f32.mrf.mxu0
    %v9247 = vadd.f32 %v8692, %v9246
    %v9248 = vpop.f32.mrf.mxu0
    %9249 = vmatprep.mubr.f32.mxu0 %v6789
    %9250 = vmatmul.mubr.f32.gmra.mxu0 %v6788
    %v9251 = vpop.f32.mrf.mxu0
    %v9252 = vadd.f32 %v8697, %v9251
    %v9253 = vpop.f32.mrf.mxu0
    %9254 = vmatprep.mubr.f32.mxu0 %v6798
    %9255 = vmatmul.mubr.f32.gmra.mxu0 %v6797
    %v9256 = vpop.f32.mrf.mxu0
    %v9257 = vadd.f32 %v8702, %v9256
    %v9258 = vpop.f32.mrf.mxu0
    %9259 = vmatprep.mubr.f32.mxu0 %v6807
    %9260 = vmatmul.mubr.f32.gmra.mxu0 %v6806
    %v9261 = vpop.f32.mrf.mxu0
    %v9262 = vadd.f32 %v8707, %v9261
    %v9263 = vpop.f32.mrf.mxu0
    %9264 = vmatprep.mubr.f32.mxu0 %v6816
    %9265 = vmatmul.mubr.f32.gmra.mxu0 %v6815
    %v9266 = vpop.f32.mrf.mxu0
    %v9267 = vadd.f32 %v8712, %v9266
    %v9268 = vpop.f32.mrf.mxu0
    %9269 = vmatprep.mubr.f32.mxu0 %v6825
    %9270 = vmatmul.mubr.f32.gmra.mxu0 %v6824
    %v9271 = vpop.f32.mrf.mxu0
    %v9272 = vadd.f32 %v8717, %v9271
    %v9273 = vpop.f32.mrf.mxu0
    %9274 = vmatprep.mubr.f32.mxu0 %v6834
    %9275 = vmatmul.mubr.f32.gmra.mxu0 %v6833
    %v9276 = vpop.f32.mrf.mxu0
    %v9277 = vadd.f32 %v8722, %v9276
    %v9278 = vpop.f32.mrf.mxu0
    %9279 = vmatprep.mubr.f32.mxu0 %v6843
    %9280 = vmatmul.mubr.f32.gmra.mxu0 %v6842
    %v9281 = vpop.f32.mrf.mxu0
    %v9282 = vadd.f32 %v8727, %v9281
    %v9283 = vpop.f32.mrf.mxu0
    %9284 = vmatprep.mubr.f32.mxu0 %v6852
    %9285 = vmatmul.mubr.f32.gmra.mxu0 %v6851
    %v9286 = vpop.f32.mrf.mxu0
    %v9287 = vadd.f32 %v8732, %v9286
    %v9288 = vpop.f32.mrf.mxu0
    %9289 = vmatprep.mubr.f32.mxu0 %v6861
    %9290 = vmatmul.mubr.f32.gmra.mxu0 %v6860
    %v9291 = vpop.f32.mrf.mxu0
    %v9292 = vadd.f32 %v8737, %v9291
    %v9293 = vpop.f32.mrf.mxu0
    %9294 = vmatprep.mubr.f32.mxu0 %v6870
    %9295 = vmatmul.mubr.f32.gmra.mxu0 %v6869
    %v9296 = vpop.f32.mrf.mxu0
    %v9297 = vadd.f32 %v8742, %v9296
    %v9298 = vpop.f32.mrf.mxu0
    %9299 = vmatprep.mubr.f32.mxu0 %v6879
    %9300 = vmatmul.mubr.f32.gmra.mxu0 %v6878
    %v9301 = vpop.f32.mrf.mxu0
    %v9302 = vadd.f32 %v8747, %v9301
    %v9303 = vpop.f32.mrf.mxu0
    %9304 = vmatprep.mubr.f32.mxu0 %v6888
    %9305 = vmatmul.mubr.f32.gmra.mxu0 %v6887
    %v9306 = vpop.f32.mrf.mxu0
    %v9307 = vadd.f32 %v8752, %v9306
    %v9308 = vpop.f32.mrf.mxu0
    %9309 = vmatprep.mubr.f32.mxu0 %v6897
    %9310 = vmatmul.mubr.f32.gmra.mxu0 %v6896
    %v9311 = vpop.f32.mrf.mxu0
    %v9312 = vadd.f32 %v8757, %v9311
    %v9313 = vpop.f32.mrf.mxu0
    %9314 = vmatprep.mubr.f32.mxu0 %v6906
    %9315 = vmatmul.mubr.f32.gmra.mxu0 %v6905
    %v9316 = vpop.f32.mrf.mxu0
    %v9317 = vadd.f32 %v8762, %v9316
    %v9318 = vpop.f32.mrf.mxu0
    %9319 = vmatprep.mubr.f32.mxu0 %v6915
    %9320 = vmatmul.mubr.f32.gmra.mxu0 %v6914
    %v9321 = vpop.f32.mrf.mxu0
    %v9322 = vadd.f32 %v8767, %v9321
    %v9323 = vpop.f32.mrf.mxu0
    %9324 = vmatprep.mubr.f32.mxu0 %v6924
    %9325 = vmatmul.mubr.f32.gmra.mxu0 %v6923
    %v9326 = vpop.f32.mrf.mxu0
    %v9327 = vadd.f32 %v8772, %v9326
    %v9328 = vpop.f32.mrf.mxu0
    %9329 = vmatprep.mubr.f32.mxu0 %v6933
    %9330 = vmatmul.mubr.f32.gmra.mxu0 %v6932
    %v9331 = vpop.f32.mrf.mxu0
    %v9332 = vadd.f32 %v8777, %v9331
    %v9333 = vpop.f32.mrf.mxu0
    %9334 = vmatprep.mubr.f32.mxu0 %v6942
    %9335 = vmatmul.mubr.f32.gmra.mxu0 %v6941
    %v9336 = vpop.f32.mrf.mxu0
    %v9337 = vadd.f32 %v8782, %v9336
    %v9338 = vpop.f32.mrf.mxu0
    %9339 = vmatprep.mubr.f32.mxu0 %v6951
    %9340 = vmatmul.mubr.f32.gmra.mxu0 %v6950
    %v9341 = vpop.f32.mrf.mxu0
    %v9342 = vadd.f32 %v8787, %v9341
    %v9343 = vpop.f32.mrf.mxu0
    %9344 = vmatprep.mubr.f32.mxu0 %v6960
    %9345 = vmatmul.mubr.f32.gmra.mxu0 %v6959
    %v9346 = vpop.f32.mrf.mxu0
    %v9347 = vadd.f32 %v8792, %v9346
    %v9348 = vpop.f32.mrf.mxu0
    %9349 = vmatprep.mubr.f32.mxu0 %v6969
    %9350 = vmatmul.mubr.f32.gmra.mxu0 %v6968
    %v9351 = vpop.f32.mrf.mxu0
    %v9352 = vadd.f32 %v8797, %v9351
    %v9353 = vpop.f32.mrf.mxu0
    %9354 = vmatprep.mubr.f32.mxu0 %v6978
    %9355 = vmatmul.mubr.f32.gmra.mxu0 %v6977
    %v9356 = vpop.f32.mrf.mxu0
    %v9357 = vadd.f32 %v8802, %v9356
    %v9358 = vpop.f32.mrf.mxu0
    %9359 = vmatprep.mubr.f32.mxu0 %v6987
    %9360 = vmatmul.mubr.f32.gmra.mxu0 %v6986
    %v9361 = vpop.f32.mrf.mxu0
    %v9362 = vadd.f32 %v8807, %v9361
    %v9363 = vpop.f32.mrf.mxu0
    %9364 = vmatprep.mubr.f32.mxu0 %v6996
    %9365 = vmatmul.mubr.f32.gmra.mxu0 %v6995
    %v9366 = vpop.f32.mrf.mxu0
    %v9367 = vadd.f32 %v8812, %v9366
    %v9368 = vpop.f32.mrf.mxu0
    %9369 = vmatprep.mubr.f32.mxu0 %v7005
    %9370 = vmatmul.mubr.f32.gmra.mxu0 %v7004
    %v9371 = vpop.f32.mrf.mxu0
    %v9372 = vadd.f32 %v8817, %v9371
    %v9373 = vpop.f32.mrf.mxu0
    %9374 = vmatprep.mubr.f32.mxu0 %v7014
    %9375 = vmatmul.mubr.f32.gmra.mxu0 %v7013
    %v9376 = vpop.f32.mrf.mxu0
    %v9377 = vadd.f32 %v8822, %v9376
    %v9378 = vpop.f32.mrf.mxu0
    %9379 = vdwg.mxu0
    %9380 = vmatprep.subr.mxu0 0.0
    %9381 = vmatpush1.msra.mxu0 %v7159
    %9382 = vmatprep.subr.mxu0 0.0
    %9383 = vmatpush1.msra.mxu0 %v7158
    %9384 = vmatprep.subr.mxu0 0.0
    %9385 = vmatpush1.msra.mxu0 %v7157
    %9386 = vmatprep.subr.mxu0 0.0
    %9387 = vmatpush1.msra.mxu0 %v7156
    %9388 = vmatprep.subr.mxu0 0.0
    %9389 = vmatpush1.msra.mxu0 %v7155
    %9390 = vmatprep.subr.mxu0 0.0
    %9391 = vmatpush1.msra.mxu0 %v7154
    %9392 = vmatprep.subr.mxu0 0.0
    %9393 = vmatpush1.msra.mxu0 %v7153
    %9394 = vmatprep.subr.mxu0 0.0
    %9395 = vmatpush1.msra.mxu0 %v7152
    %9396 = vmatprep.subr.mxu0 0.0
    %9397 = vmatpush1.msra.mxu0 %v7151
    %9398 = vmatprep.subr.mxu0 0.0
    %9399 = vmatpush1.msra.mxu0 %v7150
    %9400 = vmatprep.subr.mxu0 0.0
    %9401 = vmatpush1.msra.mxu0 %v7149
    %9402 = vmatprep.subr.mxu0 0.0
    %9403 = vmatpush1.msra.mxu0 %v7148
    %9404 = vmatprep.subr.mxu0 0.0
    %9405 = vmatpush1.msra.mxu0 %v7147
    %9406 = vmatprep.subr.mxu0 0.0
    %9407 = vmatpush1.msra.mxu0 %v7146
    %9408 = vmatprep.subr.mxu0 0.0
    %9409 = vmatpush1.msra.mxu0 %v7145
    %9410 = vmatprep.subr.mxu0 0.0
    %9411 = vmatpush1.msra.mxu0 %v7144
    %9412 = vmatprep.subr.mxu0 0.0
    %9413 = vmatpush2.msra.mxu0 0.0
    %9414 = vmatprep.subr.mxu0 0.0
    %9415 = vmatpush2.msra.mxu0 0.0
    %9416 = vmatprep.subr.mxu0 0.0
    %9417 = vmatpush2.msra.mxu0 0.0
    %9418 = vmatprep.subr.mxu0 0.0
    %9419 = vmatpush2.msra.mxu0 0.0
    %9420 = vmatprep.subr.mxu0 0.0
    %9421 = vmatpush2.msra.mxu0 0.0
    %9422 = vmatprep.subr.mxu0 0.0
    %9423 = vmatpush2.msra.mxu0 0.0
    %9424 = vmatprep.subr.mxu0 0.0
    %9425 = vmatpush2.msra.mxu0 0.0
    %9426 = vmatprep.subr.mxu0 0.0
    %9427 = vmatpush2.msra.mxu0 0.0
    %9428 = vmatprep.subr.mxu0 0.0
    %9429 = vmatpush2.msra.mxu0 0.0
    %9430 = vmatprep.subr.mxu0 0.0
    %9431 = vmatpush2.msra.mxu0 0.0
    %9432 = vmatprep.subr.mxu0 0.0
    %9433 = vmatpush2.msra.mxu0 0.0
    %9434 = vmatprep.subr.mxu0 0.0
    %9435 = vmatpush2.msra.mxu0 0.0
    %9436 = vmatprep.subr.mxu0 0.0
    %9437 = vmatpush2.msra.mxu0 0.0
    %9438 = vmatprep.subr.mxu0 0.0
    %9439 = vmatpush2.msra.mxu0 0.0
    %9440 = vmatprep.subr.mxu0 0.0
    %9441 = vmatpush2.msra.mxu0 0.0
    %9442 = vmatprep.subr.mxu0 0.0
    %9443 = vmatpush2.msra.mxu0 0.0
    %9444 = vmatprep.mubr.f32.mxu0 0.0
    %9445 = vmatmul.mubr.f32.gmra.mxu0 %v6142
    %v9446 = vpop.f32.mrf.mxu0
    %v9447 = vadd.f32 %v8892, %v9446
    %v9448 = vpop.f32.mrf.mxu0
    %9449 = vmatprep.mubr.f32.mxu0 0.0
    %9450 = vmatmul.mubr.f32.gmra.mxu0 %v6151
    %v9451 = vpop.f32.mrf.mxu0
    %v9452 = vadd.f32 %v8897, %v9451
    %v9453 = vpop.f32.mrf.mxu0
    %9454 = vmatprep.mubr.f32.mxu0 0.0
    %9455 = vmatmul.mubr.f32.gmra.mxu0 %v6160
    %v9456 = vpop.f32.mrf.mxu0
    %v9457 = vadd.f32 %v8902, %v9456
    %v9458 = vpop.f32.mrf.mxu0
    %9459 = vmatprep.mubr.f32.mxu0 0.0
    %9460 = vmatmul.mubr.f32.gmra.mxu0 %v6169
    %v9461 = vpop.f32.mrf.mxu0
    %v9462 = vadd.f32 %v8907, %v9461
    %v9463 = vpop.f32.mrf.mxu0
    %9464 = vmatprep.mubr.f32.mxu0 0.0
    %9465 = vmatmul.mubr.f32.gmra.mxu0 %v6178
    %v9466 = vpop.f32.mrf.mxu0
    %v9467 = vadd.f32 %v8912, %v9466
    %v9468 = vpop.f32.mrf.mxu0
    %9469 = vmatprep.mubr.f32.mxu0 0.0
    %9470 = vmatmul.mubr.f32.gmra.mxu0 %v6187
    %v9471 = vpop.f32.mrf.mxu0
    %v9472 = vadd.f32 %v8917, %v9471
    %v9473 = vpop.f32.mrf.mxu0
    %9474 = vmatprep.mubr.f32.mxu0 0.0
    %9475 = vmatmul.mubr.f32.gmra.mxu0 %v6196
    %v9476 = vpop.f32.mrf.mxu0
    %v9477 = vadd.f32 %v8922, %v9476
    %v9478 = vpop.f32.mrf.mxu0
    %9479 = vmatprep.mubr.f32.mxu0 0.0
    %9480 = vmatmul.mubr.f32.gmra.mxu0 %v6205
    %v9481 = vpop.f32.mrf.mxu0
    %v9482 = vadd.f32 %v8927, %v9481
    %v9483 = vpop.f32.mrf.mxu0
    %9484 = vmatprep.mubr.f32.mxu0 0.0
    %9485 = vmatmul.mubr.f32.gmra.mxu0 %v6214
    %v9486 = vpop.f32.mrf.mxu0
    %v9487 = vadd.f32 %v8932, %v9486
    %v9488 = vpop.f32.mrf.mxu0
    %9489 = vmatprep.mubr.f32.mxu0 0.0
    %9490 = vmatmul.mubr.f32.gmra.mxu0 %v6223
    %v9491 = vpop.f32.mrf.mxu0
    %v9492 = vadd.f32 %v8937, %v9491
    %v9493 = vpop.f32.mrf.mxu0
    %9494 = vmatprep.mubr.f32.mxu0 0.0
    %9495 = vmatmul.mubr.f32.gmra.mxu0 %v6232
    %v9496 = vpop.f32.mrf.mxu0
    %v9497 = vadd.f32 %v8942, %v9496
    %v9498 = vpop.f32.mrf.mxu0
    %9499 = vmatprep.mubr.f32.mxu0 0.0
    %9500 = vmatmul.mubr.f32.gmra.mxu0 %v6241
    %v9501 = vpop.f32.mrf.mxu0
    %v9502 = vadd.f32 %v8947, %v9501
    %v9503 = vpop.f32.mrf.mxu0
    %9504 = vmatprep.mubr.f32.mxu0 0.0
    %9505 = vmatmul.mubr.f32.gmra.mxu0 %v6250
    %v9506 = vpop.f32.mrf.mxu0
    %v9507 = vadd.f32 %v8952, %v9506
    %v9508 = vpop.f32.mrf.mxu0
    %9509 = vmatprep.mubr.f32.mxu0 0.0
    %9510 = vmatmul.mubr.f32.gmra.mxu0 %v6259
    %v9511 = vpop.f32.mrf.mxu0
    %v9512 = vadd.f32 %v8957, %v9511
    %v9513 = vpop.f32.mrf.mxu0
    %9514 = vmatprep.mubr.f32.mxu0 0.0
    %9515 = vmatmul.mubr.f32.gmra.mxu0 %v6268
    %v9516 = vpop.f32.mrf.mxu0
    %v9517 = vadd.f32 %v8962, %v9516
    %v9518 = vpop.f32.mrf.mxu0
    %9519 = vmatprep.mubr.f32.mxu0 0.0
    %9520 = vmatmul.mubr.f32.gmra.mxu0 %v6277
    %v9521 = vpop.f32.mrf.mxu0
    %v9522 = vadd.f32 %v8967, %v9521
    %v9523 = vpop.f32.mrf.mxu0
    %9524 = vmatprep.mubr.f32.mxu0 0.0
    %9525 = vmatmul.mubr.f32.gmra.mxu0 %v6286
    %v9526 = vpop.f32.mrf.mxu0
    %v9527 = vadd.f32 %v8972, %v9526
    %v9528 = vpop.f32.mrf.mxu0
    %9529 = vmatprep.mubr.f32.mxu0 0.0
    %9530 = vmatmul.mubr.f32.gmra.mxu0 %v6295
    %v9531 = vpop.f32.mrf.mxu0
    %v9532 = vadd.f32 %v8977, %v9531
    %v9533 = vpop.f32.mrf.mxu0
    %9534 = vmatprep.mubr.f32.mxu0 0.0
    %9535 = vmatmul.mubr.f32.gmra.mxu0 %v6304
    %v9536 = vpop.f32.mrf.mxu0
    %v9537 = vadd.f32 %v8982, %v9536
    %v9538 = vpop.f32.mrf.mxu0
    %9539 = vmatprep.mubr.f32.mxu0 0.0
    %9540 = vmatmul.mubr.f32.gmra.mxu0 %v6313
    %v9541 = vpop.f32.mrf.mxu0
    %v9542 = vadd.f32 %v8987, %v9541
    %v9543 = vpop.f32.mrf.mxu0
    %9544 = vmatprep.mubr.f32.mxu0 0.0
    %9545 = vmatmul.mubr.f32.gmra.mxu0 %v6322
    %v9546 = vpop.f32.mrf.mxu0
    %v9547 = vadd.f32 %v8992, %v9546
    %v9548 = vpop.f32.mrf.mxu0
    %9549 = vmatprep.mubr.f32.mxu0 0.0
    %9550 = vmatmul.mubr.f32.gmra.mxu0 %v6331
    %v9551 = vpop.f32.mrf.mxu0
    %v9552 = vadd.f32 %v8997, %v9551
    %v9553 = vpop.f32.mrf.mxu0
    %9554 = vmatprep.mubr.f32.mxu0 0.0
    %9555 = vmatmul.mubr.f32.gmra.mxu0 %v6340
    %v9556 = vpop.f32.mrf.mxu0
    %v9557 = vadd.f32 %v9002, %v9556
    %v9558 = vpop.f32.mrf.mxu0
    %9559 = vmatprep.mubr.f32.mxu0 0.0
    %9560 = vmatmul.mubr.f32.gmra.mxu0 %v6349
    %v9561 = vpop.f32.mrf.mxu0
    %v9562 = vadd.f32 %v9007, %v9561
    %v9563 = vpop.f32.mrf.mxu0
    %9564 = vmatprep.mubr.f32.mxu0 0.0
    %9565 = vmatmul.mubr.f32.gmra.mxu0 %v6358
    %v9566 = vpop.f32.mrf.mxu0
    %v9567 = vadd.f32 %v9012, %v9566
    %v9568 = vpop.f32.mrf.mxu0
    %9569 = vmatprep.mubr.f32.mxu0 0.0
    %9570 = vmatmul.mubr.f32.gmra.mxu0 %v6367
    %v9571 = vpop.f32.mrf.mxu0
    %v9572 = vadd.f32 %v9017, %v9571
    %v9573 = vpop.f32.mrf.mxu0
    %9574 = vmatprep.mubr.f32.mxu0 0.0
    %9575 = vmatmul.mubr.f32.gmra.mxu0 %v6376
    %v9576 = vpop.f32.mrf.mxu0
    %v9577 = vadd.f32 %v9022, %v9576
    %v9578 = vpop.f32.mrf.mxu0
    %9579 = vmatprep.mubr.f32.mxu0 0.0
    %9580 = vmatmul.mubr.f32.gmra.mxu0 %v6385
    %v9581 = vpop.f32.mrf.mxu0
    %v9582 = vadd.f32 %v9027, %v9581
    %v9583 = vpop.f32.mrf.mxu0
    %9584 = vmatprep.mubr.f32.mxu0 0.0
    %9585 = vmatmul.mubr.f32.gmra.mxu0 %v6394
    %v9586 = vpop.f32.mrf.mxu0
    %v9587 = vadd.f32 %v9032, %v9586
    %v9588 = vpop.f32.mrf.mxu0
    %9589 = vmatprep.mubr.f32.mxu0 0.0
    %9590 = vmatmul.mubr.f32.gmra.mxu0 %v6403
    %v9591 = vpop.f32.mrf.mxu0
    %v9592 = vadd.f32 %v9037, %v9591
    %v9593 = vpop.f32.mrf.mxu0
    %9594 = vmatprep.mubr.f32.mxu0 0.0
    %9595 = vmatmul.mubr.f32.gmra.mxu0 %v6412
    %v9596 = vpop.f32.mrf.mxu0
    %v9597 = vadd.f32 %v9042, %v9596
    %v9598 = vpop.f32.mrf.mxu0
    %9599 = vmatprep.mubr.f32.mxu0 0.0
    %9600 = vmatmul.mubr.f32.gmra.mxu0 %v6421
    %v9601 = vpop.f32.mrf.mxu0
    %v9602 = vadd.f32 %v9047, %v9601
    %v9603 = vpop.f32.mrf.mxu0
    %9604 = vmatprep.mubr.f32.mxu0 0.0
    %9605 = vmatmul.mubr.f32.gmra.mxu0 %v6430
    %v9606 = vpop.f32.mrf.mxu0
    %v9607 = vadd.f32 %v9052, %v9606
    %v9608 = vpop.f32.mrf.mxu0
    %9609 = vmatprep.mubr.f32.mxu0 0.0
    %9610 = vmatmul.mubr.f32.gmra.mxu0 %v6439
    %v9611 = vpop.f32.mrf.mxu0
    %v9612 = vadd.f32 %v9057, %v9611
    %v9613 = vpop.f32.mrf.mxu0
    %9614 = vmatprep.mubr.f32.mxu0 0.0
    %9615 = vmatmul.mubr.f32.gmra.mxu0 %v6448
    %v9616 = vpop.f32.mrf.mxu0
    %v9617 = vadd.f32 %v9062, %v9616
    %v9618 = vpop.f32.mrf.mxu0
    %9619 = vmatprep.mubr.f32.mxu0 0.0
    %9620 = vmatmul.mubr.f32.gmra.mxu0 %v6457
    %v9621 = vpop.f32.mrf.mxu0
    %v9622 = vadd.f32 %v9067, %v9621
    %v9623 = vpop.f32.mrf.mxu0
    %9624 = vmatprep.mubr.f32.mxu0 0.0
    %9625 = vmatmul.mubr.f32.gmra.mxu0 %v6466
    %v9626 = vpop.f32.mrf.mxu0
    %v9627 = vadd.f32 %v9072, %v9626
    %v9628 = vpop.f32.mrf.mxu0
    %9629 = vmatprep.mubr.f32.mxu0 0.0
    %9630 = vmatmul.mubr.f32.gmra.mxu0 %v6475
    %v9631 = vpop.f32.mrf.mxu0
    %v9632 = vadd.f32 %v9077, %v9631
    %v9633 = vpop.f32.mrf.mxu0
    %9634 = vmatprep.mubr.f32.mxu0 0.0
    %9635 = vmatmul.mubr.f32.gmra.mxu0 %v6484
    %v9636 = vpop.f32.mrf.mxu0
    %v9637 = vadd.f32 %v9082, %v9636
    %v9638 = vpop.f32.mrf.mxu0
    %9639 = vmatprep.mubr.f32.mxu0 0.0
    %9640 = vmatmul.mubr.f32.gmra.mxu0 %v6493
    %v9641 = vpop.f32.mrf.mxu0
    %v9642 = vadd.f32 %v9087, %v9641
    %v9643 = vpop.f32.mrf.mxu0
    %9644 = vmatprep.mubr.f32.mxu0 0.0
    %9645 = vmatmul.mubr.f32.gmra.mxu0 %v6502
    %v9646 = vpop.f32.mrf.mxu0
    %v9647 = vadd.f32 %v9092, %v9646
    %v9648 = vpop.f32.mrf.mxu0
    %9649 = vmatprep.mubr.f32.mxu0 0.0
    %9650 = vmatmul.mubr.f32.gmra.mxu0 %v6511
    %v9651 = vpop.f32.mrf.mxu0
    %v9652 = vadd.f32 %v9097, %v9651
    %v9653 = vpop.f32.mrf.mxu0
    %9654 = vmatprep.mubr.f32.mxu0 0.0
    %9655 = vmatmul.mubr.f32.gmra.mxu0 %v6520
    %v9656 = vpop.f32.mrf.mxu0
    %v9657 = vadd.f32 %v9102, %v9656
    %v9658 = vpop.f32.mrf.mxu0
    %9659 = vmatprep.mubr.f32.mxu0 0.0
    %9660 = vmatmul.mubr.f32.gmra.mxu0 %v6529
    %v9661 = vpop.f32.mrf.mxu0
    %v9662 = vadd.f32 %v9107, %v9661
    %v9663 = vpop.f32.mrf.mxu0
    %9664 = vmatprep.mubr.f32.mxu0 0.0
    %9665 = vmatmul.mubr.f32.gmra.mxu0 %v6538
    %v9666 = vpop.f32.mrf.mxu0
    %v9667 = vadd.f32 %v9112, %v9666
    %v9668 = vpop.f32.mrf.mxu0
    %9669 = vmatprep.mubr.f32.mxu0 0.0
    %9670 = vmatmul.mubr.f32.gmra.mxu0 %v6547
    %v9671 = vpop.f32.mrf.mxu0
    %v9672 = vadd.f32 %v9117, %v9671
    %v9673 = vpop.f32.mrf.mxu0
    %9674 = vmatprep.mubr.f32.mxu0 0.0
    %9675 = vmatmul.mubr.f32.gmra.mxu0 %v6556
    %v9676 = vpop.f32.mrf.mxu0
    %v9677 = vadd.f32 %v9122, %v9676
    %v9678 = vpop.f32.mrf.mxu0
    %9679 = vmatprep.mubr.f32.mxu0 0.0
    %9680 = vmatmul.mubr.f32.gmra.mxu0 %v6565
    %v9681 = vpop.f32.mrf.mxu0
    %v9682 = vadd.f32 %v9127, %v9681
    %v9683 = vpop.f32.mrf.mxu0
    %9684 = vmatprep.mubr.f32.mxu0 0.0
    %9685 = vmatmul.mubr.f32.gmra.mxu0 %v6574
    %v9686 = vpop.f32.mrf.mxu0
    %v9687 = vadd.f32 %v9132, %v9686
    %v9688 = vpop.f32.mrf.mxu0
    %9689 = vmatprep.mubr.f32.mxu0 0.0
    %9690 = vmatmul.mubr.f32.gmra.mxu0 %v6583
    %v9691 = vpop.f32.mrf.mxu0
    %v9692 = vadd.f32 %v9137, %v9691
    %v9693 = vpop.f32.mrf.mxu0
    %9694 = vmatprep.mubr.f32.mxu0 0.0
    %9695 = vmatmul.mubr.f32.gmra.mxu0 %v6592
    %v9696 = vpop.f32.mrf.mxu0
    %v9697 = vadd.f32 %v9142, %v9696
    %v9698 = vpop.f32.mrf.mxu0
    %9699 = vmatprep.mubr.f32.mxu0 0.0
    %9700 = vmatmul.mubr.f32.gmra.mxu0 %v6601
    %v9701 = vpop.f32.mrf.mxu0
    %v9702 = vadd.f32 %v9147, %v9701
    %v9703 = vpop.f32.mrf.mxu0
    %9704 = vmatprep.mubr.f32.mxu0 0.0
    %9705 = vmatmul.mubr.f32.gmra.mxu0 %v6610
    %v9706 = vpop.f32.mrf.mxu0
    %v9707 = vadd.f32 %v9152, %v9706
    %v9708 = vpop.f32.mrf.mxu0
    %9709 = vmatprep.mubr.f32.mxu0 0.0
    %9710 = vmatmul.mubr.f32.gmra.mxu0 %v6619
    %v9711 = vpop.f32.mrf.mxu0
    %v9712 = vadd.f32 %v9157, %v9711
    %v9713 = vpop.f32.mrf.mxu0
    %9714 = vmatprep.mubr.f32.mxu0 0.0
    %9715 = vmatmul.mubr.f32.gmra.mxu0 %v6628
    %v9716 = vpop.f32.mrf.mxu0
    %v9717 = vadd.f32 %v9162, %v9716
    %v9718 = vpop.f32.mrf.mxu0
    %9719 = vmatprep.mubr.f32.mxu0 0.0
    %9720 = vmatmul.mubr.f32.gmra.mxu0 %v6637
    %v9721 = vpop.f32.mrf.mxu0
    %v9722 = vadd.f32 %v9167, %v9721
    %v9723 = vpop.f32.mrf.mxu0
    %9724 = vmatprep.mubr.f32.mxu0 0.0
    %9725 = vmatmul.mubr.f32.gmra.mxu0 %v6646
    %v9726 = vpop.f32.mrf.mxu0
    %v9727 = vadd.f32 %v9172, %v9726
    %v9728 = vpop.f32.mrf.mxu0
    %9729 = vmatprep.mubr.f32.mxu0 0.0
    %9730 = vmatmul.mubr.f32.gmra.mxu0 %v6655
    %v9731 = vpop.f32.mrf.mxu0
    %v9732 = vadd.f32 %v9177, %v9731
    %v9733 = vpop.f32.mrf.mxu0
    %9734 = vmatprep.mubr.f32.mxu0 0.0
    %9735 = vmatmul.mubr.f32.gmra.mxu0 %v6664
    %v9736 = vpop.f32.mrf.mxu0
    %v9737 = vadd.f32 %v9182, %v9736
    %v9738 = vpop.f32.mrf.mxu0
    %9739 = vmatprep.mubr.f32.mxu0 0.0
    %9740 = vmatmul.mubr.f32.gmra.mxu0 %v6673
    %v9741 = vpop.f32.mrf.mxu0
    %v9742 = vadd.f32 %v9187, %v9741
    %v9743 = vpop.f32.mrf.mxu0
    %9744 = vmatprep.mubr.f32.mxu0 0.0
    %9745 = vmatmul.mubr.f32.gmra.mxu0 %v6682
    %v9746 = vpop.f32.mrf.mxu0
    %v9747 = vadd.f32 %v9192, %v9746
    %v9748 = vpop.f32.mrf.mxu0
    %9749 = vmatprep.mubr.f32.mxu0 0.0
    %9750 = vmatmul.mubr.f32.gmra.mxu0 %v6691
    %v9751 = vpop.f32.mrf.mxu0
    %v9752 = vadd.f32 %v9197, %v9751
    %v9753 = vpop.f32.mrf.mxu0
    %9754 = vmatprep.mubr.f32.mxu0 0.0
    %9755 = vmatmul.mubr.f32.gmra.mxu0 %v6700
    %v9756 = vpop.f32.mrf.mxu0
    %v9757 = vadd.f32 %v9202, %v9756
    %v9758 = vpop.f32.mrf.mxu0
    %9759 = vmatprep.mubr.f32.mxu0 0.0
    %9760 = vmatmul.mubr.f32.gmra.mxu0 %v6709
    %v9761 = vpop.f32.mrf.mxu0
    %v9762 = vadd.f32 %v9207, %v9761
    %v9763 = vpop.f32.mrf.mxu0
    %9764 = vmatprep.mubr.f32.mxu0 0.0
    %9765 = vmatmul.mubr.f32.gmra.mxu0 %v6718
    %v9766 = vpop.f32.mrf.mxu0
    %v9767 = vadd.f32 %v9212, %v9766
    %v9768 = vpop.f32.mrf.mxu0
    %9769 = vmatprep.mubr.f32.mxu0 0.0
    %9770 = vmatmul.mubr.f32.gmra.mxu0 %v6727
    %v9771 = vpop.f32.mrf.mxu0
    %v9772 = vadd.f32 %v9217, %v9771
    %v9773 = vpop.f32.mrf.mxu0
    %9774 = vmatprep.mubr.f32.mxu0 0.0
    %9775 = vmatmul.mubr.f32.gmra.mxu0 %v6736
    %v9776 = vpop.f32.mrf.mxu0
    %v9777 = vadd.f32 %v9222, %v9776
    %v9778 = vpop.f32.mrf.mxu0
    %9779 = vmatprep.mubr.f32.mxu0 0.0
    %9780 = vmatmul.mubr.f32.gmra.mxu0 %v6745
    %v9781 = vpop.f32.mrf.mxu0
    %v9782 = vadd.f32 %v9227, %v9781
    %v9783 = vpop.f32.mrf.mxu0
    %9784 = vmatprep.mubr.f32.mxu0 0.0
    %9785 = vmatmul.mubr.f32.gmra.mxu0 %v6754
    %v9786 = vpop.f32.mrf.mxu0
    %v9787 = vadd.f32 %v9232, %v9786
    %v9788 = vpop.f32.mrf.mxu0
    %9789 = vmatprep.mubr.f32.mxu0 0.0
    %9790 = vmatmul.mubr.f32.gmra.mxu0 %v6763
    %v9791 = vpop.f32.mrf.mxu0
    %v9792 = vadd.f32 %v9237, %v9791
    %v9793 = vpop.f32.mrf.mxu0
    %9794 = vmatprep.mubr.f32.mxu0 0.0
    %9795 = vmatmul.mubr.f32.gmra.mxu0 %v6772
    %v9796 = vpop.f32.mrf.mxu0
    %v9797 = vadd.f32 %v9242, %v9796
    %v9798 = vpop.f32.mrf.mxu0
    %9799 = vmatprep.mubr.f32.mxu0 0.0
    %9800 = vmatmul.mubr.f32.gmra.mxu0 %v6781
    %v9801 = vpop.f32.mrf.mxu0
    %v9802 = vadd.f32 %v9247, %v9801
    %v9803 = vpop.f32.mrf.mxu0
    %9804 = vmatprep.mubr.f32.mxu0 0.0
    %9805 = vmatmul.mubr.f32.gmra.mxu0 %v6790
    %v9806 = vpop.f32.mrf.mxu0
    %v9807 = vadd.f32 %v9252, %v9806
    %v9808 = vpop.f32.mrf.mxu0
    %9809 = vmatprep.mubr.f32.mxu0 0.0
    %9810 = vmatmul.mubr.f32.gmra.mxu0 %v6799
    %v9811 = vpop.f32.mrf.mxu0
    %v9812 = vadd.f32 %v9257, %v9811
    %v9813 = vpop.f32.mrf.mxu0
    %9814 = vmatprep.mubr.f32.mxu0 0.0
    %9815 = vmatmul.mubr.f32.gmra.mxu0 %v6808
    %v9816 = vpop.f32.mrf.mxu0
    %v9817 = vadd.f32 %v9262, %v9816
    %v9818 = vpop.f32.mrf.mxu0
    %9819 = vmatprep.mubr.f32.mxu0 0.0
    %9820 = vmatmul.mubr.f32.gmra.mxu0 %v6817
    %v9821 = vpop.f32.mrf.mxu0
    %v9822 = vadd.f32 %v9267, %v9821
    %v9823 = vpop.f32.mrf.mxu0
    %9824 = vmatprep.mubr.f32.mxu0 0.0
    %9825 = vmatmul.mubr.f32.gmra.mxu0 %v6826
    %v9826 = vpop.f32.mrf.mxu0
    %v9827 = vadd.f32 %v9272, %v9826
    %v9828 = vpop.f32.mrf.mxu0
    %9829 = vmatprep.mubr.f32.mxu0 0.0
    %9830 = vmatmul.mubr.f32.gmra.mxu0 %v6835
    %v9831 = vpop.f32.mrf.mxu0
    %v9832 = vadd.f32 %v9277, %v9831
    %v9833 = vpop.f32.mrf.mxu0
    %9834 = vmatprep.mubr.f32.mxu0 0.0
    %9835 = vmatmul.mubr.f32.gmra.mxu0 %v6844
    %v9836 = vpop.f32.mrf.mxu0
    %v9837 = vadd.f32 %v9282, %v9836
    %v9838 = vpop.f32.mrf.mxu0
    %9839 = vmatprep.mubr.f32.mxu0 0.0
    %9840 = vmatmul.mubr.f32.gmra.mxu0 %v6853
    %v9841 = vpop.f32.mrf.mxu0
    %v9842 = vadd.f32 %v9287, %v9841
    %v9843 = vpop.f32.mrf.mxu0
    %9844 = vmatprep.mubr.f32.mxu0 0.0
    %9845 = vmatmul.mubr.f32.gmra.mxu0 %v6862
    %v9846 = vpop.f32.mrf.mxu0
    %v9847 = vadd.f32 %v9292, %v9846
    %v9848 = vpop.f32.mrf.mxu0
    %9849 = vmatprep.mubr.f32.mxu0 0.0
    %9850 = vmatmul.mubr.f32.gmra.mxu0 %v6871
    %v9851 = vpop.f32.mrf.mxu0
    %v9852 = vadd.f32 %v9297, %v9851
    %v9853 = vpop.f32.mrf.mxu0
    %9854 = vmatprep.mubr.f32.mxu0 0.0
    %9855 = vmatmul.mubr.f32.gmra.mxu0 %v6880
    %v9856 = vpop.f32.mrf.mxu0
    %v9857 = vadd.f32 %v9302, %v9856
    %v9858 = vpop.f32.mrf.mxu0
    %9859 = vmatprep.mubr.f32.mxu0 0.0
    %9860 = vmatmul.mubr.f32.gmra.mxu0 %v6889
    %v9861 = vpop.f32.mrf.mxu0
    %v9862 = vadd.f32 %v9307, %v9861
    %v9863 = vpop.f32.mrf.mxu0
    %9864 = vmatprep.mubr.f32.mxu0 0.0
    %9865 = vmatmul.mubr.f32.gmra.mxu0 %v6898
    %v9866 = vpop.f32.mrf.mxu0
    %v9867 = vadd.f32 %v9312, %v9866
    %v9868 = vpop.f32.mrf.mxu0
    %9869 = vmatprep.mubr.f32.mxu0 0.0
    %9870 = vmatmul.mubr.f32.gmra.mxu0 %v6907
    %v9871 = vpop.f32.mrf.mxu0
    %v9872 = vadd.f32 %v9317, %v9871
    %v9873 = vpop.f32.mrf.mxu0
    %9874 = vmatprep.mubr.f32.mxu0 0.0
    %9875 = vmatmul.mubr.f32.gmra.mxu0 %v6916
    %v9876 = vpop.f32.mrf.mxu0
    %v9877 = vadd.f32 %v9322, %v9876
    %v9878 = vpop.f32.mrf.mxu0
    %9879 = vmatprep.mubr.f32.mxu0 0.0
    %9880 = vmatmul.mubr.f32.gmra.mxu0 %v6925
    %v9881 = vpop.f32.mrf.mxu0
    %v9882 = vadd.f32 %v9327, %v9881
    %v9883 = vpop.f32.mrf.mxu0
    %9884 = vmatprep.mubr.f32.mxu0 0.0
    %9885 = vmatmul.mubr.f32.gmra.mxu0 %v6934
    %v9886 = vpop.f32.mrf.mxu0
    %v9887 = vadd.f32 %v9332, %v9886
    %v9888 = vpop.f32.mrf.mxu0
    %9889 = vmatprep.mubr.f32.mxu0 0.0
    %9890 = vmatmul.mubr.f32.gmra.mxu0 %v6943
    %v9891 = vpop.f32.mrf.mxu0
    %v9892 = vadd.f32 %v9337, %v9891
    %v9893 = vpop.f32.mrf.mxu0
    %9894 = vmatprep.mubr.f32.mxu0 0.0
    %9895 = vmatmul.mubr.f32.gmra.mxu0 %v6952
    %v9896 = vpop.f32.mrf.mxu0
    %v9897 = vadd.f32 %v9342, %v9896
    %v9898 = vpop.f32.mrf.mxu0
    %9899 = vmatprep.mubr.f32.mxu0 0.0
    %9900 = vmatmul.mubr.f32.gmra.mxu0 %v6961
    %v9901 = vpop.f32.mrf.mxu0
    %v9902 = vadd.f32 %v9347, %v9901
    %v9903 = vpop.f32.mrf.mxu0
    %9904 = vmatprep.mubr.f32.mxu0 0.0
    %9905 = vmatmul.mubr.f32.gmra.mxu0 %v6970
    %v9906 = vpop.f32.mrf.mxu0
    %v9907 = vadd.f32 %v9352, %v9906
    %v9908 = vpop.f32.mrf.mxu0
    %9909 = vmatprep.mubr.f32.mxu0 0.0
    %9910 = vmatmul.mubr.f32.gmra.mxu0 %v6979
    %v9911 = vpop.f32.mrf.mxu0
    %v9912 = vadd.f32 %v9357, %v9911
    %v9913 = vpop.f32.mrf.mxu0
    %9914 = vmatprep.mubr.f32.mxu0 0.0
    %9915 = vmatmul.mubr.f32.gmra.mxu0 %v6988
    %v9916 = vpop.f32.mrf.mxu0
    %v9917 = vadd.f32 %v9362, %v9916
    %v9918 = vpop.f32.mrf.mxu0
    %9919 = vmatprep.mubr.f32.mxu0 0.0
    %9920 = vmatmul.mubr.f32.gmra.mxu0 %v6997
    %v9921 = vpop.f32.mrf.mxu0
    %v9922 = vadd.f32 %v9367, %v9921
    %v9923 = vpop.f32.mrf.mxu0
    %9924 = vmatprep.mubr.f32.mxu0 0.0
    %9925 = vmatmul.mubr.f32.gmra.mxu0 %v7006
    %v9926 = vpop.f32.mrf.mxu0
    %v9927 = vadd.f32 %v9372, %v9926
    %v9928 = vpop.f32.mrf.mxu0
    %9929 = vmatprep.mubr.f32.mxu0 0.0
    %9930 = vmatmul.mubr.f32.gmra.mxu0 %v7015
    %v9931 = vpop.f32.mrf.mxu0
    %v9932 = vadd.f32 %v9377, %v9931
    %v9933 = vpop.f32.mrf.mxu0
    %9934 = vdwg.mxu0
    %9935 = vst.msk [vmem:[#allocation4] sm:$0xff] %vm116, %v9447
    %9936 = vst.msk [vmem:[#allocation4 + $0x8] sm:$0xff] %vm116, %v9452
    %9937 = vst.msk [vmem:[#allocation4 + $0x10] sm:$0xff] %vm116, %v9457
    %9938 = vst.msk [vmem:[#allocation4 + $0x18] sm:$0xff] %vm116, %v9462
    %9939 = vst.msk [vmem:[#allocation4 + $0x20] sm:$0xff] %vm116, %v9467
    %9940 = vst.msk [vmem:[#allocation4 + $0x28] sm:$0xff] %vm116, %v9472
    %9941 = vst.msk [vmem:[#allocation4 + $0x30] sm:$0xff] %vm116, %v9477
    %9942 = vst.msk [vmem:[#allocation4 + $0x38] sm:$0xff] %vm116, %v9482
    %9943 = vst.msk [vmem:[#allocation4 + $0x40] sm:$0xff] %vm116, %v9487
    %9944 = vst.msk [vmem:[#allocation4 + $0x48] sm:$0xff] %vm116, %v9492
    %9945 = vst.msk [vmem:[#allocation4 + $0x50] sm:$0xff] %vm116, %v9497
    %9946 = vst.msk [vmem:[#allocation4 + $0x58] sm:$0xff] %vm116, %v9502
    %9947 = vst.msk [vmem:[#allocation4 + $0x60] sm:$0xff] %vm116, %v9507
    %9948 = vst.msk [vmem:[#allocation4 + $0x68] sm:$0xff] %vm116, %v9512
    %9949 = vst.msk [vmem:[#allocation4 + $0x70] sm:$0xff] %vm116, %v9517
    %9950 = vst.msk [vmem:[#allocation4 + $0x78] sm:$0xff] %vm116, %v9522
    %9951 = vst.msk [vmem:[#allocation4 + $0x80] sm:$0xff] %vm116, %v9527
    %9952 = vst.msk [vmem:[#allocation4 + $0x88] sm:$0xff] %vm116, %v9532
    %9953 = vst.msk [vmem:[#allocation4 + $0x90] sm:$0xff] %vm116, %v9537
    %9954 = vst.msk [vmem:[#allocation4 + $0x98] sm:$0xff] %vm116, %v9542
    %9955 = vst.msk [vmem:[#allocation4 + $0xa0] sm:$0xff] %vm116, %v9547
    %9956 = vst.msk [vmem:[#allocation4 + $0xa8] sm:$0xff] %vm116, %v9552
    %9957 = vst.msk [vmem:[#allocation4 + $0xb0] sm:$0xff] %vm116, %v9557
    %9958 = vst.msk [vmem:[#allocation4 + $0xb8] sm:$0xff] %vm116, %v9562
    %9959 = vst.msk [vmem:[#allocation4 + $0xc0] sm:$0xff] %vm116, %v9567
    %9960 = vst.msk [vmem:[#allocation4 + $0xc8] sm:$0xff] %vm116, %v9572
    %9961 = vst.msk [vmem:[#allocation4 + $0xd0] sm:$0xff] %vm116, %v9577
    %9962 = vst.msk [vmem:[#allocation4 + $0xd8] sm:$0xff] %vm116, %v9582
    %9963 = vst.msk [vmem:[#allocation4 + $0xe0] sm:$0xff] %vm116, %v9587
    %9964 = vst.msk [vmem:[#allocation4 + $0xe8] sm:$0xff] %vm116, %v9592
    %9965 = vst.msk [vmem:[#allocation4 + $0xf0] sm:$0xff] %vm116, %v9597
    %9966 = vst.msk [vmem:[#allocation4 + $0xf8] sm:$0xff] %vm116, %v9602
    %9967 = vst.msk [vmem:[#allocation4 + $0x100] sm:$0xff] %vm116, %v9607
    %9968 = vst.msk [vmem:[#allocation4 + $0x108] sm:$0xff] %vm116, %v9612
    %9969 = vst.msk [vmem:[#allocation4 + $0x110] sm:$0xff] %vm116, %v9617
    %9970 = vst.msk [vmem:[#allocation4 + $0x118] sm:$0xff] %vm116, %v9622
    %9971 = vst.msk [vmem:[#allocation4 + $0x120] sm:$0xff] %vm116, %v9627
    %9972 = vst.msk [vmem:[#allocation4 + $0x128] sm:$0xff] %vm116, %v9632
    %9973 = vst.msk [vmem:[#allocation4 + $0x130] sm:$0xff] %vm116, %v9637
    %9974 = vst.msk [vmem:[#allocation4 + $0x138] sm:$0xff] %vm116, %v9642
    %9975 = vst.msk [vmem:[#allocation4 + $0x140] sm:$0xff] %vm116, %v9647
    %9976 = vst.msk [vmem:[#allocation4 + $0x148] sm:$0xff] %vm116, %v9652
    %9977 = vst.msk [vmem:[#allocation4 + $0x150] sm:$0xff] %vm116, %v9657
    %9978 = vst.msk [vmem:[#allocation4 + $0x158] sm:$0xff] %vm116, %v9662
    %9979 = vst.msk [vmem:[#allocation4 + $0x160] sm:$0xff] %vm116, %v9667
    %9980 = vst.msk [vmem:[#allocation4 + $0x168] sm:$0xff] %vm116, %v9672
    %9981 = vst.msk [vmem:[#allocation4 + $0x170] sm:$0xff] %vm116, %v9677
    %9982 = vst.msk [vmem:[#allocation4 + $0x178] sm:$0xff] %vm116, %v9682
    %9983 = vst.msk [vmem:[#allocation4 + $0x180] sm:$0xff] %vm116, %v9687
    %9984 = vst.msk [vmem:[#allocation4 + $0x188] sm:$0xff] %vm116, %v9692
    %9985 = vst.msk [vmem:[#allocation4 + $0x190] sm:$0xff] %vm116, %v9697
    %9986 = vst.msk [vmem:[#allocation4 + $0x198] sm:$0xff] %vm116, %v9702
    %9987 = vst.msk [vmem:[#allocation4 + $0x1a0] sm:$0xff] %vm116, %v9707
    %9988 = vst.msk [vmem:[#allocation4 + $0x1a8] sm:$0xff] %vm116, %v9712
    %9989 = vst.msk [vmem:[#allocation4 + $0x1b0] sm:$0xff] %vm116, %v9717
    %9990 = vst.msk [vmem:[#allocation4 + $0x1b8] sm:$0xff] %vm116, %v9722
    %9991 = vst.msk [vmem:[#allocation4 + $0x1c0] sm:$0xff] %vm116, %v9727
    %9992 = vst.msk [vmem:[#allocation4 + $0x1c8] sm:$0xff] %vm116, %v9732
    %9993 = vst.msk [vmem:[#allocation4 + $0x1d0] sm:$0xff] %vm116, %v9737
    %9994 = vst.msk [vmem:[#allocation4 + $0x1d8] sm:$0xff] %vm116, %v9742
    %9995 = vst.msk [vmem:[#allocation4 + $0x1e0] sm:$0xff] %vm116, %v9747
    %9996 = vst.msk [vmem:[#allocation4 + $0x1e8] sm:$0xff] %vm116, %v9752
    %9997 = vst.msk [vmem:[#allocation4 + $0x1f0] sm:$0xff] %vm116, %v9757
    %9998 = vst.msk [vmem:[#allocation4 + $0x1f8] sm:$0xff] %vm116, %v9762
    %9999 = vst.msk [vmem:[#allocation4 + $0x200] sm:$0xff] %vm116, %v9767
    %10000 = vst.msk [vmem:[#allocation4 + $0x208] sm:$0xff] %vm116, %v9772
    %10001 = vst.msk [vmem:[#allocation4 + $0x210] sm:$0xff] %vm116, %v9777
    %10002 = vst.msk [vmem:[#allocation4 + $0x218] sm:$0xff] %vm116, %v9782
    %10003 = vst.msk [vmem:[#allocation4 + $0x220] sm:$0xff] %vm116, %v9787
    %10004 = vst.msk [vmem:[#allocation4 + $0x228] sm:$0xff] %vm116, %v9792
    %10005 = vst.msk [vmem:[#allocation4 + $0x230] sm:$0xff] %vm116, %v9797
    %10006 = vst.msk [vmem:[#allocation4 + $0x238] sm:$0xff] %vm116, %v9802
    %10007 = vst.msk [vmem:[#allocation4 + $0x240] sm:$0xff] %vm116, %v9807
    %10008 = vst.msk [vmem:[#allocation4 + $0x248] sm:$0xff] %vm116, %v9812
    %10009 = vst.msk [vmem:[#allocation4 + $0x250] sm:$0xff] %vm116, %v9817
    %10010 = vst.msk [vmem:[#allocation4 + $0x258] sm:$0xff] %vm116, %v9822
    %10011 = vst.msk [vmem:[#allocation4 + $0x260] sm:$0xff] %vm116, %v9827
    %10012 = vst.msk [vmem:[#allocation4 + $0x268] sm:$0xff] %vm116, %v9832
    %10013 = vst.msk [vmem:[#allocation4 + $0x270] sm:$0xff] %vm116, %v9837
    %10014 = vst.msk [vmem:[#allocation4 + $0x278] sm:$0xff] %vm116, %v9842
    %10015 = vst.msk [vmem:[#allocation4 + $0x280] sm:$0xff] %vm116, %v9847
    %10016 = vst.msk [vmem:[#allocation4 + $0x288] sm:$0xff] %vm116, %v9852
    %10017 = vst.msk [vmem:[#allocation4 + $0x290] sm:$0xff] %vm116, %v9857
    %10018 = vst.msk [vmem:[#allocation4 + $0x298] sm:$0xff] %vm116, %v9862
    %10019 = vst.msk [vmem:[#allocation4 + $0x2a0] sm:$0xff] %vm116, %v9867
    %10020 = vst.msk [vmem:[#allocation4 + $0x2a8] sm:$0xff] %vm116, %v9872
    %10021 = vst.msk [vmem:[#allocation4 + $0x2b0] sm:$0xff] %vm116, %v9877
    %10022 = vst.msk [vmem:[#allocation4 + $0x2b8] sm:$0xff] %vm116, %v9882
    %10023 = vst.msk [vmem:[#allocation4 + $0x2c0] sm:$0xff] %vm116, %v9887
    %10024 = vst.msk [vmem:[#allocation4 + $0x2c8] sm:$0xff] %vm116, %v9892
    %10025 = vst.msk [vmem:[#allocation4 + $0x2d0] sm:$0xff] %vm116, %v9897
    %10026 = vst.msk [vmem:[#allocation4 + $0x2d8] sm:$0xff] %vm116, %v9902
    %10027 = vst.msk [vmem:[#allocation4 + $0x2e0] sm:$0xff] %vm116, %v9907
    %10028 = vst.msk [vmem:[#allocation4 + $0x2e8] sm:$0xff] %vm116, %v9912
    %10029 = vst.msk [vmem:[#allocation4 + $0x2f0] sm:$0xff] %vm116, %v9917
    %10030 = vst.msk [vmem:[#allocation4 + $0x2f8] sm:$0xff] %vm116, %v9922
    %10031 = vst.msk [vmem:[#allocation4 + $0x300] sm:$0xff] %vm116, %v9927
    %10032 = vst.msk [vmem:[#allocation4 + $0x308] sm:$0xff] %vm116, %v9932
    // Predicated region
    $region18: #{bn_relu_gconv.1} parent=1 // pred_check
      _
    $region19: #{bn_relu_gconv.1} parent=1 // pred_check_branch
      %10034 = sbr.rel (0) target = $region21
    $region20: #{bn_relu_gconv.1} parent=1 // pred_region
      %s10036 = ssub.s32 12544, 12544
      %10037 = vsyncadd [#allocation5], %s10036
      %s10038 = sshll.u32 [#allocation4], 4
      %s10039 = int_to_ptr.vmem [resolvable:$true] %s10038
      %10044 = dma.vmem_to_hbm [thread:$0]  %s10039, 12544, %s4, [#allocation5], 128, 128, 8
    $region21: #{bn_relu_gconv.1} parent=1 // pred_fallthru
      _
    // Predicated region
    $region22: #{bn_relu_gconv.1} parent=1 // pred_check
      _
    $region23: #{bn_relu_gconv.1} parent=1 // pred_check_branch
      %10046 = sbr.rel (0) target = $region25
    $region24: #{bn_relu_gconv.1} parent=1 // pred_region
      %10047 = dma.done [#allocation5], 12544
    $region25: #{bn_relu_gconv.1} parent=1 // pred_fallthru
      _
    %10048 = vsyncpa [#allocation5], 1

</llo_original>
